<compile_context>
chip_gen: v6e
topology: v6e:2x2x1
jax: 0.10.0
libtpu: 0.0.40
codegen_flags: <defaults>
</compile_context>

<pallas_src>
import functools

import numpy as np
import jax
import jax.numpy as jnp
from jax.experimental import pallas as pl
from jax.experimental.pallas import tpu as pltpu


# ----------------------------- fused Pallas kernel ---------------------------
def _encoder_fused_kernel(x_ref,
                          s0_ref, m0_ref, b0_ref,
                          s1_ref, m1_ref, b1_ref,
                          m2_ref, b2_ref,
                          o_ref, *, batch):
    """All three conv+ELU layers for the whole (sublane-stacked) batch.

    Activation layout per layer: (rows, W*Cin) where rows stack batch/output
    rows.  Layers 0-1: rows = S @ h (tap-row gather), then K tap GEMMs against
    the weight matrices M[kh] and a tree-add.  Layer 2: taps are contiguous
    static row blocks of layer-1's (OH-major) output, so no selection matmul.
    """
    prec = jax.lax.Precision.HIGHEST

    def _dot(a, b):
        return jnp.dot(a, b, preferred_element_type=jnp.float32, precision=prec)

    def _tree_sum(terms):
        # Balanced add tree -> independent partial sums instead of a serial
        # acc += chain (overlaps MXU result pops with VPU adds).
        while len(terms) > 1:
            nxt = [terms[i] + terms[i + 1] for i in range(0, len(terms) - 1, 2)]
            if len(terms) % 2:
                nxt.append(terms[-1])
            terms = nxt
        return terms[0]

    def _elu(a):
        # ELU(alpha=1); exp(min(x,0)) avoids overflow on the positive branch.
        return jnp.where(a > 0.0, a, jnp.exp(jnp.minimum(a, 0.0)) - 1.0)

    h = x_ref[...]                                         # (B*H, W*Cin) f32

    # ---- layers 0 and 1: selection GEMM + K tap GEMMs ----
    for s_ref, m_ref, b_ref in ((s0_ref, m0_ref, b0_ref),
                                (s1_ref, m1_ref, b1_ref)):
        K = m_ref.shape[0]                                 # kernel height
        R = s_ref.shape[0] // K                            # rows per tap slab
        N = m_ref.shape[2]                                 # OW * Cout
        rows = _dot(s_ref[...], h)                         # (K*R, W*Cin)
        dots = [_dot(rows[kh * R:(kh + 1) * R], m_ref[kh]) for kh in range(K)]
        acc = jnp.broadcast_to(b_ref[...], (R, N)) + _tree_sum(dots)
        h = _elu(acc)

    # ---- layer 2: 1x1 spatial output, taps are contiguous row blocks ----
    K2 = m2_ref.shape[0]
    N2 = m2_ref.shape[2]                                   # lane-padded width
    dots2 = [_dot(h[kh * batch:(kh + 1) * batch], m2_ref[kh]) for kh in range(K2)]
    acc2 = jnp.broadcast_to(b2_ref[...], (batch, N2)) + _tree_sum(dots2)
    o_ref[...] = _elu(acc2).astype(o_ref.dtype)


def _full_spec(a):
    zeros = (0,) * a.ndim
    return pl.BlockSpec(a.shape, lambda g, _z=zeros: _z)


def _fused_encoder_pallas(x_flat, consts, out_rows, out_cols, batch):
    """x_flat: (B*H, W*Cin) flattened-NHWC image input (no pos channels)."""
    kernel = functools.partial(_encoder_fused_kernel, batch=batch)
    in_specs = [_full_spec(x_flat)] + [_full_spec(c) for c in consts]
    return pl.pallas_call(
        kernel,
        out_shape=jax.ShapeDtypeStruct((out_rows, out_cols), jnp.float32),
        grid=(1,),                                   # single step: batch folded
        in_specs=in_specs,
        out_specs=pl.BlockSpec((out_rows, out_cols), lambda g: (0, 0)),
        compiler_params=pltpu.CompilerParams(
            dimension_semantics=("arbitrary",),
            vmem_limit_bytes=32 * 1024 * 1024),      # ~1 MiB actually used
    )(x_flat, *consts)


# ------------------------- constant-matrix construction ----------------------
def _round_up(n, m):
    return ((n + m - 1) // m) * m


def make_position_encoder_np(dim):
    half = dim // 2
    idx = ((np.arange(dim) - half) / half).astype(np.float32)
    pos = np.zeros((2, dim, dim), np.float32)
    pos[0] = idx[:, None]            # channel 0: row coordinate (i)
    pos[1] = idx[None, :]            # channel 1: col coordinate (j)
    return pos


def _conv2d_valid_np(x_hwc, w_hwio, stride):
    """Tiny exact (float64) valid conv used once at setup for the pos-fold."""
    H, W, _ = x_hwc.shape
    KH, KW, _, Cout = w_hwio.shape
    OH = (H - KH) // stride + 1
    OW = (W - KW) // stride + 1
    x64 = x_hwc.astype(np.float64)
    w64 = w_hwio.astype(np.float64)
    out = np.zeros((OH, OW, Cout), np.float64)
    for i in range(OH):
        for j in range(OW):
            patch = x64[i * stride:i * stride + KH, j * stride:j * stride + KW, :]
            out[i, j] = np.tensordot(patch, w64, axes=([0, 1, 2], [0, 1, 2]))
    return out


def _build_selection(KH, stride, B, H_in, OH, out_order):
    """0/1 tap-row selection matrix for the batch-stacked formulation.

    Input rows are batch-major (r_in = b*H_in + i).  Output row order is
    'batch_major' (b*OH + i) or 'oh_major' (i*B + b).  Each tap slab is padded
    to a multiple of 8 rows (padded rows select nothing).
    """
    R = B * OH
    R_pad = _round_up(R, 8)
    S = np.zeros((KH * R_pad, B * H_in), np.float32)
    for kh in range(KH):
        for b in range(B):
            for i in range(OH):
                r_out = (b * OH + i) if out_order == 'batch_major' else (i * B + b)
                S[kh * R_pad + r_out, b * H_in + stride * i + kh] = 1.0
    return S, R_pad


def _build_weight_matrix(w_hwio, stride, W_in, OW, n_pad=None):
    """M[kh]: (W_in*Cin, OW*Cout) with W[kh,kw,ci,co] at [(s*j+kw)*Cin+ci, j*Cout+co]."""
    KH, KW, Cin, Cout = w_hwio.shape
    M = np.zeros((KH, W_in, Cin, OW, Cout), np.float32)
    for kh in range(KH):
        for j in range(OW):
            for kw in range(KW):
                M[kh, stride * j + kw, :, j, :] = w_hwio[kh, kw]
    M = M.reshape(KH, W_in * Cin, OW * Cout)
    if n_pad is not None and n_pad > OW * Cout:
        pad = np.zeros((KH, W_in * Cin, n_pad - OW * Cout), np.float32)
        M = np.concatenate([M, pad], axis=-1)
    return M


def build_encoder_consts(params, dim, num_inputs, batch):
    strides = (4, 2, 1)
    ws = [np.asarray(w, np.float32) for w, _ in params]
    bs = [np.asarray(b, np.float32) for _, b in params]

    sizes = [dim]
    for w, s in zip(ws, strides):
        sizes.append((sizes[-1] - w.shape[0]) // s + 1)
    OH0, OH1, OH2 = sizes[1], sizes[2], sizes[3]
    C0, C1, C2 = ws[0].shape[3], ws[1].shape[3], ws[2].shape[3]

    assert OH2 == 1, "fused layer-2 shortcut assumes a 1x1 spatial output (dim=36)"
    # TODO(synk): OH2 > 1 (other dims) would need an S2 selection matrix like layers 0-1.
    assert _round_up(batch * OH0, 8) == batch * OH0  # layer-0 output needs no pad rows

    # ---- layer 0: pos channels folded into a spatially-varying bias ----
    w0_img = ws[0][:, :, :num_inputs, :]
    w0_pos = ws[0][:, :, num_inputs:, :]
    pos_hwc = np.transpose(make_position_encoder_np(dim), (1, 2, 0))      # (H, W, 2)
    pos_out = _conv2d_valid_np(pos_hwc, w0_pos, strides[0])               # (OH0, OW0, C0)
    b0_2d = (bs[0][None, None, :].astype(np.float64) + pos_out).astype(np.float32)
    b0_tiled = np.tile(b0_2d.reshape(OH0, OH0 * C0), (batch, 1))          # (B*OH0, OW0*C0)
    S0, _ = _build_selection(ws[0].shape[0], strides[0], batch, dim, OH0, 'batch_major')
    M0 = _build_weight_matrix(w0_img, strides[0], dim, OH0)

    # ---- layer 1: output OH-major/batch-minor so layer 2 needs no selection ----
    S1, _ = _build_selection(ws[1].shape[0], strides[1], batch, OH0, OH1, 'oh_major')
    M1 = _build_weight_matrix(ws[1], strides[1], OH0, OH1)
    b1_row = np.tile(bs[1], OH1).reshape(1, OH1 * C1)

    # ---- layer 2: pad output columns to a full 128-lane slab (dense store) ----
    N2 = OH2 * C2
    N2_pad = _round_up(max(N2, 128), 128)
    M2 = _build_weight_matrix(ws[2], strides[2], OH1, OH2, n_pad=N2_pad)
    b2_row = np.zeros((1, N2_pad), np.float32)
    b2_row[0, :N2] = np.tile(bs[2], OH2)

    consts = [jnp.asarray(c) for c in (S0, M0, b0_tiled, S1, M1, b1_row, M2, b2_row)]
    geom = (OH2, OH2, C2, N2, N2_pad)
    return consts, geom


# --------------------------- parameter initialization ------------------------
def init_params(key, num_inputs, channel):
    """Deterministic conv params (HWIO weights + biases), PyTorch-like scale."""
    specs = [
        (8, 8, num_inputs + 2, channel),       # conv0: k=8, s=4
        (4, 4, channel, channel * 2),          # conv1: k=4, s=2
        (3, 3, channel * 2, channel),          # conv2: k=3, s=1
    ]
    params = []
    for (kh, kw, cin, cout) in specs:
        key, wk, bk = jax.random.split(key, 3)
        bound = 1.0 / float(np.sqrt(kh * kw * cin))
        w = jax.random.uniform(wk, (kh, kw, cin, cout), jnp.float32, -bound, bound)
        b = jax.random.uniform(bk, (cout,), jnp.float32, -bound, bound)
        params.append((w, b))
    return params


# ------------------------------- forward pass --------------------------------
def make_observation_encoder(params, dim, num_inputs):
    fwd_cache = {}

    def _build(batch):
        consts, geom = build_encoder_consts(params, dim, num_inputs, batch)
        OH2, OW2, C2, N2, N2_pad = geom

        @jax.jit
        def fwd(x_nchw):
            B, Cin, H, W = x_nchw.shape
            x = jnp.transpose(x_nchw, (0, 2, 3, 1)).reshape(B * H, W * Cin)
            out_pad = _fused_encoder_pallas(x, consts, B * OH2, N2_pad, B)
            out = out_pad[:, :N2].reshape(B, OH2, OW2, C2)
            return jnp.transpose(out, (0, 3, 1, 2))          # NHWC -> NCHW
        return fwd

    def forward(x_nchw):
        B = int(x_nchw.shape[0])
        if B not in fwd_cache:
            fwd_cache[B] = _build(B)
        return fwd_cache[B](x_nchw)

    return forward


def observation_encoder_reference(params, x_nchw, pos_nchw):
    """Pure-JAX reference (lax.conv on the pos-concatenated input)."""
    B = x_nchw.shape[0]
    x = jnp.concatenate(
        [x_nchw, jnp.broadcast_to(pos_nchw, (B,) + pos_nchw.shape[1:])], axis=1)
    for (w, b), s in zip(params, (4, 2, 1)):
        w_oihw = jnp.transpose(w, (3, 2, 0, 1))
        x = jax.lax.conv_general_dilated(
            x, w_oihw, (s, s), 'VALID',
            dimension_numbers=('NCHW', 'OIHW', 'NCHW'),
            precision=jax.lax.Precision.HIGHEST)
        x = x + b[None, :, None, None]
        x = jnp.where(x > 0.0, x, jnp.expm1(x))
    return x


# ----------------------------------- main ------------------------------------
if __name__ == "__main__":
    num_inputs, dim, channel, batch = 3, 36, 8, 2

    key = jax.random.PRNGKey(0)
    key, xk, pk = jax.random.split(key, 3)

    params = init_params(pk, num_inputs, channel)
    x = jax.random.normal(xk, (batch, num_inputs, dim, dim), jnp.float32)

    forward = make_observation_encoder(params, dim, num_inputs)
    out = jax.block_until_ready(forward(x))

    pos = jnp.asarray(make_position_encoder_np(dim))[None]          # (1, 2, dim, dim)
    ref = jax.block_until_ready(observation_encoder_reference(params, x, pos))

    assert out.shape == ref.shape == (batch, channel, 1, 1), (out.shape, ref.shape)
    max_err = float(jnp.max(jnp.abs(out - ref)))
    assert bool(jnp.allclose(out, ref, atol=1e-4, rtol=1e-4)), \
        f"mismatch vs reference (max abs err {max_err:.3e})"

    print("KERNEL_OK")
</pallas_src>

<mosaic_0001>
module attributes {stable_mosaic.version = 11 : i64} {
  func.func @_encoder_fused_kernel(%arg0: i32, %arg1: memref<72x108xf32, #tpu.memory_space<vmem>>, %arg2: memref<128x72xf32, #tpu.memory_space<vmem>>, %arg3: memref<8x108x64xf32, #tpu.memory_space<vmem>>, %arg4: memref<16x64xf32, #tpu.memory_space<vmem>>, %arg5: memref<32x16xf32, #tpu.memory_space<vmem>>, %arg6: memref<4x64x48xf32, #tpu.memory_space<vmem>>, %arg7: memref<1x48xf32, #tpu.memory_space<vmem>>, %arg8: memref<3x48x128xf32, #tpu.memory_space<vmem>>, %arg9: memref<1x128xf32, #tpu.memory_space<vmem>>, %arg10: memref<2x128xf32, #tpu.memory_space<vmem>>) attributes {dimension_semantics = [#tpu.dimension_semantics<arbitrary>], iteration_bounds = array<i64: 1>, scalar_prefetch = 0 : i64, scratch_operands = 0 : i64, tpu.core_type = #tpu.core_type<tc>, window_params = [{pipeline_mode = #tpu.pipeline_mode<synchronous>, transform_indices = @transform_0, window_bounds = array<i64: 72, 108>}, {pipeline_mode = #tpu.pipeline_mode<synchronous>, transform_indices = @transform_1, window_bounds = array<i64: 128, 72>}, {pipeline_mode = #tpu.pipeline_mode<synchronous>, transform_indices = @transform_2, window_bounds = array<i64: 8, 108, 64>}, {pipeline_mode = #tpu.pipeline_mode<synchronous>, transform_indices = @transform_3, window_bounds = array<i64: 16, 64>}, {pipeline_mode = #tpu.pipeline_mode<synchronous>, transform_indices = @transform_4, window_bounds = array<i64: 32, 16>}, {pipeline_mode = #tpu.pipeline_mode<synchronous>, transform_indices = @transform_5, window_bounds = array<i64: 4, 64, 48>}, {pipeline_mode = #tpu.pipeline_mode<synchronous>, transform_indices = @transform_6, window_bounds = array<i64: 1, 48>}, {pipeline_mode = #tpu.pipeline_mode<synchronous>, transform_indices = @transform_7, window_bounds = array<i64: 3, 48, 128>}, {pipeline_mode = #tpu.pipeline_mode<synchronous>, transform_indices = @transform_8, window_bounds = array<i64: 1, 128>}, {pipeline_mode = #tpu.pipeline_mode<synchronous>, transform_indices = @transform_9, window_bounds = array<i64: 2, 128>}]} {
    %c0 = arith.constant 0 : index
    %c0_0 = arith.constant 0 : index
    %0 = vector.load %arg1[%c0, %c0_0] : memref<72x108xf32, #tpu.memory_space<vmem>>, vector<72x108xf32>
    %c0_1 = arith.constant 0 : index
    %c0_2 = arith.constant 0 : index
    %1 = vector.load %arg2[%c0_1, %c0_2] : memref<128x72xf32, #tpu.memory_space<vmem>>, vector<128x72xf32>
    %cst = arith.constant dense<0.000000e+00> : vector<128x108xf32>
    %2 = tpu.matmul %1, %0, %cst {dimension_numbers = #tpu.dot_dimension_numbers<[1], [0], [0], [1], [0, 0, 1, 1], [], []>, precision = #tpu.contract_precision<fp32>} : vector<128x72xf32>, vector<72x108xf32>, vector<128x108xf32> -> vector<128x108xf32>
    %3 = vector.extract_strided_slice %2 {offsets = [0, 0], sizes = [16, 108], strides = [1, 1]} : vector<128x108xf32> to vector<16x108xf32>
    %c0_3 = arith.constant 0 : index
    %c0_4 = arith.constant 0 : index
    %c0_5 = arith.constant 0 : index
    %4 = vector.load %arg3[%c0_3, %c0_4, %c0_5] : memref<8x108x64xf32, #tpu.memory_space<vmem>>, vector<1x108x64xf32>
    %5 = vector.shape_cast %4 : vector<1x108x64xf32> to vector<108x64xf32>
    %cst_6 = arith.constant dense<0.000000e+00> : vector<16x64xf32>
    %6 = tpu.matmul %3, %5, %cst_6 {dimension_numbers = #tpu.dot_dimension_numbers<[1], [0], [0], [1], [0, 0, 1, 1], [], []>, precision = #tpu.contract_precision<fp32>} : vector<16x108xf32>, vector<108x64xf32>, vector<16x64xf32> -> vector<16x64xf32>
    %7 = vector.extract_strided_slice %2 {offsets = [16, 0], sizes = [16, 108], strides = [1, 1]} : vector<128x108xf32> to vector<16x108xf32>
    %c1 = arith.constant 1 : index
    %c0_7 = arith.constant 0 : index
    %c0_8 = arith.constant 0 : index
    %8 = vector.load %arg3[%c1, %c0_7, %c0_8] : memref<8x108x64xf32, #tpu.memory_space<vmem>>, vector<1x108x64xf32>
    %9 = vector.shape_cast %8 : vector<1x108x64xf32> to vector<108x64xf32>
    %cst_9 = arith.constant dense<0.000000e+00> : vector<16x64xf32>
    %10 = tpu.matmul %7, %9, %cst_9 {dimension_numbers = #tpu.dot_dimension_numbers<[1], [0], [0], [1], [0, 0, 1, 1], [], []>, precision = #tpu.contract_precision<fp32>} : vector<16x108xf32>, vector<108x64xf32>, vector<16x64xf32> -> vector<16x64xf32>
    %11 = vector.extract_strided_slice %2 {offsets = [32, 0], sizes = [16, 108], strides = [1, 1]} : vector<128x108xf32> to vector<16x108xf32>
    %c2 = arith.constant 2 : index
    %c0_10 = arith.constant 0 : index
    %c0_11 = arith.constant 0 : index
    %12 = vector.load %arg3[%c2, %c0_10, %c0_11] : memref<8x108x64xf32, #tpu.memory_space<vmem>>, vector<1x108x64xf32>
    %13 = vector.shape_cast %12 : vector<1x108x64xf32> to vector<108x64xf32>
    %cst_12 = arith.constant dense<0.000000e+00> : vector<16x64xf32>
    %14 = tpu.matmul %11, %13, %cst_12 {dimension_numbers = #tpu.dot_dimension_numbers<[1], [0], [0], [1], [0, 0, 1, 1], [], []>, precision = #tpu.contract_precision<fp32>} : vector<16x108xf32>, vector<108x64xf32>, vector<16x64xf32> -> vector<16x64xf32>
    %15 = vector.extract_strided_slice %2 {offsets = [48, 0], sizes = [16, 108], strides = [1, 1]} : vector<128x108xf32> to vector<16x108xf32>
    %c3 = arith.constant 3 : index
    %c0_13 = arith.constant 0 : index
    %c0_14 = arith.constant 0 : index
    %16 = vector.load %arg3[%c3, %c0_13, %c0_14] : memref<8x108x64xf32, #tpu.memory_space<vmem>>, vector<1x108x64xf32>
    %17 = vector.shape_cast %16 : vector<1x108x64xf32> to vector<108x64xf32>
    %cst_15 = arith.constant dense<0.000000e+00> : vector<16x64xf32>
    %18 = tpu.matmul %15, %17, %cst_15 {dimension_numbers = #tpu.dot_dimension_numbers<[1], [0], [0], [1], [0, 0, 1, 1], [], []>, precision = #tpu.contract_precision<fp32>} : vector<16x108xf32>, vector<108x64xf32>, vector<16x64xf32> -> vector<16x64xf32>
    %19 = vector.extract_strided_slice %2 {offsets = [64, 0], sizes = [16, 108], strides = [1, 1]} : vector<128x108xf32> to vector<16x108xf32>
    %c4 = arith.constant 4 : index
    %c0_16 = arith.constant 0 : index
    %c0_17 = arith.constant 0 : index
    %20 = vector.load %arg3[%c4, %c0_16, %c0_17] : memref<8x108x64xf32, #tpu.memory_space<vmem>>, vector<1x108x64xf32>
    %21 = vector.shape_cast %20 : vector<1x108x64xf32> to vector<108x64xf32>
    %cst_18 = arith.constant dense<0.000000e+00> : vector<16x64xf32>
    %22 = tpu.matmul %19, %21, %cst_18 {dimension_numbers = #tpu.dot_dimension_numbers<[1], [0], [0], [1], [0, 0, 1, 1], [], []>, precision = #tpu.contract_precision<fp32>} : vector<16x108xf32>, vector<108x64xf32>, vector<16x64xf32> -> vector<16x64xf32>
    %23 = vector.extract_strided_slice %2 {offsets = [80, 0], sizes = [16, 108], strides = [1, 1]} : vector<128x108xf32> to vector<16x108xf32>
    %c5 = arith.constant 5 : index
    %c0_19 = arith.constant 0 : index
    %c0_20 = arith.constant 0 : index
    %24 = vector.load %arg3[%c5, %c0_19, %c0_20] : memref<8x108x64xf32, #tpu.memory_space<vmem>>, vector<1x108x64xf32>
    %25 = vector.shape_cast %24 : vector<1x108x64xf32> to vector<108x64xf32>
    %cst_21 = arith.constant dense<0.000000e+00> : vector<16x64xf32>
    %26 = tpu.matmul %23, %25, %cst_21 {dimension_numbers = #tpu.dot_dimension_numbers<[1], [0], [0], [1], [0, 0, 1, 1], [], []>, precision = #tpu.contract_precision<fp32>} : vector<16x108xf32>, vector<108x64xf32>, vector<16x64xf32> -> vector<16x64xf32>
    %27 = vector.extract_strided_slice %2 {offsets = [96, 0], sizes = [16, 108], strides = [1, 1]} : vector<128x108xf32> to vector<16x108xf32>
    %c6 = arith.constant 6 : index
    %c0_22 = arith.constant 0 : index
    %c0_23 = arith.constant 0 : index
    %28 = vector.load %arg3[%c6, %c0_22, %c0_23] : memref<8x108x64xf32, #tpu.memory_space<vmem>>, vector<1x108x64xf32>
    %29 = vector.shape_cast %28 : vector<1x108x64xf32> to vector<108x64xf32>
    %cst_24 = arith.constant dense<0.000000e+00> : vector<16x64xf32>
    %30 = tpu.matmul %27, %29, %cst_24 {dimension_numbers = #tpu.dot_dimension_numbers<[1], [0], [0], [1], [0, 0, 1, 1], [], []>, precision = #tpu.contract_precision<fp32>} : vector<16x108xf32>, vector<108x64xf32>, vector<16x64xf32> -> vector<16x64xf32>
    %31 = vector.extract_strided_slice %2 {offsets = [112, 0], sizes = [16, 108], strides = [1, 1]} : vector<128x108xf32> to vector<16x108xf32>
    %c7 = arith.constant 7 : index
    %c0_25 = arith.constant 0 : index
    %c0_26 = arith.constant 0 : index
    %32 = vector.load %arg3[%c7, %c0_25, %c0_26] : memref<8x108x64xf32, #tpu.memory_space<vmem>>, vector<1x108x64xf32>
    %33 = vector.shape_cast %32 : vector<1x108x64xf32> to vector<108x64xf32>
    %cst_27 = arith.constant dense<0.000000e+00> : vector<16x64xf32>
    %34 = tpu.matmul %31, %33, %cst_27 {dimension_numbers = #tpu.dot_dimension_numbers<[1], [0], [0], [1], [0, 0, 1, 1], [], []>, precision = #tpu.contract_precision<fp32>} : vector<16x108xf32>, vector<108x64xf32>, vector<16x64xf32> -> vector<16x64xf32>
    %c0_28 = arith.constant 0 : index
    %c0_29 = arith.constant 0 : index
    %35 = vector.load %arg4[%c0_28, %c0_29] : memref<16x64xf32, #tpu.memory_space<vmem>>, vector<16x64xf32>
    %36 = arith.addf %6, %10 : vector<16x64xf32>
    %37 = arith.addf %14, %18 : vector<16x64xf32>
    %38 = arith.addf %22, %26 : vector<16x64xf32>
    %39 = arith.addf %30, %34 : vector<16x64xf32>
    %40 = arith.addf %36, %37 : vector<16x64xf32>
    %41 = arith.addf %38, %39 : vector<16x64xf32>
    %42 = arith.addf %40, %41 : vector<16x64xf32>
    %43 = arith.addf %35, %42 : vector<16x64xf32>
    %cst_30 = arith.constant 0.000000e+00 : f32
    %44 = vector.broadcast %cst_30 : f32 to vector<16x64xf32>
    %45 = arith.cmpf ogt, %43, %44 : vector<16x64xf32>
    %cst_31 = arith.constant 0.000000e+00 : f32
    %46 = vector.broadcast %cst_31 : f32 to vector<16x64xf32>
    %47 = arith.minimumf %43, %46 : vector<16x64xf32>
    %48 = math.exp %47 : vector<16x64xf32>
    %cst_32 = arith.constant 1.000000e+00 : f32
    %49 = vector.broadcast %cst_32 : f32 to vector<16x64xf32>
    %50 = arith.subf %48, %49 : vector<16x64xf32>
    %51 = arith.select %45, %43, %50 : vector<16x64xi1>, vector<16x64xf32>
    %c0_33 = arith.constant 0 : index
    %c0_34 = arith.constant 0 : index
    %52 = vector.load %arg5[%c0_33, %c0_34] : memref<32x16xf32, #tpu.memory_space<vmem>>, vector<32x16xf32>
    %cst_35 = arith.constant dense<0.000000e+00> : vector<32x64xf32>
    %53 = tpu.matmul %52, %51, %cst_35 {dimension_numbers = #tpu.dot_dimension_numbers<[1], [0], [0], [1], [0, 0, 1, 1], [], []>, precision = #tpu.contract_precision<fp32>} : vector<32x16xf32>, vector<16x64xf32>, vector<32x64xf32> -> vector<32x64xf32>
    %54 = vector.extract_strided_slice %53 {offsets = [0, 0], sizes = [8, 64], strides = [1, 1]} : vector<32x64xf32> to vector<8x64xf32>
    %c0_36 = arith.constant 0 : index
    %c0_37 = arith.constant 0 : index
    %c0_38 = arith.constant 0 : index
    %55 = vector.load %arg6[%c0_36, %c0_37, %c0_38] : memref<4x64x48xf32, #tpu.memory_space<vmem>>, vector<1x64x48xf32>
    %56 = vector.shape_cast %55 : vector<1x64x48xf32> to vector<64x48xf32>
    %cst_39 = arith.constant dense<0.000000e+00> : vector<8x48xf32>
    %57 = tpu.matmul %54, %56, %cst_39 {dimension_numbers = #tpu.dot_dimension_numbers<[1], [0], [0], [1], [0, 0, 1, 1], [], []>, precision = #tpu.contract_precision<fp32>} : vector<8x64xf32>, vector<64x48xf32>, vector<8x48xf32> -> vector<8x48xf32>
    %58 = vector.extract_strided_slice %53 {offsets = [8, 0], sizes = [8, 64], strides = [1, 1]} : vector<32x64xf32> to vector<8x64xf32>
    %c1_40 = arith.constant 1 : index
    %c0_41 = arith.constant 0 : index
    %c0_42 = arith.constant 0 : index
    %59 = vector.load %arg6[%c1_40, %c0_41, %c0_42] : memref<4x64x48xf32, #tpu.memory_space<vmem>>, vector<1x64x48xf32>
    %60 = vector.shape_cast %59 : vector<1x64x48xf32> to vector<64x48xf32>
    %cst_43 = arith.constant dense<0.000000e+00> : vector<8x48xf32>
    %61 = tpu.matmul %58, %60, %cst_43 {dimension_numbers = #tpu.dot_dimension_numbers<[1], [0], [0], [1], [0, 0, 1, 1], [], []>, precision = #tpu.contract_precision<fp32>} : vector<8x64xf32>, vector<64x48xf32>, vector<8x48xf32> -> vector<8x48xf32>
    %62 = vector.extract_strided_slice %53 {offsets = [16, 0], sizes = [8, 64], strides = [1, 1]} : vector<32x64xf32> to vector<8x64xf32>
    %c2_44 = arith.constant 2 : index
    %c0_45 = arith.constant 0 : index
    %c0_46 = arith.constant 0 : index
    %63 = vector.load %arg6[%c2_44, %c0_45, %c0_46] : memref<4x64x48xf32, #tpu.memory_space<vmem>>, vector<1x64x48xf32>
    %64 = vector.shape_cast %63 : vector<1x64x48xf32> to vector<64x48xf32>
    %cst_47 = arith.constant dense<0.000000e+00> : vector<8x48xf32>
    %65 = tpu.matmul %62, %64, %cst_47 {dimension_numbers = #tpu.dot_dimension_numbers<[1], [0], [0], [1], [0, 0, 1, 1], [], []>, precision = #tpu.contract_precision<fp32>} : vector<8x64xf32>, vector<64x48xf32>, vector<8x48xf32> -> vector<8x48xf32>
    %66 = vector.extract_strided_slice %53 {offsets = [24, 0], sizes = [8, 64], strides = [1, 1]} : vector<32x64xf32> to vector<8x64xf32>
    %c3_48 = arith.constant 3 : index
    %c0_49 = arith.constant 0 : index
    %c0_50 = arith.constant 0 : index
    %67 = vector.load %arg6[%c3_48, %c0_49, %c0_50] : memref<4x64x48xf32, #tpu.memory_space<vmem>>, vector<1x64x48xf32>
    %68 = vector.shape_cast %67 : vector<1x64x48xf32> to vector<64x48xf32>
    %cst_51 = arith.constant dense<0.000000e+00> : vector<8x48xf32>
    %69 = tpu.matmul %66, %68, %cst_51 {dimension_numbers = #tpu.dot_dimension_numbers<[1], [0], [0], [1], [0, 0, 1, 1], [], []>, precision = #tpu.contract_precision<fp32>} : vector<8x64xf32>, vector<64x48xf32>, vector<8x48xf32> -> vector<8x48xf32>
    %c0_52 = arith.constant 0 : index
    %c0_53 = arith.constant 0 : index
    %70 = vector.load %arg7[%c0_52, %c0_53] : memref<1x48xf32, #tpu.memory_space<vmem>>, vector<1x48xf32>
    %71 = vector.shape_cast %70 : vector<1x48xf32> to vector<1x48xf32>
    %72 = vector.broadcast %71 : vector<1x48xf32> to vector<8x48xf32>
    %73 = arith.addf %57, %61 : vector<8x48xf32>
    %74 = arith.addf %65, %69 : vector<8x48xf32>
    %75 = arith.addf %73, %74 : vector<8x48xf32>
    %76 = arith.addf %72, %75 : vector<8x48xf32>
    %cst_54 = arith.constant 0.000000e+00 : f32
    %77 = vector.broadcast %cst_54 : f32 to vector<8x48xf32>
    %78 = arith.cmpf ogt, %76, %77 : vector<8x48xf32>
    %cst_55 = arith.constant 0.000000e+00 : f32
    %79 = vector.broadcast %cst_55 : f32 to vector<8x48xf32>
    %80 = arith.minimumf %76, %79 : vector<8x48xf32>
    %81 = math.exp %80 : vector<8x48xf32>
    %cst_56 = arith.constant 1.000000e+00 : f32
    %82 = vector.broadcast %cst_56 : f32 to vector<8x48xf32>
    %83 = arith.subf %81, %82 : vector<8x48xf32>
    %84 = arith.select %78, %76, %83 : vector<8x48xi1>, vector<8x48xf32>
    %85 = vector.extract_strided_slice %84 {offsets = [0, 0], sizes = [2, 48], strides = [1, 1]} : vector<8x48xf32> to vector<2x48xf32>
    %c0_57 = arith.constant 0 : index
    %c0_58 = arith.constant 0 : index
    %c0_59 = arith.constant 0 : index
    %86 = vector.load %arg8[%c0_57, %c0_58, %c0_59] : memref<3x48x128xf32, #tpu.memory_space<vmem>>, vector<1x48x128xf32>
    %87 = vector.shape_cast %86 : vector<1x48x128xf32> to vector<48x128xf32>
    %cst_60 = arith.constant dense<0.000000e+00> : vector<2x128xf32>
    %88 = tpu.matmul %85, %87, %cst_60 {dimension_numbers = #tpu.dot_dimension_numbers<[1], [0], [0], [1], [0, 0, 1, 1], [], []>, precision = #tpu.contract_precision<fp32>} : vector<2x48xf32>, vector<48x128xf32>, vector<2x128xf32> -> vector<2x128xf32>
    %89 = vector.extract_strided_slice %84 {offsets = [2, 0], sizes = [2, 48], strides = [1, 1]} : vector<8x48xf32> to vector<2x48xf32>
    %c1_61 = arith.constant 1 : index
    %c0_62 = arith.constant 0 : index
    %c0_63 = arith.constant 0 : index
    %90 = vector.load %arg8[%c1_61, %c0_62, %c0_63] : memref<3x48x128xf32, #tpu.memory_space<vmem>>, vector<1x48x128xf32>
    %91 = vector.shape_cast %90 : vector<1x48x128xf32> to vector<48x128xf32>
    %cst_64 = arith.constant dense<0.000000e+00> : vector<2x128xf32>
    %92 = tpu.matmul %89, %91, %cst_64 {dimension_numbers = #tpu.dot_dimension_numbers<[1], [0], [0], [1], [0, 0, 1, 1], [], []>, precision = #tpu.contract_precision<fp32>} : vector<2x48xf32>, vector<48x128xf32>, vector<2x128xf32> -> vector<2x128xf32>
    %93 = vector.extract_strided_slice %84 {offsets = [4, 0], sizes = [2, 48], strides = [1, 1]} : vector<8x48xf32> to vector<2x48xf32>
    %c2_65 = arith.constant 2 : index
    %c0_66 = arith.constant 0 : index
    %c0_67 = arith.constant 0 : index
    %94 = vector.load %arg8[%c2_65, %c0_66, %c0_67] : memref<3x48x128xf32, #tpu.memory_space<vmem>>, vector<1x48x128xf32>
    %95 = vector.shape_cast %94 : vector<1x48x128xf32> to vector<48x128xf32>
    %cst_68 = arith.constant dense<0.000000e+00> : vector<2x128xf32>
    %96 = tpu.matmul %93, %95, %cst_68 {dimension_numbers = #tpu.dot_dimension_numbers<[1], [0], [0], [1], [0, 0, 1, 1], [], []>, precision = #tpu.contract_precision<fp32>} : vector<2x48xf32>, vector<48x128xf32>, vector<2x128xf32> -> vector<2x128xf32>
    %c0_69 = arith.constant 0 : index
    %c0_70 = arith.constant 0 : index
    %97 = vector.load %arg9[%c0_69, %c0_70] : memref<1x128xf32, #tpu.memory_space<vmem>>, vector<1x128xf32>
    %98 = vector.shape_cast %97 : vector<1x128xf32> to vector<1x128xf32>
    %99 = vector.broadcast %98 : vector<1x128xf32> to vector<2x128xf32>
    %100 = arith.addf %88, %92 : vector<2x128xf32>
    %101 = arith.addf %100, %96 : vector<2x128xf32>
    %102 = arith.addf %99, %101 : vector<2x128xf32>
    %cst_71 = arith.constant 0.000000e+00 : f32
    %103 = vector.broadcast %cst_71 : f32 to vector<2x128xf32>
    %104 = arith.cmpf ogt, %102, %103 : vector<2x128xf32>
    %cst_72 = arith.constant 0.000000e+00 : f32
    %105 = vector.broadcast %cst_72 : f32 to vector<2x128xf32>
    %106 = arith.minimumf %102, %105 : vector<2x128xf32>
    %107 = math.exp %106 : vector<2x128xf32>
    %cst_73 = arith.constant 1.000000e+00 : f32
    %108 = vector.broadcast %cst_73 : f32 to vector<2x128xf32>
    %109 = arith.subf %107, %108 : vector<2x128xf32>
    %110 = arith.select %104, %102, %109 : vector<2x128xi1>, vector<2x128xf32>
    %c0_74 = arith.constant 0 : index
    %c0_75 = arith.constant 0 : index
    %111 = vector.load %arg10[%c0_74, %c0_75] : memref<2x128xf32, #tpu.memory_space<vmem>>, vector<2x128xf32>
    tpu.vector_store %arg10[%c0_74, %c0_75], %110 {strides = array<i32>} : memref<2x128xf32, #tpu.memory_space<vmem>>, vector<2x128xf32>,
    return
  }
  func.func @transform_0(%arg0: i32) -> (i32, i32) {
    %c0_i32 = arith.constant 0 : i32
    %c0_i32_0 = arith.constant 0 : i32
    %c0_i32_1 = arith.constant 0 : i32
    return %c0_i32, %c0_i32_0 : i32, i32
  }
  func.func @transform_1(%arg0: i32) -> (i32, i32) {
    %c0_i32 = arith.constant 0 : i32
    %c0_i32_0 = arith.constant 0 : i32
    %c0_i32_1 = arith.constant 0 : i32
    return %c0_i32, %c0_i32_0 : i32, i32
  }
  func.func @transform_2(%arg0: i32) -> (i32, i32, i32) {
    %c0_i32 = arith.constant 0 : i32
    %c0_i32_0 = arith.constant 0 : i32
    %c0_i32_1 = arith.constant 0 : i32
    %c0_i32_2 = arith.constant 0 : i32
    return %c0_i32, %c0_i32_0, %c0_i32_1 : i32, i32, i32
  }
  func.func @transform_3(%arg0: i32) -> (i32, i32) {
    %c0_i32 = arith.constant 0 : i32
    %c0_i32_0 = arith.constant 0 : i32
    %c0_i32_1 = arith.constant 0 : i32
    return %c0_i32, %c0_i32_0 : i32, i32
  }
  func.func @transform_4(%arg0: i32) -> (i32, i32) {
    %c0_i32 = arith.constant 0 : i32
    %c0_i32_0 = arith.constant 0 : i32
    %c0_i32_1 = arith.constant 0 : i32
    return %c0_i32, %c0_i32_0 : i32, i32
  }
  func.func @transform_5(%arg0: i32) -> (i32, i32, i32) {
    %c0_i32 = arith.constant 0 : i32
    %c0_i32_0 = arith.constant 0 : i32
    %c0_i32_1 = arith.constant 0 : i32
    %c0_i32_2 = arith.constant 0 : i32
    return %c0_i32, %c0_i32_0, %c0_i32_1 : i32, i32, i32
  }
  func.func @transform_6(%arg0: i32) -> (i32, i32) {
    %c0_i32 = arith.constant 0 : i32
    %c0_i32_0 = arith.constant 0 : i32
    %c0_i32_1 = arith.constant 0 : i32
    return %c0_i32, %c0_i32_0 : i32, i32
  }
  func.func @transform_7(%arg0: i32) -> (i32, i32, i32) {
    %c0_i32 = arith.constant 0 : i32
    %c0_i32_0 = arith.constant 0 : i32
    %c0_i32_1 = arith.constant 0 : i32
    %c0_i32_2 = arith.constant 0 : i32
    return %c0_i32, %c0_i32_0, %c0_i32_1 : i32, i32, i32
  }
  func.func @transform_8(%arg0: i32) -> (i32, i32) {
    %c0_i32 = arith.constant 0 : i32
    %c0_i32_0 = arith.constant 0 : i32
    %c0_i32_1 = arith.constant 0 : i32
    return %c0_i32, %c0_i32_0 : i32, i32
  }
  func.func @transform_9(%arg0: i32) -> (i32, i32) {
    %c0_i32 = arith.constant 0 : i32
    %c0_i32_0 = arith.constant 0 : i32
    %c0_i32_1 = arith.constant 0 : i32
    return %c0_i32, %c0_i32_0 : i32, i32
  }
}

</mosaic_0001>

<llo_original>
// kernel: fwd.1
$region0: #{fwd.1}
  #allocation0 [shape = 'u32[]', space=smem, size = 0x4, offset = 0x4, fixed_abs, tag = 'smem constant byte address 0x4 - core index']
  #allocation1 [shape = 'u32[144,128]{1,0:T(1,128)}', space=vmem, size = 0x12000, scoped, tag = 'internal scratch']
  %s0 = inlined_call_operand.vmem [shape: f32[72,108], index: 0, kind: input, shape index: {}]
  %s1 = inlined_call_operand.hbm [shape: f32[128,72], index: 1, kind: input, shape index: {}]
  %s2 = inlined_call_operand.vmem [shape: f32[8,108,64], index: 2, kind: input, shape index: {}]
  %s3 = inlined_call_operand.vmem [shape: f32[16,64], index: 3, kind: input, shape index: {}]
  %s4 = inlined_call_operand.vmem [shape: f32[32,16], index: 4, kind: input, shape index: {}]
  %s5 = inlined_call_operand.hbm [shape: f32[4,64,48], index: 5, kind: input, shape index: {}]
  %s6 = inlined_call_operand.vmem [shape: f32[1,48], index: 6, kind: input, shape index: {}]
  %s7 = inlined_call_operand.hbm [shape: f32[3,48,128], index: 7, kind: input, shape index: {}]
  %s8 = inlined_call_operand.vmem [shape: f32[1,128], index: 8, kind: input, shape index: {}]
  %s9 = inlined_call_operand.hbm [shape: f32[2,128], index: 9, kind: output, shape index: {}]
  %s10 = sld [smem:[#allocation0]]
  $region58: #{fwd.1} parent=0
    _
  %s12 = ssub.s32 1, %s10
  %s13 = scalar_select 0, %s12, %s10
  $region1: #{fwd.1} parent=0
    #allocation2 [shape = 'u8[65536]{0}', space=vmem, size = 0x10000, scoped, tag = 'input window, operand 1, single buffered']
    #allocation3 [shape = 's32[1]{0}', space=sflag, size = 0x4, scoped, tag = 'scoped memory for fwd.1']
    #allocation4 [shape = 's32[1]{0}', space=sflag, size = 0x4, scoped, tag = 'scoped memory for fwd.1']
    #allocation5 [shape = 'u8[131072]{0}', space=vmem, size = 0x20000, scoped, tag = 'input window, operand 5, single buffered']
    #allocation6 [shape = 's32[1]{0}', space=sflag, size = 0x4, scoped, tag = 'scoped memory for fwd.1']
    #allocation7 [shape = 'u8[73728]{0}', space=vmem, size = 0x12000, scoped, tag = 'input window, operand 7, single buffered']
    #allocation8 [shape = 'u8[1024]{0}', space=vmem, size = 0x400, scoped, tag = 'output window, operand 0, single buffered']
    %14 = vsyncpa [#allocation3], 0
    %15 = vsyncpa [#allocation6], 0
    %16 = vsyncpa [#allocation4], 0
    // Predicated region
    $region2: #{fwd.1} parent=1 // pred_check
      _
    $region3: #{fwd.1} parent=1 // pred_check_branch
      %18 = sbr.rel (0) target = $region5
    $region4: #{fwd.1} parent=1 // pred_region
      _
    $region5: #{fwd.1} parent=1 // pred_fallthru
      _
    // Predicated region
    $region6: #{fwd.1} parent=1 // pred_check
      _
    $region7: #{fwd.1} parent=1 // pred_check_branch
      %20 = sbr.rel (0) target = $region9
    $region8: #{fwd.1} parent=1 // pred_region
      %s22 = ssub.s32 2048, 2048
      %23 = vsyncadd [#allocation3], %s22
      %s24 = sshll.u32 [#allocation2], 4
      %s25 = int_to_ptr.vmem [resolvable:$true] %s24
      %30 = dma.hbm_to_vmem [thread:$0]  %s1, 2048, %s25, [#allocation3], 128, 128, 8
    $region9: #{fwd.1} parent=1 // pred_fallthru
      _
    // Predicated region
    $region10: #{fwd.1} parent=1 // pred_check
      _
    $region11: #{fwd.1} parent=1 // pred_check_branch
      %32 = sbr.rel (0) target = $region13
    $region12: #{fwd.1} parent=1 // pred_region
      _
    $region13: #{fwd.1} parent=1 // pred_fallthru
      _
    // Predicated region
    $region14: #{fwd.1} parent=1 // pred_check
      _
    $region15: #{fwd.1} parent=1 // pred_check_branch
      %34 = sbr.rel (0) target = $region17
    $region16: #{fwd.1} parent=1 // pred_region
      _
    $region17: #{fwd.1} parent=1 // pred_fallthru
      _
    // Predicated region
    $region18: #{fwd.1} parent=1 // pred_check
      _
    $region19: #{fwd.1} parent=1 // pred_check_branch
      %36 = sbr.rel (0) target = $region21
    $region20: #{fwd.1} parent=1 // pred_region
      _
    $region21: #{fwd.1} parent=1 // pred_fallthru
      _
    // Predicated region
    $region22: #{fwd.1} parent=1 // pred_check
      _
    $region23: #{fwd.1} parent=1 // pred_check_branch
      %38 = sbr.rel (0) target = $region25
    $region24: #{fwd.1} parent=1 // pred_region
      %s40 = ssub.s32 4096, 4096
      %41 = vsyncadd [#allocation6], %s40
      %s42 = sshll.u32 [#allocation5], 4
      %s43 = int_to_ptr.vmem [resolvable:$true] %s42
      %48 = dma.hbm_to_vmem [thread:$0]  %s5, 4096, %s43, [#allocation6], 128, 128, 8
    $region25: #{fwd.1} parent=1 // pred_fallthru
      _
    // Predicated region
    $region26: #{fwd.1} parent=1 // pred_check
      _
    $region27: #{fwd.1} parent=1 // pred_check_branch
      %50 = sbr.rel (0) target = $region29
    $region28: #{fwd.1} parent=1 // pred_region
      _
    $region29: #{fwd.1} parent=1 // pred_fallthru
      _
    // Predicated region
    $region30: #{fwd.1} parent=1 // pred_check
      _
    $region31: #{fwd.1} parent=1 // pred_check_branch
      %52 = sbr.rel (0) target = $region33
    $region32: #{fwd.1} parent=1 // pred_region
      %s54 = ssub.s32 2304, 2304
      %55 = vsyncadd [#allocation6], %s54
      %s56 = sshll.u32 [#allocation7], 4
      %s57 = int_to_ptr.vmem [resolvable:$true] %s56
      %62 = dma.hbm_to_vmem [thread:$0]  %s7, 2304, %s57, [#allocation6], 128, 128, 8
    $region33: #{fwd.1} parent=1 // pred_fallthru
      _
    // Predicated region
    $region34: #{fwd.1} parent=1 // pred_check
      _
    $region35: #{fwd.1} parent=1 // pred_check_branch
      %64 = sbr.rel (0) target = $region37
    $region36: #{fwd.1} parent=1 // pred_region
      _
    $region37: #{fwd.1} parent=1 // pred_fallthru
      _
    // Predicated region
    $region38: #{fwd.1} parent=1 // pred_check
      _
    $region39: #{fwd.1} parent=1 // pred_check_branch
      %66 = sbr.rel (0) target = $region41
    $region40: #{fwd.1} parent=1 // pred_region
      %67 = dma.done [#allocation3], 2048
    $region41: #{fwd.1} parent=1 // pred_fallthru
      _
    // Predicated region
    $region42: #{fwd.1} parent=1 // pred_check
      _
    $region43: #{fwd.1} parent=1 // pred_check_branch
      %69 = sbr.rel (0) target = $region45
    $region44: #{fwd.1} parent=1 // pred_region
      %70 = dma.done [#allocation6], 4096
    $region45: #{fwd.1} parent=1 // pred_fallthru
      _
    // Predicated region
    $region46: #{fwd.1} parent=1 // pred_check
      _
    $region47: #{fwd.1} parent=1 // pred_check_branch
      %72 = sbr.rel (0) target = $region49
    $region48: #{fwd.1} parent=1 // pred_region
      %73 = dma.done [#allocation6], 2304
    $region49: #{fwd.1} parent=1 // pred_fallthru
      _
    %v74 = vld [vmem:[%s0] sm:$0xff]
    %v75 = vld [vmem:[%s0 + $0x8] sm:$0xff]
    %v76 = vld [vmem:[%s0 + $0x10] sm:$0xff]
    %v77 = vld [vmem:[%s0 + $0x18] sm:$0xff]
    %v78 = vld [vmem:[%s0 + $0x20] sm:$0xff]
    %v79 = vld [vmem:[%s0 + $0x28] sm:$0xff]
    %v80 = vld [vmem:[%s0 + $0x30] sm:$0xff]
    %v81 = vld [vmem:[%s0 + $0x38] sm:$0xff]
    %v82 = vld [vmem:[%s0 + $0x40] sm:$0xff]
    %v83 = vld [vmem:[#allocation2] sm:$0xff]
    %v84 = vld [vmem:[#allocation2 + $0x8] sm:$0xff]
    %v85 = vld [vmem:[#allocation2 + $0x10] sm:$0xff]
    %v86 = vld [vmem:[#allocation2 + $0x18] sm:$0xff]
    %v87 = vld [vmem:[#allocation2 + $0x20] sm:$0xff]
    %v88 = vld [vmem:[#allocation2 + $0x28] sm:$0xff]
    %v89 = vld [vmem:[#allocation2 + $0x30] sm:$0xff]
    %v90 = vld [vmem:[#allocation2 + $0x38] sm:$0xff]
    %v91 = vld [vmem:[#allocation2 + $0x40] sm:$0xff]
    %v92 = vld [vmem:[#allocation2 + $0x48] sm:$0xff]
    %v93 = vld [vmem:[#allocation2 + $0x50] sm:$0xff]
    %v94 = vld [vmem:[#allocation2 + $0x58] sm:$0xff]
    %v95 = vld [vmem:[#allocation2 + $0x60] sm:$0xff]
    %v96 = vld [vmem:[#allocation2 + $0x68] sm:$0xff]
    %v97 = vld [vmem:[#allocation2 + $0x70] sm:$0xff]
    %v98 = vld [vmem:[#allocation2 + $0x78] sm:$0xff]
    %vm99 = vcmask 588800
    %v101 = vsel %vm99, %v83, 0
    %v104 = vsel %vm99, %v84, 0
    %v107 = vsel %vm99, %v85, 0
    %v110 = vsel %vm99, %v86, 0
    %v113 = vsel %vm99, %v87, 0
    %v116 = vsel %vm99, %v88, 0
    %v119 = vsel %vm99, %v89, 0
    %v122 = vsel %vm99, %v90, 0
    %v125 = vsel %vm99, %v91, 0
    %v128 = vsel %vm99, %v92, 0
    %v131 = vsel %vm99, %v93, 0
    %v134 = vsel %vm99, %v94, 0
    %v137 = vsel %vm99, %v95, 0
    %v140 = vsel %vm99, %v96, 0
    %v143 = vsel %vm99, %v97, 0
    %v146 = vsel %vm99, %v98, 0
    %148 = vmatprep.subr.mxu0 0.0
    %149 = vmatpush1.msra.mxu0 0.0
    %150 = vmatprep.subr.mxu0 0.0
    %151 = vmatpush1.msra.mxu0 0.0
    %152 = vmatprep.subr.mxu0 0.0
    %153 = vmatpush1.msra.mxu0 0.0
    %154 = vmatprep.subr.mxu0 0.0
    %155 = vmatpush1.msra.mxu0 0.0
    %156 = vmatprep.subr.mxu0 0.0
    %157 = vmatpush1.msra.mxu0 0.0
    %158 = vmatprep.subr.mxu0 0.0
    %159 = vmatpush1.msra.mxu0 0.0
    %160 = vmatprep.subr.mxu0 0.0
    %161 = vmatpush1.msra.mxu0 0.0
    %162 = vmatprep.subr.mxu0 0.0
    %v163 = vand.u32 %v82, 4294901760
    %164 = vmatpush1.msra.mxu0 %v163
    %165 = vmatprep.subr.mxu0 0.0
    %v166 = vand.u32 %v81, 4294901760
    %167 = vmatpush1.msra.mxu0 %v166
    %168 = vmatprep.subr.mxu0 0.0
    %v169 = vand.u32 %v80, 4294901760
    %170 = vmatpush1.msra.mxu0 %v169
    %171 = vmatprep.subr.mxu0 0.0
    %v172 = vand.u32 %v79, 4294901760
    %173 = vmatpush1.msra.mxu0 %v172
    %174 = vmatprep.subr.mxu0 0.0
    %v175 = vand.u32 %v78, 4294901760
    %176 = vmatpush1.msra.mxu0 %v175
    %177 = vmatprep.subr.mxu0 0.0
    %v178 = vand.u32 %v77, 4294901760
    %179 = vmatpush1.msra.mxu0 %v178
    %180 = vmatprep.subr.mxu0 0.0
    %v181 = vand.u32 %v76, 4294901760
    %182 = vmatpush1.msra.mxu0 %v181
    %183 = vmatprep.subr.mxu0 0.0
    %v184 = vand.u32 %v75, 4294901760
    %185 = vmatpush1.msra.mxu0 %v184
    %186 = vmatprep.subr.mxu0 0.0
    %v187 = vand.u32 %v74, 4294901760
    %188 = vmatpush1.msra.mxu0 %v187
    %189 = vmatprep.subr.mxu0 0.0
    %190 = vmatpush2.msra.mxu0 0.0
    %191 = vmatprep.subr.mxu0 0.0
    %192 = vmatpush2.msra.mxu0 0.0
    %193 = vmatprep.subr.mxu0 0.0
    %194 = vmatpush2.msra.mxu0 0.0
    %195 = vmatprep.subr.mxu0 0.0
    %196 = vmatpush2.msra.mxu0 0.0
    %197 = vmatprep.subr.mxu0 0.0
    %198 = vmatpush2.msra.mxu0 0.0
    %199 = vmatprep.subr.mxu0 0.0
    %200 = vmatpush2.msra.mxu0 0.0
    %201 = vmatprep.subr.mxu0 0.0
    %202 = vmatpush2.msra.mxu0 0.0
    %203 = vmatprep.subr.mxu0 0.0
    %204 = vmatpush2.msra.mxu0 0.0
    %205 = vmatprep.subr.mxu0 0.0
    %206 = vmatpush2.msra.mxu0 0.0
    %207 = vmatprep.subr.mxu0 0.0
    %208 = vmatpush2.msra.mxu0 0.0
    %209 = vmatprep.subr.mxu0 0.0
    %210 = vmatpush2.msra.mxu0 0.0
    %211 = vmatprep.subr.mxu0 0.0
    %212 = vmatpush2.msra.mxu0 0.0
    %213 = vmatprep.subr.mxu0 0.0
    %214 = vmatpush2.msra.mxu0 0.0
    %215 = vmatprep.subr.mxu0 0.0
    %216 = vmatpush2.msra.mxu0 0.0
    %217 = vmatprep.subr.mxu0 0.0
    %218 = vmatpush2.msra.mxu0 0.0
    %219 = vmatprep.subr.mxu0 0.0
    %220 = vmatpush2.msra.mxu0 0.0
    %221 = vmatprep.mubr.f32.mxu0 0.0
    %v222 = vand.u32 %v101, 4294901760
    %v223 = vsub.f32 %v101, %v222
    %v224 = vand.u32 %v223, 4294901760
    %v225 = vsub.f32 %v223, %v224
    %v226 = vand.u32 %v225, 4294901760
    %227 = vmatmul.mubr.f32.gmra.mxu0 %v226
    %v228 = vpop.f32.mrf.mxu0
    %v229 = vadd.f32 0.0, %v228
    %v230 = vpop.f32.mrf.mxu0
    %231 = vmatprep.mubr.f32.mxu0 0.0
    %v232 = vand.u32 %v104, 4294901760
    %v233 = vsub.f32 %v104, %v232
    %v234 = vand.u32 %v233, 4294901760
    %v235 = vsub.f32 %v233, %v234
    %v236 = vand.u32 %v235, 4294901760
    %237 = vmatmul.mubr.f32.gmra.mxu0 %v236
    %v238 = vpop.f32.mrf.mxu0
    %v239 = vadd.f32 0.0, %v238
    %v240 = vpop.f32.mrf.mxu0
    %241 = vmatprep.mubr.f32.mxu0 0.0
    %v242 = vand.u32 %v107, 4294901760
    %v243 = vsub.f32 %v107, %v242
    %v244 = vand.u32 %v243, 4294901760
    %v245 = vsub.f32 %v243, %v244
    %v246 = vand.u32 %v245, 4294901760
    %247 = vmatmul.mubr.f32.gmra.mxu0 %v246
    %v248 = vpop.f32.mrf.mxu0
    %v249 = vadd.f32 0.0, %v248
    %v250 = vpop.f32.mrf.mxu0
    %251 = vmatprep.mubr.f32.mxu0 0.0
    %v252 = vand.u32 %v110, 4294901760
    %v253 = vsub.f32 %v110, %v252
    %v254 = vand.u32 %v253, 4294901760
    %v255 = vsub.f32 %v253, %v254
    %v256 = vand.u32 %v255, 4294901760
    %257 = vmatmul.mubr.f32.gmra.mxu0 %v256
    %v258 = vpop.f32.mrf.mxu0
    %v259 = vadd.f32 0.0, %v258
    %v260 = vpop.f32.mrf.mxu0
    %261 = vmatprep.mubr.f32.mxu0 0.0
    %v262 = vand.u32 %v113, 4294901760
    %v263 = vsub.f32 %v113, %v262
    %v264 = vand.u32 %v263, 4294901760
    %v265 = vsub.f32 %v263, %v264
    %v266 = vand.u32 %v265, 4294901760
    %267 = vmatmul.mubr.f32.gmra.mxu0 %v266
    %v268 = vpop.f32.mrf.mxu0
    %v269 = vadd.f32 0.0, %v268
    %v270 = vpop.f32.mrf.mxu0
    %271 = vmatprep.mubr.f32.mxu0 0.0
    %v272 = vand.u32 %v116, 4294901760
    %v273 = vsub.f32 %v116, %v272
    %v274 = vand.u32 %v273, 4294901760
    %v275 = vsub.f32 %v273, %v274
    %v276 = vand.u32 %v275, 4294901760
    %277 = vmatmul.mubr.f32.gmra.mxu0 %v276
    %v278 = vpop.f32.mrf.mxu0
    %v279 = vadd.f32 0.0, %v278
    %v280 = vpop.f32.mrf.mxu0
    %281 = vmatprep.mubr.f32.mxu0 0.0
    %v282 = vand.u32 %v119, 4294901760
    %v283 = vsub.f32 %v119, %v282
    %v284 = vand.u32 %v283, 4294901760
    %v285 = vsub.f32 %v283, %v284
    %v286 = vand.u32 %v285, 4294901760
    %287 = vmatmul.mubr.f32.gmra.mxu0 %v286
    %v288 = vpop.f32.mrf.mxu0
    %v289 = vadd.f32 0.0, %v288
    %v290 = vpop.f32.mrf.mxu0
    %291 = vmatprep.mubr.f32.mxu0 0.0
    %v292 = vand.u32 %v122, 4294901760
    %v293 = vsub.f32 %v122, %v292
    %v294 = vand.u32 %v293, 4294901760
    %v295 = vsub.f32 %v293, %v294
    %v296 = vand.u32 %v295, 4294901760
    %297 = vmatmul.mubr.f32.gmra.mxu0 %v296
    %v298 = vpop.f32.mrf.mxu0
    %v299 = vadd.f32 0.0, %v298
    %v300 = vpop.f32.mrf.mxu0
    %301 = vmatprep.mubr.f32.mxu0 0.0
    %v302 = vand.u32 %v125, 4294901760
    %v303 = vsub.f32 %v125, %v302
    %v304 = vand.u32 %v303, 4294901760
    %v305 = vsub.f32 %v303, %v304
    %v306 = vand.u32 %v305, 4294901760
    %307 = vmatmul.mubr.f32.gmra.mxu0 %v306
    %v308 = vpop.f32.mrf.mxu0
    %v309 = vadd.f32 0.0, %v308
    %v310 = vpop.f32.mrf.mxu0
    %311 = vmatprep.mubr.f32.mxu0 0.0
    %v312 = vand.u32 %v128, 4294901760
    %v313 = vsub.f32 %v128, %v312
    %v314 = vand.u32 %v313, 4294901760
    %v315 = vsub.f32 %v313, %v314
    %v316 = vand.u32 %v315, 4294901760
    %317 = vmatmul.mubr.f32.gmra.mxu0 %v316
    %v318 = vpop.f32.mrf.mxu0
    %v319 = vadd.f32 0.0, %v318
    %v320 = vpop.f32.mrf.mxu0
    %321 = vmatprep.mubr.f32.mxu0 0.0
    %v322 = vand.u32 %v131, 4294901760
    %v323 = vsub.f32 %v131, %v322
    %v324 = vand.u32 %v323, 4294901760
    %v325 = vsub.f32 %v323, %v324
    %v326 = vand.u32 %v325, 4294901760
    %327 = vmatmul.mubr.f32.gmra.mxu0 %v326
    %v328 = vpop.f32.mrf.mxu0
    %v329 = vadd.f32 0.0, %v328
    %v330 = vpop.f32.mrf.mxu0
    %331 = vmatprep.mubr.f32.mxu0 0.0
    %v332 = vand.u32 %v134, 4294901760
    %v333 = vsub.f32 %v134, %v332
    %v334 = vand.u32 %v333, 4294901760
    %v335 = vsub.f32 %v333, %v334
    %v336 = vand.u32 %v335, 4294901760
    %337 = vmatmul.mubr.f32.gmra.mxu0 %v336
    %v338 = vpop.f32.mrf.mxu0
    %v339 = vadd.f32 0.0, %v338
    %v340 = vpop.f32.mrf.mxu0
    %341 = vmatprep.mubr.f32.mxu0 0.0
    %v342 = vand.u32 %v137, 4294901760
    %v343 = vsub.f32 %v137, %v342
    %v344 = vand.u32 %v343, 4294901760
    %v345 = vsub.f32 %v343, %v344
    %v346 = vand.u32 %v345, 4294901760
    %347 = vmatmul.mubr.f32.gmra.mxu0 %v346
    %v348 = vpop.f32.mrf.mxu0
    %v349 = vadd.f32 0.0, %v348
    %v350 = vpop.f32.mrf.mxu0
    %351 = vmatprep.mubr.f32.mxu0 0.0
    %v352 = vand.u32 %v140, 4294901760
    %v353 = vsub.f32 %v140, %v352
    %v354 = vand.u32 %v353, 4294901760
    %v355 = vsub.f32 %v353, %v354
    %v356 = vand.u32 %v355, 4294901760
    %357 = vmatmul.mubr.f32.gmra.mxu0 %v356
    %v358 = vpop.f32.mrf.mxu0
    %v359 = vadd.f32 0.0, %v358
    %v360 = vpop.f32.mrf.mxu0
    %361 = vmatprep.mubr.f32.mxu0 0.0
    %v362 = vand.u32 %v143, 4294901760
    %v363 = vsub.f32 %v143, %v362
    %v364 = vand.u32 %v363, 4294901760
    %v365 = vsub.f32 %v363, %v364
    %v366 = vand.u32 %v365, 4294901760
    %367 = vmatmul.mubr.f32.gmra.mxu0 %v366
    %v368 = vpop.f32.mrf.mxu0
    %v369 = vadd.f32 0.0, %v368
    %v370 = vpop.f32.mrf.mxu0
    %371 = vmatprep.mubr.f32.mxu0 0.0
    %v372 = vand.u32 %v146, 4294901760
    %v373 = vsub.f32 %v146, %v372
    %v374 = vand.u32 %v373, 4294901760
    %v375 = vsub.f32 %v373, %v374
    %v376 = vand.u32 %v375, 4294901760
    %377 = vmatmul.mubr.f32.gmra.mxu0 %v376
    %v378 = vpop.f32.mrf.mxu0
    %v379 = vadd.f32 0.0, %v378
    %v380 = vpop.f32.mrf.mxu0
    %381 = vdwg.mxu0
    %382 = vmatprep.subr.mxu0 0.0
    %383 = vmatpush1.msra.mxu0 0.0
    %384 = vmatprep.subr.mxu0 0.0
    %385 = vmatpush1.msra.mxu0 0.0
    %386 = vmatprep.subr.mxu0 0.0
    %387 = vmatpush1.msra.mxu0 0.0
    %388 = vmatprep.subr.mxu0 0.0
    %389 = vmatpush1.msra.mxu0 0.0
    %390 = vmatprep.subr.mxu0 0.0
    %391 = vmatpush1.msra.mxu0 0.0
    %392 = vmatprep.subr.mxu0 0.0
    %393 = vmatpush1.msra.mxu0 0.0
    %394 = vmatprep.subr.mxu0 0.0
    %395 = vmatpush1.msra.mxu0 0.0
    %396 = vmatprep.subr.mxu0 0.0
    %v397 = vand.u32 %v82, 4294901760
    %v398 = vsub.f32 %v82, %v397
    %v399 = vand.u32 %v398, 4294901760
    %v400 = vsub.f32 %v398, %v399
    %v401 = vand.u32 %v400, 4294901760
    %402 = vmatpush1.msra.mxu0 %v401
    %403 = vmatprep.subr.mxu0 0.0
    %v404 = vand.u32 %v81, 4294901760
    %v405 = vsub.f32 %v81, %v404
    %v406 = vand.u32 %v405, 4294901760
    %v407 = vsub.f32 %v405, %v406
    %v408 = vand.u32 %v407, 4294901760
    %409 = vmatpush1.msra.mxu0 %v408
    %410 = vmatprep.subr.mxu0 0.0
    %v411 = vand.u32 %v80, 4294901760
    %v412 = vsub.f32 %v80, %v411
    %v413 = vand.u32 %v412, 4294901760
    %v414 = vsub.f32 %v412, %v413
    %v415 = vand.u32 %v414, 4294901760
    %416 = vmatpush1.msra.mxu0 %v415
    %417 = vmatprep.subr.mxu0 0.0
    %v418 = vand.u32 %v79, 4294901760
    %v419 = vsub.f32 %v79, %v418
    %v420 = vand.u32 %v419, 4294901760
    %v421 = vsub.f32 %v419, %v420
    %v422 = vand.u32 %v421, 4294901760
    %423 = vmatpush1.msra.mxu0 %v422
    %424 = vmatprep.subr.mxu0 0.0
    %v425 = vand.u32 %v78, 4294901760
    %v426 = vsub.f32 %v78, %v425
    %v427 = vand.u32 %v426, 4294901760
    %v428 = vsub.f32 %v426, %v427
    %v429 = vand.u32 %v428, 4294901760
    %430 = vmatpush1.msra.mxu0 %v429
    %431 = vmatprep.subr.mxu0 0.0
    %v432 = vand.u32 %v77, 4294901760
    %v433 = vsub.f32 %v77, %v432
    %v434 = vand.u32 %v433, 4294901760
    %v435 = vsub.f32 %v433, %v434
    %v436 = vand.u32 %v435, 4294901760
    %437 = vmatpush1.msra.mxu0 %v436
    %438 = vmatprep.subr.mxu0 0.0
    %v439 = vand.u32 %v76, 4294901760
    %v440 = vsub.f32 %v76, %v439
    %v441 = vand.u32 %v440, 4294901760
    %v442 = vsub.f32 %v440, %v441
    %v443 = vand.u32 %v442, 4294901760
    %444 = vmatpush1.msra.mxu0 %v443
    %445 = vmatprep.subr.mxu0 0.0
    %v446 = vand.u32 %v75, 4294901760
    %v447 = vsub.f32 %v75, %v446
    %v448 = vand.u32 %v447, 4294901760
    %v449 = vsub.f32 %v447, %v448
    %v450 = vand.u32 %v449, 4294901760
    %451 = vmatpush1.msra.mxu0 %v450
    %452 = vmatprep.subr.mxu0 0.0
    %v453 = vand.u32 %v74, 4294901760
    %v454 = vsub.f32 %v74, %v453
    %v455 = vand.u32 %v454, 4294901760
    %v456 = vsub.f32 %v454, %v455
    %v457 = vand.u32 %v456, 4294901760
    %458 = vmatpush1.msra.mxu0 %v457
    %459 = vmatprep.subr.mxu0 0.0
    %460 = vmatpush2.msra.mxu0 0.0
    %461 = vmatprep.subr.mxu0 0.0
    %462 = vmatpush2.msra.mxu0 0.0
    %463 = vmatprep.subr.mxu0 0.0
    %464 = vmatpush2.msra.mxu0 0.0
    %465 = vmatprep.subr.mxu0 0.0
    %466 = vmatpush2.msra.mxu0 0.0
    %467 = vmatprep.subr.mxu0 0.0
    %468 = vmatpush2.msra.mxu0 0.0
    %469 = vmatprep.subr.mxu0 0.0
    %470 = vmatpush2.msra.mxu0 0.0
    %471 = vmatprep.subr.mxu0 0.0
    %472 = vmatpush2.msra.mxu0 0.0
    %473 = vmatprep.subr.mxu0 0.0
    %474 = vmatpush2.msra.mxu0 0.0
    %475 = vmatprep.subr.mxu0 0.0
    %476 = vmatpush2.msra.mxu0 0.0
    %477 = vmatprep.subr.mxu0 0.0
    %478 = vmatpush2.msra.mxu0 0.0
    %479 = vmatprep.subr.mxu0 0.0
    %480 = vmatpush2.msra.mxu0 0.0
    %481 = vmatprep.subr.mxu0 0.0
    %482 = vmatpush2.msra.mxu0 0.0
    %483 = vmatprep.subr.mxu0 0.0
    %484 = vmatpush2.msra.mxu0 0.0
    %485 = vmatprep.subr.mxu0 0.0
    %486 = vmatpush2.msra.mxu0 0.0
    %487 = vmatprep.subr.mxu0 0.0
    %488 = vmatpush2.msra.mxu0 0.0
    %489 = vmatprep.subr.mxu0 0.0
    %490 = vmatpush2.msra.mxu0 0.0
    %491 = vmatprep.mubr.f32.mxu0 0.0
    %v492 = vand.u32 %v101, 4294901760
    %493 = vmatmul.mubr.f32.gmra.mxu0 %v492
    %v494 = vpop.f32.mrf.mxu0
    %v495 = vadd.f32 %v229, %v494
    %v496 = vpop.f32.mrf.mxu0
    %497 = vmatprep.mubr.f32.mxu0 0.0
    %v498 = vand.u32 %v104, 4294901760
    %499 = vmatmul.mubr.f32.gmra.mxu0 %v498
    %v500 = vpop.f32.mrf.mxu0
    %v501 = vadd.f32 %v239, %v500
    %v502 = vpop.f32.mrf.mxu0
    %503 = vmatprep.mubr.f32.mxu0 0.0
    %v504 = vand.u32 %v107, 4294901760
    %505 = vmatmul.mubr.f32.gmra.mxu0 %v504
    %v506 = vpop.f32.mrf.mxu0
    %v507 = vadd.f32 %v249, %v506
    %v508 = vpop.f32.mrf.mxu0
    %509 = vmatprep.mubr.f32.mxu0 0.0
    %v510 = vand.u32 %v110, 4294901760
    %511 = vmatmul.mubr.f32.gmra.mxu0 %v510
    %v512 = vpop.f32.mrf.mxu0
    %v513 = vadd.f32 %v259, %v512
    %v514 = vpop.f32.mrf.mxu0
    %515 = vmatprep.mubr.f32.mxu0 0.0
    %v516 = vand.u32 %v113, 4294901760
    %517 = vmatmul.mubr.f32.gmra.mxu0 %v516
    %v518 = vpop.f32.mrf.mxu0
    %v519 = vadd.f32 %v269, %v518
    %v520 = vpop.f32.mrf.mxu0
    %521 = vmatprep.mubr.f32.mxu0 0.0
    %v522 = vand.u32 %v116, 4294901760
    %523 = vmatmul.mubr.f32.gmra.mxu0 %v522
    %v524 = vpop.f32.mrf.mxu0
    %v525 = vadd.f32 %v279, %v524
    %v526 = vpop.f32.mrf.mxu0
    %527 = vmatprep.mubr.f32.mxu0 0.0
    %v528 = vand.u32 %v119, 4294901760
    %529 = vmatmul.mubr.f32.gmra.mxu0 %v528
    %v530 = vpop.f32.mrf.mxu0
    %v531 = vadd.f32 %v289, %v530
    %v532 = vpop.f32.mrf.mxu0
    %533 = vmatprep.mubr.f32.mxu0 0.0
    %v534 = vand.u32 %v122, 4294901760
    %535 = vmatmul.mubr.f32.gmra.mxu0 %v534
    %v536 = vpop.f32.mrf.mxu0
    %v537 = vadd.f32 %v299, %v536
    %v538 = vpop.f32.mrf.mxu0
    %539 = vmatprep.mubr.f32.mxu0 0.0
    %v540 = vand.u32 %v125, 4294901760
    %541 = vmatmul.mubr.f32.gmra.mxu0 %v540
    %v542 = vpop.f32.mrf.mxu0
    %v543 = vadd.f32 %v309, %v542
    %v544 = vpop.f32.mrf.mxu0
    %545 = vmatprep.mubr.f32.mxu0 0.0
    %v546 = vand.u32 %v128, 4294901760
    %547 = vmatmul.mubr.f32.gmra.mxu0 %v546
    %v548 = vpop.f32.mrf.mxu0
    %v549 = vadd.f32 %v319, %v548
    %v550 = vpop.f32.mrf.mxu0
    %551 = vmatprep.mubr.f32.mxu0 0.0
    %v552 = vand.u32 %v131, 4294901760
    %553 = vmatmul.mubr.f32.gmra.mxu0 %v552
    %v554 = vpop.f32.mrf.mxu0
    %v555 = vadd.f32 %v329, %v554
    %v556 = vpop.f32.mrf.mxu0
    %557 = vmatprep.mubr.f32.mxu0 0.0
    %v558 = vand.u32 %v134, 4294901760
    %559 = vmatmul.mubr.f32.gmra.mxu0 %v558
    %v560 = vpop.f32.mrf.mxu0
    %v561 = vadd.f32 %v339, %v560
    %v562 = vpop.f32.mrf.mxu0
    %563 = vmatprep.mubr.f32.mxu0 0.0
    %v564 = vand.u32 %v137, 4294901760
    %565 = vmatmul.mubr.f32.gmra.mxu0 %v564
    %v566 = vpop.f32.mrf.mxu0
    %v567 = vadd.f32 %v349, %v566
    %v568 = vpop.f32.mrf.mxu0
    %569 = vmatprep.mubr.f32.mxu0 0.0
    %v570 = vand.u32 %v140, 4294901760
    %571 = vmatmul.mubr.f32.gmra.mxu0 %v570
    %v572 = vpop.f32.mrf.mxu0
    %v573 = vadd.f32 %v359, %v572
    %v574 = vpop.f32.mrf.mxu0
    %575 = vmatprep.mubr.f32.mxu0 0.0
    %v576 = vand.u32 %v143, 4294901760
    %577 = vmatmul.mubr.f32.gmra.mxu0 %v576
    %v578 = vpop.f32.mrf.mxu0
    %v579 = vadd.f32 %v369, %v578
    %v580 = vpop.f32.mrf.mxu0
    %581 = vmatprep.mubr.f32.mxu0 0.0
    %v582 = vand.u32 %v146, 4294901760
    %583 = vmatmul.mubr.f32.gmra.mxu0 %v582
    %v584 = vpop.f32.mrf.mxu0
    %v585 = vadd.f32 %v379, %v584
    %v586 = vpop.f32.mrf.mxu0
    %587 = vdwg.mxu0
    %588 = vmatprep.subr.mxu0 0.0
    %589 = vmatpush1.msra.mxu0 0.0
    %590 = vmatprep.subr.mxu0 0.0
    %591 = vmatpush1.msra.mxu0 0.0
    %592 = vmatprep.subr.mxu0 0.0
    %593 = vmatpush1.msra.mxu0 0.0
    %594 = vmatprep.subr.mxu0 0.0
    %595 = vmatpush1.msra.mxu0 0.0
    %596 = vmatprep.subr.mxu0 0.0
    %597 = vmatpush1.msra.mxu0 0.0
    %598 = vmatprep.subr.mxu0 0.0
    %599 = vmatpush1.msra.mxu0 0.0
    %600 = vmatprep.subr.mxu0 0.0
    %601 = vmatpush1.msra.mxu0 0.0
    %602 = vmatprep.subr.mxu0 0.0
    %v603 = vand.u32 %v82, 4294901760
    %v604 = vsub.f32 %v82, %v603
    %605 = vmatpush1.msra.mxu0 %v604
    %606 = vmatprep.subr.mxu0 0.0
    %v607 = vand.u32 %v81, 4294901760
    %v608 = vsub.f32 %v81, %v607
    %609 = vmatpush1.msra.mxu0 %v608
    %610 = vmatprep.subr.mxu0 0.0
    %v611 = vand.u32 %v80, 4294901760
    %v612 = vsub.f32 %v80, %v611
    %613 = vmatpush1.msra.mxu0 %v612
    %614 = vmatprep.subr.mxu0 0.0
    %v615 = vand.u32 %v79, 4294901760
    %v616 = vsub.f32 %v79, %v615
    %617 = vmatpush1.msra.mxu0 %v616
    %618 = vmatprep.subr.mxu0 0.0
    %v619 = vand.u32 %v78, 4294901760
    %v620 = vsub.f32 %v78, %v619
    %621 = vmatpush1.msra.mxu0 %v620
    %622 = vmatprep.subr.mxu0 0.0
    %v623 = vand.u32 %v77, 4294901760
    %v624 = vsub.f32 %v77, %v623
    %625 = vmatpush1.msra.mxu0 %v624
    %626 = vmatprep.subr.mxu0 0.0
    %v627 = vand.u32 %v76, 4294901760
    %v628 = vsub.f32 %v76, %v627
    %629 = vmatpush1.msra.mxu0 %v628
    %630 = vmatprep.subr.mxu0 0.0
    %v631 = vand.u32 %v75, 4294901760
    %v632 = vsub.f32 %v75, %v631
    %633 = vmatpush1.msra.mxu0 %v632
    %634 = vmatprep.subr.mxu0 0.0
    %v635 = vand.u32 %v74, 4294901760
    %v636 = vsub.f32 %v74, %v635
    %637 = vmatpush1.msra.mxu0 %v636
    %638 = vmatprep.subr.mxu0 0.0
    %639 = vmatpush2.msra.mxu0 0.0
    %640 = vmatprep.subr.mxu0 0.0
    %641 = vmatpush2.msra.mxu0 0.0
    %642 = vmatprep.subr.mxu0 0.0
    %643 = vmatpush2.msra.mxu0 0.0
    %644 = vmatprep.subr.mxu0 0.0
    %645 = vmatpush2.msra.mxu0 0.0
    %646 = vmatprep.subr.mxu0 0.0
    %647 = vmatpush2.msra.mxu0 0.0
    %648 = vmatprep.subr.mxu0 0.0
    %649 = vmatpush2.msra.mxu0 0.0
    %650 = vmatprep.subr.mxu0 0.0
    %651 = vmatpush2.msra.mxu0 0.0
    %652 = vmatprep.subr.mxu0 0.0
    %653 = vmatpush2.msra.mxu0 0.0
    %654 = vmatprep.subr.mxu0 0.0
    %655 = vmatpush2.msra.mxu0 0.0
    %656 = vmatprep.subr.mxu0 0.0
    %657 = vmatpush2.msra.mxu0 0.0
    %658 = vmatprep.subr.mxu0 0.0
    %659 = vmatpush2.msra.mxu0 0.0
    %660 = vmatprep.subr.mxu0 0.0
    %661 = vmatpush2.msra.mxu0 0.0
    %662 = vmatprep.subr.mxu0 0.0
    %663 = vmatpush2.msra.mxu0 0.0
    %664 = vmatprep.subr.mxu0 0.0
    %665 = vmatpush2.msra.mxu0 0.0
    %666 = vmatprep.subr.mxu0 0.0
    %667 = vmatpush2.msra.mxu0 0.0
    %668 = vmatprep.subr.mxu0 0.0
    %669 = vmatpush2.msra.mxu0 0.0
    %670 = vmatprep.mubr.f32.mxu0 0.0
    %v671 = vand.u32 %v101, 4294901760
    %v672 = vsub.f32 %v101, %v671
    %673 = vmatmul.mubr.f32.gmra.mxu0 %v672
    %v674 = vpop.f32.mrf.mxu0
    %v675 = vadd.f32 %v495, %v674
    %v676 = vpop.f32.mrf.mxu0
    %677 = vmatprep.mubr.f32.mxu0 0.0
    %v678 = vand.u32 %v104, 4294901760
    %v679 = vsub.f32 %v104, %v678
    %680 = vmatmul.mubr.f32.gmra.mxu0 %v679
    %v681 = vpop.f32.mrf.mxu0
    %v682 = vadd.f32 %v501, %v681
    %v683 = vpop.f32.mrf.mxu0
    %684 = vmatprep.mubr.f32.mxu0 0.0
    %v685 = vand.u32 %v107, 4294901760
    %v686 = vsub.f32 %v107, %v685
    %687 = vmatmul.mubr.f32.gmra.mxu0 %v686
    %v688 = vpop.f32.mrf.mxu0
    %v689 = vadd.f32 %v507, %v688
    %v690 = vpop.f32.mrf.mxu0
    %691 = vmatprep.mubr.f32.mxu0 0.0
    %v692 = vand.u32 %v110, 4294901760
    %v693 = vsub.f32 %v110, %v692
    %694 = vmatmul.mubr.f32.gmra.mxu0 %v693
    %v695 = vpop.f32.mrf.mxu0
    %v696 = vadd.f32 %v513, %v695
    %v697 = vpop.f32.mrf.mxu0
    %698 = vmatprep.mubr.f32.mxu0 0.0
    %v699 = vand.u32 %v113, 4294901760
    %v700 = vsub.f32 %v113, %v699
    %701 = vmatmul.mubr.f32.gmra.mxu0 %v700
    %v702 = vpop.f32.mrf.mxu0
    %v703 = vadd.f32 %v519, %v702
    %v704 = vpop.f32.mrf.mxu0
    %705 = vmatprep.mubr.f32.mxu0 0.0
    %v706 = vand.u32 %v116, 4294901760
    %v707 = vsub.f32 %v116, %v706
    %708 = vmatmul.mubr.f32.gmra.mxu0 %v707
    %v709 = vpop.f32.mrf.mxu0
    %v710 = vadd.f32 %v525, %v709
    %v711 = vpop.f32.mrf.mxu0
    %712 = vmatprep.mubr.f32.mxu0 0.0
    %v713 = vand.u32 %v119, 4294901760
    %v714 = vsub.f32 %v119, %v713
    %715 = vmatmul.mubr.f32.gmra.mxu0 %v714
    %v716 = vpop.f32.mrf.mxu0
    %v717 = vadd.f32 %v531, %v716
    %v718 = vpop.f32.mrf.mxu0
    %719 = vmatprep.mubr.f32.mxu0 0.0
    %v720 = vand.u32 %v122, 4294901760
    %v721 = vsub.f32 %v122, %v720
    %722 = vmatmul.mubr.f32.gmra.mxu0 %v721
    %v723 = vpop.f32.mrf.mxu0
    %v724 = vadd.f32 %v537, %v723
    %v725 = vpop.f32.mrf.mxu0
    %726 = vmatprep.mubr.f32.mxu0 0.0
    %v727 = vand.u32 %v125, 4294901760
    %v728 = vsub.f32 %v125, %v727
    %729 = vmatmul.mubr.f32.gmra.mxu0 %v728
    %v730 = vpop.f32.mrf.mxu0
    %v731 = vadd.f32 %v543, %v730
    %v732 = vpop.f32.mrf.mxu0
    %733 = vmatprep.mubr.f32.mxu0 0.0
    %v734 = vand.u32 %v128, 4294901760
    %v735 = vsub.f32 %v128, %v734
    %736 = vmatmul.mubr.f32.gmra.mxu0 %v735
    %v737 = vpop.f32.mrf.mxu0
    %v738 = vadd.f32 %v549, %v737
    %v739 = vpop.f32.mrf.mxu0
    %740 = vmatprep.mubr.f32.mxu0 0.0
    %v741 = vand.u32 %v131, 4294901760
    %v742 = vsub.f32 %v131, %v741
    %743 = vmatmul.mubr.f32.gmra.mxu0 %v742
    %v744 = vpop.f32.mrf.mxu0
    %v745 = vadd.f32 %v555, %v744
    %v746 = vpop.f32.mrf.mxu0
    %747 = vmatprep.mubr.f32.mxu0 0.0
    %v748 = vand.u32 %v134, 4294901760
    %v749 = vsub.f32 %v134, %v748
    %750 = vmatmul.mubr.f32.gmra.mxu0 %v749
    %v751 = vpop.f32.mrf.mxu0
    %v752 = vadd.f32 %v561, %v751
    %v753 = vpop.f32.mrf.mxu0
    %754 = vmatprep.mubr.f32.mxu0 0.0
    %v755 = vand.u32 %v137, 4294901760
    %v756 = vsub.f32 %v137, %v755
    %757 = vmatmul.mubr.f32.gmra.mxu0 %v756
    %v758 = vpop.f32.mrf.mxu0
    %v759 = vadd.f32 %v567, %v758
    %v760 = vpop.f32.mrf.mxu0
    %761 = vmatprep.mubr.f32.mxu0 0.0
    %v762 = vand.u32 %v140, 4294901760
    %v763 = vsub.f32 %v140, %v762
    %764 = vmatmul.mubr.f32.gmra.mxu0 %v763
    %v765 = vpop.f32.mrf.mxu0
    %v766 = vadd.f32 %v573, %v765
    %v767 = vpop.f32.mrf.mxu0
    %768 = vmatprep.mubr.f32.mxu0 0.0
    %v769 = vand.u32 %v143, 4294901760
    %v770 = vsub.f32 %v143, %v769
    %771 = vmatmul.mubr.f32.gmra.mxu0 %v770
    %v772 = vpop.f32.mrf.mxu0
    %v773 = vadd.f32 %v579, %v772
    %v774 = vpop.f32.mrf.mxu0
    %775 = vmatprep.mubr.f32.mxu0 0.0
    %v776 = vand.u32 %v146, 4294901760
    %v777 = vsub.f32 %v146, %v776
    %778 = vmatmul.mubr.f32.gmra.mxu0 %v777
    %v779 = vpop.f32.mrf.mxu0
    %v780 = vadd.f32 %v585, %v779
    %v781 = vpop.f32.mrf.mxu0
    %782 = vdwg.mxu0
    %783 = vmatprep.subr.mxu0 0.0
    %784 = vmatpush1.msra.mxu0 0.0
    %785 = vmatprep.subr.mxu0 0.0
    %786 = vmatpush1.msra.mxu0 0.0
    %787 = vmatprep.subr.mxu0 0.0
    %788 = vmatpush1.msra.mxu0 0.0
    %789 = vmatprep.subr.mxu0 0.0
    %790 = vmatpush1.msra.mxu0 0.0
    %791 = vmatprep.subr.mxu0 0.0
    %792 = vmatpush1.msra.mxu0 0.0
    %793 = vmatprep.subr.mxu0 0.0
    %794 = vmatpush1.msra.mxu0 0.0
    %795 = vmatprep.subr.mxu0 0.0
    %796 = vmatpush1.msra.mxu0 0.0
    %797 = vmatprep.subr.mxu0 0.0
    %v798 = vand.u32 %v82, 4294901760
    %799 = vmatpush1.msra.mxu0 %v798
    %800 = vmatprep.subr.mxu0 0.0
    %v801 = vand.u32 %v81, 4294901760
    %802 = vmatpush1.msra.mxu0 %v801
    %803 = vmatprep.subr.mxu0 0.0
    %v804 = vand.u32 %v80, 4294901760
    %805 = vmatpush1.msra.mxu0 %v804
    %806 = vmatprep.subr.mxu0 0.0
    %v807 = vand.u32 %v79, 4294901760
    %808 = vmatpush1.msra.mxu0 %v807
    %809 = vmatprep.subr.mxu0 0.0
    %v810 = vand.u32 %v78, 4294901760
    %811 = vmatpush1.msra.mxu0 %v810
    %812 = vmatprep.subr.mxu0 0.0
    %v813 = vand.u32 %v77, 4294901760
    %814 = vmatpush1.msra.mxu0 %v813
    %815 = vmatprep.subr.mxu0 0.0
    %v816 = vand.u32 %v76, 4294901760
    %817 = vmatpush1.msra.mxu0 %v816
    %818 = vmatprep.subr.mxu0 0.0
    %v819 = vand.u32 %v75, 4294901760
    %820 = vmatpush1.msra.mxu0 %v819
    %821 = vmatprep.subr.mxu0 0.0
    %v822 = vand.u32 %v74, 4294901760
    %823 = vmatpush1.msra.mxu0 %v822
    %824 = vmatprep.subr.mxu0 0.0
    %825 = vmatpush2.msra.mxu0 0.0
    %826 = vmatprep.subr.mxu0 0.0
    %827 = vmatpush2.msra.mxu0 0.0
    %828 = vmatprep.subr.mxu0 0.0
    %829 = vmatpush2.msra.mxu0 0.0
    %830 = vmatprep.subr.mxu0 0.0
    %831 = vmatpush2.msra.mxu0 0.0
    %832 = vmatprep.subr.mxu0 0.0
    %833 = vmatpush2.msra.mxu0 0.0
    %834 = vmatprep.subr.mxu0 0.0
    %835 = vmatpush2.msra.mxu0 0.0
    %836 = vmatprep.subr.mxu0 0.0
    %837 = vmatpush2.msra.mxu0 0.0
    %838 = vmatprep.subr.mxu0 0.0
    %839 = vmatpush2.msra.mxu0 0.0
    %840 = vmatprep.subr.mxu0 0.0
    %841 = vmatpush2.msra.mxu0 0.0
    %842 = vmatprep.subr.mxu0 0.0
    %843 = vmatpush2.msra.mxu0 0.0
    %844 = vmatprep.subr.mxu0 0.0
    %845 = vmatpush2.msra.mxu0 0.0
    %846 = vmatprep.subr.mxu0 0.0
    %847 = vmatpush2.msra.mxu0 0.0
    %848 = vmatprep.subr.mxu0 0.0
    %849 = vmatpush2.msra.mxu0 0.0
    %850 = vmatprep.subr.mxu0 0.0
    %851 = vmatpush2.msra.mxu0 0.0
    %852 = vmatprep.subr.mxu0 0.0
    %853 = vmatpush2.msra.mxu0 0.0
    %854 = vmatprep.subr.mxu0 0.0
    %855 = vmatpush2.msra.mxu0 0.0
    %856 = vmatprep.mubr.f32.mxu0 0.0
    %v857 = vand.u32 %v101, 4294901760
    %v858 = vsub.f32 %v101, %v857
    %v859 = vand.u32 %v858, 4294901760
    %860 = vmatmul.mubr.f32.gmra.mxu0 %v859
    %v861 = vpop.f32.mrf.mxu0
    %v862 = vadd.f32 %v675, %v861
    %v863 = vpop.f32.mrf.mxu0
    %864 = vmatprep.mubr.f32.mxu0 0.0
    %v865 = vand.u32 %v104, 4294901760
    %v866 = vsub.f32 %v104, %v865
    %v867 = vand.u32 %v866, 4294901760
    %868 = vmatmul.mubr.f32.gmra.mxu0 %v867
    %v869 = vpop.f32.mrf.mxu0
    %v870 = vadd.f32 %v682, %v869
    %v871 = vpop.f32.mrf.mxu0
    %872 = vmatprep.mubr.f32.mxu0 0.0
    %v873 = vand.u32 %v107, 4294901760
    %v874 = vsub.f32 %v107, %v873
    %v875 = vand.u32 %v874, 4294901760
    %876 = vmatmul.mubr.f32.gmra.mxu0 %v875
    %v877 = vpop.f32.mrf.mxu0
    %v878 = vadd.f32 %v689, %v877
    %v879 = vpop.f32.mrf.mxu0
    %880 = vmatprep.mubr.f32.mxu0 0.0
    %v881 = vand.u32 %v110, 4294901760
    %v882 = vsub.f32 %v110, %v881
    %v883 = vand.u32 %v882, 4294901760
    %884 = vmatmul.mubr.f32.gmra.mxu0 %v883
    %v885 = vpop.f32.mrf.mxu0
    %v886 = vadd.f32 %v696, %v885
    %v887 = vpop.f32.mrf.mxu0
    %888 = vmatprep.mubr.f32.mxu0 0.0
    %v889 = vand.u32 %v113, 4294901760
    %v890 = vsub.f32 %v113, %v889
    %v891 = vand.u32 %v890, 4294901760
    %892 = vmatmul.mubr.f32.gmra.mxu0 %v891
    %v893 = vpop.f32.mrf.mxu0
    %v894 = vadd.f32 %v703, %v893
    %v895 = vpop.f32.mrf.mxu0
    %896 = vmatprep.mubr.f32.mxu0 0.0
    %v897 = vand.u32 %v116, 4294901760
    %v898 = vsub.f32 %v116, %v897
    %v899 = vand.u32 %v898, 4294901760
    %900 = vmatmul.mubr.f32.gmra.mxu0 %v899
    %v901 = vpop.f32.mrf.mxu0
    %v902 = vadd.f32 %v710, %v901
    %v903 = vpop.f32.mrf.mxu0
    %904 = vmatprep.mubr.f32.mxu0 0.0
    %v905 = vand.u32 %v119, 4294901760
    %v906 = vsub.f32 %v119, %v905
    %v907 = vand.u32 %v906, 4294901760
    %908 = vmatmul.mubr.f32.gmra.mxu0 %v907
    %v909 = vpop.f32.mrf.mxu0
    %v910 = vadd.f32 %v717, %v909
    %v911 = vpop.f32.mrf.mxu0
    %912 = vmatprep.mubr.f32.mxu0 0.0
    %v913 = vand.u32 %v122, 4294901760
    %v914 = vsub.f32 %v122, %v913
    %v915 = vand.u32 %v914, 4294901760
    %916 = vmatmul.mubr.f32.gmra.mxu0 %v915
    %v917 = vpop.f32.mrf.mxu0
    %v918 = vadd.f32 %v724, %v917
    %v919 = vpop.f32.mrf.mxu0
    %920 = vmatprep.mubr.f32.mxu0 0.0
    %v921 = vand.u32 %v125, 4294901760
    %v922 = vsub.f32 %v125, %v921
    %v923 = vand.u32 %v922, 4294901760
    %924 = vmatmul.mubr.f32.gmra.mxu0 %v923
    %v925 = vpop.f32.mrf.mxu0
    %v926 = vadd.f32 %v731, %v925
    %v927 = vpop.f32.mrf.mxu0
    %928 = vmatprep.mubr.f32.mxu0 0.0
    %v929 = vand.u32 %v128, 4294901760
    %v930 = vsub.f32 %v128, %v929
    %v931 = vand.u32 %v930, 4294901760
    %932 = vmatmul.mubr.f32.gmra.mxu0 %v931
    %v933 = vpop.f32.mrf.mxu0
    %v934 = vadd.f32 %v738, %v933
    %v935 = vpop.f32.mrf.mxu0
    %936 = vmatprep.mubr.f32.mxu0 0.0
    %v937 = vand.u32 %v131, 4294901760
    %v938 = vsub.f32 %v131, %v937
    %v939 = vand.u32 %v938, 4294901760
    %940 = vmatmul.mubr.f32.gmra.mxu0 %v939
    %v941 = vpop.f32.mrf.mxu0
    %v942 = vadd.f32 %v745, %v941
    %v943 = vpop.f32.mrf.mxu0
    %944 = vmatprep.mubr.f32.mxu0 0.0
    %v945 = vand.u32 %v134, 4294901760
    %v946 = vsub.f32 %v134, %v945
    %v947 = vand.u32 %v946, 4294901760
    %948 = vmatmul.mubr.f32.gmra.mxu0 %v947
    %v949 = vpop.f32.mrf.mxu0
    %v950 = vadd.f32 %v752, %v949
    %v951 = vpop.f32.mrf.mxu0
    %952 = vmatprep.mubr.f32.mxu0 0.0
    %v953 = vand.u32 %v137, 4294901760
    %v954 = vsub.f32 %v137, %v953
    %v955 = vand.u32 %v954, 4294901760
    %956 = vmatmul.mubr.f32.gmra.mxu0 %v955
    %v957 = vpop.f32.mrf.mxu0
    %v958 = vadd.f32 %v759, %v957
    %v959 = vpop.f32.mrf.mxu0
    %960 = vmatprep.mubr.f32.mxu0 0.0
    %v961 = vand.u32 %v140, 4294901760
    %v962 = vsub.f32 %v140, %v961
    %v963 = vand.u32 %v962, 4294901760
    %964 = vmatmul.mubr.f32.gmra.mxu0 %v963
    %v965 = vpop.f32.mrf.mxu0
    %v966 = vadd.f32 %v766, %v965
    %v967 = vpop.f32.mrf.mxu0
    %968 = vmatprep.mubr.f32.mxu0 0.0
    %v969 = vand.u32 %v143, 4294901760
    %v970 = vsub.f32 %v143, %v969
    %v971 = vand.u32 %v970, 4294901760
    %972 = vmatmul.mubr.f32.gmra.mxu0 %v971
    %v973 = vpop.f32.mrf.mxu0
    %v974 = vadd.f32 %v773, %v973
    %v975 = vpop.f32.mrf.mxu0
    %976 = vmatprep.mubr.f32.mxu0 0.0
    %v977 = vand.u32 %v146, 4294901760
    %v978 = vsub.f32 %v146, %v977
    %v979 = vand.u32 %v978, 4294901760
    %980 = vmatmul.mubr.f32.gmra.mxu0 %v979
    %v981 = vpop.f32.mrf.mxu0
    %v982 = vadd.f32 %v780, %v981
    %v983 = vpop.f32.mrf.mxu0
    %984 = vdwg.mxu0
    %985 = vmatprep.subr.mxu0 0.0
    %986 = vmatpush1.msra.mxu0 0.0
    %987 = vmatprep.subr.mxu0 0.0
    %988 = vmatpush1.msra.mxu0 0.0
    %989 = vmatprep.subr.mxu0 0.0
    %990 = vmatpush1.msra.mxu0 0.0
    %991 = vmatprep.subr.mxu0 0.0
    %992 = vmatpush1.msra.mxu0 0.0
    %993 = vmatprep.subr.mxu0 0.0
    %994 = vmatpush1.msra.mxu0 0.0
    %995 = vmatprep.subr.mxu0 0.0
    %996 = vmatpush1.msra.mxu0 0.0
    %997 = vmatprep.subr.mxu0 0.0
    %998 = vmatpush1.msra.mxu0 0.0
    %999 = vmatprep.subr.mxu0 0.0
    %v1000 = vand.u32 %v82, 4294901760
    %v1001 = vsub.f32 %v82, %v1000
    %v1002 = vand.u32 %v1001, 4294901760
    %1003 = vmatpush1.msra.mxu0 %v1002
    %1004 = vmatprep.subr.mxu0 0.0
    %v1005 = vand.u32 %v81, 4294901760
    %v1006 = vsub.f32 %v81, %v1005
    %v1007 = vand.u32 %v1006, 4294901760
    %1008 = vmatpush1.msra.mxu0 %v1007
    %1009 = vmatprep.subr.mxu0 0.0
    %v1010 = vand.u32 %v80, 4294901760
    %v1011 = vsub.f32 %v80, %v1010
    %v1012 = vand.u32 %v1011, 4294901760
    %1013 = vmatpush1.msra.mxu0 %v1012
    %1014 = vmatprep.subr.mxu0 0.0
    %v1015 = vand.u32 %v79, 4294901760
    %v1016 = vsub.f32 %v79, %v1015
    %v1017 = vand.u32 %v1016, 4294901760
    %1018 = vmatpush1.msra.mxu0 %v1017
    %1019 = vmatprep.subr.mxu0 0.0
    %v1020 = vand.u32 %v78, 4294901760
    %v1021 = vsub.f32 %v78, %v1020
    %v1022 = vand.u32 %v1021, 4294901760
    %1023 = vmatpush1.msra.mxu0 %v1022
    %1024 = vmatprep.subr.mxu0 0.0
    %v1025 = vand.u32 %v77, 4294901760
    %v1026 = vsub.f32 %v77, %v1025
    %v1027 = vand.u32 %v1026, 4294901760
    %1028 = vmatpush1.msra.mxu0 %v1027
    %1029 = vmatprep.subr.mxu0 0.0
    %v1030 = vand.u32 %v76, 4294901760
    %v1031 = vsub.f32 %v76, %v1030
    %v1032 = vand.u32 %v1031, 4294901760
    %1033 = vmatpush1.msra.mxu0 %v1032
    %1034 = vmatprep.subr.mxu0 0.0
    %v1035 = vand.u32 %v75, 4294901760
    %v1036 = vsub.f32 %v75, %v1035
    %v1037 = vand.u32 %v1036, 4294901760
    %1038 = vmatpush1.msra.mxu0 %v1037
    %1039 = vmatprep.subr.mxu0 0.0
    %v1040 = vand.u32 %v74, 4294901760
    %v1041 = vsub.f32 %v74, %v1040
    %v1042 = vand.u32 %v1041, 4294901760
    %1043 = vmatpush1.msra.mxu0 %v1042
    %1044 = vmatprep.subr.mxu0 0.0
    %1045 = vmatpush2.msra.mxu0 0.0
    %1046 = vmatprep.subr.mxu0 0.0
    %1047 = vmatpush2.msra.mxu0 0.0
    %1048 = vmatprep.subr.mxu0 0.0
    %1049 = vmatpush2.msra.mxu0 0.0
    %1050 = vmatprep.subr.mxu0 0.0
    %1051 = vmatpush2.msra.mxu0 0.0
    %1052 = vmatprep.subr.mxu0 0.0
    %1053 = vmatpush2.msra.mxu0 0.0
    %1054 = vmatprep.subr.mxu0 0.0
    %1055 = vmatpush2.msra.mxu0 0.0
    %1056 = vmatprep.subr.mxu0 0.0
    %1057 = vmatpush2.msra.mxu0 0.0
    %1058 = vmatprep.subr.mxu0 0.0
    %1059 = vmatpush2.msra.mxu0 0.0
    %1060 = vmatprep.subr.mxu0 0.0
    %1061 = vmatpush2.msra.mxu0 0.0
    %1062 = vmatprep.subr.mxu0 0.0
    %1063 = vmatpush2.msra.mxu0 0.0
    %1064 = vmatprep.subr.mxu0 0.0
    %1065 = vmatpush2.msra.mxu0 0.0
    %1066 = vmatprep.subr.mxu0 0.0
    %1067 = vmatpush2.msra.mxu0 0.0
    %1068 = vmatprep.subr.mxu0 0.0
    %1069 = vmatpush2.msra.mxu0 0.0
    %1070 = vmatprep.subr.mxu0 0.0
    %1071 = vmatpush2.msra.mxu0 0.0
    %1072 = vmatprep.subr.mxu0 0.0
    %1073 = vmatpush2.msra.mxu0 0.0
    %1074 = vmatprep.subr.mxu0 0.0
    %1075 = vmatpush2.msra.mxu0 0.0
    %1076 = vmatprep.mubr.f32.mxu0 0.0
    %v1077 = vand.u32 %v101, 4294901760
    %1078 = vmatmul.mubr.f32.gmra.mxu0 %v1077
    %v1079 = vpop.f32.mrf.mxu0
    %v1080 = vadd.f32 %v862, %v1079
    %v1081 = vpop.f32.mrf.mxu0
    %1082 = vmatprep.mubr.f32.mxu0 0.0
    %v1083 = vand.u32 %v104, 4294901760
    %1084 = vmatmul.mubr.f32.gmra.mxu0 %v1083
    %v1085 = vpop.f32.mrf.mxu0
    %v1086 = vadd.f32 %v870, %v1085
    %v1087 = vpop.f32.mrf.mxu0
    %1088 = vmatprep.mubr.f32.mxu0 0.0
    %v1089 = vand.u32 %v107, 4294901760
    %1090 = vmatmul.mubr.f32.gmra.mxu0 %v1089
    %v1091 = vpop.f32.mrf.mxu0
    %v1092 = vadd.f32 %v878, %v1091
    %v1093 = vpop.f32.mrf.mxu0
    %1094 = vmatprep.mubr.f32.mxu0 0.0
    %v1095 = vand.u32 %v110, 4294901760
    %1096 = vmatmul.mubr.f32.gmra.mxu0 %v1095
    %v1097 = vpop.f32.mrf.mxu0
    %v1098 = vadd.f32 %v886, %v1097
    %v1099 = vpop.f32.mrf.mxu0
    %1100 = vmatprep.mubr.f32.mxu0 0.0
    %v1101 = vand.u32 %v113, 4294901760
    %1102 = vmatmul.mubr.f32.gmra.mxu0 %v1101
    %v1103 = vpop.f32.mrf.mxu0
    %v1104 = vadd.f32 %v894, %v1103
    %v1105 = vpop.f32.mrf.mxu0
    %1106 = vmatprep.mubr.f32.mxu0 0.0
    %v1107 = vand.u32 %v116, 4294901760
    %1108 = vmatmul.mubr.f32.gmra.mxu0 %v1107
    %v1109 = vpop.f32.mrf.mxu0
    %v1110 = vadd.f32 %v902, %v1109
    %v1111 = vpop.f32.mrf.mxu0
    %1112 = vmatprep.mubr.f32.mxu0 0.0
    %v1113 = vand.u32 %v119, 4294901760
    %1114 = vmatmul.mubr.f32.gmra.mxu0 %v1113
    %v1115 = vpop.f32.mrf.mxu0
    %v1116 = vadd.f32 %v910, %v1115
    %v1117 = vpop.f32.mrf.mxu0
    %1118 = vmatprep.mubr.f32.mxu0 0.0
    %v1119 = vand.u32 %v122, 4294901760
    %1120 = vmatmul.mubr.f32.gmra.mxu0 %v1119
    %v1121 = vpop.f32.mrf.mxu0
    %v1122 = vadd.f32 %v918, %v1121
    %v1123 = vpop.f32.mrf.mxu0
    %1124 = vmatprep.mubr.f32.mxu0 0.0
    %v1125 = vand.u32 %v125, 4294901760
    %1126 = vmatmul.mubr.f32.gmra.mxu0 %v1125
    %v1127 = vpop.f32.mrf.mxu0
    %v1128 = vadd.f32 %v926, %v1127
    %v1129 = vpop.f32.mrf.mxu0
    %1130 = vmatprep.mubr.f32.mxu0 0.0
    %v1131 = vand.u32 %v128, 4294901760
    %1132 = vmatmul.mubr.f32.gmra.mxu0 %v1131
    %v1133 = vpop.f32.mrf.mxu0
    %v1134 = vadd.f32 %v934, %v1133
    %v1135 = vpop.f32.mrf.mxu0
    %1136 = vmatprep.mubr.f32.mxu0 0.0
    %v1137 = vand.u32 %v131, 4294901760
    %1138 = vmatmul.mubr.f32.gmra.mxu0 %v1137
    %v1139 = vpop.f32.mrf.mxu0
    %v1140 = vadd.f32 %v942, %v1139
    %v1141 = vpop.f32.mrf.mxu0
    %1142 = vmatprep.mubr.f32.mxu0 0.0
    %v1143 = vand.u32 %v134, 4294901760
    %1144 = vmatmul.mubr.f32.gmra.mxu0 %v1143
    %v1145 = vpop.f32.mrf.mxu0
    %v1146 = vadd.f32 %v950, %v1145
    %v1147 = vpop.f32.mrf.mxu0
    %1148 = vmatprep.mubr.f32.mxu0 0.0
    %v1149 = vand.u32 %v137, 4294901760
    %1150 = vmatmul.mubr.f32.gmra.mxu0 %v1149
    %v1151 = vpop.f32.mrf.mxu0
    %v1152 = vadd.f32 %v958, %v1151
    %v1153 = vpop.f32.mrf.mxu0
    %1154 = vmatprep.mubr.f32.mxu0 0.0
    %v1155 = vand.u32 %v140, 4294901760
    %1156 = vmatmul.mubr.f32.gmra.mxu0 %v1155
    %v1157 = vpop.f32.mrf.mxu0
    %v1158 = vadd.f32 %v966, %v1157
    %v1159 = vpop.f32.mrf.mxu0
    %1160 = vmatprep.mubr.f32.mxu0 0.0
    %v1161 = vand.u32 %v143, 4294901760
    %1162 = vmatmul.mubr.f32.gmra.mxu0 %v1161
    %v1163 = vpop.f32.mrf.mxu0
    %v1164 = vadd.f32 %v974, %v1163
    %v1165 = vpop.f32.mrf.mxu0
    %1166 = vmatprep.mubr.f32.mxu0 0.0
    %v1167 = vand.u32 %v146, 4294901760
    %1168 = vmatmul.mubr.f32.gmra.mxu0 %v1167
    %v1169 = vpop.f32.mrf.mxu0
    %v1170 = vadd.f32 %v982, %v1169
    %v1171 = vpop.f32.mrf.mxu0
    %1172 = vdwg.mxu0
    %1173 = vmatprep.subr.mxu0 0.0
    %1174 = vmatpush1.msra.mxu0 0.0
    %1175 = vmatprep.subr.mxu0 0.0
    %1176 = vmatpush1.msra.mxu0 0.0
    %1177 = vmatprep.subr.mxu0 0.0
    %1178 = vmatpush1.msra.mxu0 0.0
    %1179 = vmatprep.subr.mxu0 0.0
    %1180 = vmatpush1.msra.mxu0 0.0
    %1181 = vmatprep.subr.mxu0 0.0
    %1182 = vmatpush1.msra.mxu0 0.0
    %1183 = vmatprep.subr.mxu0 0.0
    %1184 = vmatpush1.msra.mxu0 0.0
    %1185 = vmatprep.subr.mxu0 0.0
    %1186 = vmatpush1.msra.mxu0 0.0
    %1187 = vmatprep.subr.mxu0 0.0
    %v1188 = vand.u32 %v82, 4294901760
    %1189 = vmatpush1.msra.mxu0 %v1188
    %1190 = vmatprep.subr.mxu0 0.0
    %v1191 = vand.u32 %v81, 4294901760
    %1192 = vmatpush1.msra.mxu0 %v1191
    %1193 = vmatprep.subr.mxu0 0.0
    %v1194 = vand.u32 %v80, 4294901760
    %1195 = vmatpush1.msra.mxu0 %v1194
    %1196 = vmatprep.subr.mxu0 0.0
    %v1197 = vand.u32 %v79, 4294901760
    %1198 = vmatpush1.msra.mxu0 %v1197
    %1199 = vmatprep.subr.mxu0 0.0
    %v1200 = vand.u32 %v78, 4294901760
    %1201 = vmatpush1.msra.mxu0 %v1200
    %1202 = vmatprep.subr.mxu0 0.0
    %v1203 = vand.u32 %v77, 4294901760
    %1204 = vmatpush1.msra.mxu0 %v1203
    %1205 = vmatprep.subr.mxu0 0.0
    %v1206 = vand.u32 %v76, 4294901760
    %1207 = vmatpush1.msra.mxu0 %v1206
    %1208 = vmatprep.subr.mxu0 0.0
    %v1209 = vand.u32 %v75, 4294901760
    %1210 = vmatpush1.msra.mxu0 %v1209
    %1211 = vmatprep.subr.mxu0 0.0
    %v1212 = vand.u32 %v74, 4294901760
    %1213 = vmatpush1.msra.mxu0 %v1212
    %1214 = vmatprep.subr.mxu0 0.0
    %1215 = vmatpush2.msra.mxu0 0.0
    %1216 = vmatprep.subr.mxu0 0.0
    %1217 = vmatpush2.msra.mxu0 0.0
    %1218 = vmatprep.subr.mxu0 0.0
    %1219 = vmatpush2.msra.mxu0 0.0
    %1220 = vmatprep.subr.mxu0 0.0
    %1221 = vmatpush2.msra.mxu0 0.0
    %1222 = vmatprep.subr.mxu0 0.0
    %1223 = vmatpush2.msra.mxu0 0.0
    %1224 = vmatprep.subr.mxu0 0.0
    %1225 = vmatpush2.msra.mxu0 0.0
    %1226 = vmatprep.subr.mxu0 0.0
    %1227 = vmatpush2.msra.mxu0 0.0
    %1228 = vmatprep.subr.mxu0 0.0
    %1229 = vmatpush2.msra.mxu0 0.0
    %1230 = vmatprep.subr.mxu0 0.0
    %1231 = vmatpush2.msra.mxu0 0.0
    %1232 = vmatprep.subr.mxu0 0.0
    %1233 = vmatpush2.msra.mxu0 0.0
    %1234 = vmatprep.subr.mxu0 0.0
    %1235 = vmatpush2.msra.mxu0 0.0
    %1236 = vmatprep.subr.mxu0 0.0
    %1237 = vmatpush2.msra.mxu0 0.0
    %1238 = vmatprep.subr.mxu0 0.0
    %1239 = vmatpush2.msra.mxu0 0.0
    %1240 = vmatprep.subr.mxu0 0.0
    %1241 = vmatpush2.msra.mxu0 0.0
    %1242 = vmatprep.subr.mxu0 0.0
    %1243 = vmatpush2.msra.mxu0 0.0
    %1244 = vmatprep.subr.mxu0 0.0
    %1245 = vmatpush2.msra.mxu0 0.0
    %1246 = vmatprep.mubr.f32.mxu0 0.0
    %v1247 = vand.u32 %v101, 4294901760
    %1248 = vmatmul.mubr.f32.gmra.mxu0 %v1247
    %v1249 = vpop.f32.mrf.mxu0
    %v1250 = vadd.f32 %v1080, %v1249
    %v1251 = vpop.f32.mrf.mxu0
    %1252 = vmatprep.mubr.f32.mxu0 0.0
    %v1253 = vand.u32 %v104, 4294901760
    %1254 = vmatmul.mubr.f32.gmra.mxu0 %v1253
    %v1255 = vpop.f32.mrf.mxu0
    %v1256 = vadd.f32 %v1086, %v1255
    %v1257 = vpop.f32.mrf.mxu0
    %1258 = vmatprep.mubr.f32.mxu0 0.0
    %v1259 = vand.u32 %v107, 4294901760
    %1260 = vmatmul.mubr.f32.gmra.mxu0 %v1259
    %v1261 = vpop.f32.mrf.mxu0
    %v1262 = vadd.f32 %v1092, %v1261
    %v1263 = vpop.f32.mrf.mxu0
    %1264 = vmatprep.mubr.f32.mxu0 0.0
    %v1265 = vand.u32 %v110, 4294901760
    %1266 = vmatmul.mubr.f32.gmra.mxu0 %v1265
    %v1267 = vpop.f32.mrf.mxu0
    %v1268 = vadd.f32 %v1098, %v1267
    %v1269 = vpop.f32.mrf.mxu0
    %1270 = vmatprep.mubr.f32.mxu0 0.0
    %v1271 = vand.u32 %v113, 4294901760
    %1272 = vmatmul.mubr.f32.gmra.mxu0 %v1271
    %v1273 = vpop.f32.mrf.mxu0
    %v1274 = vadd.f32 %v1104, %v1273
    %v1275 = vpop.f32.mrf.mxu0
    %1276 = vmatprep.mubr.f32.mxu0 0.0
    %v1277 = vand.u32 %v116, 4294901760
    %1278 = vmatmul.mubr.f32.gmra.mxu0 %v1277
    %v1279 = vpop.f32.mrf.mxu0
    %v1280 = vadd.f32 %v1110, %v1279
    %v1281 = vpop.f32.mrf.mxu0
    %1282 = vmatprep.mubr.f32.mxu0 0.0
    %v1283 = vand.u32 %v119, 4294901760
    %1284 = vmatmul.mubr.f32.gmra.mxu0 %v1283
    %v1285 = vpop.f32.mrf.mxu0
    %v1286 = vadd.f32 %v1116, %v1285
    %v1287 = vpop.f32.mrf.mxu0
    %1288 = vmatprep.mubr.f32.mxu0 0.0
    %v1289 = vand.u32 %v122, 4294901760
    %1290 = vmatmul.mubr.f32.gmra.mxu0 %v1289
    %v1291 = vpop.f32.mrf.mxu0
    %v1292 = vadd.f32 %v1122, %v1291
    %v1293 = vpop.f32.mrf.mxu0
    %1294 = vmatprep.mubr.f32.mxu0 0.0
    %v1295 = vand.u32 %v125, 4294901760
    %1296 = vmatmul.mubr.f32.gmra.mxu0 %v1295
    %v1297 = vpop.f32.mrf.mxu0
    %v1298 = vadd.f32 %v1128, %v1297
    %v1299 = vpop.f32.mrf.mxu0
    %1300 = vmatprep.mubr.f32.mxu0 0.0
    %v1301 = vand.u32 %v128, 4294901760
    %1302 = vmatmul.mubr.f32.gmra.mxu0 %v1301
    %v1303 = vpop.f32.mrf.mxu0
    %v1304 = vadd.f32 %v1134, %v1303
    %v1305 = vpop.f32.mrf.mxu0
    %1306 = vmatprep.mubr.f32.mxu0 0.0
    %v1307 = vand.u32 %v131, 4294901760
    %1308 = vmatmul.mubr.f32.gmra.mxu0 %v1307
    %v1309 = vpop.f32.mrf.mxu0
    %v1310 = vadd.f32 %v1140, %v1309
    %v1311 = vpop.f32.mrf.mxu0
    %1312 = vmatprep.mubr.f32.mxu0 0.0
    %v1313 = vand.u32 %v134, 4294901760
    %1314 = vmatmul.mubr.f32.gmra.mxu0 %v1313
    %v1315 = vpop.f32.mrf.mxu0
    %v1316 = vadd.f32 %v1146, %v1315
    %v1317 = vpop.f32.mrf.mxu0
    %1318 = vmatprep.mubr.f32.mxu0 0.0
    %v1319 = vand.u32 %v137, 4294901760
    %1320 = vmatmul.mubr.f32.gmra.mxu0 %v1319
    %v1321 = vpop.f32.mrf.mxu0
    %v1322 = vadd.f32 %v1152, %v1321
    %v1323 = vpop.f32.mrf.mxu0
    %1324 = vmatprep.mubr.f32.mxu0 0.0
    %v1325 = vand.u32 %v140, 4294901760
    %1326 = vmatmul.mubr.f32.gmra.mxu0 %v1325
    %v1327 = vpop.f32.mrf.mxu0
    %v1328 = vadd.f32 %v1158, %v1327
    %v1329 = vpop.f32.mrf.mxu0
    %1330 = vmatprep.mubr.f32.mxu0 0.0
    %v1331 = vand.u32 %v143, 4294901760
    %1332 = vmatmul.mubr.f32.gmra.mxu0 %v1331
    %v1333 = vpop.f32.mrf.mxu0
    %v1334 = vadd.f32 %v1164, %v1333
    %v1335 = vpop.f32.mrf.mxu0
    %1336 = vmatprep.mubr.f32.mxu0 0.0
    %v1337 = vand.u32 %v146, 4294901760
    %1338 = vmatmul.mubr.f32.gmra.mxu0 %v1337
    %v1339 = vpop.f32.mrf.mxu0
    %v1340 = vadd.f32 %v1170, %v1339
    %v1341 = vpop.f32.mrf.mxu0
    %1342 = vdwg.mxu0
    %v1343 = vld [vmem:[%s2] sm:$0xff]
    %v1344 = vld [vmem:[%s2 + $0x8] sm:$0xff]
    %v1345 = vld [vmem:[%s2 + $0x10] sm:$0xff]
    %v1346 = vld [vmem:[%s2 + $0x18] sm:$0xff]
    %v1347 = vld [vmem:[%s2 + $0x20] sm:$0xff]
    %v1348 = vld [vmem:[%s2 + $0x28] sm:$0xff]
    %v1349 = vld [vmem:[%s2 + $0x30] sm:$0xff]
    %v1350 = vld [vmem:[%s2 + $0x38] sm:$0xff]
    %v1351 = vld [vmem:[%s2 + $0x40] sm:$0xff]
    %v1352 = vld [vmem:[%s2 + $0x48] sm:$0xff]
    %v1353 = vld [vmem:[%s2 + $0x50] sm:$0xff]
    %v1354 = vld [vmem:[%s2 + $0x58] sm:$0xff]
    %v1355 = vld [vmem:[%s2 + $0x60] sm:$0xff]
    %v1356 = vld [vmem:[%s2 + $0x68] sm:$0xf]
    %s1357 = scalar_lea.vmem %s2, 112
    %v1358 = vld [vmem:[%s1357] sm:$0xff]
    %v1359 = vld [vmem:[%s1357 + $0x8] sm:$0xff]
    %v1360 = vld [vmem:[%s1357 + $0x10] sm:$0xff]
    %v1361 = vld [vmem:[%s1357 + $0x18] sm:$0xff]
    %v1362 = vld [vmem:[%s1357 + $0x20] sm:$0xff]
    %v1363 = vld [vmem:[%s1357 + $0x28] sm:$0xff]
    %v1364 = vld [vmem:[%s1357 + $0x30] sm:$0xff]
    %v1365 = vld [vmem:[%s1357 + $0x38] sm:$0xff]
    %v1366 = vld [vmem:[%s1357 + $0x40] sm:$0xff]
    %v1367 = vld [vmem:[%s1357 + $0x48] sm:$0xff]
    %v1368 = vld [vmem:[%s1357 + $0x50] sm:$0xff]
    %v1369 = vld [vmem:[%s1357 + $0x58] sm:$0xff]
    %v1370 = vld [vmem:[%s1357 + $0x60] sm:$0xff]
    %v1371 = vld [vmem:[%s1357 + $0x68] sm:$0xf]
    %vm1372 = vcmask 883712
    %v1374 = vsel %vm1372, %v1262, 0
    %v1377 = vsel %vm1372, %v1268, 0
    %vm1379 = vcmask 1043456
    %v1381 = vsel %vm1379, %v1371, 0
    %1383 = vmatprep.subr.mxu0 0.0
    %1384 = vmatpush1.msra.mxu0 0.0
    %1385 = vmatprep.subr.mxu0 0.0
    %1386 = vmatpush1.msra.mxu0 0.0
    %1387 = vmatprep.subr.mxu0 0.0
    %v1388 = vand.u32 %v1381, 4294901760
    %1389 = vmatpush1.msra.mxu0 %v1388
    %1390 = vmatprep.subr.mxu0 0.0
    %v1391 = vand.u32 %v1370, 4294901760
    %1392 = vmatpush1.msra.mxu0 %v1391
    %1393 = vmatprep.subr.mxu0 0.0
    %v1394 = vand.u32 %v1369, 4294901760
    %1395 = vmatpush1.msra.mxu0 %v1394
    %1396 = vmatprep.subr.mxu0 0.0
    %v1397 = vand.u32 %v1368, 4294901760
    %1398 = vmatpush1.msra.mxu0 %v1397
    %1399 = vmatprep.subr.mxu0 0.0
    %v1400 = vand.u32 %v1367, 4294901760
    %1401 = vmatpush1.msra.mxu0 %v1400
    %1402 = vmatprep.subr.mxu0 0.0
    %v1403 = vand.u32 %v1366, 4294901760
    %1404 = vmatpush1.msra.mxu0 %v1403
    %1405 = vmatprep.subr.mxu0 0.0
    %v1406 = vand.u32 %v1365, 4294901760
    %1407 = vmatpush1.msra.mxu0 %v1406
    %1408 = vmatprep.subr.mxu0 0.0
    %v1409 = vand.u32 %v1364, 4294901760
    %1410 = vmatpush1.msra.mxu0 %v1409
    %1411 = vmatprep.subr.mxu0 0.0
    %v1412 = vand.u32 %v1363, 4294901760
    %1413 = vmatpush1.msra.mxu0 %v1412
    %1414 = vmatprep.subr.mxu0 0.0
    %v1415 = vand.u32 %v1362, 4294901760
    %1416 = vmatpush1.msra.mxu0 %v1415
    %1417 = vmatprep.subr.mxu0 0.0
    %v1418 = vand.u32 %v1361, 4294901760
    %1419 = vmatpush1.msra.mxu0 %v1418
    %1420 = vmatprep.subr.mxu0 0.0
    %v1421 = vand.u32 %v1360, 4294901760
    %1422 = vmatpush1.msra.mxu0 %v1421
    %1423 = vmatprep.subr.mxu0 0.0
    %v1424 = vand.u32 %v1359, 4294901760
    %1425 = vmatpush1.msra.mxu0 %v1424
    %1426 = vmatprep.subr.mxu0 0.0
    %v1427 = vand.u32 %v1358, 4294901760
    %1428 = vmatpush1.msra.mxu0 %v1427
    %1429 = vmatprep.subr.mxu0 0.0
    %1430 = vmatpush2.msra.mxu0 0.0
    %1431 = vmatprep.subr.mxu0 0.0
    %1432 = vmatpush2.msra.mxu0 0.0
    %1433 = vmatprep.subr.mxu0 0.0
    %1434 = vmatpush2.msra.mxu0 0.0
    %1435 = vmatprep.subr.mxu0 0.0
    %1436 = vmatpush2.msra.mxu0 0.0
    %1437 = vmatprep.subr.mxu0 0.0
    %1438 = vmatpush2.msra.mxu0 0.0
    %1439 = vmatprep.subr.mxu0 0.0
    %1440 = vmatpush2.msra.mxu0 0.0
    %1441 = vmatprep.subr.mxu0 0.0
    %1442 = vmatpush2.msra.mxu0 0.0
    %1443 = vmatprep.subr.mxu0 0.0
    %1444 = vmatpush2.msra.mxu0 0.0
    %1445 = vmatprep.subr.mxu0 0.0
    %1446 = vmatpush2.msra.mxu0 0.0
    %1447 = vmatprep.subr.mxu0 0.0
    %1448 = vmatpush2.msra.mxu0 0.0
    %1449 = vmatprep.subr.mxu0 0.0
    %1450 = vmatpush2.msra.mxu0 0.0
    %1451 = vmatprep.subr.mxu0 0.0
    %1452 = vmatpush2.msra.mxu0 0.0
    %1453 = vmatprep.subr.mxu0 0.0
    %1454 = vmatpush2.msra.mxu0 0.0
    %1455 = vmatprep.subr.mxu0 0.0
    %1456 = vmatpush2.msra.mxu0 0.0
    %1457 = vmatprep.subr.mxu0 0.0
    %1458 = vmatpush2.msra.mxu0 0.0
    %1459 = vmatprep.subr.mxu0 0.0
    %1460 = vmatpush2.msra.mxu0 0.0
    %1461 = vmatprep.mubr.f32.mxu0 0.0
    %v1462 = vand.u32 %v1374, 4294901760
    %v1463 = vsub.f32 %v1374, %v1462
    %v1464 = vand.u32 %v1463, 4294901760
    %v1465 = vsub.f32 %v1463, %v1464
    %v1466 = vand.u32 %v1465, 4294901760
    %1467 = vmatmul.mubr.f32.gmra.mxu0 %v1466
    %v1468 = vpop.f32.mrf.mxu0
    %v1469 = vadd.f32 0.0, %v1468
    %v1470 = vpop.f32.mrf.mxu0
    %1471 = vmatprep.mubr.f32.mxu0 0.0
    %v1472 = vand.u32 %v1377, 4294901760
    %v1473 = vsub.f32 %v1377, %v1472
    %v1474 = vand.u32 %v1473, 4294901760
    %v1475 = vsub.f32 %v1473, %v1474
    %v1476 = vand.u32 %v1475, 4294901760
    %1477 = vmatmul.mubr.f32.gmra.mxu0 %v1476
    %v1478 = vpop.f32.mrf.mxu0
    %v1479 = vadd.f32 0.0, %v1478
    %v1480 = vpop.f32.mrf.mxu0
    %1481 = vdwg.mxu0
    %1482 = vmatprep.subr.mxu0 0.0
    %1483 = vmatpush1.msra.mxu0 0.0
    %1484 = vmatprep.subr.mxu0 0.0
    %1485 = vmatpush1.msra.mxu0 0.0
    %1486 = vmatprep.subr.mxu0 0.0
    %v1487 = vand.u32 %v1381, 4294901760
    %v1488 = vsub.f32 %v1381, %v1487
    %v1489 = vand.u32 %v1488, 4294901760
    %v1490 = vsub.f32 %v1488, %v1489
    %v1491 = vand.u32 %v1490, 4294901760
    %1492 = vmatpush1.msra.mxu0 %v1491
    %1493 = vmatprep.subr.mxu0 0.0
    %v1494 = vand.u32 %v1370, 4294901760
    %v1495 = vsub.f32 %v1370, %v1494
    %v1496 = vand.u32 %v1495, 4294901760
    %v1497 = vsub.f32 %v1495, %v1496
    %v1498 = vand.u32 %v1497, 4294901760
    %1499 = vmatpush1.msra.mxu0 %v1498
    %1500 = vmatprep.subr.mxu0 0.0
    %v1501 = vand.u32 %v1369, 4294901760
    %v1502 = vsub.f32 %v1369, %v1501
    %v1503 = vand.u32 %v1502, 4294901760
    %v1504 = vsub.f32 %v1502, %v1503
    %v1505 = vand.u32 %v1504, 4294901760
    %1506 = vmatpush1.msra.mxu0 %v1505
    %1507 = vmatprep.subr.mxu0 0.0
    %v1508 = vand.u32 %v1368, 4294901760
    %v1509 = vsub.f32 %v1368, %v1508
    %v1510 = vand.u32 %v1509, 4294901760
    %v1511 = vsub.f32 %v1509, %v1510
    %v1512 = vand.u32 %v1511, 4294901760
    %1513 = vmatpush1.msra.mxu0 %v1512
    %1514 = vmatprep.subr.mxu0 0.0
    %v1515 = vand.u32 %v1367, 4294901760
    %v1516 = vsub.f32 %v1367, %v1515
    %v1517 = vand.u32 %v1516, 4294901760
    %v1518 = vsub.f32 %v1516, %v1517
    %v1519 = vand.u32 %v1518, 4294901760
    %1520 = vmatpush1.msra.mxu0 %v1519
    %1521 = vmatprep.subr.mxu0 0.0
    %v1522 = vand.u32 %v1366, 4294901760
    %v1523 = vsub.f32 %v1366, %v1522
    %v1524 = vand.u32 %v1523, 4294901760
    %v1525 = vsub.f32 %v1523, %v1524
    %v1526 = vand.u32 %v1525, 4294901760
    %1527 = vmatpush1.msra.mxu0 %v1526
    %1528 = vmatprep.subr.mxu0 0.0
    %v1529 = vand.u32 %v1365, 4294901760
    %v1530 = vsub.f32 %v1365, %v1529
    %v1531 = vand.u32 %v1530, 4294901760
    %v1532 = vsub.f32 %v1530, %v1531
    %v1533 = vand.u32 %v1532, 4294901760
    %1534 = vmatpush1.msra.mxu0 %v1533
    %1535 = vmatprep.subr.mxu0 0.0
    %v1536 = vand.u32 %v1364, 4294901760
    %v1537 = vsub.f32 %v1364, %v1536
    %v1538 = vand.u32 %v1537, 4294901760
    %v1539 = vsub.f32 %v1537, %v1538
    %v1540 = vand.u32 %v1539, 4294901760
    %1541 = vmatpush1.msra.mxu0 %v1540
    %1542 = vmatprep.subr.mxu0 0.0
    %v1543 = vand.u32 %v1363, 4294901760
    %v1544 = vsub.f32 %v1363, %v1543
    %v1545 = vand.u32 %v1544, 4294901760
    %v1546 = vsub.f32 %v1544, %v1545
    %v1547 = vand.u32 %v1546, 4294901760
    %1548 = vmatpush1.msra.mxu0 %v1547
    %1549 = vmatprep.subr.mxu0 0.0
    %v1550 = vand.u32 %v1362, 4294901760
    %v1551 = vsub.f32 %v1362, %v1550
    %v1552 = vand.u32 %v1551, 4294901760
    %v1553 = vsub.f32 %v1551, %v1552
    %v1554 = vand.u32 %v1553, 4294901760
    %1555 = vmatpush1.msra.mxu0 %v1554
    %1556 = vmatprep.subr.mxu0 0.0
    %v1557 = vand.u32 %v1361, 4294901760
    %v1558 = vsub.f32 %v1361, %v1557
    %v1559 = vand.u32 %v1558, 4294901760
    %v1560 = vsub.f32 %v1558, %v1559
    %v1561 = vand.u32 %v1560, 4294901760
    %1562 = vmatpush1.msra.mxu0 %v1561
    %1563 = vmatprep.subr.mxu0 0.0
    %v1564 = vand.u32 %v1360, 4294901760
    %v1565 = vsub.f32 %v1360, %v1564
    %v1566 = vand.u32 %v1565, 4294901760
    %v1567 = vsub.f32 %v1565, %v1566
    %v1568 = vand.u32 %v1567, 4294901760
    %1569 = vmatpush1.msra.mxu0 %v1568
    %1570 = vmatprep.subr.mxu0 0.0
    %v1571 = vand.u32 %v1359, 4294901760
    %v1572 = vsub.f32 %v1359, %v1571
    %v1573 = vand.u32 %v1572, 4294901760
    %v1574 = vsub.f32 %v1572, %v1573
    %v1575 = vand.u32 %v1574, 4294901760
    %1576 = vmatpush1.msra.mxu0 %v1575
    %1577 = vmatprep.subr.mxu0 0.0
    %v1578 = vand.u32 %v1358, 4294901760
    %v1579 = vsub.f32 %v1358, %v1578
    %v1580 = vand.u32 %v1579, 4294901760
    %v1581 = vsub.f32 %v1579, %v1580
    %v1582 = vand.u32 %v1581, 4294901760
    %1583 = vmatpush1.msra.mxu0 %v1582
    %1584 = vmatprep.subr.mxu0 0.0
    %1585 = vmatpush2.msra.mxu0 0.0
    %1586 = vmatprep.subr.mxu0 0.0
    %1587 = vmatpush2.msra.mxu0 0.0
    %1588 = vmatprep.subr.mxu0 0.0
    %1589 = vmatpush2.msra.mxu0 0.0
    %1590 = vmatprep.subr.mxu0 0.0
    %1591 = vmatpush2.msra.mxu0 0.0
    %1592 = vmatprep.subr.mxu0 0.0
    %1593 = vmatpush2.msra.mxu0 0.0
    %1594 = vmatprep.subr.mxu0 0.0
    %1595 = vmatpush2.msra.mxu0 0.0
    %1596 = vmatprep.subr.mxu0 0.0
    %1597 = vmatpush2.msra.mxu0 0.0
    %1598 = vmatprep.subr.mxu0 0.0
    %1599 = vmatpush2.msra.mxu0 0.0
    %1600 = vmatprep.subr.mxu0 0.0
    %1601 = vmatpush2.msra.mxu0 0.0
    %1602 = vmatprep.subr.mxu0 0.0
    %1603 = vmatpush2.msra.mxu0 0.0
    %1604 = vmatprep.subr.mxu0 0.0
    %1605 = vmatpush2.msra.mxu0 0.0
    %1606 = vmatprep.subr.mxu0 0.0
    %1607 = vmatpush2.msra.mxu0 0.0
    %1608 = vmatprep.subr.mxu0 0.0
    %1609 = vmatpush2.msra.mxu0 0.0
    %1610 = vmatprep.subr.mxu0 0.0
    %1611 = vmatpush2.msra.mxu0 0.0
    %1612 = vmatprep.subr.mxu0 0.0
    %1613 = vmatpush2.msra.mxu0 0.0
    %1614 = vmatprep.subr.mxu0 0.0
    %1615 = vmatpush2.msra.mxu0 0.0
    %1616 = vmatprep.mubr.f32.mxu0 0.0
    %v1617 = vand.u32 %v1374, 4294901760
    %1618 = vmatmul.mubr.f32.gmra.mxu0 %v1617
    %v1619 = vpop.f32.mrf.mxu0
    %v1620 = vadd.f32 %v1469, %v1619
    %v1621 = vpop.f32.mrf.mxu0
    %1622 = vmatprep.mubr.f32.mxu0 0.0
    %v1623 = vand.u32 %v1377, 4294901760
    %1624 = vmatmul.mubr.f32.gmra.mxu0 %v1623
    %v1625 = vpop.f32.mrf.mxu0
    %v1626 = vadd.f32 %v1479, %v1625
    %v1627 = vpop.f32.mrf.mxu0
    %1628 = vdwg.mxu0
    %1629 = vmatprep.subr.mxu0 0.0
    %1630 = vmatpush1.msra.mxu0 0.0
    %1631 = vmatprep.subr.mxu0 0.0
    %1632 = vmatpush1.msra.mxu0 0.0
    %1633 = vmatprep.subr.mxu0 0.0
    %v1634 = vand.u32 %v1381, 4294901760
    %v1635 = vsub.f32 %v1381, %v1634
    %1636 = vmatpush1.msra.mxu0 %v1635
    %1637 = vmatprep.subr.mxu0 0.0
    %v1638 = vand.u32 %v1370, 4294901760
    %v1639 = vsub.f32 %v1370, %v1638
    %1640 = vmatpush1.msra.mxu0 %v1639
    %1641 = vmatprep.subr.mxu0 0.0
    %v1642 = vand.u32 %v1369, 4294901760
    %v1643 = vsub.f32 %v1369, %v1642
    %1644 = vmatpush1.msra.mxu0 %v1643
    %1645 = vmatprep.subr.mxu0 0.0
    %v1646 = vand.u32 %v1368, 4294901760
    %v1647 = vsub.f32 %v1368, %v1646
    %1648 = vmatpush1.msra.mxu0 %v1647
    %1649 = vmatprep.subr.mxu0 0.0
    %v1650 = vand.u32 %v1367, 4294901760
    %v1651 = vsub.f32 %v1367, %v1650
    %1652 = vmatpush1.msra.mxu0 %v1651
    %1653 = vmatprep.subr.mxu0 0.0
    %v1654 = vand.u32 %v1366, 4294901760
    %v1655 = vsub.f32 %v1366, %v1654
    %1656 = vmatpush1.msra.mxu0 %v1655
    %1657 = vmatprep.subr.mxu0 0.0
    %v1658 = vand.u32 %v1365, 4294901760
    %v1659 = vsub.f32 %v1365, %v1658
    %1660 = vmatpush1.msra.mxu0 %v1659
    %1661 = vmatprep.subr.mxu0 0.0
    %v1662 = vand.u32 %v1364, 4294901760
    %v1663 = vsub.f32 %v1364, %v1662
    %1664 = vmatpush1.msra.mxu0 %v1663
    %1665 = vmatprep.subr.mxu0 0.0
    %v1666 = vand.u32 %v1363, 4294901760
    %v1667 = vsub.f32 %v1363, %v1666
    %1668 = vmatpush1.msra.mxu0 %v1667
    %1669 = vmatprep.subr.mxu0 0.0
    %v1670 = vand.u32 %v1362, 4294901760
    %v1671 = vsub.f32 %v1362, %v1670
    %1672 = vmatpush1.msra.mxu0 %v1671
    %1673 = vmatprep.subr.mxu0 0.0
    %v1674 = vand.u32 %v1361, 4294901760
    %v1675 = vsub.f32 %v1361, %v1674
    %1676 = vmatpush1.msra.mxu0 %v1675
    %1677 = vmatprep.subr.mxu0 0.0
    %v1678 = vand.u32 %v1360, 4294901760
    %v1679 = vsub.f32 %v1360, %v1678
    %1680 = vmatpush1.msra.mxu0 %v1679
    %1681 = vmatprep.subr.mxu0 0.0
    %v1682 = vand.u32 %v1359, 4294901760
    %v1683 = vsub.f32 %v1359, %v1682
    %1684 = vmatpush1.msra.mxu0 %v1683
    %1685 = vmatprep.subr.mxu0 0.0
    %v1686 = vand.u32 %v1358, 4294901760
    %v1687 = vsub.f32 %v1358, %v1686
    %1688 = vmatpush1.msra.mxu0 %v1687
    %1689 = vmatprep.subr.mxu0 0.0
    %1690 = vmatpush2.msra.mxu0 0.0
    %1691 = vmatprep.subr.mxu0 0.0
    %1692 = vmatpush2.msra.mxu0 0.0
    %1693 = vmatprep.subr.mxu0 0.0
    %1694 = vmatpush2.msra.mxu0 0.0
    %1695 = vmatprep.subr.mxu0 0.0
    %1696 = vmatpush2.msra.mxu0 0.0
    %1697 = vmatprep.subr.mxu0 0.0
    %1698 = vmatpush2.msra.mxu0 0.0
    %1699 = vmatprep.subr.mxu0 0.0
    %1700 = vmatpush2.msra.mxu0 0.0
    %1701 = vmatprep.subr.mxu0 0.0
    %1702 = vmatpush2.msra.mxu0 0.0
    %1703 = vmatprep.subr.mxu0 0.0
    %1704 = vmatpush2.msra.mxu0 0.0
    %1705 = vmatprep.subr.mxu0 0.0
    %1706 = vmatpush2.msra.mxu0 0.0
    %1707 = vmatprep.subr.mxu0 0.0
    %1708 = vmatpush2.msra.mxu0 0.0
    %1709 = vmatprep.subr.mxu0 0.0
    %1710 = vmatpush2.msra.mxu0 0.0
    %1711 = vmatprep.subr.mxu0 0.0
    %1712 = vmatpush2.msra.mxu0 0.0
    %1713 = vmatprep.subr.mxu0 0.0
    %1714 = vmatpush2.msra.mxu0 0.0
    %1715 = vmatprep.subr.mxu0 0.0
    %1716 = vmatpush2.msra.mxu0 0.0
    %1717 = vmatprep.subr.mxu0 0.0
    %1718 = vmatpush2.msra.mxu0 0.0
    %1719 = vmatprep.subr.mxu0 0.0
    %1720 = vmatpush2.msra.mxu0 0.0
    %1721 = vmatprep.mubr.f32.mxu0 0.0
    %v1722 = vand.u32 %v1374, 4294901760
    %v1723 = vsub.f32 %v1374, %v1722
    %1724 = vmatmul.mubr.f32.gmra.mxu0 %v1723
    %v1725 = vpop.f32.mrf.mxu0
    %v1726 = vadd.f32 %v1620, %v1725
    %v1727 = vpop.f32.mrf.mxu0
    %1728 = vmatprep.mubr.f32.mxu0 0.0
    %v1729 = vand.u32 %v1377, 4294901760
    %v1730 = vsub.f32 %v1377, %v1729
    %1731 = vmatmul.mubr.f32.gmra.mxu0 %v1730
    %v1732 = vpop.f32.mrf.mxu0
    %v1733 = vadd.f32 %v1626, %v1732
    %v1734 = vpop.f32.mrf.mxu0
    %1735 = vdwg.mxu0
    %1736 = vmatprep.subr.mxu0 0.0
    %1737 = vmatpush1.msra.mxu0 0.0
    %1738 = vmatprep.subr.mxu0 0.0
    %1739 = vmatpush1.msra.mxu0 0.0
    %1740 = vmatprep.subr.mxu0 0.0
    %v1741 = vand.u32 %v1381, 4294901760
    %1742 = vmatpush1.msra.mxu0 %v1741
    %1743 = vmatprep.subr.mxu0 0.0
    %v1744 = vand.u32 %v1370, 4294901760
    %1745 = vmatpush1.msra.mxu0 %v1744
    %1746 = vmatprep.subr.mxu0 0.0
    %v1747 = vand.u32 %v1369, 4294901760
    %1748 = vmatpush1.msra.mxu0 %v1747
    %1749 = vmatprep.subr.mxu0 0.0
    %v1750 = vand.u32 %v1368, 4294901760
    %1751 = vmatpush1.msra.mxu0 %v1750
    %1752 = vmatprep.subr.mxu0 0.0
    %v1753 = vand.u32 %v1367, 4294901760
    %1754 = vmatpush1.msra.mxu0 %v1753
    %1755 = vmatprep.subr.mxu0 0.0
    %v1756 = vand.u32 %v1366, 4294901760
    %1757 = vmatpush1.msra.mxu0 %v1756
    %1758 = vmatprep.subr.mxu0 0.0
    %v1759 = vand.u32 %v1365, 4294901760
    %1760 = vmatpush1.msra.mxu0 %v1759
    %1761 = vmatprep.subr.mxu0 0.0
    %v1762 = vand.u32 %v1364, 4294901760
    %1763 = vmatpush1.msra.mxu0 %v1762
    %1764 = vmatprep.subr.mxu0 0.0
    %v1765 = vand.u32 %v1363, 4294901760
    %1766 = vmatpush1.msra.mxu0 %v1765
    %1767 = vmatprep.subr.mxu0 0.0
    %v1768 = vand.u32 %v1362, 4294901760
    %1769 = vmatpush1.msra.mxu0 %v1768
    %1770 = vmatprep.subr.mxu0 0.0
    %v1771 = vand.u32 %v1361, 4294901760
    %1772 = vmatpush1.msra.mxu0 %v1771
    %1773 = vmatprep.subr.mxu0 0.0
    %v1774 = vand.u32 %v1360, 4294901760
    %1775 = vmatpush1.msra.mxu0 %v1774
    %1776 = vmatprep.subr.mxu0 0.0
    %v1777 = vand.u32 %v1359, 4294901760
    %1778 = vmatpush1.msra.mxu0 %v1777
    %1779 = vmatprep.subr.mxu0 0.0
    %v1780 = vand.u32 %v1358, 4294901760
    %1781 = vmatpush1.msra.mxu0 %v1780
    %1782 = vmatprep.subr.mxu0 0.0
    %1783 = vmatpush2.msra.mxu0 0.0
    %1784 = vmatprep.subr.mxu0 0.0
    %1785 = vmatpush2.msra.mxu0 0.0
    %1786 = vmatprep.subr.mxu0 0.0
    %1787 = vmatpush2.msra.mxu0 0.0
    %1788 = vmatprep.subr.mxu0 0.0
    %1789 = vmatpush2.msra.mxu0 0.0
    %1790 = vmatprep.subr.mxu0 0.0
    %1791 = vmatpush2.msra.mxu0 0.0
    %1792 = vmatprep.subr.mxu0 0.0
    %1793 = vmatpush2.msra.mxu0 0.0
    %1794 = vmatprep.subr.mxu0 0.0
    %1795 = vmatpush2.msra.mxu0 0.0
    %1796 = vmatprep.subr.mxu0 0.0
    %1797 = vmatpush2.msra.mxu0 0.0
    %1798 = vmatprep.subr.mxu0 0.0
    %1799 = vmatpush2.msra.mxu0 0.0
    %1800 = vmatprep.subr.mxu0 0.0
    %1801 = vmatpush2.msra.mxu0 0.0
    %1802 = vmatprep.subr.mxu0 0.0
    %1803 = vmatpush2.msra.mxu0 0.0
    %1804 = vmatprep.subr.mxu0 0.0
    %1805 = vmatpush2.msra.mxu0 0.0
    %1806 = vmatprep.subr.mxu0 0.0
    %1807 = vmatpush2.msra.mxu0 0.0
    %1808 = vmatprep.subr.mxu0 0.0
    %1809 = vmatpush2.msra.mxu0 0.0
    %1810 = vmatprep.subr.mxu0 0.0
    %1811 = vmatpush2.msra.mxu0 0.0
    %1812 = vmatprep.subr.mxu0 0.0
    %1813 = vmatpush2.msra.mxu0 0.0
    %1814 = vmatprep.mubr.f32.mxu0 0.0
    %v1815 = vand.u32 %v1374, 4294901760
    %v1816 = vsub.f32 %v1374, %v1815
    %v1817 = vand.u32 %v1816, 4294901760
    %1818 = vmatmul.mubr.f32.gmra.mxu0 %v1817
    %v1819 = vpop.f32.mrf.mxu0
    %v1820 = vadd.f32 %v1726, %v1819
    %v1821 = vpop.f32.mrf.mxu0
    %1822 = vmatprep.mubr.f32.mxu0 0.0
    %v1823 = vand.u32 %v1377, 4294901760
    %v1824 = vsub.f32 %v1377, %v1823
    %v1825 = vand.u32 %v1824, 4294901760
    %1826 = vmatmul.mubr.f32.gmra.mxu0 %v1825
    %v1827 = vpop.f32.mrf.mxu0
    %v1828 = vadd.f32 %v1733, %v1827
    %v1829 = vpop.f32.mrf.mxu0
    %1830 = vdwg.mxu0
    %1831 = vmatprep.subr.mxu0 0.0
    %1832 = vmatpush1.msra.mxu0 0.0
    %1833 = vmatprep.subr.mxu0 0.0
    %1834 = vmatpush1.msra.mxu0 0.0
    %1835 = vmatprep.subr.mxu0 0.0
    %v1836 = vand.u32 %v1381, 4294901760
    %v1837 = vsub.f32 %v1381, %v1836
    %v1838 = vand.u32 %v1837, 4294901760
    %1839 = vmatpush1.msra.mxu0 %v1838
    %1840 = vmatprep.subr.mxu0 0.0
    %v1841 = vand.u32 %v1370, 4294901760
    %v1842 = vsub.f32 %v1370, %v1841
    %v1843 = vand.u32 %v1842, 4294901760
    %1844 = vmatpush1.msra.mxu0 %v1843
    %1845 = vmatprep.subr.mxu0 0.0
    %v1846 = vand.u32 %v1369, 4294901760
    %v1847 = vsub.f32 %v1369, %v1846
    %v1848 = vand.u32 %v1847, 4294901760
    %1849 = vmatpush1.msra.mxu0 %v1848
    %1850 = vmatprep.subr.mxu0 0.0
    %v1851 = vand.u32 %v1368, 4294901760
    %v1852 = vsub.f32 %v1368, %v1851
    %v1853 = vand.u32 %v1852, 4294901760
    %1854 = vmatpush1.msra.mxu0 %v1853
    %1855 = vmatprep.subr.mxu0 0.0
    %v1856 = vand.u32 %v1367, 4294901760
    %v1857 = vsub.f32 %v1367, %v1856
    %v1858 = vand.u32 %v1857, 4294901760
    %1859 = vmatpush1.msra.mxu0 %v1858
    %1860 = vmatprep.subr.mxu0 0.0
    %v1861 = vand.u32 %v1366, 4294901760
    %v1862 = vsub.f32 %v1366, %v1861
    %v1863 = vand.u32 %v1862, 4294901760
    %1864 = vmatpush1.msra.mxu0 %v1863
    %1865 = vmatprep.subr.mxu0 0.0
    %v1866 = vand.u32 %v1365, 4294901760
    %v1867 = vsub.f32 %v1365, %v1866
    %v1868 = vand.u32 %v1867, 4294901760
    %1869 = vmatpush1.msra.mxu0 %v1868
    %1870 = vmatprep.subr.mxu0 0.0
    %v1871 = vand.u32 %v1364, 4294901760
    %v1872 = vsub.f32 %v1364, %v1871
    %v1873 = vand.u32 %v1872, 4294901760
    %1874 = vmatpush1.msra.mxu0 %v1873
    %1875 = vmatprep.subr.mxu0 0.0
    %v1876 = vand.u32 %v1363, 4294901760
    %v1877 = vsub.f32 %v1363, %v1876
    %v1878 = vand.u32 %v1877, 4294901760
    %1879 = vmatpush1.msra.mxu0 %v1878
    %1880 = vmatprep.subr.mxu0 0.0
    %v1881 = vand.u32 %v1362, 4294901760
    %v1882 = vsub.f32 %v1362, %v1881
    %v1883 = vand.u32 %v1882, 4294901760
    %1884 = vmatpush1.msra.mxu0 %v1883
    %1885 = vmatprep.subr.mxu0 0.0
    %v1886 = vand.u32 %v1361, 4294901760
    %v1887 = vsub.f32 %v1361, %v1886
    %v1888 = vand.u32 %v1887, 4294901760
    %1889 = vmatpush1.msra.mxu0 %v1888
    %1890 = vmatprep.subr.mxu0 0.0
    %v1891 = vand.u32 %v1360, 4294901760
    %v1892 = vsub.f32 %v1360, %v1891
    %v1893 = vand.u32 %v1892, 4294901760
    %1894 = vmatpush1.msra.mxu0 %v1893
    %1895 = vmatprep.subr.mxu0 0.0
    %v1896 = vand.u32 %v1359, 4294901760
    %v1897 = vsub.f32 %v1359, %v1896
    %v1898 = vand.u32 %v1897, 4294901760
    %1899 = vmatpush1.msra.mxu0 %v1898
    %1900 = vmatprep.subr.mxu0 0.0
    %v1901 = vand.u32 %v1358, 4294901760
    %v1902 = vsub.f32 %v1358, %v1901
    %v1903 = vand.u32 %v1902, 4294901760
    %1904 = vmatpush1.msra.mxu0 %v1903
    %1905 = vmatprep.subr.mxu0 0.0
    %1906 = vmatpush2.msra.mxu0 0.0
    %1907 = vmatprep.subr.mxu0 0.0
    %1908 = vmatpush2.msra.mxu0 0.0
    %1909 = vmatprep.subr.mxu0 0.0
    %1910 = vmatpush2.msra.mxu0 0.0
    %1911 = vmatprep.subr.mxu0 0.0
    %1912 = vmatpush2.msra.mxu0 0.0
    %1913 = vmatprep.subr.mxu0 0.0
    %1914 = vmatpush2.msra.mxu0 0.0
    %1915 = vmatprep.subr.mxu0 0.0
    %1916 = vmatpush2.msra.mxu0 0.0
    %1917 = vmatprep.subr.mxu0 0.0
    %1918 = vmatpush2.msra.mxu0 0.0
    %1919 = vmatprep.subr.mxu0 0.0
    %1920 = vmatpush2.msra.mxu0 0.0
    %1921 = vmatprep.subr.mxu0 0.0
    %1922 = vmatpush2.msra.mxu0 0.0
    %1923 = vmatprep.subr.mxu0 0.0
    %1924 = vmatpush2.msra.mxu0 0.0
    %1925 = vmatprep.subr.mxu0 0.0
    %1926 = vmatpush2.msra.mxu0 0.0
    %1927 = vmatprep.subr.mxu0 0.0
    %1928 = vmatpush2.msra.mxu0 0.0
    %1929 = vmatprep.subr.mxu0 0.0
    %1930 = vmatpush2.msra.mxu0 0.0
    %1931 = vmatprep.subr.mxu0 0.0
    %1932 = vmatpush2.msra.mxu0 0.0
    %1933 = vmatprep.subr.mxu0 0.0
    %1934 = vmatpush2.msra.mxu0 0.0
    %1935 = vmatprep.subr.mxu0 0.0
    %1936 = vmatpush2.msra.mxu0 0.0
    %1937 = vmatprep.mubr.f32.mxu0 0.0
    %v1938 = vand.u32 %v1374, 4294901760
    %1939 = vmatmul.mubr.f32.gmra.mxu0 %v1938
    %v1940 = vpop.f32.mrf.mxu0
    %v1941 = vadd.f32 %v1820, %v1940
    %v1942 = vpop.f32.mrf.mxu0
    %1943 = vmatprep.mubr.f32.mxu0 0.0
    %v1944 = vand.u32 %v1377, 4294901760
    %1945 = vmatmul.mubr.f32.gmra.mxu0 %v1944
    %v1946 = vpop.f32.mrf.mxu0
    %v1947 = vadd.f32 %v1828, %v1946
    %v1948 = vpop.f32.mrf.mxu0
    %1949 = vdwg.mxu0
    %1950 = vmatprep.subr.mxu0 0.0
    %1951 = vmatpush1.msra.mxu0 0.0
    %1952 = vmatprep.subr.mxu0 0.0
    %1953 = vmatpush1.msra.mxu0 0.0
    %1954 = vmatprep.subr.mxu0 0.0
    %v1955 = vand.u32 %v1381, 4294901760
    %1956 = vmatpush1.msra.mxu0 %v1955
    %1957 = vmatprep.subr.mxu0 0.0
    %v1958 = vand.u32 %v1370, 4294901760
    %1959 = vmatpush1.msra.mxu0 %v1958
    %1960 = vmatprep.subr.mxu0 0.0
    %v1961 = vand.u32 %v1369, 4294901760
    %1962 = vmatpush1.msra.mxu0 %v1961
    %1963 = vmatprep.subr.mxu0 0.0
    %v1964 = vand.u32 %v1368, 4294901760
    %1965 = vmatpush1.msra.mxu0 %v1964
    %1966 = vmatprep.subr.mxu0 0.0
    %v1967 = vand.u32 %v1367, 4294901760
    %1968 = vmatpush1.msra.mxu0 %v1967
    %1969 = vmatprep.subr.mxu0 0.0
    %v1970 = vand.u32 %v1366, 4294901760
    %1971 = vmatpush1.msra.mxu0 %v1970
    %1972 = vmatprep.subr.mxu0 0.0
    %v1973 = vand.u32 %v1365, 4294901760
    %1974 = vmatpush1.msra.mxu0 %v1973
    %1975 = vmatprep.subr.mxu0 0.0
    %v1976 = vand.u32 %v1364, 4294901760
    %1977 = vmatpush1.msra.mxu0 %v1976
    %1978 = vmatprep.subr.mxu0 0.0
    %v1979 = vand.u32 %v1363, 4294901760
    %1980 = vmatpush1.msra.mxu0 %v1979
    %1981 = vmatprep.subr.mxu0 0.0
    %v1982 = vand.u32 %v1362, 4294901760
    %1983 = vmatpush1.msra.mxu0 %v1982
    %1984 = vmatprep.subr.mxu0 0.0
    %v1985 = vand.u32 %v1361, 4294901760
    %1986 = vmatpush1.msra.mxu0 %v1985
    %1987 = vmatprep.subr.mxu0 0.0
    %v1988 = vand.u32 %v1360, 4294901760
    %1989 = vmatpush1.msra.mxu0 %v1988
    %1990 = vmatprep.subr.mxu0 0.0
    %v1991 = vand.u32 %v1359, 4294901760
    %1992 = vmatpush1.msra.mxu0 %v1991
    %1993 = vmatprep.subr.mxu0 0.0
    %v1994 = vand.u32 %v1358, 4294901760
    %1995 = vmatpush1.msra.mxu0 %v1994
    %1996 = vmatprep.subr.mxu0 0.0
    %1997 = vmatpush2.msra.mxu0 0.0
    %1998 = vmatprep.subr.mxu0 0.0
    %1999 = vmatpush2.msra.mxu0 0.0
    %2000 = vmatprep.subr.mxu0 0.0
    %2001 = vmatpush2.msra.mxu0 0.0
    %2002 = vmatprep.subr.mxu0 0.0
    %2003 = vmatpush2.msra.mxu0 0.0
    %2004 = vmatprep.subr.mxu0 0.0
    %2005 = vmatpush2.msra.mxu0 0.0
    %2006 = vmatprep.subr.mxu0 0.0
    %2007 = vmatpush2.msra.mxu0 0.0
    %2008 = vmatprep.subr.mxu0 0.0
    %2009 = vmatpush2.msra.mxu0 0.0
    %2010 = vmatprep.subr.mxu0 0.0
    %2011 = vmatpush2.msra.mxu0 0.0
    %2012 = vmatprep.subr.mxu0 0.0
    %2013 = vmatpush2.msra.mxu0 0.0
    %2014 = vmatprep.subr.mxu0 0.0
    %2015 = vmatpush2.msra.mxu0 0.0
    %2016 = vmatprep.subr.mxu0 0.0
    %2017 = vmatpush2.msra.mxu0 0.0
    %2018 = vmatprep.subr.mxu0 0.0
    %2019 = vmatpush2.msra.mxu0 0.0
    %2020 = vmatprep.subr.mxu0 0.0
    %2021 = vmatpush2.msra.mxu0 0.0
    %2022 = vmatprep.subr.mxu0 0.0
    %2023 = vmatpush2.msra.mxu0 0.0
    %2024 = vmatprep.subr.mxu0 0.0
    %2025 = vmatpush2.msra.mxu0 0.0
    %2026 = vmatprep.subr.mxu0 0.0
    %2027 = vmatpush2.msra.mxu0 0.0
    %2028 = vmatprep.mubr.f32.mxu0 0.0
    %v2029 = vand.u32 %v1374, 4294901760
    %2030 = vmatmul.mubr.f32.gmra.mxu0 %v2029
    %v2031 = vpop.f32.mrf.mxu0
    %v2032 = vadd.f32 %v1941, %v2031
    %v2033 = vpop.f32.mrf.mxu0
    %2034 = vmatprep.mubr.f32.mxu0 0.0
    %v2035 = vand.u32 %v1377, 4294901760
    %2036 = vmatmul.mubr.f32.gmra.mxu0 %v2035
    %v2037 = vpop.f32.mrf.mxu0
    %v2038 = vadd.f32 %v1947, %v2037
    %v2039 = vpop.f32.mrf.mxu0
    %2040 = vdwg.mxu0
    %s2041 = scalar_lea.vmem %s2, 224
    %v2042 = vld [vmem:[%s2041] sm:$0xff]
    %v2043 = vld [vmem:[%s2041 + $0x8] sm:$0xff]
    %v2044 = vld [vmem:[%s2041 + $0x10] sm:$0xff]
    %v2045 = vld [vmem:[%s2041 + $0x18] sm:$0xff]
    %v2046 = vld [vmem:[%s2041 + $0x20] sm:$0xff]
    %v2047 = vld [vmem:[%s2041 + $0x28] sm:$0xff]
    %v2048 = vld [vmem:[%s2041 + $0x30] sm:$0xff]
    %v2049 = vld [vmem:[%s2041 + $0x38] sm:$0xff]
    %v2050 = vld [vmem:[%s2041 + $0x40] sm:$0xff]
    %v2051 = vld [vmem:[%s2041 + $0x48] sm:$0xff]
    %v2052 = vld [vmem:[%s2041 + $0x50] sm:$0xff]
    %v2053 = vld [vmem:[%s2041 + $0x58] sm:$0xff]
    %v2054 = vld [vmem:[%s2041 + $0x60] sm:$0xff]
    %v2055 = vld [vmem:[%s2041 + $0x68] sm:$0xf]
    %s2056 = scalar_lea.vmem %s2, 336
    %v2057 = vld [vmem:[%s2056] sm:$0xff]
    %v2058 = vld [vmem:[%s2056 + $0x8] sm:$0xff]
    %v2059 = vld [vmem:[%s2056 + $0x10] sm:$0xff]
    %v2060 = vld [vmem:[%s2056 + $0x18] sm:$0xff]
    %v2061 = vld [vmem:[%s2056 + $0x20] sm:$0xff]
    %v2062 = vld [vmem:[%s2056 + $0x28] sm:$0xff]
    %v2063 = vld [vmem:[%s2056 + $0x30] sm:$0xff]
    %v2064 = vld [vmem:[%s2056 + $0x38] sm:$0xff]
    %v2065 = vld [vmem:[%s2056 + $0x40] sm:$0xff]
    %v2066 = vld [vmem:[%s2056 + $0x48] sm:$0xff]
    %v2067 = vld [vmem:[%s2056 + $0x50] sm:$0xff]
    %v2068 = vld [vmem:[%s2056 + $0x58] sm:$0xff]
    %v2069 = vld [vmem:[%s2056 + $0x60] sm:$0xff]
    %v2070 = vld [vmem:[%s2056 + $0x68] sm:$0xf]
    %v2072 = vsel %vm1372, %v1286, 0
    %v2075 = vsel %vm1372, %v1292, 0
    %v2078 = vsel %vm1379, %v2070, 0
    %2080 = vmatprep.subr.mxu0 0.0
    %2081 = vmatpush1.msra.mxu0 0.0
    %2082 = vmatprep.subr.mxu0 0.0
    %2083 = vmatpush1.msra.mxu0 0.0
    %2084 = vmatprep.subr.mxu0 0.0
    %v2085 = vand.u32 %v2078, 4294901760
    %2086 = vmatpush1.msra.mxu0 %v2085
    %2087 = vmatprep.subr.mxu0 0.0
    %v2088 = vand.u32 %v2069, 4294901760
    %2089 = vmatpush1.msra.mxu0 %v2088
    %2090 = vmatprep.subr.mxu0 0.0
    %v2091 = vand.u32 %v2068, 4294901760
    %2092 = vmatpush1.msra.mxu0 %v2091
    %2093 = vmatprep.subr.mxu0 0.0
    %v2094 = vand.u32 %v2067, 4294901760
    %2095 = vmatpush1.msra.mxu0 %v2094
    %2096 = vmatprep.subr.mxu0 0.0
    %v2097 = vand.u32 %v2066, 4294901760
    %2098 = vmatpush1.msra.mxu0 %v2097
    %2099 = vmatprep.subr.mxu0 0.0
    %v2100 = vand.u32 %v2065, 4294901760
    %2101 = vmatpush1.msra.mxu0 %v2100
    %2102 = vmatprep.subr.mxu0 0.0
    %v2103 = vand.u32 %v2064, 4294901760
    %2104 = vmatpush1.msra.mxu0 %v2103
    %2105 = vmatprep.subr.mxu0 0.0
    %v2106 = vand.u32 %v2063, 4294901760
    %2107 = vmatpush1.msra.mxu0 %v2106
    %2108 = vmatprep.subr.mxu0 0.0
    %v2109 = vand.u32 %v2062, 4294901760
    %2110 = vmatpush1.msra.mxu0 %v2109
    %2111 = vmatprep.subr.mxu0 0.0
    %v2112 = vand.u32 %v2061, 4294901760
    %2113 = vmatpush1.msra.mxu0 %v2112
    %2114 = vmatprep.subr.mxu0 0.0
    %v2115 = vand.u32 %v2060, 4294901760
    %2116 = vmatpush1.msra.mxu0 %v2115
    %2117 = vmatprep.subr.mxu0 0.0
    %v2118 = vand.u32 %v2059, 4294901760
    %2119 = vmatpush1.msra.mxu0 %v2118
    %2120 = vmatprep.subr.mxu0 0.0
    %v2121 = vand.u32 %v2058, 4294901760
    %2122 = vmatpush1.msra.mxu0 %v2121
    %2123 = vmatprep.subr.mxu0 0.0
    %v2124 = vand.u32 %v2057, 4294901760
    %2125 = vmatpush1.msra.mxu0 %v2124
    %2126 = vmatprep.subr.mxu0 0.0
    %2127 = vmatpush2.msra.mxu0 0.0
    %2128 = vmatprep.subr.mxu0 0.0
    %2129 = vmatpush2.msra.mxu0 0.0
    %2130 = vmatprep.subr.mxu0 0.0
    %2131 = vmatpush2.msra.mxu0 0.0
    %2132 = vmatprep.subr.mxu0 0.0
    %2133 = vmatpush2.msra.mxu0 0.0
    %2134 = vmatprep.subr.mxu0 0.0
    %2135 = vmatpush2.msra.mxu0 0.0
    %2136 = vmatprep.subr.mxu0 0.0
    %2137 = vmatpush2.msra.mxu0 0.0
    %2138 = vmatprep.subr.mxu0 0.0
    %2139 = vmatpush2.msra.mxu0 0.0
    %2140 = vmatprep.subr.mxu0 0.0
    %2141 = vmatpush2.msra.mxu0 0.0
    %2142 = vmatprep.subr.mxu0 0.0
    %2143 = vmatpush2.msra.mxu0 0.0
    %2144 = vmatprep.subr.mxu0 0.0
    %2145 = vmatpush2.msra.mxu0 0.0
    %2146 = vmatprep.subr.mxu0 0.0
    %2147 = vmatpush2.msra.mxu0 0.0
    %2148 = vmatprep.subr.mxu0 0.0
    %2149 = vmatpush2.msra.mxu0 0.0
    %2150 = vmatprep.subr.mxu0 0.0
    %2151 = vmatpush2.msra.mxu0 0.0
    %2152 = vmatprep.subr.mxu0 0.0
    %2153 = vmatpush2.msra.mxu0 0.0
    %2154 = vmatprep.subr.mxu0 0.0
    %2155 = vmatpush2.msra.mxu0 0.0
    %2156 = vmatprep.subr.mxu0 0.0
    %2157 = vmatpush2.msra.mxu0 0.0
    %2158 = vmatprep.mubr.f32.mxu0 0.0
    %v2159 = vand.u32 %v2072, 4294901760
    %v2160 = vsub.f32 %v2072, %v2159
    %v2161 = vand.u32 %v2160, 4294901760
    %v2162 = vsub.f32 %v2160, %v2161
    %v2163 = vand.u32 %v2162, 4294901760
    %2164 = vmatmul.mubr.f32.gmra.mxu0 %v2163
    %v2165 = vpop.f32.mrf.mxu0
    %v2166 = vadd.f32 0.0, %v2165
    %v2167 = vpop.f32.mrf.mxu0
    %2168 = vmatprep.mubr.f32.mxu0 0.0
    %v2169 = vand.u32 %v2075, 4294901760
    %v2170 = vsub.f32 %v2075, %v2169
    %v2171 = vand.u32 %v2170, 4294901760
    %v2172 = vsub.f32 %v2170, %v2171
    %v2173 = vand.u32 %v2172, 4294901760
    %2174 = vmatmul.mubr.f32.gmra.mxu0 %v2173
    %v2175 = vpop.f32.mrf.mxu0
    %v2176 = vadd.f32 0.0, %v2175
    %v2177 = vpop.f32.mrf.mxu0
    %2178 = vdwg.mxu0
    %2179 = vmatprep.subr.mxu0 0.0
    %2180 = vmatpush1.msra.mxu0 0.0
    %2181 = vmatprep.subr.mxu0 0.0
    %2182 = vmatpush1.msra.mxu0 0.0
    %2183 = vmatprep.subr.mxu0 0.0
    %v2184 = vand.u32 %v2078, 4294901760
    %v2185 = vsub.f32 %v2078, %v2184
    %v2186 = vand.u32 %v2185, 4294901760
    %v2187 = vsub.f32 %v2185, %v2186
    %v2188 = vand.u32 %v2187, 4294901760
    %2189 = vmatpush1.msra.mxu0 %v2188
    %2190 = vmatprep.subr.mxu0 0.0
    %v2191 = vand.u32 %v2069, 4294901760
    %v2192 = vsub.f32 %v2069, %v2191
    %v2193 = vand.u32 %v2192, 4294901760
    %v2194 = vsub.f32 %v2192, %v2193
    %v2195 = vand.u32 %v2194, 4294901760
    %2196 = vmatpush1.msra.mxu0 %v2195
    %2197 = vmatprep.subr.mxu0 0.0
    %v2198 = vand.u32 %v2068, 4294901760
    %v2199 = vsub.f32 %v2068, %v2198
    %v2200 = vand.u32 %v2199, 4294901760
    %v2201 = vsub.f32 %v2199, %v2200
    %v2202 = vand.u32 %v2201, 4294901760
    %2203 = vmatpush1.msra.mxu0 %v2202
    %2204 = vmatprep.subr.mxu0 0.0
    %v2205 = vand.u32 %v2067, 4294901760
    %v2206 = vsub.f32 %v2067, %v2205
    %v2207 = vand.u32 %v2206, 4294901760
    %v2208 = vsub.f32 %v2206, %v2207
    %v2209 = vand.u32 %v2208, 4294901760
    %2210 = vmatpush1.msra.mxu0 %v2209
    %2211 = vmatprep.subr.mxu0 0.0
    %v2212 = vand.u32 %v2066, 4294901760
    %v2213 = vsub.f32 %v2066, %v2212
    %v2214 = vand.u32 %v2213, 4294901760
    %v2215 = vsub.f32 %v2213, %v2214
    %v2216 = vand.u32 %v2215, 4294901760
    %2217 = vmatpush1.msra.mxu0 %v2216
    %2218 = vmatprep.subr.mxu0 0.0
    %v2219 = vand.u32 %v2065, 4294901760
    %v2220 = vsub.f32 %v2065, %v2219
    %v2221 = vand.u32 %v2220, 4294901760
    %v2222 = vsub.f32 %v2220, %v2221
    %v2223 = vand.u32 %v2222, 4294901760
    %2224 = vmatpush1.msra.mxu0 %v2223
    %2225 = vmatprep.subr.mxu0 0.0
    %v2226 = vand.u32 %v2064, 4294901760
    %v2227 = vsub.f32 %v2064, %v2226
    %v2228 = vand.u32 %v2227, 4294901760
    %v2229 = vsub.f32 %v2227, %v2228
    %v2230 = vand.u32 %v2229, 4294901760
    %2231 = vmatpush1.msra.mxu0 %v2230
    %2232 = vmatprep.subr.mxu0 0.0
    %v2233 = vand.u32 %v2063, 4294901760
    %v2234 = vsub.f32 %v2063, %v2233
    %v2235 = vand.u32 %v2234, 4294901760
    %v2236 = vsub.f32 %v2234, %v2235
    %v2237 = vand.u32 %v2236, 4294901760
    %2238 = vmatpush1.msra.mxu0 %v2237
    %2239 = vmatprep.subr.mxu0 0.0
    %v2240 = vand.u32 %v2062, 4294901760
    %v2241 = vsub.f32 %v2062, %v2240
    %v2242 = vand.u32 %v2241, 4294901760
    %v2243 = vsub.f32 %v2241, %v2242
    %v2244 = vand.u32 %v2243, 4294901760
    %2245 = vmatpush1.msra.mxu0 %v2244
    %2246 = vmatprep.subr.mxu0 0.0
    %v2247 = vand.u32 %v2061, 4294901760
    %v2248 = vsub.f32 %v2061, %v2247
    %v2249 = vand.u32 %v2248, 4294901760
    %v2250 = vsub.f32 %v2248, %v2249
    %v2251 = vand.u32 %v2250, 4294901760
    %2252 = vmatpush1.msra.mxu0 %v2251
    %2253 = vmatprep.subr.mxu0 0.0
    %v2254 = vand.u32 %v2060, 4294901760
    %v2255 = vsub.f32 %v2060, %v2254
    %v2256 = vand.u32 %v2255, 4294901760
    %v2257 = vsub.f32 %v2255, %v2256
    %v2258 = vand.u32 %v2257, 4294901760
    %2259 = vmatpush1.msra.mxu0 %v2258
    %2260 = vmatprep.subr.mxu0 0.0
    %v2261 = vand.u32 %v2059, 4294901760
    %v2262 = vsub.f32 %v2059, %v2261
    %v2263 = vand.u32 %v2262, 4294901760
    %v2264 = vsub.f32 %v2262, %v2263
    %v2265 = vand.u32 %v2264, 4294901760
    %2266 = vmatpush1.msra.mxu0 %v2265
    %2267 = vmatprep.subr.mxu0 0.0
    %v2268 = vand.u32 %v2058, 4294901760
    %v2269 = vsub.f32 %v2058, %v2268
    %v2270 = vand.u32 %v2269, 4294901760
    %v2271 = vsub.f32 %v2269, %v2270
    %v2272 = vand.u32 %v2271, 4294901760
    %2273 = vmatpush1.msra.mxu0 %v2272
    %2274 = vmatprep.subr.mxu0 0.0
    %v2275 = vand.u32 %v2057, 4294901760
    %v2276 = vsub.f32 %v2057, %v2275
    %v2277 = vand.u32 %v2276, 4294901760
    %v2278 = vsub.f32 %v2276, %v2277
    %v2279 = vand.u32 %v2278, 4294901760
    %2280 = vmatpush1.msra.mxu0 %v2279
    %2281 = vmatprep.subr.mxu0 0.0
    %2282 = vmatpush2.msra.mxu0 0.0
    %2283 = vmatprep.subr.mxu0 0.0
    %2284 = vmatpush2.msra.mxu0 0.0
    %2285 = vmatprep.subr.mxu0 0.0
    %2286 = vmatpush2.msra.mxu0 0.0
    %2287 = vmatprep.subr.mxu0 0.0
    %2288 = vmatpush2.msra.mxu0 0.0
    %2289 = vmatprep.subr.mxu0 0.0
    %2290 = vmatpush2.msra.mxu0 0.0
    %2291 = vmatprep.subr.mxu0 0.0
    %2292 = vmatpush2.msra.mxu0 0.0
    %2293 = vmatprep.subr.mxu0 0.0
    %2294 = vmatpush2.msra.mxu0 0.0
    %2295 = vmatprep.subr.mxu0 0.0
    %2296 = vmatpush2.msra.mxu0 0.0
    %2297 = vmatprep.subr.mxu0 0.0
    %2298 = vmatpush2.msra.mxu0 0.0
    %2299 = vmatprep.subr.mxu0 0.0
    %2300 = vmatpush2.msra.mxu0 0.0
    %2301 = vmatprep.subr.mxu0 0.0
    %2302 = vmatpush2.msra.mxu0 0.0
    %2303 = vmatprep.subr.mxu0 0.0
    %2304 = vmatpush2.msra.mxu0 0.0
    %2305 = vmatprep.subr.mxu0 0.0
    %2306 = vmatpush2.msra.mxu0 0.0
    %2307 = vmatprep.subr.mxu0 0.0
    %2308 = vmatpush2.msra.mxu0 0.0
    %2309 = vmatprep.subr.mxu0 0.0
    %2310 = vmatpush2.msra.mxu0 0.0
    %2311 = vmatprep.subr.mxu0 0.0
    %2312 = vmatpush2.msra.mxu0 0.0
    %2313 = vmatprep.mubr.f32.mxu0 0.0
    %v2314 = vand.u32 %v2072, 4294901760
    %2315 = vmatmul.mubr.f32.gmra.mxu0 %v2314
    %v2316 = vpop.f32.mrf.mxu0
    %v2317 = vadd.f32 %v2166, %v2316
    %v2318 = vpop.f32.mrf.mxu0
    %2319 = vmatprep.mubr.f32.mxu0 0.0
    %v2320 = vand.u32 %v2075, 4294901760
    %2321 = vmatmul.mubr.f32.gmra.mxu0 %v2320
    %v2322 = vpop.f32.mrf.mxu0
    %v2323 = vadd.f32 %v2176, %v2322
    %v2324 = vpop.f32.mrf.mxu0
    %2325 = vdwg.mxu0
    %2326 = vmatprep.subr.mxu0 0.0
    %2327 = vmatpush1.msra.mxu0 0.0
    %2328 = vmatprep.subr.mxu0 0.0
    %2329 = vmatpush1.msra.mxu0 0.0
    %2330 = vmatprep.subr.mxu0 0.0
    %v2331 = vand.u32 %v2078, 4294901760
    %v2332 = vsub.f32 %v2078, %v2331
    %2333 = vmatpush1.msra.mxu0 %v2332
    %2334 = vmatprep.subr.mxu0 0.0
    %v2335 = vand.u32 %v2069, 4294901760
    %v2336 = vsub.f32 %v2069, %v2335
    %2337 = vmatpush1.msra.mxu0 %v2336
    %2338 = vmatprep.subr.mxu0 0.0
    %v2339 = vand.u32 %v2068, 4294901760
    %v2340 = vsub.f32 %v2068, %v2339
    %2341 = vmatpush1.msra.mxu0 %v2340
    %2342 = vmatprep.subr.mxu0 0.0
    %v2343 = vand.u32 %v2067, 4294901760
    %v2344 = vsub.f32 %v2067, %v2343
    %2345 = vmatpush1.msra.mxu0 %v2344
    %2346 = vmatprep.subr.mxu0 0.0
    %v2347 = vand.u32 %v2066, 4294901760
    %v2348 = vsub.f32 %v2066, %v2347
    %2349 = vmatpush1.msra.mxu0 %v2348
    %2350 = vmatprep.subr.mxu0 0.0
    %v2351 = vand.u32 %v2065, 4294901760
    %v2352 = vsub.f32 %v2065, %v2351
    %2353 = vmatpush1.msra.mxu0 %v2352
    %2354 = vmatprep.subr.mxu0 0.0
    %v2355 = vand.u32 %v2064, 4294901760
    %v2356 = vsub.f32 %v2064, %v2355
    %2357 = vmatpush1.msra.mxu0 %v2356
    %2358 = vmatprep.subr.mxu0 0.0
    %v2359 = vand.u32 %v2063, 4294901760
    %v2360 = vsub.f32 %v2063, %v2359
    %2361 = vmatpush1.msra.mxu0 %v2360
    %2362 = vmatprep.subr.mxu0 0.0
    %v2363 = vand.u32 %v2062, 4294901760
    %v2364 = vsub.f32 %v2062, %v2363
    %2365 = vmatpush1.msra.mxu0 %v2364
    %2366 = vmatprep.subr.mxu0 0.0
    %v2367 = vand.u32 %v2061, 4294901760
    %v2368 = vsub.f32 %v2061, %v2367
    %2369 = vmatpush1.msra.mxu0 %v2368
    %2370 = vmatprep.subr.mxu0 0.0
    %v2371 = vand.u32 %v2060, 4294901760
    %v2372 = vsub.f32 %v2060, %v2371
    %2373 = vmatpush1.msra.mxu0 %v2372
    %2374 = vmatprep.subr.mxu0 0.0
    %v2375 = vand.u32 %v2059, 4294901760
    %v2376 = vsub.f32 %v2059, %v2375
    %2377 = vmatpush1.msra.mxu0 %v2376
    %2378 = vmatprep.subr.mxu0 0.0
    %v2379 = vand.u32 %v2058, 4294901760
    %v2380 = vsub.f32 %v2058, %v2379
    %2381 = vmatpush1.msra.mxu0 %v2380
    %2382 = vmatprep.subr.mxu0 0.0
    %v2383 = vand.u32 %v2057, 4294901760
    %v2384 = vsub.f32 %v2057, %v2383
    %2385 = vmatpush1.msra.mxu0 %v2384
    %2386 = vmatprep.subr.mxu0 0.0
    %2387 = vmatpush2.msra.mxu0 0.0
    %2388 = vmatprep.subr.mxu0 0.0
    %2389 = vmatpush2.msra.mxu0 0.0
    %2390 = vmatprep.subr.mxu0 0.0
    %2391 = vmatpush2.msra.mxu0 0.0
    %2392 = vmatprep.subr.mxu0 0.0
    %2393 = vmatpush2.msra.mxu0 0.0
    %2394 = vmatprep.subr.mxu0 0.0
    %2395 = vmatpush2.msra.mxu0 0.0
    %2396 = vmatprep.subr.mxu0 0.0
    %2397 = vmatpush2.msra.mxu0 0.0
    %2398 = vmatprep.subr.mxu0 0.0
    %2399 = vmatpush2.msra.mxu0 0.0
    %2400 = vmatprep.subr.mxu0 0.0
    %2401 = vmatpush2.msra.mxu0 0.0
    %2402 = vmatprep.subr.mxu0 0.0
    %2403 = vmatpush2.msra.mxu0 0.0
    %2404 = vmatprep.subr.mxu0 0.0
    %2405 = vmatpush2.msra.mxu0 0.0
    %2406 = vmatprep.subr.mxu0 0.0
    %2407 = vmatpush2.msra.mxu0 0.0
    %2408 = vmatprep.subr.mxu0 0.0
    %2409 = vmatpush2.msra.mxu0 0.0
    %2410 = vmatprep.subr.mxu0 0.0
    %2411 = vmatpush2.msra.mxu0 0.0
    %2412 = vmatprep.subr.mxu0 0.0
    %2413 = vmatpush2.msra.mxu0 0.0
    %2414 = vmatprep.subr.mxu0 0.0
    %2415 = vmatpush2.msra.mxu0 0.0
    %2416 = vmatprep.subr.mxu0 0.0
    %2417 = vmatpush2.msra.mxu0 0.0
    %2418 = vmatprep.mubr.f32.mxu0 0.0
    %v2419 = vand.u32 %v2072, 4294901760
    %v2420 = vsub.f32 %v2072, %v2419
    %2421 = vmatmul.mubr.f32.gmra.mxu0 %v2420
    %v2422 = vpop.f32.mrf.mxu0
    %v2423 = vadd.f32 %v2317, %v2422
    %v2424 = vpop.f32.mrf.mxu0
    %2425 = vmatprep.mubr.f32.mxu0 0.0
    %v2426 = vand.u32 %v2075, 4294901760
    %v2427 = vsub.f32 %v2075, %v2426
    %2428 = vmatmul.mubr.f32.gmra.mxu0 %v2427
    %v2429 = vpop.f32.mrf.mxu0
    %v2430 = vadd.f32 %v2323, %v2429
    %v2431 = vpop.f32.mrf.mxu0
    %2432 = vdwg.mxu0
    %2433 = vmatprep.subr.mxu0 0.0
    %2434 = vmatpush1.msra.mxu0 0.0
    %2435 = vmatprep.subr.mxu0 0.0
    %2436 = vmatpush1.msra.mxu0 0.0
    %2437 = vmatprep.subr.mxu0 0.0
    %v2438 = vand.u32 %v2078, 4294901760
    %2439 = vmatpush1.msra.mxu0 %v2438
    %2440 = vmatprep.subr.mxu0 0.0
    %v2441 = vand.u32 %v2069, 4294901760
    %2442 = vmatpush1.msra.mxu0 %v2441
    %2443 = vmatprep.subr.mxu0 0.0
    %v2444 = vand.u32 %v2068, 4294901760
    %2445 = vmatpush1.msra.mxu0 %v2444
    %2446 = vmatprep.subr.mxu0 0.0
    %v2447 = vand.u32 %v2067, 4294901760
    %2448 = vmatpush1.msra.mxu0 %v2447
    %2449 = vmatprep.subr.mxu0 0.0
    %v2450 = vand.u32 %v2066, 4294901760
    %2451 = vmatpush1.msra.mxu0 %v2450
    %2452 = vmatprep.subr.mxu0 0.0
    %v2453 = vand.u32 %v2065, 4294901760
    %2454 = vmatpush1.msra.mxu0 %v2453
    %2455 = vmatprep.subr.mxu0 0.0
    %v2456 = vand.u32 %v2064, 4294901760
    %2457 = vmatpush1.msra.mxu0 %v2456
    %2458 = vmatprep.subr.mxu0 0.0
    %v2459 = vand.u32 %v2063, 4294901760
    %2460 = vmatpush1.msra.mxu0 %v2459
    %2461 = vmatprep.subr.mxu0 0.0
    %v2462 = vand.u32 %v2062, 4294901760
    %2463 = vmatpush1.msra.mxu0 %v2462
    %2464 = vmatprep.subr.mxu0 0.0
    %v2465 = vand.u32 %v2061, 4294901760
    %2466 = vmatpush1.msra.mxu0 %v2465
    %2467 = vmatprep.subr.mxu0 0.0
    %v2468 = vand.u32 %v2060, 4294901760
    %2469 = vmatpush1.msra.mxu0 %v2468
    %2470 = vmatprep.subr.mxu0 0.0
    %v2471 = vand.u32 %v2059, 4294901760
    %2472 = vmatpush1.msra.mxu0 %v2471
    %2473 = vmatprep.subr.mxu0 0.0
    %v2474 = vand.u32 %v2058, 4294901760
    %2475 = vmatpush1.msra.mxu0 %v2474
    %2476 = vmatprep.subr.mxu0 0.0
    %v2477 = vand.u32 %v2057, 4294901760
    %2478 = vmatpush1.msra.mxu0 %v2477
    %2479 = vmatprep.subr.mxu0 0.0
    %2480 = vmatpush2.msra.mxu0 0.0
    %2481 = vmatprep.subr.mxu0 0.0
    %2482 = vmatpush2.msra.mxu0 0.0
    %2483 = vmatprep.subr.mxu0 0.0
    %2484 = vmatpush2.msra.mxu0 0.0
    %2485 = vmatprep.subr.mxu0 0.0
    %2486 = vmatpush2.msra.mxu0 0.0
    %2487 = vmatprep.subr.mxu0 0.0
    %2488 = vmatpush2.msra.mxu0 0.0
    %2489 = vmatprep.subr.mxu0 0.0
    %2490 = vmatpush2.msra.mxu0 0.0
    %2491 = vmatprep.subr.mxu0 0.0
    %2492 = vmatpush2.msra.mxu0 0.0
    %2493 = vmatprep.subr.mxu0 0.0
    %2494 = vmatpush2.msra.mxu0 0.0
    %2495 = vmatprep.subr.mxu0 0.0
    %2496 = vmatpush2.msra.mxu0 0.0
    %2497 = vmatprep.subr.mxu0 0.0
    %2498 = vmatpush2.msra.mxu0 0.0
    %2499 = vmatprep.subr.mxu0 0.0
    %2500 = vmatpush2.msra.mxu0 0.0
    %2501 = vmatprep.subr.mxu0 0.0
    %2502 = vmatpush2.msra.mxu0 0.0
    %2503 = vmatprep.subr.mxu0 0.0
    %2504 = vmatpush2.msra.mxu0 0.0
    %2505 = vmatprep.subr.mxu0 0.0
    %2506 = vmatpush2.msra.mxu0 0.0
    %2507 = vmatprep.subr.mxu0 0.0
    %2508 = vmatpush2.msra.mxu0 0.0
    %2509 = vmatprep.subr.mxu0 0.0
    %2510 = vmatpush2.msra.mxu0 0.0
    %2511 = vmatprep.mubr.f32.mxu0 0.0
    %v2512 = vand.u32 %v2072, 4294901760
    %v2513 = vsub.f32 %v2072, %v2512
    %v2514 = vand.u32 %v2513, 4294901760
    %2515 = vmatmul.mubr.f32.gmra.mxu0 %v2514
    %v2516 = vpop.f32.mrf.mxu0
    %v2517 = vadd.f32 %v2423, %v2516
    %v2518 = vpop.f32.mrf.mxu0
    %2519 = vmatprep.mubr.f32.mxu0 0.0
    %v2520 = vand.u32 %v2075, 4294901760
    %v2521 = vsub.f32 %v2075, %v2520
    %v2522 = vand.u32 %v2521, 4294901760
    %2523 = vmatmul.mubr.f32.gmra.mxu0 %v2522
    %v2524 = vpop.f32.mrf.mxu0
    %v2525 = vadd.f32 %v2430, %v2524
    %v2526 = vpop.f32.mrf.mxu0
    %2527 = vdwg.mxu0
    %2528 = vmatprep.subr.mxu0 0.0
    %2529 = vmatpush1.msra.mxu0 0.0
    %2530 = vmatprep.subr.mxu0 0.0
    %2531 = vmatpush1.msra.mxu0 0.0
    %2532 = vmatprep.subr.mxu0 0.0
    %v2533 = vand.u32 %v2078, 4294901760
    %v2534 = vsub.f32 %v2078, %v2533
    %v2535 = vand.u32 %v2534, 4294901760
    %2536 = vmatpush1.msra.mxu0 %v2535
    %2537 = vmatprep.subr.mxu0 0.0
    %v2538 = vand.u32 %v2069, 4294901760
    %v2539 = vsub.f32 %v2069, %v2538
    %v2540 = vand.u32 %v2539, 4294901760
    %2541 = vmatpush1.msra.mxu0 %v2540
    %2542 = vmatprep.subr.mxu0 0.0
    %v2543 = vand.u32 %v2068, 4294901760
    %v2544 = vsub.f32 %v2068, %v2543
    %v2545 = vand.u32 %v2544, 4294901760
    %2546 = vmatpush1.msra.mxu0 %v2545
    %2547 = vmatprep.subr.mxu0 0.0
    %v2548 = vand.u32 %v2067, 4294901760
    %v2549 = vsub.f32 %v2067, %v2548
    %v2550 = vand.u32 %v2549, 4294901760
    %2551 = vmatpush1.msra.mxu0 %v2550
    %2552 = vmatprep.subr.mxu0 0.0
    %v2553 = vand.u32 %v2066, 4294901760
    %v2554 = vsub.f32 %v2066, %v2553
    %v2555 = vand.u32 %v2554, 4294901760
    %2556 = vmatpush1.msra.mxu0 %v2555
    %2557 = vmatprep.subr.mxu0 0.0
    %v2558 = vand.u32 %v2065, 4294901760
    %v2559 = vsub.f32 %v2065, %v2558
    %v2560 = vand.u32 %v2559, 4294901760
    %2561 = vmatpush1.msra.mxu0 %v2560
    %2562 = vmatprep.subr.mxu0 0.0
    %v2563 = vand.u32 %v2064, 4294901760
    %v2564 = vsub.f32 %v2064, %v2563
    %v2565 = vand.u32 %v2564, 4294901760
    %2566 = vmatpush1.msra.mxu0 %v2565
    %2567 = vmatprep.subr.mxu0 0.0
    %v2568 = vand.u32 %v2063, 4294901760
    %v2569 = vsub.f32 %v2063, %v2568
    %v2570 = vand.u32 %v2569, 4294901760
    %2571 = vmatpush1.msra.mxu0 %v2570
    %2572 = vmatprep.subr.mxu0 0.0
    %v2573 = vand.u32 %v2062, 4294901760
    %v2574 = vsub.f32 %v2062, %v2573
    %v2575 = vand.u32 %v2574, 4294901760
    %2576 = vmatpush1.msra.mxu0 %v2575
    %2577 = vmatprep.subr.mxu0 0.0
    %v2578 = vand.u32 %v2061, 4294901760
    %v2579 = vsub.f32 %v2061, %v2578
    %v2580 = vand.u32 %v2579, 4294901760
    %2581 = vmatpush1.msra.mxu0 %v2580
    %2582 = vmatprep.subr.mxu0 0.0
    %v2583 = vand.u32 %v2060, 4294901760
    %v2584 = vsub.f32 %v2060, %v2583
    %v2585 = vand.u32 %v2584, 4294901760
    %2586 = vmatpush1.msra.mxu0 %v2585
    %2587 = vmatprep.subr.mxu0 0.0
    %v2588 = vand.u32 %v2059, 4294901760
    %v2589 = vsub.f32 %v2059, %v2588
    %v2590 = vand.u32 %v2589, 4294901760
    %2591 = vmatpush1.msra.mxu0 %v2590
    %2592 = vmatprep.subr.mxu0 0.0
    %v2593 = vand.u32 %v2058, 4294901760
    %v2594 = vsub.f32 %v2058, %v2593
    %v2595 = vand.u32 %v2594, 4294901760
    %2596 = vmatpush1.msra.mxu0 %v2595
    %2597 = vmatprep.subr.mxu0 0.0
    %v2598 = vand.u32 %v2057, 4294901760
    %v2599 = vsub.f32 %v2057, %v2598
    %v2600 = vand.u32 %v2599, 4294901760
    %2601 = vmatpush1.msra.mxu0 %v2600
    %2602 = vmatprep.subr.mxu0 0.0
    %2603 = vmatpush2.msra.mxu0 0.0
    %2604 = vmatprep.subr.mxu0 0.0
    %2605 = vmatpush2.msra.mxu0 0.0
    %2606 = vmatprep.subr.mxu0 0.0
    %2607 = vmatpush2.msra.mxu0 0.0
    %2608 = vmatprep.subr.mxu0 0.0
    %2609 = vmatpush2.msra.mxu0 0.0
    %2610 = vmatprep.subr.mxu0 0.0
    %2611 = vmatpush2.msra.mxu0 0.0
    %2612 = vmatprep.subr.mxu0 0.0
    %2613 = vmatpush2.msra.mxu0 0.0
    %2614 = vmatprep.subr.mxu0 0.0
    %2615 = vmatpush2.msra.mxu0 0.0
    %2616 = vmatprep.subr.mxu0 0.0
    %2617 = vmatpush2.msra.mxu0 0.0
    %2618 = vmatprep.subr.mxu0 0.0
    %2619 = vmatpush2.msra.mxu0 0.0
    %2620 = vmatprep.subr.mxu0 0.0
    %2621 = vmatpush2.msra.mxu0 0.0
    %2622 = vmatprep.subr.mxu0 0.0
    %2623 = vmatpush2.msra.mxu0 0.0
    %2624 = vmatprep.subr.mxu0 0.0
    %2625 = vmatpush2.msra.mxu0 0.0
    %2626 = vmatprep.subr.mxu0 0.0
    %2627 = vmatpush2.msra.mxu0 0.0
    %2628 = vmatprep.subr.mxu0 0.0
    %2629 = vmatpush2.msra.mxu0 0.0
    %2630 = vmatprep.subr.mxu0 0.0
    %2631 = vmatpush2.msra.mxu0 0.0
    %2632 = vmatprep.subr.mxu0 0.0
    %2633 = vmatpush2.msra.mxu0 0.0
    %2634 = vmatprep.mubr.f32.mxu0 0.0
    %v2635 = vand.u32 %v2072, 4294901760
    %2636 = vmatmul.mubr.f32.gmra.mxu0 %v2635
    %v2637 = vpop.f32.mrf.mxu0
    %v2638 = vadd.f32 %v2517, %v2637
    %v2639 = vpop.f32.mrf.mxu0
    %2640 = vmatprep.mubr.f32.mxu0 0.0
    %v2641 = vand.u32 %v2075, 4294901760
    %2642 = vmatmul.mubr.f32.gmra.mxu0 %v2641
    %v2643 = vpop.f32.mrf.mxu0
    %v2644 = vadd.f32 %v2525, %v2643
    %v2645 = vpop.f32.mrf.mxu0
    %2646 = vdwg.mxu0
    %2647 = vmatprep.subr.mxu0 0.0
    %2648 = vmatpush1.msra.mxu0 0.0
    %2649 = vmatprep.subr.mxu0 0.0
    %2650 = vmatpush1.msra.mxu0 0.0
    %2651 = vmatprep.subr.mxu0 0.0
    %v2652 = vand.u32 %v2078, 4294901760
    %2653 = vmatpush1.msra.mxu0 %v2652
    %2654 = vmatprep.subr.mxu0 0.0
    %v2655 = vand.u32 %v2069, 4294901760
    %2656 = vmatpush1.msra.mxu0 %v2655
    %2657 = vmatprep.subr.mxu0 0.0
    %v2658 = vand.u32 %v2068, 4294901760
    %2659 = vmatpush1.msra.mxu0 %v2658
    %2660 = vmatprep.subr.mxu0 0.0
    %v2661 = vand.u32 %v2067, 4294901760
    %2662 = vmatpush1.msra.mxu0 %v2661
    %2663 = vmatprep.subr.mxu0 0.0
    %v2664 = vand.u32 %v2066, 4294901760
    %2665 = vmatpush1.msra.mxu0 %v2664
    %2666 = vmatprep.subr.mxu0 0.0
    %v2667 = vand.u32 %v2065, 4294901760
    %2668 = vmatpush1.msra.mxu0 %v2667
    %2669 = vmatprep.subr.mxu0 0.0
    %v2670 = vand.u32 %v2064, 4294901760
    %2671 = vmatpush1.msra.mxu0 %v2670
    %2672 = vmatprep.subr.mxu0 0.0
    %v2673 = vand.u32 %v2063, 4294901760
    %2674 = vmatpush1.msra.mxu0 %v2673
    %2675 = vmatprep.subr.mxu0 0.0
    %v2676 = vand.u32 %v2062, 4294901760
    %2677 = vmatpush1.msra.mxu0 %v2676
    %2678 = vmatprep.subr.mxu0 0.0
    %v2679 = vand.u32 %v2061, 4294901760
    %2680 = vmatpush1.msra.mxu0 %v2679
    %2681 = vmatprep.subr.mxu0 0.0
    %v2682 = vand.u32 %v2060, 4294901760
    %2683 = vmatpush1.msra.mxu0 %v2682
    %2684 = vmatprep.subr.mxu0 0.0
    %v2685 = vand.u32 %v2059, 4294901760
    %2686 = vmatpush1.msra.mxu0 %v2685
    %2687 = vmatprep.subr.mxu0 0.0
    %v2688 = vand.u32 %v2058, 4294901760
    %2689 = vmatpush1.msra.mxu0 %v2688
    %2690 = vmatprep.subr.mxu0 0.0
    %v2691 = vand.u32 %v2057, 4294901760
    %2692 = vmatpush1.msra.mxu0 %v2691
    %2693 = vmatprep.subr.mxu0 0.0
    %2694 = vmatpush2.msra.mxu0 0.0
    %2695 = vmatprep.subr.mxu0 0.0
    %2696 = vmatpush2.msra.mxu0 0.0
    %2697 = vmatprep.subr.mxu0 0.0
    %2698 = vmatpush2.msra.mxu0 0.0
    %2699 = vmatprep.subr.mxu0 0.0
    %2700 = vmatpush2.msra.mxu0 0.0
    %2701 = vmatprep.subr.mxu0 0.0
    %2702 = vmatpush2.msra.mxu0 0.0
    %2703 = vmatprep.subr.mxu0 0.0
    %2704 = vmatpush2.msra.mxu0 0.0
    %2705 = vmatprep.subr.mxu0 0.0
    %2706 = vmatpush2.msra.mxu0 0.0
    %2707 = vmatprep.subr.mxu0 0.0
    %2708 = vmatpush2.msra.mxu0 0.0
    %2709 = vmatprep.subr.mxu0 0.0
    %2710 = vmatpush2.msra.mxu0 0.0
    %2711 = vmatprep.subr.mxu0 0.0
    %2712 = vmatpush2.msra.mxu0 0.0
    %2713 = vmatprep.subr.mxu0 0.0
    %2714 = vmatpush2.msra.mxu0 0.0
    %2715 = vmatprep.subr.mxu0 0.0
    %2716 = vmatpush2.msra.mxu0 0.0
    %2717 = vmatprep.subr.mxu0 0.0
    %2718 = vmatpush2.msra.mxu0 0.0
    %2719 = vmatprep.subr.mxu0 0.0
    %2720 = vmatpush2.msra.mxu0 0.0
    %2721 = vmatprep.subr.mxu0 0.0
    %2722 = vmatpush2.msra.mxu0 0.0
    %2723 = vmatprep.subr.mxu0 0.0
    %2724 = vmatpush2.msra.mxu0 0.0
    %2725 = vmatprep.mubr.f32.mxu0 0.0
    %v2726 = vand.u32 %v2072, 4294901760
    %2727 = vmatmul.mubr.f32.gmra.mxu0 %v2726
    %v2728 = vpop.f32.mrf.mxu0
    %v2729 = vadd.f32 %v2638, %v2728
    %v2730 = vpop.f32.mrf.mxu0
    %2731 = vmatprep.mubr.f32.mxu0 0.0
    %v2732 = vand.u32 %v2075, 4294901760
    %2733 = vmatmul.mubr.f32.gmra.mxu0 %v2732
    %v2734 = vpop.f32.mrf.mxu0
    %v2735 = vadd.f32 %v2644, %v2734
    %v2736 = vpop.f32.mrf.mxu0
    %2737 = vdwg.mxu0
    %s2738 = scalar_lea.vmem %s2, 448
    %v2739 = vld [vmem:[%s2738] sm:$0xff]
    %v2740 = vld [vmem:[%s2738 + $0x8] sm:$0xff]
    %v2741 = vld [vmem:[%s2738 + $0x10] sm:$0xff]
    %v2742 = vld [vmem:[%s2738 + $0x18] sm:$0xff]
    %v2743 = vld [vmem:[%s2738 + $0x20] sm:$0xff]
    %v2744 = vld [vmem:[%s2738 + $0x28] sm:$0xff]
    %v2745 = vld [vmem:[%s2738 + $0x30] sm:$0xff]
    %v2746 = vld [vmem:[%s2738 + $0x38] sm:$0xff]
    %v2747 = vld [vmem:[%s2738 + $0x40] sm:$0xff]
    %v2748 = vld [vmem:[%s2738 + $0x48] sm:$0xff]
    %v2749 = vld [vmem:[%s2738 + $0x50] sm:$0xff]
    %v2750 = vld [vmem:[%s2738 + $0x58] sm:$0xff]
    %v2751 = vld [vmem:[%s2738 + $0x60] sm:$0xff]
    %v2752 = vld [vmem:[%s2738 + $0x68] sm:$0xf]
    %s2753 = scalar_lea.vmem %s2, 560
    %v2754 = vld [vmem:[%s2753] sm:$0xff]
    %v2755 = vld [vmem:[%s2753 + $0x8] sm:$0xff]
    %v2756 = vld [vmem:[%s2753 + $0x10] sm:$0xff]
    %v2757 = vld [vmem:[%s2753 + $0x18] sm:$0xff]
    %v2758 = vld [vmem:[%s2753 + $0x20] sm:$0xff]
    %v2759 = vld [vmem:[%s2753 + $0x28] sm:$0xff]
    %v2760 = vld [vmem:[%s2753 + $0x30] sm:$0xff]
    %v2761 = vld [vmem:[%s2753 + $0x38] sm:$0xff]
    %v2762 = vld [vmem:[%s2753 + $0x40] sm:$0xff]
    %v2763 = vld [vmem:[%s2753 + $0x48] sm:$0xff]
    %v2764 = vld [vmem:[%s2753 + $0x50] sm:$0xff]
    %v2765 = vld [vmem:[%s2753 + $0x58] sm:$0xff]
    %v2766 = vld [vmem:[%s2753 + $0x60] sm:$0xff]
    %v2767 = vld [vmem:[%s2753 + $0x68] sm:$0xf]
    %v2769 = vsel %vm1372, %v1310, 0
    %v2772 = vsel %vm1372, %v1316, 0
    %v2775 = vsel %vm1379, %v2767, 0
    %2777 = vmatprep.subr.mxu0 0.0
    %2778 = vmatpush1.msra.mxu0 0.0
    %2779 = vmatprep.subr.mxu0 0.0
    %2780 = vmatpush1.msra.mxu0 0.0
    %2781 = vmatprep.subr.mxu0 0.0
    %v2782 = vand.u32 %v2775, 4294901760
    %2783 = vmatpush1.msra.mxu0 %v2782
    %2784 = vmatprep.subr.mxu0 0.0
    %v2785 = vand.u32 %v2766, 4294901760
    %2786 = vmatpush1.msra.mxu0 %v2785
    %2787 = vmatprep.subr.mxu0 0.0
    %v2788 = vand.u32 %v2765, 4294901760
    %2789 = vmatpush1.msra.mxu0 %v2788
    %2790 = vmatprep.subr.mxu0 0.0
    %v2791 = vand.u32 %v2764, 4294901760
    %2792 = vmatpush1.msra.mxu0 %v2791
    %2793 = vmatprep.subr.mxu0 0.0
    %v2794 = vand.u32 %v2763, 4294901760
    %2795 = vmatpush1.msra.mxu0 %v2794
    %2796 = vmatprep.subr.mxu0 0.0
    %v2797 = vand.u32 %v2762, 4294901760
    %2798 = vmatpush1.msra.mxu0 %v2797
    %2799 = vmatprep.subr.mxu0 0.0
    %v2800 = vand.u32 %v2761, 4294901760
    %2801 = vmatpush1.msra.mxu0 %v2800
    %2802 = vmatprep.subr.mxu0 0.0
    %v2803 = vand.u32 %v2760, 4294901760
    %2804 = vmatpush1.msra.mxu0 %v2803
    %2805 = vmatprep.subr.mxu0 0.0
    %v2806 = vand.u32 %v2759, 4294901760
    %2807 = vmatpush1.msra.mxu0 %v2806
    %2808 = vmatprep.subr.mxu0 0.0
    %v2809 = vand.u32 %v2758, 4294901760
    %2810 = vmatpush1.msra.mxu0 %v2809
    %2811 = vmatprep.subr.mxu0 0.0
    %v2812 = vand.u32 %v2757, 4294901760
    %2813 = vmatpush1.msra.mxu0 %v2812
    %2814 = vmatprep.subr.mxu0 0.0
    %v2815 = vand.u32 %v2756, 4294901760
    %2816 = vmatpush1.msra.mxu0 %v2815
    %2817 = vmatprep.subr.mxu0 0.0
    %v2818 = vand.u32 %v2755, 4294901760
    %2819 = vmatpush1.msra.mxu0 %v2818
    %2820 = vmatprep.subr.mxu0 0.0
    %v2821 = vand.u32 %v2754, 4294901760
    %2822 = vmatpush1.msra.mxu0 %v2821
    %2823 = vmatprep.subr.mxu0 0.0
    %2824 = vmatpush2.msra.mxu0 0.0
    %2825 = vmatprep.subr.mxu0 0.0
    %2826 = vmatpush2.msra.mxu0 0.0
    %2827 = vmatprep.subr.mxu0 0.0
    %2828 = vmatpush2.msra.mxu0 0.0
    %2829 = vmatprep.subr.mxu0 0.0
    %2830 = vmatpush2.msra.mxu0 0.0
    %2831 = vmatprep.subr.mxu0 0.0
    %2832 = vmatpush2.msra.mxu0 0.0
    %2833 = vmatprep.subr.mxu0 0.0
    %2834 = vmatpush2.msra.mxu0 0.0
    %2835 = vmatprep.subr.mxu0 0.0
    %2836 = vmatpush2.msra.mxu0 0.0
    %2837 = vmatprep.subr.mxu0 0.0
    %2838 = vmatpush2.msra.mxu0 0.0
    %2839 = vmatprep.subr.mxu0 0.0
    %2840 = vmatpush2.msra.mxu0 0.0
    %2841 = vmatprep.subr.mxu0 0.0
    %2842 = vmatpush2.msra.mxu0 0.0
    %2843 = vmatprep.subr.mxu0 0.0
    %2844 = vmatpush2.msra.mxu0 0.0
    %2845 = vmatprep.subr.mxu0 0.0
    %2846 = vmatpush2.msra.mxu0 0.0
    %2847 = vmatprep.subr.mxu0 0.0
    %2848 = vmatpush2.msra.mxu0 0.0
    %2849 = vmatprep.subr.mxu0 0.0
    %2850 = vmatpush2.msra.mxu0 0.0
    %2851 = vmatprep.subr.mxu0 0.0
    %2852 = vmatpush2.msra.mxu0 0.0
    %2853 = vmatprep.subr.mxu0 0.0
    %2854 = vmatpush2.msra.mxu0 0.0
    %2855 = vmatprep.mubr.f32.mxu0 0.0
    %v2856 = vand.u32 %v2769, 4294901760
    %v2857 = vsub.f32 %v2769, %v2856
    %v2858 = vand.u32 %v2857, 4294901760
    %v2859 = vsub.f32 %v2857, %v2858
    %v2860 = vand.u32 %v2859, 4294901760
    %2861 = vmatmul.mubr.f32.gmra.mxu0 %v2860
    %v2862 = vpop.f32.mrf.mxu0
    %v2863 = vadd.f32 0.0, %v2862
    %v2864 = vpop.f32.mrf.mxu0
    %2865 = vmatprep.mubr.f32.mxu0 0.0
    %v2866 = vand.u32 %v2772, 4294901760
    %v2867 = vsub.f32 %v2772, %v2866
    %v2868 = vand.u32 %v2867, 4294901760
    %v2869 = vsub.f32 %v2867, %v2868
    %v2870 = vand.u32 %v2869, 4294901760
    %2871 = vmatmul.mubr.f32.gmra.mxu0 %v2870
    %v2872 = vpop.f32.mrf.mxu0
    %v2873 = vadd.f32 0.0, %v2872
    %v2874 = vpop.f32.mrf.mxu0
    %2875 = vdwg.mxu0
    %2876 = vmatprep.subr.mxu0 0.0
    %2877 = vmatpush1.msra.mxu0 0.0
    %2878 = vmatprep.subr.mxu0 0.0
    %2879 = vmatpush1.msra.mxu0 0.0
    %2880 = vmatprep.subr.mxu0 0.0
    %v2881 = vand.u32 %v2775, 4294901760
    %v2882 = vsub.f32 %v2775, %v2881
    %v2883 = vand.u32 %v2882, 4294901760
    %v2884 = vsub.f32 %v2882, %v2883
    %v2885 = vand.u32 %v2884, 4294901760
    %2886 = vmatpush1.msra.mxu0 %v2885
    %2887 = vmatprep.subr.mxu0 0.0
    %v2888 = vand.u32 %v2766, 4294901760
    %v2889 = vsub.f32 %v2766, %v2888
    %v2890 = vand.u32 %v2889, 4294901760
    %v2891 = vsub.f32 %v2889, %v2890
    %v2892 = vand.u32 %v2891, 4294901760
    %2893 = vmatpush1.msra.mxu0 %v2892
    %2894 = vmatprep.subr.mxu0 0.0
    %v2895 = vand.u32 %v2765, 4294901760
    %v2896 = vsub.f32 %v2765, %v2895
    %v2897 = vand.u32 %v2896, 4294901760
    %v2898 = vsub.f32 %v2896, %v2897
    %v2899 = vand.u32 %v2898, 4294901760
    %2900 = vmatpush1.msra.mxu0 %v2899
    %2901 = vmatprep.subr.mxu0 0.0
    %v2902 = vand.u32 %v2764, 4294901760
    %v2903 = vsub.f32 %v2764, %v2902
    %v2904 = vand.u32 %v2903, 4294901760
    %v2905 = vsub.f32 %v2903, %v2904
    %v2906 = vand.u32 %v2905, 4294901760
    %2907 = vmatpush1.msra.mxu0 %v2906
    %2908 = vmatprep.subr.mxu0 0.0
    %v2909 = vand.u32 %v2763, 4294901760
    %v2910 = vsub.f32 %v2763, %v2909
    %v2911 = vand.u32 %v2910, 4294901760
    %v2912 = vsub.f32 %v2910, %v2911
    %v2913 = vand.u32 %v2912, 4294901760
    %2914 = vmatpush1.msra.mxu0 %v2913
    %2915 = vmatprep.subr.mxu0 0.0
    %v2916 = vand.u32 %v2762, 4294901760
    %v2917 = vsub.f32 %v2762, %v2916
    %v2918 = vand.u32 %v2917, 4294901760
    %v2919 = vsub.f32 %v2917, %v2918
    %v2920 = vand.u32 %v2919, 4294901760
    %2921 = vmatpush1.msra.mxu0 %v2920
    %2922 = vmatprep.subr.mxu0 0.0
    %v2923 = vand.u32 %v2761, 4294901760
    %v2924 = vsub.f32 %v2761, %v2923
    %v2925 = vand.u32 %v2924, 4294901760
    %v2926 = vsub.f32 %v2924, %v2925
    %v2927 = vand.u32 %v2926, 4294901760
    %2928 = vmatpush1.msra.mxu0 %v2927
    %2929 = vmatprep.subr.mxu0 0.0
    %v2930 = vand.u32 %v2760, 4294901760
    %v2931 = vsub.f32 %v2760, %v2930
    %v2932 = vand.u32 %v2931, 4294901760
    %v2933 = vsub.f32 %v2931, %v2932
    %v2934 = vand.u32 %v2933, 4294901760
    %2935 = vmatpush1.msra.mxu0 %v2934
    %2936 = vmatprep.subr.mxu0 0.0
    %v2937 = vand.u32 %v2759, 4294901760
    %v2938 = vsub.f32 %v2759, %v2937
    %v2939 = vand.u32 %v2938, 4294901760
    %v2940 = vsub.f32 %v2938, %v2939
    %v2941 = vand.u32 %v2940, 4294901760
    %2942 = vmatpush1.msra.mxu0 %v2941
    %2943 = vmatprep.subr.mxu0 0.0
    %v2944 = vand.u32 %v2758, 4294901760
    %v2945 = vsub.f32 %v2758, %v2944
    %v2946 = vand.u32 %v2945, 4294901760
    %v2947 = vsub.f32 %v2945, %v2946
    %v2948 = vand.u32 %v2947, 4294901760
    %2949 = vmatpush1.msra.mxu0 %v2948
    %2950 = vmatprep.subr.mxu0 0.0
    %v2951 = vand.u32 %v2757, 4294901760
    %v2952 = vsub.f32 %v2757, %v2951
    %v2953 = vand.u32 %v2952, 4294901760
    %v2954 = vsub.f32 %v2952, %v2953
    %v2955 = vand.u32 %v2954, 4294901760
    %2956 = vmatpush1.msra.mxu0 %v2955
    %2957 = vmatprep.subr.mxu0 0.0
    %v2958 = vand.u32 %v2756, 4294901760
    %v2959 = vsub.f32 %v2756, %v2958
    %v2960 = vand.u32 %v2959, 4294901760
    %v2961 = vsub.f32 %v2959, %v2960
    %v2962 = vand.u32 %v2961, 4294901760
    %2963 = vmatpush1.msra.mxu0 %v2962
    %2964 = vmatprep.subr.mxu0 0.0
    %v2965 = vand.u32 %v2755, 4294901760
    %v2966 = vsub.f32 %v2755, %v2965
    %v2967 = vand.u32 %v2966, 4294901760
    %v2968 = vsub.f32 %v2966, %v2967
    %v2969 = vand.u32 %v2968, 4294901760
    %2970 = vmatpush1.msra.mxu0 %v2969
    %2971 = vmatprep.subr.mxu0 0.0
    %v2972 = vand.u32 %v2754, 4294901760
    %v2973 = vsub.f32 %v2754, %v2972
    %v2974 = vand.u32 %v2973, 4294901760
    %v2975 = vsub.f32 %v2973, %v2974
    %v2976 = vand.u32 %v2975, 4294901760
    %2977 = vmatpush1.msra.mxu0 %v2976
    %2978 = vmatprep.subr.mxu0 0.0
    %2979 = vmatpush2.msra.mxu0 0.0
    %2980 = vmatprep.subr.mxu0 0.0
    %2981 = vmatpush2.msra.mxu0 0.0
    %2982 = vmatprep.subr.mxu0 0.0
    %2983 = vmatpush2.msra.mxu0 0.0
    %2984 = vmatprep.subr.mxu0 0.0
    %2985 = vmatpush2.msra.mxu0 0.0
    %2986 = vmatprep.subr.mxu0 0.0
    %2987 = vmatpush2.msra.mxu0 0.0
    %2988 = vmatprep.subr.mxu0 0.0
    %2989 = vmatpush2.msra.mxu0 0.0
    %2990 = vmatprep.subr.mxu0 0.0
    %2991 = vmatpush2.msra.mxu0 0.0
    %2992 = vmatprep.subr.mxu0 0.0
    %2993 = vmatpush2.msra.mxu0 0.0
    %2994 = vmatprep.subr.mxu0 0.0
    %2995 = vmatpush2.msra.mxu0 0.0
    %2996 = vmatprep.subr.mxu0 0.0
    %2997 = vmatpush2.msra.mxu0 0.0
    %2998 = vmatprep.subr.mxu0 0.0
    %2999 = vmatpush2.msra.mxu0 0.0
    %3000 = vmatprep.subr.mxu0 0.0
    %3001 = vmatpush2.msra.mxu0 0.0
    %3002 = vmatprep.subr.mxu0 0.0
    %3003 = vmatpush2.msra.mxu0 0.0
    %3004 = vmatprep.subr.mxu0 0.0
    %3005 = vmatpush2.msra.mxu0 0.0
    %3006 = vmatprep.subr.mxu0 0.0
    %3007 = vmatpush2.msra.mxu0 0.0
    %3008 = vmatprep.subr.mxu0 0.0
    %3009 = vmatpush2.msra.mxu0 0.0
    %3010 = vmatprep.mubr.f32.mxu0 0.0
    %v3011 = vand.u32 %v2769, 4294901760
    %3012 = vmatmul.mubr.f32.gmra.mxu0 %v3011
    %v3013 = vpop.f32.mrf.mxu0
    %v3014 = vadd.f32 %v2863, %v3013
    %v3015 = vpop.f32.mrf.mxu0
    %3016 = vmatprep.mubr.f32.mxu0 0.0
    %v3017 = vand.u32 %v2772, 4294901760
    %3018 = vmatmul.mubr.f32.gmra.mxu0 %v3017
    %v3019 = vpop.f32.mrf.mxu0
    %v3020 = vadd.f32 %v2873, %v3019
    %v3021 = vpop.f32.mrf.mxu0
    %3022 = vdwg.mxu0
    %3023 = vmatprep.subr.mxu0 0.0
    %3024 = vmatpush1.msra.mxu0 0.0
    %3025 = vmatprep.subr.mxu0 0.0
    %3026 = vmatpush1.msra.mxu0 0.0
    %3027 = vmatprep.subr.mxu0 0.0
    %v3028 = vand.u32 %v2775, 4294901760
    %v3029 = vsub.f32 %v2775, %v3028
    %3030 = vmatpush1.msra.mxu0 %v3029
    %3031 = vmatprep.subr.mxu0 0.0
    %v3032 = vand.u32 %v2766, 4294901760
    %v3033 = vsub.f32 %v2766, %v3032
    %3034 = vmatpush1.msra.mxu0 %v3033
    %3035 = vmatprep.subr.mxu0 0.0
    %v3036 = vand.u32 %v2765, 4294901760
    %v3037 = vsub.f32 %v2765, %v3036
    %3038 = vmatpush1.msra.mxu0 %v3037
    %3039 = vmatprep.subr.mxu0 0.0
    %v3040 = vand.u32 %v2764, 4294901760
    %v3041 = vsub.f32 %v2764, %v3040
    %3042 = vmatpush1.msra.mxu0 %v3041
    %3043 = vmatprep.subr.mxu0 0.0
    %v3044 = vand.u32 %v2763, 4294901760
    %v3045 = vsub.f32 %v2763, %v3044
    %3046 = vmatpush1.msra.mxu0 %v3045
    %3047 = vmatprep.subr.mxu0 0.0
    %v3048 = vand.u32 %v2762, 4294901760
    %v3049 = vsub.f32 %v2762, %v3048
    %3050 = vmatpush1.msra.mxu0 %v3049
    %3051 = vmatprep.subr.mxu0 0.0
    %v3052 = vand.u32 %v2761, 4294901760
    %v3053 = vsub.f32 %v2761, %v3052
    %3054 = vmatpush1.msra.mxu0 %v3053
    %3055 = vmatprep.subr.mxu0 0.0
    %v3056 = vand.u32 %v2760, 4294901760
    %v3057 = vsub.f32 %v2760, %v3056
    %3058 = vmatpush1.msra.mxu0 %v3057
    %3059 = vmatprep.subr.mxu0 0.0
    %v3060 = vand.u32 %v2759, 4294901760
    %v3061 = vsub.f32 %v2759, %v3060
    %3062 = vmatpush1.msra.mxu0 %v3061
    %3063 = vmatprep.subr.mxu0 0.0
    %v3064 = vand.u32 %v2758, 4294901760
    %v3065 = vsub.f32 %v2758, %v3064
    %3066 = vmatpush1.msra.mxu0 %v3065
    %3067 = vmatprep.subr.mxu0 0.0
    %v3068 = vand.u32 %v2757, 4294901760
    %v3069 = vsub.f32 %v2757, %v3068
    %3070 = vmatpush1.msra.mxu0 %v3069
    %3071 = vmatprep.subr.mxu0 0.0
    %v3072 = vand.u32 %v2756, 4294901760
    %v3073 = vsub.f32 %v2756, %v3072
    %3074 = vmatpush1.msra.mxu0 %v3073
    %3075 = vmatprep.subr.mxu0 0.0
    %v3076 = vand.u32 %v2755, 4294901760
    %v3077 = vsub.f32 %v2755, %v3076
    %3078 = vmatpush1.msra.mxu0 %v3077
    %3079 = vmatprep.subr.mxu0 0.0
    %v3080 = vand.u32 %v2754, 4294901760
    %v3081 = vsub.f32 %v2754, %v3080
    %3082 = vmatpush1.msra.mxu0 %v3081
    %3083 = vmatprep.subr.mxu0 0.0
    %3084 = vmatpush2.msra.mxu0 0.0
    %3085 = vmatprep.subr.mxu0 0.0
    %3086 = vmatpush2.msra.mxu0 0.0
    %3087 = vmatprep.subr.mxu0 0.0
    %3088 = vmatpush2.msra.mxu0 0.0
    %3089 = vmatprep.subr.mxu0 0.0
    %3090 = vmatpush2.msra.mxu0 0.0
    %3091 = vmatprep.subr.mxu0 0.0
    %3092 = vmatpush2.msra.mxu0 0.0
    %3093 = vmatprep.subr.mxu0 0.0
    %3094 = vmatpush2.msra.mxu0 0.0
    %3095 = vmatprep.subr.mxu0 0.0
    %3096 = vmatpush2.msra.mxu0 0.0
    %3097 = vmatprep.subr.mxu0 0.0
    %3098 = vmatpush2.msra.mxu0 0.0
    %3099 = vmatprep.subr.mxu0 0.0
    %3100 = vmatpush2.msra.mxu0 0.0
    %3101 = vmatprep.subr.mxu0 0.0
    %3102 = vmatpush2.msra.mxu0 0.0
    %3103 = vmatprep.subr.mxu0 0.0
    %3104 = vmatpush2.msra.mxu0 0.0
    %3105 = vmatprep.subr.mxu0 0.0
    %3106 = vmatpush2.msra.mxu0 0.0
    %3107 = vmatprep.subr.mxu0 0.0
    %3108 = vmatpush2.msra.mxu0 0.0
    %3109 = vmatprep.subr.mxu0 0.0
    %3110 = vmatpush2.msra.mxu0 0.0
    %3111 = vmatprep.subr.mxu0 0.0
    %3112 = vmatpush2.msra.mxu0 0.0
    %3113 = vmatprep.subr.mxu0 0.0
    %3114 = vmatpush2.msra.mxu0 0.0
    %3115 = vmatprep.mubr.f32.mxu0 0.0
    %v3116 = vand.u32 %v2769, 4294901760
    %v3117 = vsub.f32 %v2769, %v3116
    %3118 = vmatmul.mubr.f32.gmra.mxu0 %v3117
    %v3119 = vpop.f32.mrf.mxu0
    %v3120 = vadd.f32 %v3014, %v3119
    %v3121 = vpop.f32.mrf.mxu0
    %3122 = vmatprep.mubr.f32.mxu0 0.0
    %v3123 = vand.u32 %v2772, 4294901760
    %v3124 = vsub.f32 %v2772, %v3123
    %3125 = vmatmul.mubr.f32.gmra.mxu0 %v3124
    %v3126 = vpop.f32.mrf.mxu0
    %v3127 = vadd.f32 %v3020, %v3126
    %v3128 = vpop.f32.mrf.mxu0
    %3129 = vdwg.mxu0
    %3130 = vmatprep.subr.mxu0 0.0
    %3131 = vmatpush1.msra.mxu0 0.0
    %3132 = vmatprep.subr.mxu0 0.0
    %3133 = vmatpush1.msra.mxu0 0.0
    %3134 = vmatprep.subr.mxu0 0.0
    %v3135 = vand.u32 %v2775, 4294901760
    %3136 = vmatpush1.msra.mxu0 %v3135
    %3137 = vmatprep.subr.mxu0 0.0
    %v3138 = vand.u32 %v2766, 4294901760
    %3139 = vmatpush1.msra.mxu0 %v3138
    %3140 = vmatprep.subr.mxu0 0.0
    %v3141 = vand.u32 %v2765, 4294901760
    %3142 = vmatpush1.msra.mxu0 %v3141
    %3143 = vmatprep.subr.mxu0 0.0
    %v3144 = vand.u32 %v2764, 4294901760
    %3145 = vmatpush1.msra.mxu0 %v3144
    %3146 = vmatprep.subr.mxu0 0.0
    %v3147 = vand.u32 %v2763, 4294901760
    %3148 = vmatpush1.msra.mxu0 %v3147
    %3149 = vmatprep.subr.mxu0 0.0
    %v3150 = vand.u32 %v2762, 4294901760
    %3151 = vmatpush1.msra.mxu0 %v3150
    %3152 = vmatprep.subr.mxu0 0.0
    %v3153 = vand.u32 %v2761, 4294901760
    %3154 = vmatpush1.msra.mxu0 %v3153
    %3155 = vmatprep.subr.mxu0 0.0
    %v3156 = vand.u32 %v2760, 4294901760
    %3157 = vmatpush1.msra.mxu0 %v3156
    %3158 = vmatprep.subr.mxu0 0.0
    %v3159 = vand.u32 %v2759, 4294901760
    %3160 = vmatpush1.msra.mxu0 %v3159
    %3161 = vmatprep.subr.mxu0 0.0
    %v3162 = vand.u32 %v2758, 4294901760
    %3163 = vmatpush1.msra.mxu0 %v3162
    %3164 = vmatprep.subr.mxu0 0.0
    %v3165 = vand.u32 %v2757, 4294901760
    %3166 = vmatpush1.msra.mxu0 %v3165
    %3167 = vmatprep.subr.mxu0 0.0
    %v3168 = vand.u32 %v2756, 4294901760
    %3169 = vmatpush1.msra.mxu0 %v3168
    %3170 = vmatprep.subr.mxu0 0.0
    %v3171 = vand.u32 %v2755, 4294901760
    %3172 = vmatpush1.msra.mxu0 %v3171
    %3173 = vmatprep.subr.mxu0 0.0
    %v3174 = vand.u32 %v2754, 4294901760
    %3175 = vmatpush1.msra.mxu0 %v3174
    %3176 = vmatprep.subr.mxu0 0.0
    %3177 = vmatpush2.msra.mxu0 0.0
    %3178 = vmatprep.subr.mxu0 0.0
    %3179 = vmatpush2.msra.mxu0 0.0
    %3180 = vmatprep.subr.mxu0 0.0
    %3181 = vmatpush2.msra.mxu0 0.0
    %3182 = vmatprep.subr.mxu0 0.0
    %3183 = vmatpush2.msra.mxu0 0.0
    %3184 = vmatprep.subr.mxu0 0.0
    %3185 = vmatpush2.msra.mxu0 0.0
    %3186 = vmatprep.subr.mxu0 0.0
    %3187 = vmatpush2.msra.mxu0 0.0
    %3188 = vmatprep.subr.mxu0 0.0
    %3189 = vmatpush2.msra.mxu0 0.0
    %3190 = vmatprep.subr.mxu0 0.0
    %3191 = vmatpush2.msra.mxu0 0.0
    %3192 = vmatprep.subr.mxu0 0.0
    %3193 = vmatpush2.msra.mxu0 0.0
    %3194 = vmatprep.subr.mxu0 0.0
    %3195 = vmatpush2.msra.mxu0 0.0
    %3196 = vmatprep.subr.mxu0 0.0
    %3197 = vmatpush2.msra.mxu0 0.0
    %3198 = vmatprep.subr.mxu0 0.0
    %3199 = vmatpush2.msra.mxu0 0.0
    %3200 = vmatprep.subr.mxu0 0.0
    %3201 = vmatpush2.msra.mxu0 0.0
    %3202 = vmatprep.subr.mxu0 0.0
    %3203 = vmatpush2.msra.mxu0 0.0
    %3204 = vmatprep.subr.mxu0 0.0
    %3205 = vmatpush2.msra.mxu0 0.0
    %3206 = vmatprep.subr.mxu0 0.0
    %3207 = vmatpush2.msra.mxu0 0.0
    %3208 = vmatprep.mubr.f32.mxu0 0.0
    %v3209 = vand.u32 %v2769, 4294901760
    %v3210 = vsub.f32 %v2769, %v3209
    %v3211 = vand.u32 %v3210, 4294901760
    %3212 = vmatmul.mubr.f32.gmra.mxu0 %v3211
    %v3213 = vpop.f32.mrf.mxu0
    %v3214 = vadd.f32 %v3120, %v3213
    %v3215 = vpop.f32.mrf.mxu0
    %3216 = vmatprep.mubr.f32.mxu0 0.0
    %v3217 = vand.u32 %v2772, 4294901760
    %v3218 = vsub.f32 %v2772, %v3217
    %v3219 = vand.u32 %v3218, 4294901760
    %3220 = vmatmul.mubr.f32.gmra.mxu0 %v3219
    %v3221 = vpop.f32.mrf.mxu0
    %v3222 = vadd.f32 %v3127, %v3221
    %v3223 = vpop.f32.mrf.mxu0
    %3224 = vdwg.mxu0
    %3225 = vmatprep.subr.mxu0 0.0
    %3226 = vmatpush1.msra.mxu0 0.0
    %3227 = vmatprep.subr.mxu0 0.0
    %3228 = vmatpush1.msra.mxu0 0.0
    %3229 = vmatprep.subr.mxu0 0.0
    %v3230 = vand.u32 %v2775, 4294901760
    %v3231 = vsub.f32 %v2775, %v3230
    %v3232 = vand.u32 %v3231, 4294901760
    %3233 = vmatpush1.msra.mxu0 %v3232
    %3234 = vmatprep.subr.mxu0 0.0
    %v3235 = vand.u32 %v2766, 4294901760
    %v3236 = vsub.f32 %v2766, %v3235
    %v3237 = vand.u32 %v3236, 4294901760
    %3238 = vmatpush1.msra.mxu0 %v3237
    %3239 = vmatprep.subr.mxu0 0.0
    %v3240 = vand.u32 %v2765, 4294901760
    %v3241 = vsub.f32 %v2765, %v3240
    %v3242 = vand.u32 %v3241, 4294901760
    %3243 = vmatpush1.msra.mxu0 %v3242
    %3244 = vmatprep.subr.mxu0 0.0
    %v3245 = vand.u32 %v2764, 4294901760
    %v3246 = vsub.f32 %v2764, %v3245
    %v3247 = vand.u32 %v3246, 4294901760
    %3248 = vmatpush1.msra.mxu0 %v3247
    %3249 = vmatprep.subr.mxu0 0.0
    %v3250 = vand.u32 %v2763, 4294901760
    %v3251 = vsub.f32 %v2763, %v3250
    %v3252 = vand.u32 %v3251, 4294901760
    %3253 = vmatpush1.msra.mxu0 %v3252
    %3254 = vmatprep.subr.mxu0 0.0
    %v3255 = vand.u32 %v2762, 4294901760
    %v3256 = vsub.f32 %v2762, %v3255
    %v3257 = vand.u32 %v3256, 4294901760
    %3258 = vmatpush1.msra.mxu0 %v3257
    %3259 = vmatprep.subr.mxu0 0.0
    %v3260 = vand.u32 %v2761, 4294901760
    %v3261 = vsub.f32 %v2761, %v3260
    %v3262 = vand.u32 %v3261, 4294901760
    %3263 = vmatpush1.msra.mxu0 %v3262
    %3264 = vmatprep.subr.mxu0 0.0
    %v3265 = vand.u32 %v2760, 4294901760
    %v3266 = vsub.f32 %v2760, %v3265
    %v3267 = vand.u32 %v3266, 4294901760
    %3268 = vmatpush1.msra.mxu0 %v3267
    %3269 = vmatprep.subr.mxu0 0.0
    %v3270 = vand.u32 %v2759, 4294901760
    %v3271 = vsub.f32 %v2759, %v3270
    %v3272 = vand.u32 %v3271, 4294901760
    %3273 = vmatpush1.msra.mxu0 %v3272
    %3274 = vmatprep.subr.mxu0 0.0
    %v3275 = vand.u32 %v2758, 4294901760
    %v3276 = vsub.f32 %v2758, %v3275
    %v3277 = vand.u32 %v3276, 4294901760
    %3278 = vmatpush1.msra.mxu0 %v3277
    %3279 = vmatprep.subr.mxu0 0.0
    %v3280 = vand.u32 %v2757, 4294901760
    %v3281 = vsub.f32 %v2757, %v3280
    %v3282 = vand.u32 %v3281, 4294901760
    %3283 = vmatpush1.msra.mxu0 %v3282
    %3284 = vmatprep.subr.mxu0 0.0
    %v3285 = vand.u32 %v2756, 4294901760
    %v3286 = vsub.f32 %v2756, %v3285
    %v3287 = vand.u32 %v3286, 4294901760
    %3288 = vmatpush1.msra.mxu0 %v3287
    %3289 = vmatprep.subr.mxu0 0.0
    %v3290 = vand.u32 %v2755, 4294901760
    %v3291 = vsub.f32 %v2755, %v3290
    %v3292 = vand.u32 %v3291, 4294901760
    %3293 = vmatpush1.msra.mxu0 %v3292
    %3294 = vmatprep.subr.mxu0 0.0
    %v3295 = vand.u32 %v2754, 4294901760
    %v3296 = vsub.f32 %v2754, %v3295
    %v3297 = vand.u32 %v3296, 4294901760
    %3298 = vmatpush1.msra.mxu0 %v3297
    %3299 = vmatprep.subr.mxu0 0.0
    %3300 = vmatpush2.msra.mxu0 0.0
    %3301 = vmatprep.subr.mxu0 0.0
    %3302 = vmatpush2.msra.mxu0 0.0
    %3303 = vmatprep.subr.mxu0 0.0
    %3304 = vmatpush2.msra.mxu0 0.0
    %3305 = vmatprep.subr.mxu0 0.0
    %3306 = vmatpush2.msra.mxu0 0.0
    %3307 = vmatprep.subr.mxu0 0.0
    %3308 = vmatpush2.msra.mxu0 0.0
    %3309 = vmatprep.subr.mxu0 0.0
    %3310 = vmatpush2.msra.mxu0 0.0
    %3311 = vmatprep.subr.mxu0 0.0
    %3312 = vmatpush2.msra.mxu0 0.0
    %3313 = vmatprep.subr.mxu0 0.0
    %3314 = vmatpush2.msra.mxu0 0.0
    %3315 = vmatprep.subr.mxu0 0.0
    %3316 = vmatpush2.msra.mxu0 0.0
    %3317 = vmatprep.subr.mxu0 0.0
    %3318 = vmatpush2.msra.mxu0 0.0
    %3319 = vmatprep.subr.mxu0 0.0
    %3320 = vmatpush2.msra.mxu0 0.0
    %3321 = vmatprep.subr.mxu0 0.0
    %3322 = vmatpush2.msra.mxu0 0.0
    %3323 = vmatprep.subr.mxu0 0.0
    %3324 = vmatpush2.msra.mxu0 0.0
    %3325 = vmatprep.subr.mxu0 0.0
    %3326 = vmatpush2.msra.mxu0 0.0
    %3327 = vmatprep.subr.mxu0 0.0
    %3328 = vmatpush2.msra.mxu0 0.0
    %3329 = vmatprep.subr.mxu0 0.0
    %3330 = vmatpush2.msra.mxu0 0.0
    %3331 = vmatprep.mubr.f32.mxu0 0.0
    %v3332 = vand.u32 %v2769, 4294901760
    %3333 = vmatmul.mubr.f32.gmra.mxu0 %v3332
    %v3334 = vpop.f32.mrf.mxu0
    %v3335 = vadd.f32 %v3214, %v3334
    %v3336 = vpop.f32.mrf.mxu0
    %3337 = vmatprep.mubr.f32.mxu0 0.0
    %v3338 = vand.u32 %v2772, 4294901760
    %3339 = vmatmul.mubr.f32.gmra.mxu0 %v3338
    %v3340 = vpop.f32.mrf.mxu0
    %v3341 = vadd.f32 %v3222, %v3340
    %v3342 = vpop.f32.mrf.mxu0
    %3343 = vdwg.mxu0
    %3344 = vmatprep.subr.mxu0 0.0
    %3345 = vmatpush1.msra.mxu0 0.0
    %3346 = vmatprep.subr.mxu0 0.0
    %3347 = vmatpush1.msra.mxu0 0.0
    %3348 = vmatprep.subr.mxu0 0.0
    %v3349 = vand.u32 %v2775, 4294901760
    %3350 = vmatpush1.msra.mxu0 %v3349
    %3351 = vmatprep.subr.mxu0 0.0
    %v3352 = vand.u32 %v2766, 4294901760
    %3353 = vmatpush1.msra.mxu0 %v3352
    %3354 = vmatprep.subr.mxu0 0.0
    %v3355 = vand.u32 %v2765, 4294901760
    %3356 = vmatpush1.msra.mxu0 %v3355
    %3357 = vmatprep.subr.mxu0 0.0
    %v3358 = vand.u32 %v2764, 4294901760
    %3359 = vmatpush1.msra.mxu0 %v3358
    %3360 = vmatprep.subr.mxu0 0.0
    %v3361 = vand.u32 %v2763, 4294901760
    %3362 = vmatpush1.msra.mxu0 %v3361
    %3363 = vmatprep.subr.mxu0 0.0
    %v3364 = vand.u32 %v2762, 4294901760
    %3365 = vmatpush1.msra.mxu0 %v3364
    %3366 = vmatprep.subr.mxu0 0.0
    %v3367 = vand.u32 %v2761, 4294901760
    %3368 = vmatpush1.msra.mxu0 %v3367
    %3369 = vmatprep.subr.mxu0 0.0
    %v3370 = vand.u32 %v2760, 4294901760
    %3371 = vmatpush1.msra.mxu0 %v3370
    %3372 = vmatprep.subr.mxu0 0.0
    %v3373 = vand.u32 %v2759, 4294901760
    %3374 = vmatpush1.msra.mxu0 %v3373
    %3375 = vmatprep.subr.mxu0 0.0
    %v3376 = vand.u32 %v2758, 4294901760
    %3377 = vmatpush1.msra.mxu0 %v3376
    %3378 = vmatprep.subr.mxu0 0.0
    %v3379 = vand.u32 %v2757, 4294901760
    %3380 = vmatpush1.msra.mxu0 %v3379
    %3381 = vmatprep.subr.mxu0 0.0
    %v3382 = vand.u32 %v2756, 4294901760
    %3383 = vmatpush1.msra.mxu0 %v3382
    %3384 = vmatprep.subr.mxu0 0.0
    %v3385 = vand.u32 %v2755, 4294901760
    %3386 = vmatpush1.msra.mxu0 %v3385
    %3387 = vmatprep.subr.mxu0 0.0
    %v3388 = vand.u32 %v2754, 4294901760
    %3389 = vmatpush1.msra.mxu0 %v3388
    %3390 = vmatprep.subr.mxu0 0.0
    %3391 = vmatpush2.msra.mxu0 0.0
    %3392 = vmatprep.subr.mxu0 0.0
    %3393 = vmatpush2.msra.mxu0 0.0
    %3394 = vmatprep.subr.mxu0 0.0
    %3395 = vmatpush2.msra.mxu0 0.0
    %3396 = vmatprep.subr.mxu0 0.0
    %3397 = vmatpush2.msra.mxu0 0.0
    %3398 = vmatprep.subr.mxu0 0.0
    %3399 = vmatpush2.msra.mxu0 0.0
    %3400 = vmatprep.subr.mxu0 0.0
    %3401 = vmatpush2.msra.mxu0 0.0
    %3402 = vmatprep.subr.mxu0 0.0
    %3403 = vmatpush2.msra.mxu0 0.0
    %3404 = vmatprep.subr.mxu0 0.0
    %3405 = vmatpush2.msra.mxu0 0.0
    %3406 = vmatprep.subr.mxu0 0.0
    %3407 = vmatpush2.msra.mxu0 0.0
    %3408 = vmatprep.subr.mxu0 0.0
    %3409 = vmatpush2.msra.mxu0 0.0
    %3410 = vmatprep.subr.mxu0 0.0
    %3411 = vmatpush2.msra.mxu0 0.0
    %3412 = vmatprep.subr.mxu0 0.0
    %3413 = vmatpush2.msra.mxu0 0.0
    %3414 = vmatprep.subr.mxu0 0.0
    %3415 = vmatpush2.msra.mxu0 0.0
    %3416 = vmatprep.subr.mxu0 0.0
    %3417 = vmatpush2.msra.mxu0 0.0
    %3418 = vmatprep.subr.mxu0 0.0
    %3419 = vmatpush2.msra.mxu0 0.0
    %3420 = vmatprep.subr.mxu0 0.0
    %3421 = vmatpush2.msra.mxu0 0.0
    %3422 = vmatprep.mubr.f32.mxu0 0.0
    %v3423 = vand.u32 %v2769, 4294901760
    %3424 = vmatmul.mubr.f32.gmra.mxu0 %v3423
    %v3425 = vpop.f32.mrf.mxu0
    %v3426 = vadd.f32 %v3335, %v3425
    %v3427 = vpop.f32.mrf.mxu0
    %3428 = vmatprep.mubr.f32.mxu0 0.0
    %v3429 = vand.u32 %v2772, 4294901760
    %3430 = vmatmul.mubr.f32.gmra.mxu0 %v3429
    %v3431 = vpop.f32.mrf.mxu0
    %v3432 = vadd.f32 %v3341, %v3431
    %v3433 = vpop.f32.mrf.mxu0
    %3434 = vdwg.mxu0
    %s3435 = scalar_lea.vmem %s2, 672
    %v3436 = vld [vmem:[%s3435] sm:$0xff]
    %v3437 = vld [vmem:[%s3435 + $0x8] sm:$0xff]
    %v3438 = vld [vmem:[%s3435 + $0x10] sm:$0xff]
    %v3439 = vld [vmem:[%s3435 + $0x18] sm:$0xff]
    %v3440 = vld [vmem:[%s3435 + $0x20] sm:$0xff]
    %v3441 = vld [vmem:[%s3435 + $0x28] sm:$0xff]
    %v3442 = vld [vmem:[%s3435 + $0x30] sm:$0xff]
    %v3443 = vld [vmem:[%s3435 + $0x38] sm:$0xff]
    %v3444 = vld [vmem:[%s3435 + $0x40] sm:$0xff]
    %v3445 = vld [vmem:[%s3435 + $0x48] sm:$0xff]
    %v3446 = vld [vmem:[%s3435 + $0x50] sm:$0xff]
    %v3447 = vld [vmem:[%s3435 + $0x58] sm:$0xff]
    %v3448 = vld [vmem:[%s3435 + $0x60] sm:$0xff]
    %v3449 = vld [vmem:[%s3435 + $0x68] sm:$0xf]
    %s3450 = scalar_lea.vmem %s2, 784
    %v3451 = vld [vmem:[%s3450] sm:$0xff]
    %v3452 = vld [vmem:[%s3450 + $0x8] sm:$0xff]
    %v3453 = vld [vmem:[%s3450 + $0x10] sm:$0xff]
    %v3454 = vld [vmem:[%s3450 + $0x18] sm:$0xff]
    %v3455 = vld [vmem:[%s3450 + $0x20] sm:$0xff]
    %v3456 = vld [vmem:[%s3450 + $0x28] sm:$0xff]
    %v3457 = vld [vmem:[%s3450 + $0x30] sm:$0xff]
    %v3458 = vld [vmem:[%s3450 + $0x38] sm:$0xff]
    %v3459 = vld [vmem:[%s3450 + $0x40] sm:$0xff]
    %v3460 = vld [vmem:[%s3450 + $0x48] sm:$0xff]
    %v3461 = vld [vmem:[%s3450 + $0x50] sm:$0xff]
    %v3462 = vld [vmem:[%s3450 + $0x58] sm:$0xff]
    %v3463 = vld [vmem:[%s3450 + $0x60] sm:$0xff]
    %v3464 = vld [vmem:[%s3450 + $0x68] sm:$0xf]
    %v3466 = vsel %vm1372, %v1334, 0
    %v3469 = vsel %vm1372, %v1340, 0
    %v3472 = vsel %vm1379, %v3464, 0
    %3474 = vmatprep.subr.mxu0 0.0
    %3475 = vmatpush1.msra.mxu0 0.0
    %3476 = vmatprep.subr.mxu0 0.0
    %3477 = vmatpush1.msra.mxu0 0.0
    %3478 = vmatprep.subr.mxu0 0.0
    %v3479 = vand.u32 %v3472, 4294901760
    %3480 = vmatpush1.msra.mxu0 %v3479
    %3481 = vmatprep.subr.mxu0 0.0
    %v3482 = vand.u32 %v3463, 4294901760
    %3483 = vmatpush1.msra.mxu0 %v3482
    %3484 = vmatprep.subr.mxu0 0.0
    %v3485 = vand.u32 %v3462, 4294901760
    %3486 = vmatpush1.msra.mxu0 %v3485
    %3487 = vmatprep.subr.mxu0 0.0
    %v3488 = vand.u32 %v3461, 4294901760
    %3489 = vmatpush1.msra.mxu0 %v3488
    %3490 = vmatprep.subr.mxu0 0.0
    %v3491 = vand.u32 %v3460, 4294901760
    %3492 = vmatpush1.msra.mxu0 %v3491
    %3493 = vmatprep.subr.mxu0 0.0
    %v3494 = vand.u32 %v3459, 4294901760
    %3495 = vmatpush1.msra.mxu0 %v3494
    %3496 = vmatprep.subr.mxu0 0.0
    %v3497 = vand.u32 %v3458, 4294901760
    %3498 = vmatpush1.msra.mxu0 %v3497
    %3499 = vmatprep.subr.mxu0 0.0
    %v3500 = vand.u32 %v3457, 4294901760
    %3501 = vmatpush1.msra.mxu0 %v3500
    %3502 = vmatprep.subr.mxu0 0.0
    %v3503 = vand.u32 %v3456, 4294901760
    %3504 = vmatpush1.msra.mxu0 %v3503
    %3505 = vmatprep.subr.mxu0 0.0
    %v3506 = vand.u32 %v3455, 4294901760
    %3507 = vmatpush1.msra.mxu0 %v3506
    %3508 = vmatprep.subr.mxu0 0.0
    %v3509 = vand.u32 %v3454, 4294901760
    %3510 = vmatpush1.msra.mxu0 %v3509
    %3511 = vmatprep.subr.mxu0 0.0
    %v3512 = vand.u32 %v3453, 4294901760
    %3513 = vmatpush1.msra.mxu0 %v3512
    %3514 = vmatprep.subr.mxu0 0.0
    %v3515 = vand.u32 %v3452, 4294901760
    %3516 = vmatpush1.msra.mxu0 %v3515
    %3517 = vmatprep.subr.mxu0 0.0
    %v3518 = vand.u32 %v3451, 4294901760
    %3519 = vmatpush1.msra.mxu0 %v3518
    %3520 = vmatprep.subr.mxu0 0.0
    %3521 = vmatpush2.msra.mxu0 0.0
    %3522 = vmatprep.subr.mxu0 0.0
    %3523 = vmatpush2.msra.mxu0 0.0
    %3524 = vmatprep.subr.mxu0 0.0
    %3525 = vmatpush2.msra.mxu0 0.0
    %3526 = vmatprep.subr.mxu0 0.0
    %3527 = vmatpush2.msra.mxu0 0.0
    %3528 = vmatprep.subr.mxu0 0.0
    %3529 = vmatpush2.msra.mxu0 0.0
    %3530 = vmatprep.subr.mxu0 0.0
    %3531 = vmatpush2.msra.mxu0 0.0
    %3532 = vmatprep.subr.mxu0 0.0
    %3533 = vmatpush2.msra.mxu0 0.0
    %3534 = vmatprep.subr.mxu0 0.0
    %3535 = vmatpush2.msra.mxu0 0.0
    %3536 = vmatprep.subr.mxu0 0.0
    %3537 = vmatpush2.msra.mxu0 0.0
    %3538 = vmatprep.subr.mxu0 0.0
    %3539 = vmatpush2.msra.mxu0 0.0
    %3540 = vmatprep.subr.mxu0 0.0
    %3541 = vmatpush2.msra.mxu0 0.0
    %3542 = vmatprep.subr.mxu0 0.0
    %3543 = vmatpush2.msra.mxu0 0.0
    %3544 = vmatprep.subr.mxu0 0.0
    %3545 = vmatpush2.msra.mxu0 0.0
    %3546 = vmatprep.subr.mxu0 0.0
    %3547 = vmatpush2.msra.mxu0 0.0
    %3548 = vmatprep.subr.mxu0 0.0
    %3549 = vmatpush2.msra.mxu0 0.0
    %3550 = vmatprep.subr.mxu0 0.0
    %3551 = vmatpush2.msra.mxu0 0.0
    %3552 = vmatprep.mubr.f32.mxu0 0.0
    %v3553 = vand.u32 %v3466, 4294901760
    %v3554 = vsub.f32 %v3466, %v3553
    %v3555 = vand.u32 %v3554, 4294901760
    %v3556 = vsub.f32 %v3554, %v3555
    %v3557 = vand.u32 %v3556, 4294901760
    %3558 = vmatmul.mubr.f32.gmra.mxu0 %v3557
    %v3559 = vpop.f32.mrf.mxu0
    %v3560 = vadd.f32 0.0, %v3559
    %v3561 = vpop.f32.mrf.mxu0
    %3562 = vmatprep.mubr.f32.mxu0 0.0
    %v3563 = vand.u32 %v3469, 4294901760
    %v3564 = vsub.f32 %v3469, %v3563
    %v3565 = vand.u32 %v3564, 4294901760
    %v3566 = vsub.f32 %v3564, %v3565
    %v3567 = vand.u32 %v3566, 4294901760
    %3568 = vmatmul.mubr.f32.gmra.mxu0 %v3567
    %v3569 = vpop.f32.mrf.mxu0
    %v3570 = vadd.f32 0.0, %v3569
    %v3571 = vpop.f32.mrf.mxu0
    %3572 = vdwg.mxu0
    %3573 = vmatprep.subr.mxu0 0.0
    %3574 = vmatpush1.msra.mxu0 0.0
    %3575 = vmatprep.subr.mxu0 0.0
    %3576 = vmatpush1.msra.mxu0 0.0
    %3577 = vmatprep.subr.mxu0 0.0
    %v3578 = vand.u32 %v3472, 4294901760
    %v3579 = vsub.f32 %v3472, %v3578
    %v3580 = vand.u32 %v3579, 4294901760
    %v3581 = vsub.f32 %v3579, %v3580
    %v3582 = vand.u32 %v3581, 4294901760
    %3583 = vmatpush1.msra.mxu0 %v3582
    %3584 = vmatprep.subr.mxu0 0.0
    %v3585 = vand.u32 %v3463, 4294901760
    %v3586 = vsub.f32 %v3463, %v3585
    %v3587 = vand.u32 %v3586, 4294901760
    %v3588 = vsub.f32 %v3586, %v3587
    %v3589 = vand.u32 %v3588, 4294901760
    %3590 = vmatpush1.msra.mxu0 %v3589
    %3591 = vmatprep.subr.mxu0 0.0
    %v3592 = vand.u32 %v3462, 4294901760
    %v3593 = vsub.f32 %v3462, %v3592
    %v3594 = vand.u32 %v3593, 4294901760
    %v3595 = vsub.f32 %v3593, %v3594
    %v3596 = vand.u32 %v3595, 4294901760
    %3597 = vmatpush1.msra.mxu0 %v3596
    %3598 = vmatprep.subr.mxu0 0.0
    %v3599 = vand.u32 %v3461, 4294901760
    %v3600 = vsub.f32 %v3461, %v3599
    %v3601 = vand.u32 %v3600, 4294901760
    %v3602 = vsub.f32 %v3600, %v3601
    %v3603 = vand.u32 %v3602, 4294901760
    %3604 = vmatpush1.msra.mxu0 %v3603
    %3605 = vmatprep.subr.mxu0 0.0
    %v3606 = vand.u32 %v3460, 4294901760
    %v3607 = vsub.f32 %v3460, %v3606
    %v3608 = vand.u32 %v3607, 4294901760
    %v3609 = vsub.f32 %v3607, %v3608
    %v3610 = vand.u32 %v3609, 4294901760
    %3611 = vmatpush1.msra.mxu0 %v3610
    %3612 = vmatprep.subr.mxu0 0.0
    %v3613 = vand.u32 %v3459, 4294901760
    %v3614 = vsub.f32 %v3459, %v3613
    %v3615 = vand.u32 %v3614, 4294901760
    %v3616 = vsub.f32 %v3614, %v3615
    %v3617 = vand.u32 %v3616, 4294901760
    %3618 = vmatpush1.msra.mxu0 %v3617
    %3619 = vmatprep.subr.mxu0 0.0
    %v3620 = vand.u32 %v3458, 4294901760
    %v3621 = vsub.f32 %v3458, %v3620
    %v3622 = vand.u32 %v3621, 4294901760
    %v3623 = vsub.f32 %v3621, %v3622
    %v3624 = vand.u32 %v3623, 4294901760
    %3625 = vmatpush1.msra.mxu0 %v3624
    %3626 = vmatprep.subr.mxu0 0.0
    %v3627 = vand.u32 %v3457, 4294901760
    %v3628 = vsub.f32 %v3457, %v3627
    %v3629 = vand.u32 %v3628, 4294901760
    %v3630 = vsub.f32 %v3628, %v3629
    %v3631 = vand.u32 %v3630, 4294901760
    %3632 = vmatpush1.msra.mxu0 %v3631
    %3633 = vmatprep.subr.mxu0 0.0
    %v3634 = vand.u32 %v3456, 4294901760
    %v3635 = vsub.f32 %v3456, %v3634
    %v3636 = vand.u32 %v3635, 4294901760
    %v3637 = vsub.f32 %v3635, %v3636
    %v3638 = vand.u32 %v3637, 4294901760
    %3639 = vmatpush1.msra.mxu0 %v3638
    %3640 = vmatprep.subr.mxu0 0.0
    %v3641 = vand.u32 %v3455, 4294901760
    %v3642 = vsub.f32 %v3455, %v3641
    %v3643 = vand.u32 %v3642, 4294901760
    %v3644 = vsub.f32 %v3642, %v3643
    %v3645 = vand.u32 %v3644, 4294901760
    %3646 = vmatpush1.msra.mxu0 %v3645
    %3647 = vmatprep.subr.mxu0 0.0
    %v3648 = vand.u32 %v3454, 4294901760
    %v3649 = vsub.f32 %v3454, %v3648
    %v3650 = vand.u32 %v3649, 4294901760
    %v3651 = vsub.f32 %v3649, %v3650
    %v3652 = vand.u32 %v3651, 4294901760
    %3653 = vmatpush1.msra.mxu0 %v3652
    %3654 = vmatprep.subr.mxu0 0.0
    %v3655 = vand.u32 %v3453, 4294901760
    %v3656 = vsub.f32 %v3453, %v3655
    %v3657 = vand.u32 %v3656, 4294901760
    %v3658 = vsub.f32 %v3656, %v3657
    %v3659 = vand.u32 %v3658, 4294901760
    %3660 = vmatpush1.msra.mxu0 %v3659
    %3661 = vmatprep.subr.mxu0 0.0
    %v3662 = vand.u32 %v3452, 4294901760
    %v3663 = vsub.f32 %v3452, %v3662
    %v3664 = vand.u32 %v3663, 4294901760
    %v3665 = vsub.f32 %v3663, %v3664
    %v3666 = vand.u32 %v3665, 4294901760
    %3667 = vmatpush1.msra.mxu0 %v3666
    %3668 = vmatprep.subr.mxu0 0.0
    %v3669 = vand.u32 %v3451, 4294901760
    %v3670 = vsub.f32 %v3451, %v3669
    %v3671 = vand.u32 %v3670, 4294901760
    %v3672 = vsub.f32 %v3670, %v3671
    %v3673 = vand.u32 %v3672, 4294901760
    %3674 = vmatpush1.msra.mxu0 %v3673
    %3675 = vmatprep.subr.mxu0 0.0
    %3676 = vmatpush2.msra.mxu0 0.0
    %3677 = vmatprep.subr.mxu0 0.0
    %3678 = vmatpush2.msra.mxu0 0.0
    %3679 = vmatprep.subr.mxu0 0.0
    %3680 = vmatpush2.msra.mxu0 0.0
    %3681 = vmatprep.subr.mxu0 0.0
    %3682 = vmatpush2.msra.mxu0 0.0
    %3683 = vmatprep.subr.mxu0 0.0
    %3684 = vmatpush2.msra.mxu0 0.0
    %3685 = vmatprep.subr.mxu0 0.0
    %3686 = vmatpush2.msra.mxu0 0.0
    %3687 = vmatprep.subr.mxu0 0.0
    %3688 = vmatpush2.msra.mxu0 0.0
    %3689 = vmatprep.subr.mxu0 0.0
    %3690 = vmatpush2.msra.mxu0 0.0
    %3691 = vmatprep.subr.mxu0 0.0
    %3692 = vmatpush2.msra.mxu0 0.0
    %3693 = vmatprep.subr.mxu0 0.0
    %3694 = vmatpush2.msra.mxu0 0.0
    %3695 = vmatprep.subr.mxu0 0.0
    %3696 = vmatpush2.msra.mxu0 0.0
    %3697 = vmatprep.subr.mxu0 0.0
    %3698 = vmatpush2.msra.mxu0 0.0
    %3699 = vmatprep.subr.mxu0 0.0
    %3700 = vmatpush2.msra.mxu0 0.0
    %3701 = vmatprep.subr.mxu0 0.0
    %3702 = vmatpush2.msra.mxu0 0.0
    %3703 = vmatprep.subr.mxu0 0.0
    %3704 = vmatpush2.msra.mxu0 0.0
    %3705 = vmatprep.subr.mxu0 0.0
    %3706 = vmatpush2.msra.mxu0 0.0
    %3707 = vmatprep.mubr.f32.mxu0 0.0
    %v3708 = vand.u32 %v3466, 4294901760
    %3709 = vmatmul.mubr.f32.gmra.mxu0 %v3708
    %v3710 = vpop.f32.mrf.mxu0
    %v3711 = vadd.f32 %v3560, %v3710
    %v3712 = vpop.f32.mrf.mxu0
    %3713 = vmatprep.mubr.f32.mxu0 0.0
    %v3714 = vand.u32 %v3469, 4294901760
    %3715 = vmatmul.mubr.f32.gmra.mxu0 %v3714
    %v3716 = vpop.f32.mrf.mxu0
    %v3717 = vadd.f32 %v3570, %v3716
    %v3718 = vpop.f32.mrf.mxu0
    %3719 = vdwg.mxu0
    %3720 = vmatprep.subr.mxu0 0.0
    %3721 = vmatpush1.msra.mxu0 0.0
    %3722 = vmatprep.subr.mxu0 0.0
    %3723 = vmatpush1.msra.mxu0 0.0
    %3724 = vmatprep.subr.mxu0 0.0
    %v3725 = vand.u32 %v3472, 4294901760
    %v3726 = vsub.f32 %v3472, %v3725
    %3727 = vmatpush1.msra.mxu0 %v3726
    %3728 = vmatprep.subr.mxu0 0.0
    %v3729 = vand.u32 %v3463, 4294901760
    %v3730 = vsub.f32 %v3463, %v3729
    %3731 = vmatpush1.msra.mxu0 %v3730
    %3732 = vmatprep.subr.mxu0 0.0
    %v3733 = vand.u32 %v3462, 4294901760
    %v3734 = vsub.f32 %v3462, %v3733
    %3735 = vmatpush1.msra.mxu0 %v3734
    %3736 = vmatprep.subr.mxu0 0.0
    %v3737 = vand.u32 %v3461, 4294901760
    %v3738 = vsub.f32 %v3461, %v3737
    %3739 = vmatpush1.msra.mxu0 %v3738
    %3740 = vmatprep.subr.mxu0 0.0
    %v3741 = vand.u32 %v3460, 4294901760
    %v3742 = vsub.f32 %v3460, %v3741
    %3743 = vmatpush1.msra.mxu0 %v3742
    %3744 = vmatprep.subr.mxu0 0.0
    %v3745 = vand.u32 %v3459, 4294901760
    %v3746 = vsub.f32 %v3459, %v3745
    %3747 = vmatpush1.msra.mxu0 %v3746
    %3748 = vmatprep.subr.mxu0 0.0
    %v3749 = vand.u32 %v3458, 4294901760
    %v3750 = vsub.f32 %v3458, %v3749
    %3751 = vmatpush1.msra.mxu0 %v3750
    %3752 = vmatprep.subr.mxu0 0.0
    %v3753 = vand.u32 %v3457, 4294901760
    %v3754 = vsub.f32 %v3457, %v3753
    %3755 = vmatpush1.msra.mxu0 %v3754
    %3756 = vmatprep.subr.mxu0 0.0
    %v3757 = vand.u32 %v3456, 4294901760
    %v3758 = vsub.f32 %v3456, %v3757
    %3759 = vmatpush1.msra.mxu0 %v3758
    %3760 = vmatprep.subr.mxu0 0.0
    %v3761 = vand.u32 %v3455, 4294901760
    %v3762 = vsub.f32 %v3455, %v3761
    %3763 = vmatpush1.msra.mxu0 %v3762
    %3764 = vmatprep.subr.mxu0 0.0
    %v3765 = vand.u32 %v3454, 4294901760
    %v3766 = vsub.f32 %v3454, %v3765
    %3767 = vmatpush1.msra.mxu0 %v3766
    %3768 = vmatprep.subr.mxu0 0.0
    %v3769 = vand.u32 %v3453, 4294901760
    %v3770 = vsub.f32 %v3453, %v3769
    %3771 = vmatpush1.msra.mxu0 %v3770
    %3772 = vmatprep.subr.mxu0 0.0
    %v3773 = vand.u32 %v3452, 4294901760
    %v3774 = vsub.f32 %v3452, %v3773
    %3775 = vmatpush1.msra.mxu0 %v3774
    %3776 = vmatprep.subr.mxu0 0.0
    %v3777 = vand.u32 %v3451, 4294901760
    %v3778 = vsub.f32 %v3451, %v3777
    %3779 = vmatpush1.msra.mxu0 %v3778
    %3780 = vmatprep.subr.mxu0 0.0
    %3781 = vmatpush2.msra.mxu0 0.0
    %3782 = vmatprep.subr.mxu0 0.0
    %3783 = vmatpush2.msra.mxu0 0.0
    %3784 = vmatprep.subr.mxu0 0.0
    %3785 = vmatpush2.msra.mxu0 0.0
    %3786 = vmatprep.subr.mxu0 0.0
    %3787 = vmatpush2.msra.mxu0 0.0
    %3788 = vmatprep.subr.mxu0 0.0
    %3789 = vmatpush2.msra.mxu0 0.0
    %3790 = vmatprep.subr.mxu0 0.0
    %3791 = vmatpush2.msra.mxu0 0.0
    %3792 = vmatprep.subr.mxu0 0.0
    %3793 = vmatpush2.msra.mxu0 0.0
    %3794 = vmatprep.subr.mxu0 0.0
    %3795 = vmatpush2.msra.mxu0 0.0
    %3796 = vmatprep.subr.mxu0 0.0
    %3797 = vmatpush2.msra.mxu0 0.0
    %3798 = vmatprep.subr.mxu0 0.0
    %3799 = vmatpush2.msra.mxu0 0.0
    %3800 = vmatprep.subr.mxu0 0.0
    %3801 = vmatpush2.msra.mxu0 0.0
    %3802 = vmatprep.subr.mxu0 0.0
    %3803 = vmatpush2.msra.mxu0 0.0
    %3804 = vmatprep.subr.mxu0 0.0
    %3805 = vmatpush2.msra.mxu0 0.0
    %3806 = vmatprep.subr.mxu0 0.0
    %3807 = vmatpush2.msra.mxu0 0.0
    %3808 = vmatprep.subr.mxu0 0.0
    %3809 = vmatpush2.msra.mxu0 0.0
    %3810 = vmatprep.subr.mxu0 0.0
    %3811 = vmatpush2.msra.mxu0 0.0
    %3812 = vmatprep.mubr.f32.mxu0 0.0
    %v3813 = vand.u32 %v3466, 4294901760
    %v3814 = vsub.f32 %v3466, %v3813
    %3815 = vmatmul.mubr.f32.gmra.mxu0 %v3814
    %v3816 = vpop.f32.mrf.mxu0
    %v3817 = vadd.f32 %v3711, %v3816
    %v3818 = vpop.f32.mrf.mxu0
    %3819 = vmatprep.mubr.f32.mxu0 0.0
    %v3820 = vand.u32 %v3469, 4294901760
    %v3821 = vsub.f32 %v3469, %v3820
    %3822 = vmatmul.mubr.f32.gmra.mxu0 %v3821
    %v3823 = vpop.f32.mrf.mxu0
    %v3824 = vadd.f32 %v3717, %v3823
    %v3825 = vpop.f32.mrf.mxu0
    %3826 = vdwg.mxu0
    %3827 = vmatprep.subr.mxu0 0.0
    %3828 = vmatpush1.msra.mxu0 0.0
    %3829 = vmatprep.subr.mxu0 0.0
    %3830 = vmatpush1.msra.mxu0 0.0
    %3831 = vmatprep.subr.mxu0 0.0
    %v3832 = vand.u32 %v3472, 4294901760
    %3833 = vmatpush1.msra.mxu0 %v3832
    %3834 = vmatprep.subr.mxu0 0.0
    %v3835 = vand.u32 %v3463, 4294901760
    %3836 = vmatpush1.msra.mxu0 %v3835
    %3837 = vmatprep.subr.mxu0 0.0
    %v3838 = vand.u32 %v3462, 4294901760
    %3839 = vmatpush1.msra.mxu0 %v3838
    %3840 = vmatprep.subr.mxu0 0.0
    %v3841 = vand.u32 %v3461, 4294901760
    %3842 = vmatpush1.msra.mxu0 %v3841
    %3843 = vmatprep.subr.mxu0 0.0
    %v3844 = vand.u32 %v3460, 4294901760
    %3845 = vmatpush1.msra.mxu0 %v3844
    %3846 = vmatprep.subr.mxu0 0.0
    %v3847 = vand.u32 %v3459, 4294901760
    %3848 = vmatpush1.msra.mxu0 %v3847
    %3849 = vmatprep.subr.mxu0 0.0
    %v3850 = vand.u32 %v3458, 4294901760
    %3851 = vmatpush1.msra.mxu0 %v3850
    %3852 = vmatprep.subr.mxu0 0.0
    %v3853 = vand.u32 %v3457, 4294901760
    %3854 = vmatpush1.msra.mxu0 %v3853
    %3855 = vmatprep.subr.mxu0 0.0
    %v3856 = vand.u32 %v3456, 4294901760
    %3857 = vmatpush1.msra.mxu0 %v3856
    %3858 = vmatprep.subr.mxu0 0.0
    %v3859 = vand.u32 %v3455, 4294901760
    %3860 = vmatpush1.msra.mxu0 %v3859
    %3861 = vmatprep.subr.mxu0 0.0
    %v3862 = vand.u32 %v3454, 4294901760
    %3863 = vmatpush1.msra.mxu0 %v3862
    %3864 = vmatprep.subr.mxu0 0.0
    %v3865 = vand.u32 %v3453, 4294901760
    %3866 = vmatpush1.msra.mxu0 %v3865
    %3867 = vmatprep.subr.mxu0 0.0
    %v3868 = vand.u32 %v3452, 4294901760
    %3869 = vmatpush1.msra.mxu0 %v3868
    %3870 = vmatprep.subr.mxu0 0.0
    %v3871 = vand.u32 %v3451, 4294901760
    %3872 = vmatpush1.msra.mxu0 %v3871
    %3873 = vmatprep.subr.mxu0 0.0
    %3874 = vmatpush2.msra.mxu0 0.0
    %3875 = vmatprep.subr.mxu0 0.0
    %3876 = vmatpush2.msra.mxu0 0.0
    %3877 = vmatprep.subr.mxu0 0.0
    %3878 = vmatpush2.msra.mxu0 0.0
    %3879 = vmatprep.subr.mxu0 0.0
    %3880 = vmatpush2.msra.mxu0 0.0
    %3881 = vmatprep.subr.mxu0 0.0
    %3882 = vmatpush2.msra.mxu0 0.0
    %3883 = vmatprep.subr.mxu0 0.0
    %3884 = vmatpush2.msra.mxu0 0.0
    %3885 = vmatprep.subr.mxu0 0.0
    %3886 = vmatpush2.msra.mxu0 0.0
    %3887 = vmatprep.subr.mxu0 0.0
    %3888 = vmatpush2.msra.mxu0 0.0
    %3889 = vmatprep.subr.mxu0 0.0
    %3890 = vmatpush2.msra.mxu0 0.0
    %3891 = vmatprep.subr.mxu0 0.0
    %3892 = vmatpush2.msra.mxu0 0.0
    %3893 = vmatprep.subr.mxu0 0.0
    %3894 = vmatpush2.msra.mxu0 0.0
    %3895 = vmatprep.subr.mxu0 0.0
    %3896 = vmatpush2.msra.mxu0 0.0
    %3897 = vmatprep.subr.mxu0 0.0
    %3898 = vmatpush2.msra.mxu0 0.0
    %3899 = vmatprep.subr.mxu0 0.0
    %3900 = vmatpush2.msra.mxu0 0.0
    %3901 = vmatprep.subr.mxu0 0.0
    %3902 = vmatpush2.msra.mxu0 0.0
    %3903 = vmatprep.subr.mxu0 0.0
    %3904 = vmatpush2.msra.mxu0 0.0
    %3905 = vmatprep.mubr.f32.mxu0 0.0
    %v3906 = vand.u32 %v3466, 4294901760
    %v3907 = vsub.f32 %v3466, %v3906
    %v3908 = vand.u32 %v3907, 4294901760
    %3909 = vmatmul.mubr.f32.gmra.mxu0 %v3908
    %v3910 = vpop.f32.mrf.mxu0
    %v3911 = vadd.f32 %v3817, %v3910
    %v3912 = vpop.f32.mrf.mxu0
    %3913 = vmatprep.mubr.f32.mxu0 0.0
    %v3914 = vand.u32 %v3469, 4294901760
    %v3915 = vsub.f32 %v3469, %v3914
    %v3916 = vand.u32 %v3915, 4294901760
    %3917 = vmatmul.mubr.f32.gmra.mxu0 %v3916
    %v3918 = vpop.f32.mrf.mxu0
    %v3919 = vadd.f32 %v3824, %v3918
    %v3920 = vpop.f32.mrf.mxu0
    %3921 = vdwg.mxu0
    %3922 = vmatprep.subr.mxu0 0.0
    %3923 = vmatpush1.msra.mxu0 0.0
    %3924 = vmatprep.subr.mxu0 0.0
    %3925 = vmatpush1.msra.mxu0 0.0
    %3926 = vmatprep.subr.mxu0 0.0
    %v3927 = vand.u32 %v3472, 4294901760
    %v3928 = vsub.f32 %v3472, %v3927
    %v3929 = vand.u32 %v3928, 4294901760
    %3930 = vmatpush1.msra.mxu0 %v3929
    %3931 = vmatprep.subr.mxu0 0.0
    %v3932 = vand.u32 %v3463, 4294901760
    %v3933 = vsub.f32 %v3463, %v3932
    %v3934 = vand.u32 %v3933, 4294901760
    %3935 = vmatpush1.msra.mxu0 %v3934
    %3936 = vmatprep.subr.mxu0 0.0
    %v3937 = vand.u32 %v3462, 4294901760
    %v3938 = vsub.f32 %v3462, %v3937
    %v3939 = vand.u32 %v3938, 4294901760
    %3940 = vmatpush1.msra.mxu0 %v3939
    %3941 = vmatprep.subr.mxu0 0.0
    %v3942 = vand.u32 %v3461, 4294901760
    %v3943 = vsub.f32 %v3461, %v3942
    %v3944 = vand.u32 %v3943, 4294901760
    %3945 = vmatpush1.msra.mxu0 %v3944
    %3946 = vmatprep.subr.mxu0 0.0
    %v3947 = vand.u32 %v3460, 4294901760
    %v3948 = vsub.f32 %v3460, %v3947
    %v3949 = vand.u32 %v3948, 4294901760
    %3950 = vmatpush1.msra.mxu0 %v3949
    %3951 = vmatprep.subr.mxu0 0.0
    %v3952 = vand.u32 %v3459, 4294901760
    %v3953 = vsub.f32 %v3459, %v3952
    %v3954 = vand.u32 %v3953, 4294901760
    %3955 = vmatpush1.msra.mxu0 %v3954
    %3956 = vmatprep.subr.mxu0 0.0
    %v3957 = vand.u32 %v3458, 4294901760
    %v3958 = vsub.f32 %v3458, %v3957
    %v3959 = vand.u32 %v3958, 4294901760
    %3960 = vmatpush1.msra.mxu0 %v3959
    %3961 = vmatprep.subr.mxu0 0.0
    %v3962 = vand.u32 %v3457, 4294901760
    %v3963 = vsub.f32 %v3457, %v3962
    %v3964 = vand.u32 %v3963, 4294901760
    %3965 = vmatpush1.msra.mxu0 %v3964
    %3966 = vmatprep.subr.mxu0 0.0
    %v3967 = vand.u32 %v3456, 4294901760
    %v3968 = vsub.f32 %v3456, %v3967
    %v3969 = vand.u32 %v3968, 4294901760
    %3970 = vmatpush1.msra.mxu0 %v3969
    %3971 = vmatprep.subr.mxu0 0.0
    %v3972 = vand.u32 %v3455, 4294901760
    %v3973 = vsub.f32 %v3455, %v3972
    %v3974 = vand.u32 %v3973, 4294901760
    %3975 = vmatpush1.msra.mxu0 %v3974
    %3976 = vmatprep.subr.mxu0 0.0
    %v3977 = vand.u32 %v3454, 4294901760
    %v3978 = vsub.f32 %v3454, %v3977
    %v3979 = vand.u32 %v3978, 4294901760
    %3980 = vmatpush1.msra.mxu0 %v3979
    %3981 = vmatprep.subr.mxu0 0.0
    %v3982 = vand.u32 %v3453, 4294901760
    %v3983 = vsub.f32 %v3453, %v3982
    %v3984 = vand.u32 %v3983, 4294901760
    %3985 = vmatpush1.msra.mxu0 %v3984
    %3986 = vmatprep.subr.mxu0 0.0
    %v3987 = vand.u32 %v3452, 4294901760
    %v3988 = vsub.f32 %v3452, %v3987
    %v3989 = vand.u32 %v3988, 4294901760
    %3990 = vmatpush1.msra.mxu0 %v3989
    %3991 = vmatprep.subr.mxu0 0.0
    %v3992 = vand.u32 %v3451, 4294901760
    %v3993 = vsub.f32 %v3451, %v3992
    %v3994 = vand.u32 %v3993, 4294901760
    %3995 = vmatpush1.msra.mxu0 %v3994
    %3996 = vmatprep.subr.mxu0 0.0
    %3997 = vmatpush2.msra.mxu0 0.0
    %3998 = vmatprep.subr.mxu0 0.0
    %3999 = vmatpush2.msra.mxu0 0.0
    %4000 = vmatprep.subr.mxu0 0.0
    %4001 = vmatpush2.msra.mxu0 0.0
    %4002 = vmatprep.subr.mxu0 0.0
    %4003 = vmatpush2.msra.mxu0 0.0
    %4004 = vmatprep.subr.mxu0 0.0
    %4005 = vmatpush2.msra.mxu0 0.0
    %4006 = vmatprep.subr.mxu0 0.0
    %4007 = vmatpush2.msra.mxu0 0.0
    %4008 = vmatprep.subr.mxu0 0.0
    %4009 = vmatpush2.msra.mxu0 0.0
    %4010 = vmatprep.subr.mxu0 0.0
    %4011 = vmatpush2.msra.mxu0 0.0
    %4012 = vmatprep.subr.mxu0 0.0
    %4013 = vmatpush2.msra.mxu0 0.0
    %4014 = vmatprep.subr.mxu0 0.0
    %4015 = vmatpush2.msra.mxu0 0.0
    %4016 = vmatprep.subr.mxu0 0.0
    %4017 = vmatpush2.msra.mxu0 0.0
    %4018 = vmatprep.subr.mxu0 0.0
    %4019 = vmatpush2.msra.mxu0 0.0
    %4020 = vmatprep.subr.mxu0 0.0
    %4021 = vmatpush2.msra.mxu0 0.0
    %4022 = vmatprep.subr.mxu0 0.0
    %4023 = vmatpush2.msra.mxu0 0.0
    %4024 = vmatprep.subr.mxu0 0.0
    %4025 = vmatpush2.msra.mxu0 0.0
    %4026 = vmatprep.subr.mxu0 0.0
    %4027 = vmatpush2.msra.mxu0 0.0
    %4028 = vmatprep.mubr.f32.mxu0 0.0
    %v4029 = vand.u32 %v3466, 4294901760
    %4030 = vmatmul.mubr.f32.gmra.mxu0 %v4029
    %v4031 = vpop.f32.mrf.mxu0
    %v4032 = vadd.f32 %v3911, %v4031
    %v4033 = vpop.f32.mrf.mxu0
    %4034 = vmatprep.mubr.f32.mxu0 0.0
    %v4035 = vand.u32 %v3469, 4294901760
    %4036 = vmatmul.mubr.f32.gmra.mxu0 %v4035
    %v4037 = vpop.f32.mrf.mxu0
    %v4038 = vadd.f32 %v3919, %v4037
    %v4039 = vpop.f32.mrf.mxu0
    %4040 = vdwg.mxu0
    %4041 = vmatprep.subr.mxu0 0.0
    %4042 = vmatpush1.msra.mxu0 0.0
    %4043 = vmatprep.subr.mxu0 0.0
    %4044 = vmatpush1.msra.mxu0 0.0
    %4045 = vmatprep.subr.mxu0 0.0
    %v4046 = vand.u32 %v3472, 4294901760
    %4047 = vmatpush1.msra.mxu0 %v4046
    %4048 = vmatprep.subr.mxu0 0.0
    %v4049 = vand.u32 %v3463, 4294901760
    %4050 = vmatpush1.msra.mxu0 %v4049
    %4051 = vmatprep.subr.mxu0 0.0
    %v4052 = vand.u32 %v3462, 4294901760
    %4053 = vmatpush1.msra.mxu0 %v4052
    %4054 = vmatprep.subr.mxu0 0.0
    %v4055 = vand.u32 %v3461, 4294901760
    %4056 = vmatpush1.msra.mxu0 %v4055
    %4057 = vmatprep.subr.mxu0 0.0
    %v4058 = vand.u32 %v3460, 4294901760
    %4059 = vmatpush1.msra.mxu0 %v4058
    %4060 = vmatprep.subr.mxu0 0.0
    %v4061 = vand.u32 %v3459, 4294901760
    %4062 = vmatpush1.msra.mxu0 %v4061
    %4063 = vmatprep.subr.mxu0 0.0
    %v4064 = vand.u32 %v3458, 4294901760
    %4065 = vmatpush1.msra.mxu0 %v4064
    %4066 = vmatprep.subr.mxu0 0.0
    %v4067 = vand.u32 %v3457, 4294901760
    %4068 = vmatpush1.msra.mxu0 %v4067
    %4069 = vmatprep.subr.mxu0 0.0
    %v4070 = vand.u32 %v3456, 4294901760
    %4071 = vmatpush1.msra.mxu0 %v4070
    %4072 = vmatprep.subr.mxu0 0.0
    %v4073 = vand.u32 %v3455, 4294901760
    %4074 = vmatpush1.msra.mxu0 %v4073
    %4075 = vmatprep.subr.mxu0 0.0
    %v4076 = vand.u32 %v3454, 4294901760
    %4077 = vmatpush1.msra.mxu0 %v4076
    %4078 = vmatprep.subr.mxu0 0.0
    %v4079 = vand.u32 %v3453, 4294901760
    %4080 = vmatpush1.msra.mxu0 %v4079
    %4081 = vmatprep.subr.mxu0 0.0
    %v4082 = vand.u32 %v3452, 4294901760
    %4083 = vmatpush1.msra.mxu0 %v4082
    %4084 = vmatprep.subr.mxu0 0.0
    %v4085 = vand.u32 %v3451, 4294901760
    %4086 = vmatpush1.msra.mxu0 %v4085
    %4087 = vmatprep.subr.mxu0 0.0
    %4088 = vmatpush2.msra.mxu0 0.0
    %4089 = vmatprep.subr.mxu0 0.0
    %4090 = vmatpush2.msra.mxu0 0.0
    %4091 = vmatprep.subr.mxu0 0.0
    %4092 = vmatpush2.msra.mxu0 0.0
    %4093 = vmatprep.subr.mxu0 0.0
    %4094 = vmatpush2.msra.mxu0 0.0
    %4095 = vmatprep.subr.mxu0 0.0
    %4096 = vmatpush2.msra.mxu0 0.0
    %4097 = vmatprep.subr.mxu0 0.0
    %4098 = vmatpush2.msra.mxu0 0.0
    %4099 = vmatprep.subr.mxu0 0.0
    %4100 = vmatpush2.msra.mxu0 0.0
    %4101 = vmatprep.subr.mxu0 0.0
    %4102 = vmatpush2.msra.mxu0 0.0
    %4103 = vmatprep.subr.mxu0 0.0
    %4104 = vmatpush2.msra.mxu0 0.0
    %4105 = vmatprep.subr.mxu0 0.0
    %4106 = vmatpush2.msra.mxu0 0.0
    %4107 = vmatprep.subr.mxu0 0.0
    %4108 = vmatpush2.msra.mxu0 0.0
    %4109 = vmatprep.subr.mxu0 0.0
    %4110 = vmatpush2.msra.mxu0 0.0
    %4111 = vmatprep.subr.mxu0 0.0
    %4112 = vmatpush2.msra.mxu0 0.0
    %4113 = vmatprep.subr.mxu0 0.0
    %4114 = vmatpush2.msra.mxu0 0.0
    %4115 = vmatprep.subr.mxu0 0.0
    %4116 = vmatpush2.msra.mxu0 0.0
    %4117 = vmatprep.subr.mxu0 0.0
    %4118 = vmatpush2.msra.mxu0 0.0
    %4119 = vmatprep.mubr.f32.mxu0 0.0
    %v4120 = vand.u32 %v3466, 4294901760
    %4121 = vmatmul.mubr.f32.gmra.mxu0 %v4120
    %v4122 = vpop.f32.mrf.mxu0
    %v4123 = vadd.f32 %v4032, %v4122
    %v4124 = vpop.f32.mrf.mxu0
    %4125 = vmatprep.mubr.f32.mxu0 0.0
    %v4126 = vand.u32 %v3469, 4294901760
    %4127 = vmatmul.mubr.f32.gmra.mxu0 %v4126
    %v4128 = vpop.f32.mrf.mxu0
    %v4129 = vadd.f32 %v4038, %v4128
    %v4130 = vpop.f32.mrf.mxu0
    %4131 = vdwg.mxu0
    %v4132 = vld [vmem:[%s3] sm:$0xff]
    %v4133 = vld [vmem:[%s3 + $0x8] sm:$0xff]
    %v4135 = vsel %vm1372, %v1250, 0
    %v4138 = vsel %vm1372, %v1256, 0
    %v4141 = vsel %vm1379, %v1356, 0
    %4143 = vmatprep.subr.mxu0 0.0
    %4144 = vmatpush1.msra.mxu0 0.0
    %4145 = vmatprep.subr.mxu0 0.0
    %4146 = vmatpush1.msra.mxu0 0.0
    %4147 = vmatprep.subr.mxu0 0.0
    %v4148 = vand.u32 %v4141, 4294901760
    %4149 = vmatpush1.msra.mxu0 %v4148
    %4150 = vmatprep.subr.mxu0 0.0
    %v4151 = vand.u32 %v1355, 4294901760
    %4152 = vmatpush1.msra.mxu0 %v4151
    %4153 = vmatprep.subr.mxu0 0.0
    %v4154 = vand.u32 %v1354, 4294901760
    %4155 = vmatpush1.msra.mxu0 %v4154
    %4156 = vmatprep.subr.mxu0 0.0
    %v4157 = vand.u32 %v1353, 4294901760
    %4158 = vmatpush1.msra.mxu0 %v4157
    %4159 = vmatprep.subr.mxu0 0.0
    %v4160 = vand.u32 %v1352, 4294901760
    %4161 = vmatpush1.msra.mxu0 %v4160
    %4162 = vmatprep.subr.mxu0 0.0
    %v4163 = vand.u32 %v1351, 4294901760
    %4164 = vmatpush1.msra.mxu0 %v4163
    %4165 = vmatprep.subr.mxu0 0.0
    %v4166 = vand.u32 %v1350, 4294901760
    %4167 = vmatpush1.msra.mxu0 %v4166
    %4168 = vmatprep.subr.mxu0 0.0
    %v4169 = vand.u32 %v1349, 4294901760
    %4170 = vmatpush1.msra.mxu0 %v4169
    %4171 = vmatprep.subr.mxu0 0.0
    %v4172 = vand.u32 %v1348, 4294901760
    %4173 = vmatpush1.msra.mxu0 %v4172
    %4174 = vmatprep.subr.mxu0 0.0
    %v4175 = vand.u32 %v1347, 4294901760
    %4176 = vmatpush1.msra.mxu0 %v4175
    %4177 = vmatprep.subr.mxu0 0.0
    %v4178 = vand.u32 %v1346, 4294901760
    %4179 = vmatpush1.msra.mxu0 %v4178
    %4180 = vmatprep.subr.mxu0 0.0
    %v4181 = vand.u32 %v1345, 4294901760
    %4182 = vmatpush1.msra.mxu0 %v4181
    %4183 = vmatprep.subr.mxu0 0.0
    %v4184 = vand.u32 %v1344, 4294901760
    %4185 = vmatpush1.msra.mxu0 %v4184
    %4186 = vmatprep.subr.mxu0 0.0
    %v4187 = vand.u32 %v1343, 4294901760
    %4188 = vmatpush1.msra.mxu0 %v4187
    %4189 = vmatprep.subr.mxu0 0.0
    %4190 = vmatpush2.msra.mxu0 0.0
    %4191 = vmatprep.subr.mxu0 0.0
    %4192 = vmatpush2.msra.mxu0 0.0
    %4193 = vmatprep.subr.mxu0 0.0
    %4194 = vmatpush2.msra.mxu0 0.0
    %4195 = vmatprep.subr.mxu0 0.0
    %4196 = vmatpush2.msra.mxu0 0.0
    %4197 = vmatprep.subr.mxu0 0.0
    %4198 = vmatpush2.msra.mxu0 0.0
    %4199 = vmatprep.subr.mxu0 0.0
    %4200 = vmatpush2.msra.mxu0 0.0
    %4201 = vmatprep.subr.mxu0 0.0
    %4202 = vmatpush2.msra.mxu0 0.0
    %4203 = vmatprep.subr.mxu0 0.0
    %4204 = vmatpush2.msra.mxu0 0.0
    %4205 = vmatprep.subr.mxu0 0.0
    %4206 = vmatpush2.msra.mxu0 0.0
    %4207 = vmatprep.subr.mxu0 0.0
    %4208 = vmatpush2.msra.mxu0 0.0
    %4209 = vmatprep.subr.mxu0 0.0
    %4210 = vmatpush2.msra.mxu0 0.0
    %4211 = vmatprep.subr.mxu0 0.0
    %4212 = vmatpush2.msra.mxu0 0.0
    %4213 = vmatprep.subr.mxu0 0.0
    %4214 = vmatpush2.msra.mxu0 0.0
    %4215 = vmatprep.subr.mxu0 0.0
    %4216 = vmatpush2.msra.mxu0 0.0
    %4217 = vmatprep.subr.mxu0 0.0
    %4218 = vmatpush2.msra.mxu0 0.0
    %4219 = vmatprep.subr.mxu0 0.0
    %4220 = vmatpush2.msra.mxu0 0.0
    %4221 = vmatprep.mubr.f32.mxu0 0.0
    %v4222 = vand.u32 %v4135, 4294901760
    %v4223 = vsub.f32 %v4135, %v4222
    %v4224 = vand.u32 %v4223, 4294901760
    %v4225 = vsub.f32 %v4223, %v4224
    %v4226 = vand.u32 %v4225, 4294901760
    %4227 = vmatmul.mubr.f32.gmra.mxu0 %v4226
    %v4228 = vpop.f32.mrf.mxu0
    %v4229 = vadd.f32 %v2032, %v4228
    %v4230 = vpop.f32.mrf.mxu0
    %4231 = vmatprep.mubr.f32.mxu0 0.0
    %v4232 = vand.u32 %v4138, 4294901760
    %v4233 = vsub.f32 %v4138, %v4232
    %v4234 = vand.u32 %v4233, 4294901760
    %v4235 = vsub.f32 %v4233, %v4234
    %v4236 = vand.u32 %v4235, 4294901760
    %4237 = vmatmul.mubr.f32.gmra.mxu0 %v4236
    %v4238 = vpop.f32.mrf.mxu0
    %v4239 = vadd.f32 %v2038, %v4238
    %v4240 = vpop.f32.mrf.mxu0
    %4241 = vdwg.mxu0
    %4242 = vmatprep.subr.mxu0 0.0
    %4243 = vmatpush1.msra.mxu0 0.0
    %4244 = vmatprep.subr.mxu0 0.0
    %4245 = vmatpush1.msra.mxu0 0.0
    %4246 = vmatprep.subr.mxu0 0.0
    %v4247 = vand.u32 %v4141, 4294901760
    %v4248 = vsub.f32 %v4141, %v4247
    %v4249 = vand.u32 %v4248, 4294901760
    %v4250 = vsub.f32 %v4248, %v4249
    %v4251 = vand.u32 %v4250, 4294901760
    %4252 = vmatpush1.msra.mxu0 %v4251
    %4253 = vmatprep.subr.mxu0 0.0
    %v4254 = vand.u32 %v1355, 4294901760
    %v4255 = vsub.f32 %v1355, %v4254
    %v4256 = vand.u32 %v4255, 4294901760
    %v4257 = vsub.f32 %v4255, %v4256
    %v4258 = vand.u32 %v4257, 4294901760
    %4259 = vmatpush1.msra.mxu0 %v4258
    %4260 = vmatprep.subr.mxu0 0.0
    %v4261 = vand.u32 %v1354, 4294901760
    %v4262 = vsub.f32 %v1354, %v4261
    %v4263 = vand.u32 %v4262, 4294901760
    %v4264 = vsub.f32 %v4262, %v4263
    %v4265 = vand.u32 %v4264, 4294901760
    %4266 = vmatpush1.msra.mxu0 %v4265
    %4267 = vmatprep.subr.mxu0 0.0
    %v4268 = vand.u32 %v1353, 4294901760
    %v4269 = vsub.f32 %v1353, %v4268
    %v4270 = vand.u32 %v4269, 4294901760
    %v4271 = vsub.f32 %v4269, %v4270
    %v4272 = vand.u32 %v4271, 4294901760
    %4273 = vmatpush1.msra.mxu0 %v4272
    %4274 = vmatprep.subr.mxu0 0.0
    %v4275 = vand.u32 %v1352, 4294901760
    %v4276 = vsub.f32 %v1352, %v4275
    %v4277 = vand.u32 %v4276, 4294901760
    %v4278 = vsub.f32 %v4276, %v4277
    %v4279 = vand.u32 %v4278, 4294901760
    %4280 = vmatpush1.msra.mxu0 %v4279
    %4281 = vmatprep.subr.mxu0 0.0
    %v4282 = vand.u32 %v1351, 4294901760
    %v4283 = vsub.f32 %v1351, %v4282
    %v4284 = vand.u32 %v4283, 4294901760
    %v4285 = vsub.f32 %v4283, %v4284
    %v4286 = vand.u32 %v4285, 4294901760
    %4287 = vmatpush1.msra.mxu0 %v4286
    %4288 = vmatprep.subr.mxu0 0.0
    %v4289 = vand.u32 %v1350, 4294901760
    %v4290 = vsub.f32 %v1350, %v4289
    %v4291 = vand.u32 %v4290, 4294901760
    %v4292 = vsub.f32 %v4290, %v4291
    %v4293 = vand.u32 %v4292, 4294901760
    %4294 = vmatpush1.msra.mxu0 %v4293
    %4295 = vmatprep.subr.mxu0 0.0
    %v4296 = vand.u32 %v1349, 4294901760
    %v4297 = vsub.f32 %v1349, %v4296
    %v4298 = vand.u32 %v4297, 4294901760
    %v4299 = vsub.f32 %v4297, %v4298
    %v4300 = vand.u32 %v4299, 4294901760
    %4301 = vmatpush1.msra.mxu0 %v4300
    %4302 = vmatprep.subr.mxu0 0.0
    %v4303 = vand.u32 %v1348, 4294901760
    %v4304 = vsub.f32 %v1348, %v4303
    %v4305 = vand.u32 %v4304, 4294901760
    %v4306 = vsub.f32 %v4304, %v4305
    %v4307 = vand.u32 %v4306, 4294901760
    %4308 = vmatpush1.msra.mxu0 %v4307
    %4309 = vmatprep.subr.mxu0 0.0
    %v4310 = vand.u32 %v1347, 4294901760
    %v4311 = vsub.f32 %v1347, %v4310
    %v4312 = vand.u32 %v4311, 4294901760
    %v4313 = vsub.f32 %v4311, %v4312
    %v4314 = vand.u32 %v4313, 4294901760
    %4315 = vmatpush1.msra.mxu0 %v4314
    %4316 = vmatprep.subr.mxu0 0.0
    %v4317 = vand.u32 %v1346, 4294901760
    %v4318 = vsub.f32 %v1346, %v4317
    %v4319 = vand.u32 %v4318, 4294901760
    %v4320 = vsub.f32 %v4318, %v4319
    %v4321 = vand.u32 %v4320, 4294901760
    %4322 = vmatpush1.msra.mxu0 %v4321
    %4323 = vmatprep.subr.mxu0 0.0
    %v4324 = vand.u32 %v1345, 4294901760
    %v4325 = vsub.f32 %v1345, %v4324
    %v4326 = vand.u32 %v4325, 4294901760
    %v4327 = vsub.f32 %v4325, %v4326
    %v4328 = vand.u32 %v4327, 4294901760
    %4329 = vmatpush1.msra.mxu0 %v4328
    %4330 = vmatprep.subr.mxu0 0.0
    %v4331 = vand.u32 %v1344, 4294901760
    %v4332 = vsub.f32 %v1344, %v4331
    %v4333 = vand.u32 %v4332, 4294901760
    %v4334 = vsub.f32 %v4332, %v4333
    %v4335 = vand.u32 %v4334, 4294901760
    %4336 = vmatpush1.msra.mxu0 %v4335
    %4337 = vmatprep.subr.mxu0 0.0
    %v4338 = vand.u32 %v1343, 4294901760
    %v4339 = vsub.f32 %v1343, %v4338
    %v4340 = vand.u32 %v4339, 4294901760
    %v4341 = vsub.f32 %v4339, %v4340
    %v4342 = vand.u32 %v4341, 4294901760
    %4343 = vmatpush1.msra.mxu0 %v4342
    %4344 = vmatprep.subr.mxu0 0.0
    %4345 = vmatpush2.msra.mxu0 0.0
    %4346 = vmatprep.subr.mxu0 0.0
    %4347 = vmatpush2.msra.mxu0 0.0
    %4348 = vmatprep.subr.mxu0 0.0
    %4349 = vmatpush2.msra.mxu0 0.0
    %4350 = vmatprep.subr.mxu0 0.0
    %4351 = vmatpush2.msra.mxu0 0.0
    %4352 = vmatprep.subr.mxu0 0.0
    %4353 = vmatpush2.msra.mxu0 0.0
    %4354 = vmatprep.subr.mxu0 0.0
    %4355 = vmatpush2.msra.mxu0 0.0
    %4356 = vmatprep.subr.mxu0 0.0
    %4357 = vmatpush2.msra.mxu0 0.0
    %4358 = vmatprep.subr.mxu0 0.0
    %4359 = vmatpush2.msra.mxu0 0.0
    %4360 = vmatprep.subr.mxu0 0.0
    %4361 = vmatpush2.msra.mxu0 0.0
    %4362 = vmatprep.subr.mxu0 0.0
    %4363 = vmatpush2.msra.mxu0 0.0
    %4364 = vmatprep.subr.mxu0 0.0
    %4365 = vmatpush2.msra.mxu0 0.0
    %4366 = vmatprep.subr.mxu0 0.0
    %4367 = vmatpush2.msra.mxu0 0.0
    %4368 = vmatprep.subr.mxu0 0.0
    %4369 = vmatpush2.msra.mxu0 0.0
    %4370 = vmatprep.subr.mxu0 0.0
    %4371 = vmatpush2.msra.mxu0 0.0
    %4372 = vmatprep.subr.mxu0 0.0
    %4373 = vmatpush2.msra.mxu0 0.0
    %4374 = vmatprep.subr.mxu0 0.0
    %4375 = vmatpush2.msra.mxu0 0.0
    %4376 = vmatprep.mubr.f32.mxu0 0.0
    %v4377 = vand.u32 %v4135, 4294901760
    %4378 = vmatmul.mubr.f32.gmra.mxu0 %v4377
    %v4379 = vpop.f32.mrf.mxu0
    %v4380 = vadd.f32 %v4229, %v4379
    %v4381 = vpop.f32.mrf.mxu0
    %4382 = vmatprep.mubr.f32.mxu0 0.0
    %v4383 = vand.u32 %v4138, 4294901760
    %4384 = vmatmul.mubr.f32.gmra.mxu0 %v4383
    %v4385 = vpop.f32.mrf.mxu0
    %v4386 = vadd.f32 %v4239, %v4385
    %v4387 = vpop.f32.mrf.mxu0
    %4388 = vdwg.mxu0
    %4389 = vmatprep.subr.mxu0 0.0
    %4390 = vmatpush1.msra.mxu0 0.0
    %4391 = vmatprep.subr.mxu0 0.0
    %4392 = vmatpush1.msra.mxu0 0.0
    %4393 = vmatprep.subr.mxu0 0.0
    %v4394 = vand.u32 %v4141, 4294901760
    %v4395 = vsub.f32 %v4141, %v4394
    %4396 = vmatpush1.msra.mxu0 %v4395
    %4397 = vmatprep.subr.mxu0 0.0
    %v4398 = vand.u32 %v1355, 4294901760
    %v4399 = vsub.f32 %v1355, %v4398
    %4400 = vmatpush1.msra.mxu0 %v4399
    %4401 = vmatprep.subr.mxu0 0.0
    %v4402 = vand.u32 %v1354, 4294901760
    %v4403 = vsub.f32 %v1354, %v4402
    %4404 = vmatpush1.msra.mxu0 %v4403
    %4405 = vmatprep.subr.mxu0 0.0
    %v4406 = vand.u32 %v1353, 4294901760
    %v4407 = vsub.f32 %v1353, %v4406
    %4408 = vmatpush1.msra.mxu0 %v4407
    %4409 = vmatprep.subr.mxu0 0.0
    %v4410 = vand.u32 %v1352, 4294901760
    %v4411 = vsub.f32 %v1352, %v4410
    %4412 = vmatpush1.msra.mxu0 %v4411
    %4413 = vmatprep.subr.mxu0 0.0
    %v4414 = vand.u32 %v1351, 4294901760
    %v4415 = vsub.f32 %v1351, %v4414
    %4416 = vmatpush1.msra.mxu0 %v4415
    %4417 = vmatprep.subr.mxu0 0.0
    %v4418 = vand.u32 %v1350, 4294901760
    %v4419 = vsub.f32 %v1350, %v4418
    %4420 = vmatpush1.msra.mxu0 %v4419
    %4421 = vmatprep.subr.mxu0 0.0
    %v4422 = vand.u32 %v1349, 4294901760
    %v4423 = vsub.f32 %v1349, %v4422
    %4424 = vmatpush1.msra.mxu0 %v4423
    %4425 = vmatprep.subr.mxu0 0.0
    %v4426 = vand.u32 %v1348, 4294901760
    %v4427 = vsub.f32 %v1348, %v4426
    %4428 = vmatpush1.msra.mxu0 %v4427
    %4429 = vmatprep.subr.mxu0 0.0
    %v4430 = vand.u32 %v1347, 4294901760
    %v4431 = vsub.f32 %v1347, %v4430
    %4432 = vmatpush1.msra.mxu0 %v4431
    %4433 = vmatprep.subr.mxu0 0.0
    %v4434 = vand.u32 %v1346, 4294901760
    %v4435 = vsub.f32 %v1346, %v4434
    %4436 = vmatpush1.msra.mxu0 %v4435
    %4437 = vmatprep.subr.mxu0 0.0
    %v4438 = vand.u32 %v1345, 4294901760
    %v4439 = vsub.f32 %v1345, %v4438
    %4440 = vmatpush1.msra.mxu0 %v4439
    %4441 = vmatprep.subr.mxu0 0.0
    %v4442 = vand.u32 %v1344, 4294901760
    %v4443 = vsub.f32 %v1344, %v4442
    %4444 = vmatpush1.msra.mxu0 %v4443
    %4445 = vmatprep.subr.mxu0 0.0
    %v4446 = vand.u32 %v1343, 4294901760
    %v4447 = vsub.f32 %v1343, %v4446
    %4448 = vmatpush1.msra.mxu0 %v4447
    %4449 = vmatprep.subr.mxu0 0.0
    %4450 = vmatpush2.msra.mxu0 0.0
    %4451 = vmatprep.subr.mxu0 0.0
    %4452 = vmatpush2.msra.mxu0 0.0
    %4453 = vmatprep.subr.mxu0 0.0
    %4454 = vmatpush2.msra.mxu0 0.0
    %4455 = vmatprep.subr.mxu0 0.0
    %4456 = vmatpush2.msra.mxu0 0.0
    %4457 = vmatprep.subr.mxu0 0.0
    %4458 = vmatpush2.msra.mxu0 0.0
    %4459 = vmatprep.subr.mxu0 0.0
    %4460 = vmatpush2.msra.mxu0 0.0
    %4461 = vmatprep.subr.mxu0 0.0
    %4462 = vmatpush2.msra.mxu0 0.0
    %4463 = vmatprep.subr.mxu0 0.0
    %4464 = vmatpush2.msra.mxu0 0.0
    %4465 = vmatprep.subr.mxu0 0.0
    %4466 = vmatpush2.msra.mxu0 0.0
    %4467 = vmatprep.subr.mxu0 0.0
    %4468 = vmatpush2.msra.mxu0 0.0
    %4469 = vmatprep.subr.mxu0 0.0
    %4470 = vmatpush2.msra.mxu0 0.0
    %4471 = vmatprep.subr.mxu0 0.0
    %4472 = vmatpush2.msra.mxu0 0.0
    %4473 = vmatprep.subr.mxu0 0.0
    %4474 = vmatpush2.msra.mxu0 0.0
    %4475 = vmatprep.subr.mxu0 0.0
    %4476 = vmatpush2.msra.mxu0 0.0
    %4477 = vmatprep.subr.mxu0 0.0
    %4478 = vmatpush2.msra.mxu0 0.0
    %4479 = vmatprep.subr.mxu0 0.0
    %4480 = vmatpush2.msra.mxu0 0.0
    %4481 = vmatprep.mubr.f32.mxu0 0.0
    %v4482 = vand.u32 %v4135, 4294901760
    %v4483 = vsub.f32 %v4135, %v4482
    %4484 = vmatmul.mubr.f32.gmra.mxu0 %v4483
    %v4485 = vpop.f32.mrf.mxu0
    %v4486 = vadd.f32 %v4380, %v4485
    %v4487 = vpop.f32.mrf.mxu0
    %4488 = vmatprep.mubr.f32.mxu0 0.0
    %v4489 = vand.u32 %v4138, 4294901760
    %v4490 = vsub.f32 %v4138, %v4489
    %4491 = vmatmul.mubr.f32.gmra.mxu0 %v4490
    %v4492 = vpop.f32.mrf.mxu0
    %v4493 = vadd.f32 %v4386, %v4492
    %v4494 = vpop.f32.mrf.mxu0
    %4495 = vdwg.mxu0
    %4496 = vmatprep.subr.mxu0 0.0
    %4497 = vmatpush1.msra.mxu0 0.0
    %4498 = vmatprep.subr.mxu0 0.0
    %4499 = vmatpush1.msra.mxu0 0.0
    %4500 = vmatprep.subr.mxu0 0.0
    %v4501 = vand.u32 %v4141, 4294901760
    %4502 = vmatpush1.msra.mxu0 %v4501
    %4503 = vmatprep.subr.mxu0 0.0
    %v4504 = vand.u32 %v1355, 4294901760
    %4505 = vmatpush1.msra.mxu0 %v4504
    %4506 = vmatprep.subr.mxu0 0.0
    %v4507 = vand.u32 %v1354, 4294901760
    %4508 = vmatpush1.msra.mxu0 %v4507
    %4509 = vmatprep.subr.mxu0 0.0
    %v4510 = vand.u32 %v1353, 4294901760
    %4511 = vmatpush1.msra.mxu0 %v4510
    %4512 = vmatprep.subr.mxu0 0.0
    %v4513 = vand.u32 %v1352, 4294901760
    %4514 = vmatpush1.msra.mxu0 %v4513
    %4515 = vmatprep.subr.mxu0 0.0
    %v4516 = vand.u32 %v1351, 4294901760
    %4517 = vmatpush1.msra.mxu0 %v4516
    %4518 = vmatprep.subr.mxu0 0.0
    %v4519 = vand.u32 %v1350, 4294901760
    %4520 = vmatpush1.msra.mxu0 %v4519
    %4521 = vmatprep.subr.mxu0 0.0
    %v4522 = vand.u32 %v1349, 4294901760
    %4523 = vmatpush1.msra.mxu0 %v4522
    %4524 = vmatprep.subr.mxu0 0.0
    %v4525 = vand.u32 %v1348, 4294901760
    %4526 = vmatpush1.msra.mxu0 %v4525
    %4527 = vmatprep.subr.mxu0 0.0
    %v4528 = vand.u32 %v1347, 4294901760
    %4529 = vmatpush1.msra.mxu0 %v4528
    %4530 = vmatprep.subr.mxu0 0.0
    %v4531 = vand.u32 %v1346, 4294901760
    %4532 = vmatpush1.msra.mxu0 %v4531
    %4533 = vmatprep.subr.mxu0 0.0
    %v4534 = vand.u32 %v1345, 4294901760
    %4535 = vmatpush1.msra.mxu0 %v4534
    %4536 = vmatprep.subr.mxu0 0.0
    %v4537 = vand.u32 %v1344, 4294901760
    %4538 = vmatpush1.msra.mxu0 %v4537
    %4539 = vmatprep.subr.mxu0 0.0
    %v4540 = vand.u32 %v1343, 4294901760
    %4541 = vmatpush1.msra.mxu0 %v4540
    %4542 = vmatprep.subr.mxu0 0.0
    %4543 = vmatpush2.msra.mxu0 0.0
    %4544 = vmatprep.subr.mxu0 0.0
    %4545 = vmatpush2.msra.mxu0 0.0
    %4546 = vmatprep.subr.mxu0 0.0
    %4547 = vmatpush2.msra.mxu0 0.0
    %4548 = vmatprep.subr.mxu0 0.0
    %4549 = vmatpush2.msra.mxu0 0.0
    %4550 = vmatprep.subr.mxu0 0.0
    %4551 = vmatpush2.msra.mxu0 0.0
    %4552 = vmatprep.subr.mxu0 0.0
    %4553 = vmatpush2.msra.mxu0 0.0
    %4554 = vmatprep.subr.mxu0 0.0
    %4555 = vmatpush2.msra.mxu0 0.0
    %4556 = vmatprep.subr.mxu0 0.0
    %4557 = vmatpush2.msra.mxu0 0.0
    %4558 = vmatprep.subr.mxu0 0.0
    %4559 = vmatpush2.msra.mxu0 0.0
    %4560 = vmatprep.subr.mxu0 0.0
    %4561 = vmatpush2.msra.mxu0 0.0
    %4562 = vmatprep.subr.mxu0 0.0
    %4563 = vmatpush2.msra.mxu0 0.0
    %4564 = vmatprep.subr.mxu0 0.0
    %4565 = vmatpush2.msra.mxu0 0.0
    %4566 = vmatprep.subr.mxu0 0.0
    %4567 = vmatpush2.msra.mxu0 0.0
    %4568 = vmatprep.subr.mxu0 0.0
    %4569 = vmatpush2.msra.mxu0 0.0
    %4570 = vmatprep.subr.mxu0 0.0
    %4571 = vmatpush2.msra.mxu0 0.0
    %4572 = vmatprep.subr.mxu0 0.0
    %4573 = vmatpush2.msra.mxu0 0.0
    %4574 = vmatprep.mubr.f32.mxu0 0.0
    %v4575 = vand.u32 %v4135, 4294901760
    %v4576 = vsub.f32 %v4135, %v4575
    %v4577 = vand.u32 %v4576, 4294901760
    %4578 = vmatmul.mubr.f32.gmra.mxu0 %v4577
    %v4579 = vpop.f32.mrf.mxu0
    %v4580 = vadd.f32 %v4486, %v4579
    %v4581 = vpop.f32.mrf.mxu0
    %4582 = vmatprep.mubr.f32.mxu0 0.0
    %v4583 = vand.u32 %v4138, 4294901760
    %v4584 = vsub.f32 %v4138, %v4583
    %v4585 = vand.u32 %v4584, 4294901760
    %4586 = vmatmul.mubr.f32.gmra.mxu0 %v4585
    %v4587 = vpop.f32.mrf.mxu0
    %v4588 = vadd.f32 %v4493, %v4587
    %v4589 = vpop.f32.mrf.mxu0
    %4590 = vdwg.mxu0
    %4591 = vmatprep.subr.mxu0 0.0
    %4592 = vmatpush1.msra.mxu0 0.0
    %4593 = vmatprep.subr.mxu0 0.0
    %4594 = vmatpush1.msra.mxu0 0.0
    %4595 = vmatprep.subr.mxu0 0.0
    %v4596 = vand.u32 %v4141, 4294901760
    %v4597 = vsub.f32 %v4141, %v4596
    %v4598 = vand.u32 %v4597, 4294901760
    %4599 = vmatpush1.msra.mxu0 %v4598
    %4600 = vmatprep.subr.mxu0 0.0
    %v4601 = vand.u32 %v1355, 4294901760
    %v4602 = vsub.f32 %v1355, %v4601
    %v4603 = vand.u32 %v4602, 4294901760
    %4604 = vmatpush1.msra.mxu0 %v4603
    %4605 = vmatprep.subr.mxu0 0.0
    %v4606 = vand.u32 %v1354, 4294901760
    %v4607 = vsub.f32 %v1354, %v4606
    %v4608 = vand.u32 %v4607, 4294901760
    %4609 = vmatpush1.msra.mxu0 %v4608
    %4610 = vmatprep.subr.mxu0 0.0
    %v4611 = vand.u32 %v1353, 4294901760
    %v4612 = vsub.f32 %v1353, %v4611
    %v4613 = vand.u32 %v4612, 4294901760
    %4614 = vmatpush1.msra.mxu0 %v4613
    %4615 = vmatprep.subr.mxu0 0.0
    %v4616 = vand.u32 %v1352, 4294901760
    %v4617 = vsub.f32 %v1352, %v4616
    %v4618 = vand.u32 %v4617, 4294901760
    %4619 = vmatpush1.msra.mxu0 %v4618
    %4620 = vmatprep.subr.mxu0 0.0
    %v4621 = vand.u32 %v1351, 4294901760
    %v4622 = vsub.f32 %v1351, %v4621
    %v4623 = vand.u32 %v4622, 4294901760
    %4624 = vmatpush1.msra.mxu0 %v4623
    %4625 = vmatprep.subr.mxu0 0.0
    %v4626 = vand.u32 %v1350, 4294901760
    %v4627 = vsub.f32 %v1350, %v4626
    %v4628 = vand.u32 %v4627, 4294901760
    %4629 = vmatpush1.msra.mxu0 %v4628
    %4630 = vmatprep.subr.mxu0 0.0
    %v4631 = vand.u32 %v1349, 4294901760
    %v4632 = vsub.f32 %v1349, %v4631
    %v4633 = vand.u32 %v4632, 4294901760
    %4634 = vmatpush1.msra.mxu0 %v4633
    %4635 = vmatprep.subr.mxu0 0.0
    %v4636 = vand.u32 %v1348, 4294901760
    %v4637 = vsub.f32 %v1348, %v4636
    %v4638 = vand.u32 %v4637, 4294901760
    %4639 = vmatpush1.msra.mxu0 %v4638
    %4640 = vmatprep.subr.mxu0 0.0
    %v4641 = vand.u32 %v1347, 4294901760
    %v4642 = vsub.f32 %v1347, %v4641
    %v4643 = vand.u32 %v4642, 4294901760
    %4644 = vmatpush1.msra.mxu0 %v4643
    %4645 = vmatprep.subr.mxu0 0.0
    %v4646 = vand.u32 %v1346, 4294901760
    %v4647 = vsub.f32 %v1346, %v4646
    %v4648 = vand.u32 %v4647, 4294901760
    %4649 = vmatpush1.msra.mxu0 %v4648
    %4650 = vmatprep.subr.mxu0 0.0
    %v4651 = vand.u32 %v1345, 4294901760
    %v4652 = vsub.f32 %v1345, %v4651
    %v4653 = vand.u32 %v4652, 4294901760
    %4654 = vmatpush1.msra.mxu0 %v4653
    %4655 = vmatprep.subr.mxu0 0.0
    %v4656 = vand.u32 %v1344, 4294901760
    %v4657 = vsub.f32 %v1344, %v4656
    %v4658 = vand.u32 %v4657, 4294901760
    %4659 = vmatpush1.msra.mxu0 %v4658
    %4660 = vmatprep.subr.mxu0 0.0
    %v4661 = vand.u32 %v1343, 4294901760
    %v4662 = vsub.f32 %v1343, %v4661
    %v4663 = vand.u32 %v4662, 4294901760
    %4664 = vmatpush1.msra.mxu0 %v4663
    %4665 = vmatprep.subr.mxu0 0.0
    %4666 = vmatpush2.msra.mxu0 0.0
    %4667 = vmatprep.subr.mxu0 0.0
    %4668 = vmatpush2.msra.mxu0 0.0
    %4669 = vmatprep.subr.mxu0 0.0
    %4670 = vmatpush2.msra.mxu0 0.0
    %4671 = vmatprep.subr.mxu0 0.0
    %4672 = vmatpush2.msra.mxu0 0.0
    %4673 = vmatprep.subr.mxu0 0.0
    %4674 = vmatpush2.msra.mxu0 0.0
    %4675 = vmatprep.subr.mxu0 0.0
    %4676 = vmatpush2.msra.mxu0 0.0
    %4677 = vmatprep.subr.mxu0 0.0
    %4678 = vmatpush2.msra.mxu0 0.0
    %4679 = vmatprep.subr.mxu0 0.0
    %4680 = vmatpush2.msra.mxu0 0.0
    %4681 = vmatprep.subr.mxu0 0.0
    %4682 = vmatpush2.msra.mxu0 0.0
    %4683 = vmatprep.subr.mxu0 0.0
    %4684 = vmatpush2.msra.mxu0 0.0
    %4685 = vmatprep.subr.mxu0 0.0
    %4686 = vmatpush2.msra.mxu0 0.0
    %4687 = vmatprep.subr.mxu0 0.0
    %4688 = vmatpush2.msra.mxu0 0.0
    %4689 = vmatprep.subr.mxu0 0.0
    %4690 = vmatpush2.msra.mxu0 0.0
    %4691 = vmatprep.subr.mxu0 0.0
    %4692 = vmatpush2.msra.mxu0 0.0
    %4693 = vmatprep.subr.mxu0 0.0
    %4694 = vmatpush2.msra.mxu0 0.0
    %4695 = vmatprep.subr.mxu0 0.0
    %4696 = vmatpush2.msra.mxu0 0.0
    %4697 = vmatprep.mubr.f32.mxu0 0.0
    %v4698 = vand.u32 %v4135, 4294901760
    %4699 = vmatmul.mubr.f32.gmra.mxu0 %v4698
    %v4700 = vpop.f32.mrf.mxu0
    %v4701 = vadd.f32 %v4580, %v4700
    %v4702 = vpop.f32.mrf.mxu0
    %4703 = vmatprep.mubr.f32.mxu0 0.0
    %v4704 = vand.u32 %v4138, 4294901760
    %4705 = vmatmul.mubr.f32.gmra.mxu0 %v4704
    %v4706 = vpop.f32.mrf.mxu0
    %v4707 = vadd.f32 %v4588, %v4706
    %v4708 = vpop.f32.mrf.mxu0
    %4709 = vdwg.mxu0
    %4710 = vmatprep.subr.mxu0 0.0
    %4711 = vmatpush1.msra.mxu0 0.0
    %4712 = vmatprep.subr.mxu0 0.0
    %4713 = vmatpush1.msra.mxu0 0.0
    %4714 = vmatprep.subr.mxu0 0.0
    %v4715 = vand.u32 %v4141, 4294901760
    %4716 = vmatpush1.msra.mxu0 %v4715
    %4717 = vmatprep.subr.mxu0 0.0
    %v4718 = vand.u32 %v1355, 4294901760
    %4719 = vmatpush1.msra.mxu0 %v4718
    %4720 = vmatprep.subr.mxu0 0.0
    %v4721 = vand.u32 %v1354, 4294901760
    %4722 = vmatpush1.msra.mxu0 %v4721
    %4723 = vmatprep.subr.mxu0 0.0
    %v4724 = vand.u32 %v1353, 4294901760
    %4725 = vmatpush1.msra.mxu0 %v4724
    %4726 = vmatprep.subr.mxu0 0.0
    %v4727 = vand.u32 %v1352, 4294901760
    %4728 = vmatpush1.msra.mxu0 %v4727
    %4729 = vmatprep.subr.mxu0 0.0
    %v4730 = vand.u32 %v1351, 4294901760
    %4731 = vmatpush1.msra.mxu0 %v4730
    %4732 = vmatprep.subr.mxu0 0.0
    %v4733 = vand.u32 %v1350, 4294901760
    %4734 = vmatpush1.msra.mxu0 %v4733
    %4735 = vmatprep.subr.mxu0 0.0
    %v4736 = vand.u32 %v1349, 4294901760
    %4737 = vmatpush1.msra.mxu0 %v4736
    %4738 = vmatprep.subr.mxu0 0.0
    %v4739 = vand.u32 %v1348, 4294901760
    %4740 = vmatpush1.msra.mxu0 %v4739
    %4741 = vmatprep.subr.mxu0 0.0
    %v4742 = vand.u32 %v1347, 4294901760
    %4743 = vmatpush1.msra.mxu0 %v4742
    %4744 = vmatprep.subr.mxu0 0.0
    %v4745 = vand.u32 %v1346, 4294901760
    %4746 = vmatpush1.msra.mxu0 %v4745
    %4747 = vmatprep.subr.mxu0 0.0
    %v4748 = vand.u32 %v1345, 4294901760
    %4749 = vmatpush1.msra.mxu0 %v4748
    %4750 = vmatprep.subr.mxu0 0.0
    %v4751 = vand.u32 %v1344, 4294901760
    %4752 = vmatpush1.msra.mxu0 %v4751
    %4753 = vmatprep.subr.mxu0 0.0
    %v4754 = vand.u32 %v1343, 4294901760
    %4755 = vmatpush1.msra.mxu0 %v4754
    %4756 = vmatprep.subr.mxu0 0.0
    %4757 = vmatpush2.msra.mxu0 0.0
    %4758 = vmatprep.subr.mxu0 0.0
    %4759 = vmatpush2.msra.mxu0 0.0
    %4760 = vmatprep.subr.mxu0 0.0
    %4761 = vmatpush2.msra.mxu0 0.0
    %4762 = vmatprep.subr.mxu0 0.0
    %4763 = vmatpush2.msra.mxu0 0.0
    %4764 = vmatprep.subr.mxu0 0.0
    %4765 = vmatpush2.msra.mxu0 0.0
    %4766 = vmatprep.subr.mxu0 0.0
    %4767 = vmatpush2.msra.mxu0 0.0
    %4768 = vmatprep.subr.mxu0 0.0
    %4769 = vmatpush2.msra.mxu0 0.0
    %4770 = vmatprep.subr.mxu0 0.0
    %4771 = vmatpush2.msra.mxu0 0.0
    %4772 = vmatprep.subr.mxu0 0.0
    %4773 = vmatpush2.msra.mxu0 0.0
    %4774 = vmatprep.subr.mxu0 0.0
    %4775 = vmatpush2.msra.mxu0 0.0
    %4776 = vmatprep.subr.mxu0 0.0
    %4777 = vmatpush2.msra.mxu0 0.0
    %4778 = vmatprep.subr.mxu0 0.0
    %4779 = vmatpush2.msra.mxu0 0.0
    %4780 = vmatprep.subr.mxu0 0.0
    %4781 = vmatpush2.msra.mxu0 0.0
    %4782 = vmatprep.subr.mxu0 0.0
    %4783 = vmatpush2.msra.mxu0 0.0
    %4784 = vmatprep.subr.mxu0 0.0
    %4785 = vmatpush2.msra.mxu0 0.0
    %4786 = vmatprep.subr.mxu0 0.0
    %4787 = vmatpush2.msra.mxu0 0.0
    %4788 = vmatprep.mubr.f32.mxu0 0.0
    %v4789 = vand.u32 %v4135, 4294901760
    %4790 = vmatmul.mubr.f32.gmra.mxu0 %v4789
    %v4791 = vpop.f32.mrf.mxu0
    %v4792 = vadd.f32 %v4701, %v4791
    %v4793 = vpop.f32.mrf.mxu0
    %4794 = vmatprep.mubr.f32.mxu0 0.0
    %v4795 = vand.u32 %v4138, 4294901760
    %4796 = vmatmul.mubr.f32.gmra.mxu0 %v4795
    %v4797 = vpop.f32.mrf.mxu0
    %v4798 = vadd.f32 %v4707, %v4797
    %v4799 = vpop.f32.mrf.mxu0
    %4800 = vdwg.mxu0
    %v4802 = vsel %vm1372, %v1274, 0
    %v4805 = vsel %vm1372, %v1280, 0
    %v4808 = vsel %vm1379, %v2055, 0
    %4810 = vmatprep.subr.mxu0 0.0
    %4811 = vmatpush1.msra.mxu0 0.0
    %4812 = vmatprep.subr.mxu0 0.0
    %4813 = vmatpush1.msra.mxu0 0.0
    %4814 = vmatprep.subr.mxu0 0.0
    %v4815 = vand.u32 %v4808, 4294901760
    %4816 = vmatpush1.msra.mxu0 %v4815
    %4817 = vmatprep.subr.mxu0 0.0
    %v4818 = vand.u32 %v2054, 4294901760
    %4819 = vmatpush1.msra.mxu0 %v4818
    %4820 = vmatprep.subr.mxu0 0.0
    %v4821 = vand.u32 %v2053, 4294901760
    %4822 = vmatpush1.msra.mxu0 %v4821
    %4823 = vmatprep.subr.mxu0 0.0
    %v4824 = vand.u32 %v2052, 4294901760
    %4825 = vmatpush1.msra.mxu0 %v4824
    %4826 = vmatprep.subr.mxu0 0.0
    %v4827 = vand.u32 %v2051, 4294901760
    %4828 = vmatpush1.msra.mxu0 %v4827
    %4829 = vmatprep.subr.mxu0 0.0
    %v4830 = vand.u32 %v2050, 4294901760
    %4831 = vmatpush1.msra.mxu0 %v4830
    %4832 = vmatprep.subr.mxu0 0.0
    %v4833 = vand.u32 %v2049, 4294901760
    %4834 = vmatpush1.msra.mxu0 %v4833
    %4835 = vmatprep.subr.mxu0 0.0
    %v4836 = vand.u32 %v2048, 4294901760
    %4837 = vmatpush1.msra.mxu0 %v4836
    %4838 = vmatprep.subr.mxu0 0.0
    %v4839 = vand.u32 %v2047, 4294901760
    %4840 = vmatpush1.msra.mxu0 %v4839
    %4841 = vmatprep.subr.mxu0 0.0
    %v4842 = vand.u32 %v2046, 4294901760
    %4843 = vmatpush1.msra.mxu0 %v4842
    %4844 = vmatprep.subr.mxu0 0.0
    %v4845 = vand.u32 %v2045, 4294901760
    %4846 = vmatpush1.msra.mxu0 %v4845
    %4847 = vmatprep.subr.mxu0 0.0
    %v4848 = vand.u32 %v2044, 4294901760
    %4849 = vmatpush1.msra.mxu0 %v4848
    %4850 = vmatprep.subr.mxu0 0.0
    %v4851 = vand.u32 %v2043, 4294901760
    %4852 = vmatpush1.msra.mxu0 %v4851
    %4853 = vmatprep.subr.mxu0 0.0
    %v4854 = vand.u32 %v2042, 4294901760
    %4855 = vmatpush1.msra.mxu0 %v4854
    %4856 = vmatprep.subr.mxu0 0.0
    %4857 = vmatpush2.msra.mxu0 0.0
    %4858 = vmatprep.subr.mxu0 0.0
    %4859 = vmatpush2.msra.mxu0 0.0
    %4860 = vmatprep.subr.mxu0 0.0
    %4861 = vmatpush2.msra.mxu0 0.0
    %4862 = vmatprep.subr.mxu0 0.0
    %4863 = vmatpush2.msra.mxu0 0.0
    %4864 = vmatprep.subr.mxu0 0.0
    %4865 = vmatpush2.msra.mxu0 0.0
    %4866 = vmatprep.subr.mxu0 0.0
    %4867 = vmatpush2.msra.mxu0 0.0
    %4868 = vmatprep.subr.mxu0 0.0
    %4869 = vmatpush2.msra.mxu0 0.0
    %4870 = vmatprep.subr.mxu0 0.0
    %4871 = vmatpush2.msra.mxu0 0.0
    %4872 = vmatprep.subr.mxu0 0.0
    %4873 = vmatpush2.msra.mxu0 0.0
    %4874 = vmatprep.subr.mxu0 0.0
    %4875 = vmatpush2.msra.mxu0 0.0
    %4876 = vmatprep.subr.mxu0 0.0
    %4877 = vmatpush2.msra.mxu0 0.0
    %4878 = vmatprep.subr.mxu0 0.0
    %4879 = vmatpush2.msra.mxu0 0.0
    %4880 = vmatprep.subr.mxu0 0.0
    %4881 = vmatpush2.msra.mxu0 0.0
    %4882 = vmatprep.subr.mxu0 0.0
    %4883 = vmatpush2.msra.mxu0 0.0
    %4884 = vmatprep.subr.mxu0 0.0
    %4885 = vmatpush2.msra.mxu0 0.0
    %4886 = vmatprep.subr.mxu0 0.0
    %4887 = vmatpush2.msra.mxu0 0.0
    %4888 = vmatprep.mubr.f32.mxu0 0.0
    %v4889 = vand.u32 %v4802, 4294901760
    %v4890 = vsub.f32 %v4802, %v4889
    %v4891 = vand.u32 %v4890, 4294901760
    %v4892 = vsub.f32 %v4890, %v4891
    %v4893 = vand.u32 %v4892, 4294901760
    %4894 = vmatmul.mubr.f32.gmra.mxu0 %v4893
    %v4895 = vpop.f32.mrf.mxu0
    %v4896 = vadd.f32 %v2729, %v4895
    %v4897 = vpop.f32.mrf.mxu0
    %4898 = vmatprep.mubr.f32.mxu0 0.0
    %v4899 = vand.u32 %v4805, 4294901760
    %v4900 = vsub.f32 %v4805, %v4899
    %v4901 = vand.u32 %v4900, 4294901760
    %v4902 = vsub.f32 %v4900, %v4901
    %v4903 = vand.u32 %v4902, 4294901760
    %4904 = vmatmul.mubr.f32.gmra.mxu0 %v4903
    %v4905 = vpop.f32.mrf.mxu0
    %v4906 = vadd.f32 %v2735, %v4905
    %v4907 = vpop.f32.mrf.mxu0
    %4908 = vdwg.mxu0
    %4909 = vmatprep.subr.mxu0 0.0
    %4910 = vmatpush1.msra.mxu0 0.0
    %4911 = vmatprep.subr.mxu0 0.0
    %4912 = vmatpush1.msra.mxu0 0.0
    %4913 = vmatprep.subr.mxu0 0.0
    %v4914 = vand.u32 %v4808, 4294901760
    %v4915 = vsub.f32 %v4808, %v4914
    %v4916 = vand.u32 %v4915, 4294901760
    %v4917 = vsub.f32 %v4915, %v4916
    %v4918 = vand.u32 %v4917, 4294901760
    %4919 = vmatpush1.msra.mxu0 %v4918
    %4920 = vmatprep.subr.mxu0 0.0
    %v4921 = vand.u32 %v2054, 4294901760
    %v4922 = vsub.f32 %v2054, %v4921
    %v4923 = vand.u32 %v4922, 4294901760
    %v4924 = vsub.f32 %v4922, %v4923
    %v4925 = vand.u32 %v4924, 4294901760
    %4926 = vmatpush1.msra.mxu0 %v4925
    %4927 = vmatprep.subr.mxu0 0.0
    %v4928 = vand.u32 %v2053, 4294901760
    %v4929 = vsub.f32 %v2053, %v4928
    %v4930 = vand.u32 %v4929, 4294901760
    %v4931 = vsub.f32 %v4929, %v4930
    %v4932 = vand.u32 %v4931, 4294901760
    %4933 = vmatpush1.msra.mxu0 %v4932
    %4934 = vmatprep.subr.mxu0 0.0
    %v4935 = vand.u32 %v2052, 4294901760
    %v4936 = vsub.f32 %v2052, %v4935
    %v4937 = vand.u32 %v4936, 4294901760
    %v4938 = vsub.f32 %v4936, %v4937
    %v4939 = vand.u32 %v4938, 4294901760
    %4940 = vmatpush1.msra.mxu0 %v4939
    %4941 = vmatprep.subr.mxu0 0.0
    %v4942 = vand.u32 %v2051, 4294901760
    %v4943 = vsub.f32 %v2051, %v4942
    %v4944 = vand.u32 %v4943, 4294901760
    %v4945 = vsub.f32 %v4943, %v4944
    %v4946 = vand.u32 %v4945, 4294901760
    %4947 = vmatpush1.msra.mxu0 %v4946
    %4948 = vmatprep.subr.mxu0 0.0
    %v4949 = vand.u32 %v2050, 4294901760
    %v4950 = vsub.f32 %v2050, %v4949
    %v4951 = vand.u32 %v4950, 4294901760
    %v4952 = vsub.f32 %v4950, %v4951
    %v4953 = vand.u32 %v4952, 4294901760
    %4954 = vmatpush1.msra.mxu0 %v4953
    %4955 = vmatprep.subr.mxu0 0.0
    %v4956 = vand.u32 %v2049, 4294901760
    %v4957 = vsub.f32 %v2049, %v4956
    %v4958 = vand.u32 %v4957, 4294901760
    %v4959 = vsub.f32 %v4957, %v4958
    %v4960 = vand.u32 %v4959, 4294901760
    %4961 = vmatpush1.msra.mxu0 %v4960
    %4962 = vmatprep.subr.mxu0 0.0
    %v4963 = vand.u32 %v2048, 4294901760
    %v4964 = vsub.f32 %v2048, %v4963
    %v4965 = vand.u32 %v4964, 4294901760
    %v4966 = vsub.f32 %v4964, %v4965
    %v4967 = vand.u32 %v4966, 4294901760
    %4968 = vmatpush1.msra.mxu0 %v4967
    %4969 = vmatprep.subr.mxu0 0.0
    %v4970 = vand.u32 %v2047, 4294901760
    %v4971 = vsub.f32 %v2047, %v4970
    %v4972 = vand.u32 %v4971, 4294901760
    %v4973 = vsub.f32 %v4971, %v4972
    %v4974 = vand.u32 %v4973, 4294901760
    %4975 = vmatpush1.msra.mxu0 %v4974
    %4976 = vmatprep.subr.mxu0 0.0
    %v4977 = vand.u32 %v2046, 4294901760
    %v4978 = vsub.f32 %v2046, %v4977
    %v4979 = vand.u32 %v4978, 4294901760
    %v4980 = vsub.f32 %v4978, %v4979
    %v4981 = vand.u32 %v4980, 4294901760
    %4982 = vmatpush1.msra.mxu0 %v4981
    %4983 = vmatprep.subr.mxu0 0.0
    %v4984 = vand.u32 %v2045, 4294901760
    %v4985 = vsub.f32 %v2045, %v4984
    %v4986 = vand.u32 %v4985, 4294901760
    %v4987 = vsub.f32 %v4985, %v4986
    %v4988 = vand.u32 %v4987, 4294901760
    %4989 = vmatpush1.msra.mxu0 %v4988
    %4990 = vmatprep.subr.mxu0 0.0
    %v4991 = vand.u32 %v2044, 4294901760
    %v4992 = vsub.f32 %v2044, %v4991
    %v4993 = vand.u32 %v4992, 4294901760
    %v4994 = vsub.f32 %v4992, %v4993
    %v4995 = vand.u32 %v4994, 4294901760
    %4996 = vmatpush1.msra.mxu0 %v4995
    %4997 = vmatprep.subr.mxu0 0.0
    %v4998 = vand.u32 %v2043, 4294901760
    %v4999 = vsub.f32 %v2043, %v4998
    %v5000 = vand.u32 %v4999, 4294901760
    %v5001 = vsub.f32 %v4999, %v5000
    %v5002 = vand.u32 %v5001, 4294901760
    %5003 = vmatpush1.msra.mxu0 %v5002
    %5004 = vmatprep.subr.mxu0 0.0
    %v5005 = vand.u32 %v2042, 4294901760
    %v5006 = vsub.f32 %v2042, %v5005
    %v5007 = vand.u32 %v5006, 4294901760
    %v5008 = vsub.f32 %v5006, %v5007
    %v5009 = vand.u32 %v5008, 4294901760
    %5010 = vmatpush1.msra.mxu0 %v5009
    %5011 = vmatprep.subr.mxu0 0.0
    %5012 = vmatpush2.msra.mxu0 0.0
    %5013 = vmatprep.subr.mxu0 0.0
    %5014 = vmatpush2.msra.mxu0 0.0
    %5015 = vmatprep.subr.mxu0 0.0
    %5016 = vmatpush2.msra.mxu0 0.0
    %5017 = vmatprep.subr.mxu0 0.0
    %5018 = vmatpush2.msra.mxu0 0.0
    %5019 = vmatprep.subr.mxu0 0.0
    %5020 = vmatpush2.msra.mxu0 0.0
    %5021 = vmatprep.subr.mxu0 0.0
    %5022 = vmatpush2.msra.mxu0 0.0
    %5023 = vmatprep.subr.mxu0 0.0
    %5024 = vmatpush2.msra.mxu0 0.0
    %5025 = vmatprep.subr.mxu0 0.0
    %5026 = vmatpush2.msra.mxu0 0.0
    %5027 = vmatprep.subr.mxu0 0.0
    %5028 = vmatpush2.msra.mxu0 0.0
    %5029 = vmatprep.subr.mxu0 0.0
    %5030 = vmatpush2.msra.mxu0 0.0
    %5031 = vmatprep.subr.mxu0 0.0
    %5032 = vmatpush2.msra.mxu0 0.0
    %5033 = vmatprep.subr.mxu0 0.0
    %5034 = vmatpush2.msra.mxu0 0.0
    %5035 = vmatprep.subr.mxu0 0.0
    %5036 = vmatpush2.msra.mxu0 0.0
    %5037 = vmatprep.subr.mxu0 0.0
    %5038 = vmatpush2.msra.mxu0 0.0
    %5039 = vmatprep.subr.mxu0 0.0
    %5040 = vmatpush2.msra.mxu0 0.0
    %5041 = vmatprep.subr.mxu0 0.0
    %5042 = vmatpush2.msra.mxu0 0.0
    %5043 = vmatprep.mubr.f32.mxu0 0.0
    %v5044 = vand.u32 %v4802, 4294901760
    %5045 = vmatmul.mubr.f32.gmra.mxu0 %v5044
    %v5046 = vpop.f32.mrf.mxu0
    %v5047 = vadd.f32 %v4896, %v5046
    %v5048 = vpop.f32.mrf.mxu0
    %5049 = vmatprep.mubr.f32.mxu0 0.0
    %v5050 = vand.u32 %v4805, 4294901760
    %5051 = vmatmul.mubr.f32.gmra.mxu0 %v5050
    %v5052 = vpop.f32.mrf.mxu0
    %v5053 = vadd.f32 %v4906, %v5052
    %v5054 = vpop.f32.mrf.mxu0
    %5055 = vdwg.mxu0
    %5056 = vmatprep.subr.mxu0 0.0
    %5057 = vmatpush1.msra.mxu0 0.0
    %5058 = vmatprep.subr.mxu0 0.0
    %5059 = vmatpush1.msra.mxu0 0.0
    %5060 = vmatprep.subr.mxu0 0.0
    %v5061 = vand.u32 %v4808, 4294901760
    %v5062 = vsub.f32 %v4808, %v5061
    %5063 = vmatpush1.msra.mxu0 %v5062
    %5064 = vmatprep.subr.mxu0 0.0
    %v5065 = vand.u32 %v2054, 4294901760
    %v5066 = vsub.f32 %v2054, %v5065
    %5067 = vmatpush1.msra.mxu0 %v5066
    %5068 = vmatprep.subr.mxu0 0.0
    %v5069 = vand.u32 %v2053, 4294901760
    %v5070 = vsub.f32 %v2053, %v5069
    %5071 = vmatpush1.msra.mxu0 %v5070
    %5072 = vmatprep.subr.mxu0 0.0
    %v5073 = vand.u32 %v2052, 4294901760
    %v5074 = vsub.f32 %v2052, %v5073
    %5075 = vmatpush1.msra.mxu0 %v5074
    %5076 = vmatprep.subr.mxu0 0.0
    %v5077 = vand.u32 %v2051, 4294901760
    %v5078 = vsub.f32 %v2051, %v5077
    %5079 = vmatpush1.msra.mxu0 %v5078
    %5080 = vmatprep.subr.mxu0 0.0
    %v5081 = vand.u32 %v2050, 4294901760
    %v5082 = vsub.f32 %v2050, %v5081
    %5083 = vmatpush1.msra.mxu0 %v5082
    %5084 = vmatprep.subr.mxu0 0.0
    %v5085 = vand.u32 %v2049, 4294901760
    %v5086 = vsub.f32 %v2049, %v5085
    %5087 = vmatpush1.msra.mxu0 %v5086
    %5088 = vmatprep.subr.mxu0 0.0
    %v5089 = vand.u32 %v2048, 4294901760
    %v5090 = vsub.f32 %v2048, %v5089
    %5091 = vmatpush1.msra.mxu0 %v5090
    %5092 = vmatprep.subr.mxu0 0.0
    %v5093 = vand.u32 %v2047, 4294901760
    %v5094 = vsub.f32 %v2047, %v5093
    %5095 = vmatpush1.msra.mxu0 %v5094
    %5096 = vmatprep.subr.mxu0 0.0
    %v5097 = vand.u32 %v2046, 4294901760
    %v5098 = vsub.f32 %v2046, %v5097
    %5099 = vmatpush1.msra.mxu0 %v5098
    %5100 = vmatprep.subr.mxu0 0.0
    %v5101 = vand.u32 %v2045, 4294901760
    %v5102 = vsub.f32 %v2045, %v5101
    %5103 = vmatpush1.msra.mxu0 %v5102
    %5104 = vmatprep.subr.mxu0 0.0
    %v5105 = vand.u32 %v2044, 4294901760
    %v5106 = vsub.f32 %v2044, %v5105
    %5107 = vmatpush1.msra.mxu0 %v5106
    %5108 = vmatprep.subr.mxu0 0.0
    %v5109 = vand.u32 %v2043, 4294901760
    %v5110 = vsub.f32 %v2043, %v5109
    %5111 = vmatpush1.msra.mxu0 %v5110
    %5112 = vmatprep.subr.mxu0 0.0
    %v5113 = vand.u32 %v2042, 4294901760
    %v5114 = vsub.f32 %v2042, %v5113
    %5115 = vmatpush1.msra.mxu0 %v5114
    %5116 = vmatprep.subr.mxu0 0.0
    %5117 = vmatpush2.msra.mxu0 0.0
    %5118 = vmatprep.subr.mxu0 0.0
    %5119 = vmatpush2.msra.mxu0 0.0
    %5120 = vmatprep.subr.mxu0 0.0
    %5121 = vmatpush2.msra.mxu0 0.0
    %5122 = vmatprep.subr.mxu0 0.0
    %5123 = vmatpush2.msra.mxu0 0.0
    %5124 = vmatprep.subr.mxu0 0.0
    %5125 = vmatpush2.msra.mxu0 0.0
    %5126 = vmatprep.subr.mxu0 0.0
    %5127 = vmatpush2.msra.mxu0 0.0
    %5128 = vmatprep.subr.mxu0 0.0
    %5129 = vmatpush2.msra.mxu0 0.0
    %5130 = vmatprep.subr.mxu0 0.0
    %5131 = vmatpush2.msra.mxu0 0.0
    %5132 = vmatprep.subr.mxu0 0.0
    %5133 = vmatpush2.msra.mxu0 0.0
    %5134 = vmatprep.subr.mxu0 0.0
    %5135 = vmatpush2.msra.mxu0 0.0
    %5136 = vmatprep.subr.mxu0 0.0
    %5137 = vmatpush2.msra.mxu0 0.0
    %5138 = vmatprep.subr.mxu0 0.0
    %5139 = vmatpush2.msra.mxu0 0.0
    %5140 = vmatprep.subr.mxu0 0.0
    %5141 = vmatpush2.msra.mxu0 0.0
    %5142 = vmatprep.subr.mxu0 0.0
    %5143 = vmatpush2.msra.mxu0 0.0
    %5144 = vmatprep.subr.mxu0 0.0
    %5145 = vmatpush2.msra.mxu0 0.0
    %5146 = vmatprep.subr.mxu0 0.0
    %5147 = vmatpush2.msra.mxu0 0.0
    %5148 = vmatprep.mubr.f32.mxu0 0.0
    %v5149 = vand.u32 %v4802, 4294901760
    %v5150 = vsub.f32 %v4802, %v5149
    %5151 = vmatmul.mubr.f32.gmra.mxu0 %v5150
    %v5152 = vpop.f32.mrf.mxu0
    %v5153 = vadd.f32 %v5047, %v5152
    %v5154 = vpop.f32.mrf.mxu0
    %5155 = vmatprep.mubr.f32.mxu0 0.0
    %v5156 = vand.u32 %v4805, 4294901760
    %v5157 = vsub.f32 %v4805, %v5156
    %5158 = vmatmul.mubr.f32.gmra.mxu0 %v5157
    %v5159 = vpop.f32.mrf.mxu0
    %v5160 = vadd.f32 %v5053, %v5159
    %v5161 = vpop.f32.mrf.mxu0
    %5162 = vdwg.mxu0
    %5163 = vmatprep.subr.mxu0 0.0
    %5164 = vmatpush1.msra.mxu0 0.0
    %5165 = vmatprep.subr.mxu0 0.0
    %5166 = vmatpush1.msra.mxu0 0.0
    %5167 = vmatprep.subr.mxu0 0.0
    %v5168 = vand.u32 %v4808, 4294901760
    %5169 = vmatpush1.msra.mxu0 %v5168
    %5170 = vmatprep.subr.mxu0 0.0
    %v5171 = vand.u32 %v2054, 4294901760
    %5172 = vmatpush1.msra.mxu0 %v5171
    %5173 = vmatprep.subr.mxu0 0.0
    %v5174 = vand.u32 %v2053, 4294901760
    %5175 = vmatpush1.msra.mxu0 %v5174
    %5176 = vmatprep.subr.mxu0 0.0
    %v5177 = vand.u32 %v2052, 4294901760
    %5178 = vmatpush1.msra.mxu0 %v5177
    %5179 = vmatprep.subr.mxu0 0.0
    %v5180 = vand.u32 %v2051, 4294901760
    %5181 = vmatpush1.msra.mxu0 %v5180
    %5182 = vmatprep.subr.mxu0 0.0
    %v5183 = vand.u32 %v2050, 4294901760
    %5184 = vmatpush1.msra.mxu0 %v5183
    %5185 = vmatprep.subr.mxu0 0.0
    %v5186 = vand.u32 %v2049, 4294901760
    %5187 = vmatpush1.msra.mxu0 %v5186
    %5188 = vmatprep.subr.mxu0 0.0
    %v5189 = vand.u32 %v2048, 4294901760
    %5190 = vmatpush1.msra.mxu0 %v5189
    %5191 = vmatprep.subr.mxu0 0.0
    %v5192 = vand.u32 %v2047, 4294901760
    %5193 = vmatpush1.msra.mxu0 %v5192
    %5194 = vmatprep.subr.mxu0 0.0
    %v5195 = vand.u32 %v2046, 4294901760
    %5196 = vmatpush1.msra.mxu0 %v5195
    %5197 = vmatprep.subr.mxu0 0.0
    %v5198 = vand.u32 %v2045, 4294901760
    %5199 = vmatpush1.msra.mxu0 %v5198
    %5200 = vmatprep.subr.mxu0 0.0
    %v5201 = vand.u32 %v2044, 4294901760
    %5202 = vmatpush1.msra.mxu0 %v5201
    %5203 = vmatprep.subr.mxu0 0.0
    %v5204 = vand.u32 %v2043, 4294901760
    %5205 = vmatpush1.msra.mxu0 %v5204
    %5206 = vmatprep.subr.mxu0 0.0
    %v5207 = vand.u32 %v2042, 4294901760
    %5208 = vmatpush1.msra.mxu0 %v5207
    %5209 = vmatprep.subr.mxu0 0.0
    %5210 = vmatpush2.msra.mxu0 0.0
    %5211 = vmatprep.subr.mxu0 0.0
    %5212 = vmatpush2.msra.mxu0 0.0
    %5213 = vmatprep.subr.mxu0 0.0
    %5214 = vmatpush2.msra.mxu0 0.0
    %5215 = vmatprep.subr.mxu0 0.0
    %5216 = vmatpush2.msra.mxu0 0.0
    %5217 = vmatprep.subr.mxu0 0.0
    %5218 = vmatpush2.msra.mxu0 0.0
    %5219 = vmatprep.subr.mxu0 0.0
    %5220 = vmatpush2.msra.mxu0 0.0
    %5221 = vmatprep.subr.mxu0 0.0
    %5222 = vmatpush2.msra.mxu0 0.0
    %5223 = vmatprep.subr.mxu0 0.0
    %5224 = vmatpush2.msra.mxu0 0.0
    %5225 = vmatprep.subr.mxu0 0.0
    %5226 = vmatpush2.msra.mxu0 0.0
    %5227 = vmatprep.subr.mxu0 0.0
    %5228 = vmatpush2.msra.mxu0 0.0
    %5229 = vmatprep.subr.mxu0 0.0
    %5230 = vmatpush2.msra.mxu0 0.0
    %5231 = vmatprep.subr.mxu0 0.0
    %5232 = vmatpush2.msra.mxu0 0.0
    %5233 = vmatprep.subr.mxu0 0.0
    %5234 = vmatpush2.msra.mxu0 0.0
    %5235 = vmatprep.subr.mxu0 0.0
    %5236 = vmatpush2.msra.mxu0 0.0
    %5237 = vmatprep.subr.mxu0 0.0
    %5238 = vmatpush2.msra.mxu0 0.0
    %5239 = vmatprep.subr.mxu0 0.0
    %5240 = vmatpush2.msra.mxu0 0.0
    %5241 = vmatprep.mubr.f32.mxu0 0.0
    %v5242 = vand.u32 %v4802, 4294901760
    %v5243 = vsub.f32 %v4802, %v5242
    %v5244 = vand.u32 %v5243, 4294901760
    %5245 = vmatmul.mubr.f32.gmra.mxu0 %v5244
    %v5246 = vpop.f32.mrf.mxu0
    %v5247 = vadd.f32 %v5153, %v5246
    %v5248 = vpop.f32.mrf.mxu0
    %5249 = vmatprep.mubr.f32.mxu0 0.0
    %v5250 = vand.u32 %v4805, 4294901760
    %v5251 = vsub.f32 %v4805, %v5250
    %v5252 = vand.u32 %v5251, 4294901760
    %5253 = vmatmul.mubr.f32.gmra.mxu0 %v5252
    %v5254 = vpop.f32.mrf.mxu0
    %v5255 = vadd.f32 %v5160, %v5254
    %v5256 = vpop.f32.mrf.mxu0
    %5257 = vdwg.mxu0
    %5258 = vmatprep.subr.mxu0 0.0
    %5259 = vmatpush1.msra.mxu0 0.0
    %5260 = vmatprep.subr.mxu0 0.0
    %5261 = vmatpush1.msra.mxu0 0.0
    %5262 = vmatprep.subr.mxu0 0.0
    %v5263 = vand.u32 %v4808, 4294901760
    %v5264 = vsub.f32 %v4808, %v5263
    %v5265 = vand.u32 %v5264, 4294901760
    %5266 = vmatpush1.msra.mxu0 %v5265
    %5267 = vmatprep.subr.mxu0 0.0
    %v5268 = vand.u32 %v2054, 4294901760
    %v5269 = vsub.f32 %v2054, %v5268
    %v5270 = vand.u32 %v5269, 4294901760
    %5271 = vmatpush1.msra.mxu0 %v5270
    %5272 = vmatprep.subr.mxu0 0.0
    %v5273 = vand.u32 %v2053, 4294901760
    %v5274 = vsub.f32 %v2053, %v5273
    %v5275 = vand.u32 %v5274, 4294901760
    %5276 = vmatpush1.msra.mxu0 %v5275
    %5277 = vmatprep.subr.mxu0 0.0
    %v5278 = vand.u32 %v2052, 4294901760
    %v5279 = vsub.f32 %v2052, %v5278
    %v5280 = vand.u32 %v5279, 4294901760
    %5281 = vmatpush1.msra.mxu0 %v5280
    %5282 = vmatprep.subr.mxu0 0.0
    %v5283 = vand.u32 %v2051, 4294901760
    %v5284 = vsub.f32 %v2051, %v5283
    %v5285 = vand.u32 %v5284, 4294901760
    %5286 = vmatpush1.msra.mxu0 %v5285
    %5287 = vmatprep.subr.mxu0 0.0
    %v5288 = vand.u32 %v2050, 4294901760
    %v5289 = vsub.f32 %v2050, %v5288
    %v5290 = vand.u32 %v5289, 4294901760
    %5291 = vmatpush1.msra.mxu0 %v5290
    %5292 = vmatprep.subr.mxu0 0.0
    %v5293 = vand.u32 %v2049, 4294901760
    %v5294 = vsub.f32 %v2049, %v5293
    %v5295 = vand.u32 %v5294, 4294901760
    %5296 = vmatpush1.msra.mxu0 %v5295
    %5297 = vmatprep.subr.mxu0 0.0
    %v5298 = vand.u32 %v2048, 4294901760
    %v5299 = vsub.f32 %v2048, %v5298
    %v5300 = vand.u32 %v5299, 4294901760
    %5301 = vmatpush1.msra.mxu0 %v5300
    %5302 = vmatprep.subr.mxu0 0.0
    %v5303 = vand.u32 %v2047, 4294901760
    %v5304 = vsub.f32 %v2047, %v5303
    %v5305 = vand.u32 %v5304, 4294901760
    %5306 = vmatpush1.msra.mxu0 %v5305
    %5307 = vmatprep.subr.mxu0 0.0
    %v5308 = vand.u32 %v2046, 4294901760
    %v5309 = vsub.f32 %v2046, %v5308
    %v5310 = vand.u32 %v5309, 4294901760
    %5311 = vmatpush1.msra.mxu0 %v5310
    %5312 = vmatprep.subr.mxu0 0.0
    %v5313 = vand.u32 %v2045, 4294901760
    %v5314 = vsub.f32 %v2045, %v5313
    %v5315 = vand.u32 %v5314, 4294901760
    %5316 = vmatpush1.msra.mxu0 %v5315
    %5317 = vmatprep.subr.mxu0 0.0
    %v5318 = vand.u32 %v2044, 4294901760
    %v5319 = vsub.f32 %v2044, %v5318
    %v5320 = vand.u32 %v5319, 4294901760
    %5321 = vmatpush1.msra.mxu0 %v5320
    %5322 = vmatprep.subr.mxu0 0.0
    %v5323 = vand.u32 %v2043, 4294901760
    %v5324 = vsub.f32 %v2043, %v5323
    %v5325 = vand.u32 %v5324, 4294901760
    %5326 = vmatpush1.msra.mxu0 %v5325
    %5327 = vmatprep.subr.mxu0 0.0
    %v5328 = vand.u32 %v2042, 4294901760
    %v5329 = vsub.f32 %v2042, %v5328
    %v5330 = vand.u32 %v5329, 4294901760
    %5331 = vmatpush1.msra.mxu0 %v5330
    %5332 = vmatprep.subr.mxu0 0.0
    %5333 = vmatpush2.msra.mxu0 0.0
    %5334 = vmatprep.subr.mxu0 0.0
    %5335 = vmatpush2.msra.mxu0 0.0
    %5336 = vmatprep.subr.mxu0 0.0
    %5337 = vmatpush2.msra.mxu0 0.0
    %5338 = vmatprep.subr.mxu0 0.0
    %5339 = vmatpush2.msra.mxu0 0.0
    %5340 = vmatprep.subr.mxu0 0.0
    %5341 = vmatpush2.msra.mxu0 0.0
    %5342 = vmatprep.subr.mxu0 0.0
    %5343 = vmatpush2.msra.mxu0 0.0
    %5344 = vmatprep.subr.mxu0 0.0
    %5345 = vmatpush2.msra.mxu0 0.0
    %5346 = vmatprep.subr.mxu0 0.0
    %5347 = vmatpush2.msra.mxu0 0.0
    %5348 = vmatprep.subr.mxu0 0.0
    %5349 = vmatpush2.msra.mxu0 0.0
    %5350 = vmatprep.subr.mxu0 0.0
    %5351 = vmatpush2.msra.mxu0 0.0
    %5352 = vmatprep.subr.mxu0 0.0
    %5353 = vmatpush2.msra.mxu0 0.0
    %5354 = vmatprep.subr.mxu0 0.0
    %5355 = vmatpush2.msra.mxu0 0.0
    %5356 = vmatprep.subr.mxu0 0.0
    %5357 = vmatpush2.msra.mxu0 0.0
    %5358 = vmatprep.subr.mxu0 0.0
    %5359 = vmatpush2.msra.mxu0 0.0
    %5360 = vmatprep.subr.mxu0 0.0
    %5361 = vmatpush2.msra.mxu0 0.0
    %5362 = vmatprep.subr.mxu0 0.0
    %5363 = vmatpush2.msra.mxu0 0.0
    %5364 = vmatprep.mubr.f32.mxu0 0.0
    %v5365 = vand.u32 %v4802, 4294901760
    %5366 = vmatmul.mubr.f32.gmra.mxu0 %v5365
    %v5367 = vpop.f32.mrf.mxu0
    %v5368 = vadd.f32 %v5247, %v5367
    %v5369 = vpop.f32.mrf.mxu0
    %5370 = vmatprep.mubr.f32.mxu0 0.0
    %v5371 = vand.u32 %v4805, 4294901760
    %5372 = vmatmul.mubr.f32.gmra.mxu0 %v5371
    %v5373 = vpop.f32.mrf.mxu0
    %v5374 = vadd.f32 %v5255, %v5373
    %v5375 = vpop.f32.mrf.mxu0
    %5376 = vdwg.mxu0
    %5377 = vmatprep.subr.mxu0 0.0
    %5378 = vmatpush1.msra.mxu0 0.0
    %5379 = vmatprep.subr.mxu0 0.0
    %5380 = vmatpush1.msra.mxu0 0.0
    %5381 = vmatprep.subr.mxu0 0.0
    %v5382 = vand.u32 %v4808, 4294901760
    %5383 = vmatpush1.msra.mxu0 %v5382
    %5384 = vmatprep.subr.mxu0 0.0
    %v5385 = vand.u32 %v2054, 4294901760
    %5386 = vmatpush1.msra.mxu0 %v5385
    %5387 = vmatprep.subr.mxu0 0.0
    %v5388 = vand.u32 %v2053, 4294901760
    %5389 = vmatpush1.msra.mxu0 %v5388
    %5390 = vmatprep.subr.mxu0 0.0
    %v5391 = vand.u32 %v2052, 4294901760
    %5392 = vmatpush1.msra.mxu0 %v5391
    %5393 = vmatprep.subr.mxu0 0.0
    %v5394 = vand.u32 %v2051, 4294901760
    %5395 = vmatpush1.msra.mxu0 %v5394
    %5396 = vmatprep.subr.mxu0 0.0
    %v5397 = vand.u32 %v2050, 4294901760
    %5398 = vmatpush1.msra.mxu0 %v5397
    %5399 = vmatprep.subr.mxu0 0.0
    %v5400 = vand.u32 %v2049, 4294901760
    %5401 = vmatpush1.msra.mxu0 %v5400
    %5402 = vmatprep.subr.mxu0 0.0
    %v5403 = vand.u32 %v2048, 4294901760
    %5404 = vmatpush1.msra.mxu0 %v5403
    %5405 = vmatprep.subr.mxu0 0.0
    %v5406 = vand.u32 %v2047, 4294901760
    %5407 = vmatpush1.msra.mxu0 %v5406
    %5408 = vmatprep.subr.mxu0 0.0
    %v5409 = vand.u32 %v2046, 4294901760
    %5410 = vmatpush1.msra.mxu0 %v5409
    %5411 = vmatprep.subr.mxu0 0.0
    %v5412 = vand.u32 %v2045, 4294901760
    %5413 = vmatpush1.msra.mxu0 %v5412
    %5414 = vmatprep.subr.mxu0 0.0
    %v5415 = vand.u32 %v2044, 4294901760
    %5416 = vmatpush1.msra.mxu0 %v5415
    %5417 = vmatprep.subr.mxu0 0.0
    %v5418 = vand.u32 %v2043, 4294901760
    %5419 = vmatpush1.msra.mxu0 %v5418
    %5420 = vmatprep.subr.mxu0 0.0
    %v5421 = vand.u32 %v2042, 4294901760
    %5422 = vmatpush1.msra.mxu0 %v5421
    %5423 = vmatprep.subr.mxu0 0.0
    %5424 = vmatpush2.msra.mxu0 0.0
    %5425 = vmatprep.subr.mxu0 0.0
    %5426 = vmatpush2.msra.mxu0 0.0
    %5427 = vmatprep.subr.mxu0 0.0
    %5428 = vmatpush2.msra.mxu0 0.0
    %5429 = vmatprep.subr.mxu0 0.0
    %5430 = vmatpush2.msra.mxu0 0.0
    %5431 = vmatprep.subr.mxu0 0.0
    %5432 = vmatpush2.msra.mxu0 0.0
    %5433 = vmatprep.subr.mxu0 0.0
    %5434 = vmatpush2.msra.mxu0 0.0
    %5435 = vmatprep.subr.mxu0 0.0
    %5436 = vmatpush2.msra.mxu0 0.0
    %5437 = vmatprep.subr.mxu0 0.0
    %5438 = vmatpush2.msra.mxu0 0.0
    %5439 = vmatprep.subr.mxu0 0.0
    %5440 = vmatpush2.msra.mxu0 0.0
    %5441 = vmatprep.subr.mxu0 0.0
    %5442 = vmatpush2.msra.mxu0 0.0
    %5443 = vmatprep.subr.mxu0 0.0
    %5444 = vmatpush2.msra.mxu0 0.0
    %5445 = vmatprep.subr.mxu0 0.0
    %5446 = vmatpush2.msra.mxu0 0.0
    %5447 = vmatprep.subr.mxu0 0.0
    %5448 = vmatpush2.msra.mxu0 0.0
    %5449 = vmatprep.subr.mxu0 0.0
    %5450 = vmatpush2.msra.mxu0 0.0
    %5451 = vmatprep.subr.mxu0 0.0
    %5452 = vmatpush2.msra.mxu0 0.0
    %5453 = vmatprep.subr.mxu0 0.0
    %5454 = vmatpush2.msra.mxu0 0.0
    %5455 = vmatprep.mubr.f32.mxu0 0.0
    %v5456 = vand.u32 %v4802, 4294901760
    %5457 = vmatmul.mubr.f32.gmra.mxu0 %v5456
    %v5458 = vpop.f32.mrf.mxu0
    %v5459 = vadd.f32 %v5368, %v5458
    %v5460 = vpop.f32.mrf.mxu0
    %5461 = vmatprep.mubr.f32.mxu0 0.0
    %v5462 = vand.u32 %v4805, 4294901760
    %5463 = vmatmul.mubr.f32.gmra.mxu0 %v5462
    %v5464 = vpop.f32.mrf.mxu0
    %v5465 = vadd.f32 %v5374, %v5464
    %v5466 = vpop.f32.mrf.mxu0
    %5467 = vdwg.mxu0
    %v5469 = vsel %vm1372, %v1298, 0
    %v5472 = vsel %vm1372, %v1304, 0
    %v5475 = vsel %vm1379, %v2752, 0
    %5477 = vmatprep.subr.mxu0 0.0
    %5478 = vmatpush1.msra.mxu0 0.0
    %5479 = vmatprep.subr.mxu0 0.0
    %5480 = vmatpush1.msra.mxu0 0.0
    %5481 = vmatprep.subr.mxu0 0.0
    %v5482 = vand.u32 %v5475, 4294901760
    %5483 = vmatpush1.msra.mxu0 %v5482
    %5484 = vmatprep.subr.mxu0 0.0
    %v5485 = vand.u32 %v2751, 4294901760
    %5486 = vmatpush1.msra.mxu0 %v5485
    %5487 = vmatprep.subr.mxu0 0.0
    %v5488 = vand.u32 %v2750, 4294901760
    %5489 = vmatpush1.msra.mxu0 %v5488
    %5490 = vmatprep.subr.mxu0 0.0
    %v5491 = vand.u32 %v2749, 4294901760
    %5492 = vmatpush1.msra.mxu0 %v5491
    %5493 = vmatprep.subr.mxu0 0.0
    %v5494 = vand.u32 %v2748, 4294901760
    %5495 = vmatpush1.msra.mxu0 %v5494
    %5496 = vmatprep.subr.mxu0 0.0
    %v5497 = vand.u32 %v2747, 4294901760
    %5498 = vmatpush1.msra.mxu0 %v5497
    %5499 = vmatprep.subr.mxu0 0.0
    %v5500 = vand.u32 %v2746, 4294901760
    %5501 = vmatpush1.msra.mxu0 %v5500
    %5502 = vmatprep.subr.mxu0 0.0
    %v5503 = vand.u32 %v2745, 4294901760
    %5504 = vmatpush1.msra.mxu0 %v5503
    %5505 = vmatprep.subr.mxu0 0.0
    %v5506 = vand.u32 %v2744, 4294901760
    %5507 = vmatpush1.msra.mxu0 %v5506
    %5508 = vmatprep.subr.mxu0 0.0
    %v5509 = vand.u32 %v2743, 4294901760
    %5510 = vmatpush1.msra.mxu0 %v5509
    %5511 = vmatprep.subr.mxu0 0.0
    %v5512 = vand.u32 %v2742, 4294901760
    %5513 = vmatpush1.msra.mxu0 %v5512
    %5514 = vmatprep.subr.mxu0 0.0
    %v5515 = vand.u32 %v2741, 4294901760
    %5516 = vmatpush1.msra.mxu0 %v5515
    %5517 = vmatprep.subr.mxu0 0.0
    %v5518 = vand.u32 %v2740, 4294901760
    %5519 = vmatpush1.msra.mxu0 %v5518
    %5520 = vmatprep.subr.mxu0 0.0
    %v5521 = vand.u32 %v2739, 4294901760
    %5522 = vmatpush1.msra.mxu0 %v5521
    %5523 = vmatprep.subr.mxu0 0.0
    %5524 = vmatpush2.msra.mxu0 0.0
    %5525 = vmatprep.subr.mxu0 0.0
    %5526 = vmatpush2.msra.mxu0 0.0
    %5527 = vmatprep.subr.mxu0 0.0
    %5528 = vmatpush2.msra.mxu0 0.0
    %5529 = vmatprep.subr.mxu0 0.0
    %5530 = vmatpush2.msra.mxu0 0.0
    %5531 = vmatprep.subr.mxu0 0.0
    %5532 = vmatpush2.msra.mxu0 0.0
    %5533 = vmatprep.subr.mxu0 0.0
    %5534 = vmatpush2.msra.mxu0 0.0
    %5535 = vmatprep.subr.mxu0 0.0
    %5536 = vmatpush2.msra.mxu0 0.0
    %5537 = vmatprep.subr.mxu0 0.0
    %5538 = vmatpush2.msra.mxu0 0.0
    %5539 = vmatprep.subr.mxu0 0.0
    %5540 = vmatpush2.msra.mxu0 0.0
    %5541 = vmatprep.subr.mxu0 0.0
    %5542 = vmatpush2.msra.mxu0 0.0
    %5543 = vmatprep.subr.mxu0 0.0
    %5544 = vmatpush2.msra.mxu0 0.0
    %5545 = vmatprep.subr.mxu0 0.0
    %5546 = vmatpush2.msra.mxu0 0.0
    %5547 = vmatprep.subr.mxu0 0.0
    %5548 = vmatpush2.msra.mxu0 0.0
    %5549 = vmatprep.subr.mxu0 0.0
    %5550 = vmatpush2.msra.mxu0 0.0
    %5551 = vmatprep.subr.mxu0 0.0
    %5552 = vmatpush2.msra.mxu0 0.0
    %5553 = vmatprep.subr.mxu0 0.0
    %5554 = vmatpush2.msra.mxu0 0.0
    %5555 = vmatprep.mubr.f32.mxu0 0.0
    %v5556 = vand.u32 %v5469, 4294901760
    %v5557 = vsub.f32 %v5469, %v5556
    %v5558 = vand.u32 %v5557, 4294901760
    %v5559 = vsub.f32 %v5557, %v5558
    %v5560 = vand.u32 %v5559, 4294901760
    %5561 = vmatmul.mubr.f32.gmra.mxu0 %v5560
    %v5562 = vpop.f32.mrf.mxu0
    %v5563 = vadd.f32 %v3426, %v5562
    %v5564 = vpop.f32.mrf.mxu0
    %5565 = vmatprep.mubr.f32.mxu0 0.0
    %v5566 = vand.u32 %v5472, 4294901760
    %v5567 = vsub.f32 %v5472, %v5566
    %v5568 = vand.u32 %v5567, 4294901760
    %v5569 = vsub.f32 %v5567, %v5568
    %v5570 = vand.u32 %v5569, 4294901760
    %5571 = vmatmul.mubr.f32.gmra.mxu0 %v5570
    %v5572 = vpop.f32.mrf.mxu0
    %v5573 = vadd.f32 %v3432, %v5572
    %v5574 = vpop.f32.mrf.mxu0
    %5575 = vdwg.mxu0
    %5576 = vmatprep.subr.mxu0 0.0
    %5577 = vmatpush1.msra.mxu0 0.0
    %5578 = vmatprep.subr.mxu0 0.0
    %5579 = vmatpush1.msra.mxu0 0.0
    %5580 = vmatprep.subr.mxu0 0.0
    %v5581 = vand.u32 %v5475, 4294901760
    %v5582 = vsub.f32 %v5475, %v5581
    %v5583 = vand.u32 %v5582, 4294901760
    %v5584 = vsub.f32 %v5582, %v5583
    %v5585 = vand.u32 %v5584, 4294901760
    %5586 = vmatpush1.msra.mxu0 %v5585
    %5587 = vmatprep.subr.mxu0 0.0
    %v5588 = vand.u32 %v2751, 4294901760
    %v5589 = vsub.f32 %v2751, %v5588
    %v5590 = vand.u32 %v5589, 4294901760
    %v5591 = vsub.f32 %v5589, %v5590
    %v5592 = vand.u32 %v5591, 4294901760
    %5593 = vmatpush1.msra.mxu0 %v5592
    %5594 = vmatprep.subr.mxu0 0.0
    %v5595 = vand.u32 %v2750, 4294901760
    %v5596 = vsub.f32 %v2750, %v5595
    %v5597 = vand.u32 %v5596, 4294901760
    %v5598 = vsub.f32 %v5596, %v5597
    %v5599 = vand.u32 %v5598, 4294901760
    %5600 = vmatpush1.msra.mxu0 %v5599
    %5601 = vmatprep.subr.mxu0 0.0
    %v5602 = vand.u32 %v2749, 4294901760
    %v5603 = vsub.f32 %v2749, %v5602
    %v5604 = vand.u32 %v5603, 4294901760
    %v5605 = vsub.f32 %v5603, %v5604
    %v5606 = vand.u32 %v5605, 4294901760
    %5607 = vmatpush1.msra.mxu0 %v5606
    %5608 = vmatprep.subr.mxu0 0.0
    %v5609 = vand.u32 %v2748, 4294901760
    %v5610 = vsub.f32 %v2748, %v5609
    %v5611 = vand.u32 %v5610, 4294901760
    %v5612 = vsub.f32 %v5610, %v5611
    %v5613 = vand.u32 %v5612, 4294901760
    %5614 = vmatpush1.msra.mxu0 %v5613
    %5615 = vmatprep.subr.mxu0 0.0
    %v5616 = vand.u32 %v2747, 4294901760
    %v5617 = vsub.f32 %v2747, %v5616
    %v5618 = vand.u32 %v5617, 4294901760
    %v5619 = vsub.f32 %v5617, %v5618
    %v5620 = vand.u32 %v5619, 4294901760
    %5621 = vmatpush1.msra.mxu0 %v5620
    %5622 = vmatprep.subr.mxu0 0.0
    %v5623 = vand.u32 %v2746, 4294901760
    %v5624 = vsub.f32 %v2746, %v5623
    %v5625 = vand.u32 %v5624, 4294901760
    %v5626 = vsub.f32 %v5624, %v5625
    %v5627 = vand.u32 %v5626, 4294901760
    %5628 = vmatpush1.msra.mxu0 %v5627
    %5629 = vmatprep.subr.mxu0 0.0
    %v5630 = vand.u32 %v2745, 4294901760
    %v5631 = vsub.f32 %v2745, %v5630
    %v5632 = vand.u32 %v5631, 4294901760
    %v5633 = vsub.f32 %v5631, %v5632
    %v5634 = vand.u32 %v5633, 4294901760
    %5635 = vmatpush1.msra.mxu0 %v5634
    %5636 = vmatprep.subr.mxu0 0.0
    %v5637 = vand.u32 %v2744, 4294901760
    %v5638 = vsub.f32 %v2744, %v5637
    %v5639 = vand.u32 %v5638, 4294901760
    %v5640 = vsub.f32 %v5638, %v5639
    %v5641 = vand.u32 %v5640, 4294901760
    %5642 = vmatpush1.msra.mxu0 %v5641
    %5643 = vmatprep.subr.mxu0 0.0
    %v5644 = vand.u32 %v2743, 4294901760
    %v5645 = vsub.f32 %v2743, %v5644
    %v5646 = vand.u32 %v5645, 4294901760
    %v5647 = vsub.f32 %v5645, %v5646
    %v5648 = vand.u32 %v5647, 4294901760
    %5649 = vmatpush1.msra.mxu0 %v5648
    %5650 = vmatprep.subr.mxu0 0.0
    %v5651 = vand.u32 %v2742, 4294901760
    %v5652 = vsub.f32 %v2742, %v5651
    %v5653 = vand.u32 %v5652, 4294901760
    %v5654 = vsub.f32 %v5652, %v5653
    %v5655 = vand.u32 %v5654, 4294901760
    %5656 = vmatpush1.msra.mxu0 %v5655
    %5657 = vmatprep.subr.mxu0 0.0
    %v5658 = vand.u32 %v2741, 4294901760
    %v5659 = vsub.f32 %v2741, %v5658
    %v5660 = vand.u32 %v5659, 4294901760
    %v5661 = vsub.f32 %v5659, %v5660
    %v5662 = vand.u32 %v5661, 4294901760
    %5663 = vmatpush1.msra.mxu0 %v5662
    %5664 = vmatprep.subr.mxu0 0.0
    %v5665 = vand.u32 %v2740, 4294901760
    %v5666 = vsub.f32 %v2740, %v5665
    %v5667 = vand.u32 %v5666, 4294901760
    %v5668 = vsub.f32 %v5666, %v5667
    %v5669 = vand.u32 %v5668, 4294901760
    %5670 = vmatpush1.msra.mxu0 %v5669
    %5671 = vmatprep.subr.mxu0 0.0
    %v5672 = vand.u32 %v2739, 4294901760
    %v5673 = vsub.f32 %v2739, %v5672
    %v5674 = vand.u32 %v5673, 4294901760
    %v5675 = vsub.f32 %v5673, %v5674
    %v5676 = vand.u32 %v5675, 4294901760
    %5677 = vmatpush1.msra.mxu0 %v5676
    %5678 = vmatprep.subr.mxu0 0.0
    %5679 = vmatpush2.msra.mxu0 0.0
    %5680 = vmatprep.subr.mxu0 0.0
    %5681 = vmatpush2.msra.mxu0 0.0
    %5682 = vmatprep.subr.mxu0 0.0
    %5683 = vmatpush2.msra.mxu0 0.0
    %5684 = vmatprep.subr.mxu0 0.0
    %5685 = vmatpush2.msra.mxu0 0.0
    %5686 = vmatprep.subr.mxu0 0.0
    %5687 = vmatpush2.msra.mxu0 0.0
    %5688 = vmatprep.subr.mxu0 0.0
    %5689 = vmatpush2.msra.mxu0 0.0
    %5690 = vmatprep.subr.mxu0 0.0
    %5691 = vmatpush2.msra.mxu0 0.0
    %5692 = vmatprep.subr.mxu0 0.0
    %5693 = vmatpush2.msra.mxu0 0.0
    %5694 = vmatprep.subr.mxu0 0.0
    %5695 = vmatpush2.msra.mxu0 0.0
    %5696 = vmatprep.subr.mxu0 0.0
    %5697 = vmatpush2.msra.mxu0 0.0
    %5698 = vmatprep.subr.mxu0 0.0
    %5699 = vmatpush2.msra.mxu0 0.0
    %5700 = vmatprep.subr.mxu0 0.0
    %5701 = vmatpush2.msra.mxu0 0.0
    %5702 = vmatprep.subr.mxu0 0.0
    %5703 = vmatpush2.msra.mxu0 0.0
    %5704 = vmatprep.subr.mxu0 0.0
    %5705 = vmatpush2.msra.mxu0 0.0
    %5706 = vmatprep.subr.mxu0 0.0
    %5707 = vmatpush2.msra.mxu0 0.0
    %5708 = vmatprep.subr.mxu0 0.0
    %5709 = vmatpush2.msra.mxu0 0.0
    %5710 = vmatprep.mubr.f32.mxu0 0.0
    %v5711 = vand.u32 %v5469, 4294901760
    %5712 = vmatmul.mubr.f32.gmra.mxu0 %v5711
    %v5713 = vpop.f32.mrf.mxu0
    %v5714 = vadd.f32 %v5563, %v5713
    %v5715 = vpop.f32.mrf.mxu0
    %5716 = vmatprep.mubr.f32.mxu0 0.0
    %v5717 = vand.u32 %v5472, 4294901760
    %5718 = vmatmul.mubr.f32.gmra.mxu0 %v5717
    %v5719 = vpop.f32.mrf.mxu0
    %v5720 = vadd.f32 %v5573, %v5719
    %v5721 = vpop.f32.mrf.mxu0
    %5722 = vdwg.mxu0
    %5723 = vmatprep.subr.mxu0 0.0
    %5724 = vmatpush1.msra.mxu0 0.0
    %5725 = vmatprep.subr.mxu0 0.0
    %5726 = vmatpush1.msra.mxu0 0.0
    %5727 = vmatprep.subr.mxu0 0.0
    %v5728 = vand.u32 %v5475, 4294901760
    %v5729 = vsub.f32 %v5475, %v5728
    %5730 = vmatpush1.msra.mxu0 %v5729
    %5731 = vmatprep.subr.mxu0 0.0
    %v5732 = vand.u32 %v2751, 4294901760
    %v5733 = vsub.f32 %v2751, %v5732
    %5734 = vmatpush1.msra.mxu0 %v5733
    %5735 = vmatprep.subr.mxu0 0.0
    %v5736 = vand.u32 %v2750, 4294901760
    %v5737 = vsub.f32 %v2750, %v5736
    %5738 = vmatpush1.msra.mxu0 %v5737
    %5739 = vmatprep.subr.mxu0 0.0
    %v5740 = vand.u32 %v2749, 4294901760
    %v5741 = vsub.f32 %v2749, %v5740
    %5742 = vmatpush1.msra.mxu0 %v5741
    %5743 = vmatprep.subr.mxu0 0.0
    %v5744 = vand.u32 %v2748, 4294901760
    %v5745 = vsub.f32 %v2748, %v5744
    %5746 = vmatpush1.msra.mxu0 %v5745
    %5747 = vmatprep.subr.mxu0 0.0
    %v5748 = vand.u32 %v2747, 4294901760
    %v5749 = vsub.f32 %v2747, %v5748
    %5750 = vmatpush1.msra.mxu0 %v5749
    %5751 = vmatprep.subr.mxu0 0.0
    %v5752 = vand.u32 %v2746, 4294901760
    %v5753 = vsub.f32 %v2746, %v5752
    %5754 = vmatpush1.msra.mxu0 %v5753
    %5755 = vmatprep.subr.mxu0 0.0
    %v5756 = vand.u32 %v2745, 4294901760
    %v5757 = vsub.f32 %v2745, %v5756
    %5758 = vmatpush1.msra.mxu0 %v5757
    %5759 = vmatprep.subr.mxu0 0.0
    %v5760 = vand.u32 %v2744, 4294901760
    %v5761 = vsub.f32 %v2744, %v5760
    %5762 = vmatpush1.msra.mxu0 %v5761
    %5763 = vmatprep.subr.mxu0 0.0
    %v5764 = vand.u32 %v2743, 4294901760
    %v5765 = vsub.f32 %v2743, %v5764
    %5766 = vmatpush1.msra.mxu0 %v5765
    %5767 = vmatprep.subr.mxu0 0.0
    %v5768 = vand.u32 %v2742, 4294901760
    %v5769 = vsub.f32 %v2742, %v5768
    %5770 = vmatpush1.msra.mxu0 %v5769
    %5771 = vmatprep.subr.mxu0 0.0
    %v5772 = vand.u32 %v2741, 4294901760
    %v5773 = vsub.f32 %v2741, %v5772
    %5774 = vmatpush1.msra.mxu0 %v5773
    %5775 = vmatprep.subr.mxu0 0.0
    %v5776 = vand.u32 %v2740, 4294901760
    %v5777 = vsub.f32 %v2740, %v5776
    %5778 = vmatpush1.msra.mxu0 %v5777
    %5779 = vmatprep.subr.mxu0 0.0
    %v5780 = vand.u32 %v2739, 4294901760
    %v5781 = vsub.f32 %v2739, %v5780
    %5782 = vmatpush1.msra.mxu0 %v5781
    %5783 = vmatprep.subr.mxu0 0.0
    %5784 = vmatpush2.msra.mxu0 0.0
    %5785 = vmatprep.subr.mxu0 0.0
    %5786 = vmatpush2.msra.mxu0 0.0
    %5787 = vmatprep.subr.mxu0 0.0
    %5788 = vmatpush2.msra.mxu0 0.0
    %5789 = vmatprep.subr.mxu0 0.0
    %5790 = vmatpush2.msra.mxu0 0.0
    %5791 = vmatprep.subr.mxu0 0.0
    %5792 = vmatpush2.msra.mxu0 0.0
    %5793 = vmatprep.subr.mxu0 0.0
    %5794 = vmatpush2.msra.mxu0 0.0
    %5795 = vmatprep.subr.mxu0 0.0
    %5796 = vmatpush2.msra.mxu0 0.0
    %5797 = vmatprep.subr.mxu0 0.0
    %5798 = vmatpush2.msra.mxu0 0.0
    %5799 = vmatprep.subr.mxu0 0.0
    %5800 = vmatpush2.msra.mxu0 0.0
    %5801 = vmatprep.subr.mxu0 0.0
    %5802 = vmatpush2.msra.mxu0 0.0
    %5803 = vmatprep.subr.mxu0 0.0
    %5804 = vmatpush2.msra.mxu0 0.0
    %5805 = vmatprep.subr.mxu0 0.0
    %5806 = vmatpush2.msra.mxu0 0.0
    %5807 = vmatprep.subr.mxu0 0.0
    %5808 = vmatpush2.msra.mxu0 0.0
    %5809 = vmatprep.subr.mxu0 0.0
    %5810 = vmatpush2.msra.mxu0 0.0
    %5811 = vmatprep.subr.mxu0 0.0
    %5812 = vmatpush2.msra.mxu0 0.0
    %5813 = vmatprep.subr.mxu0 0.0
    %5814 = vmatpush2.msra.mxu0 0.0
    %5815 = vmatprep.mubr.f32.mxu0 0.0
    %v5816 = vand.u32 %v5469, 4294901760
    %v5817 = vsub.f32 %v5469, %v5816
    %5818 = vmatmul.mubr.f32.gmra.mxu0 %v5817
    %v5819 = vpop.f32.mrf.mxu0
    %v5820 = vadd.f32 %v5714, %v5819
    %v5821 = vpop.f32.mrf.mxu0
    %5822 = vmatprep.mubr.f32.mxu0 0.0
    %v5823 = vand.u32 %v5472, 4294901760
    %v5824 = vsub.f32 %v5472, %v5823
    %5825 = vmatmul.mubr.f32.gmra.mxu0 %v5824
    %v5826 = vpop.f32.mrf.mxu0
    %v5827 = vadd.f32 %v5720, %v5826
    %v5828 = vpop.f32.mrf.mxu0
    %5829 = vdwg.mxu0
    %5830 = vmatprep.subr.mxu0 0.0
    %5831 = vmatpush1.msra.mxu0 0.0
    %5832 = vmatprep.subr.mxu0 0.0
    %5833 = vmatpush1.msra.mxu0 0.0
    %5834 = vmatprep.subr.mxu0 0.0
    %v5835 = vand.u32 %v5475, 4294901760
    %5836 = vmatpush1.msra.mxu0 %v5835
    %5837 = vmatprep.subr.mxu0 0.0
    %v5838 = vand.u32 %v2751, 4294901760
    %5839 = vmatpush1.msra.mxu0 %v5838
    %5840 = vmatprep.subr.mxu0 0.0
    %v5841 = vand.u32 %v2750, 4294901760
    %5842 = vmatpush1.msra.mxu0 %v5841
    %5843 = vmatprep.subr.mxu0 0.0
    %v5844 = vand.u32 %v2749, 4294901760
    %5845 = vmatpush1.msra.mxu0 %v5844
    %5846 = vmatprep.subr.mxu0 0.0
    %v5847 = vand.u32 %v2748, 4294901760
    %5848 = vmatpush1.msra.mxu0 %v5847
    %5849 = vmatprep.subr.mxu0 0.0
    %v5850 = vand.u32 %v2747, 4294901760
    %5851 = vmatpush1.msra.mxu0 %v5850
    %5852 = vmatprep.subr.mxu0 0.0
    %v5853 = vand.u32 %v2746, 4294901760
    %5854 = vmatpush1.msra.mxu0 %v5853
    %5855 = vmatprep.subr.mxu0 0.0
    %v5856 = vand.u32 %v2745, 4294901760
    %5857 = vmatpush1.msra.mxu0 %v5856
    %5858 = vmatprep.subr.mxu0 0.0
    %v5859 = vand.u32 %v2744, 4294901760
    %5860 = vmatpush1.msra.mxu0 %v5859
    %5861 = vmatprep.subr.mxu0 0.0
    %v5862 = vand.u32 %v2743, 4294901760
    %5863 = vmatpush1.msra.mxu0 %v5862
    %5864 = vmatprep.subr.mxu0 0.0
    %v5865 = vand.u32 %v2742, 4294901760
    %5866 = vmatpush1.msra.mxu0 %v5865
    %5867 = vmatprep.subr.mxu0 0.0
    %v5868 = vand.u32 %v2741, 4294901760
    %5869 = vmatpush1.msra.mxu0 %v5868
    %5870 = vmatprep.subr.mxu0 0.0
    %v5871 = vand.u32 %v2740, 4294901760
    %5872 = vmatpush1.msra.mxu0 %v5871
    %5873 = vmatprep.subr.mxu0 0.0
    %v5874 = vand.u32 %v2739, 4294901760
    %5875 = vmatpush1.msra.mxu0 %v5874
    %5876 = vmatprep.subr.mxu0 0.0
    %5877 = vmatpush2.msra.mxu0 0.0
    %5878 = vmatprep.subr.mxu0 0.0
    %5879 = vmatpush2.msra.mxu0 0.0
    %5880 = vmatprep.subr.mxu0 0.0
    %5881 = vmatpush2.msra.mxu0 0.0
    %5882 = vmatprep.subr.mxu0 0.0
    %5883 = vmatpush2.msra.mxu0 0.0
    %5884 = vmatprep.subr.mxu0 0.0
    %5885 = vmatpush2.msra.mxu0 0.0
    %5886 = vmatprep.subr.mxu0 0.0
    %5887 = vmatpush2.msra.mxu0 0.0
    %5888 = vmatprep.subr.mxu0 0.0
    %5889 = vmatpush2.msra.mxu0 0.0
    %5890 = vmatprep.subr.mxu0 0.0
    %5891 = vmatpush2.msra.mxu0 0.0
    %5892 = vmatprep.subr.mxu0 0.0
    %5893 = vmatpush2.msra.mxu0 0.0
    %5894 = vmatprep.subr.mxu0 0.0
    %5895 = vmatpush2.msra.mxu0 0.0
    %5896 = vmatprep.subr.mxu0 0.0
    %5897 = vmatpush2.msra.mxu0 0.0
    %5898 = vmatprep.subr.mxu0 0.0
    %5899 = vmatpush2.msra.mxu0 0.0
    %5900 = vmatprep.subr.mxu0 0.0
    %5901 = vmatpush2.msra.mxu0 0.0
    %5902 = vmatprep.subr.mxu0 0.0
    %5903 = vmatpush2.msra.mxu0 0.0
    %5904 = vmatprep.subr.mxu0 0.0
    %5905 = vmatpush2.msra.mxu0 0.0
    %5906 = vmatprep.subr.mxu0 0.0
    %5907 = vmatpush2.msra.mxu0 0.0
    %5908 = vmatprep.mubr.f32.mxu0 0.0
    %v5909 = vand.u32 %v5469, 4294901760
    %v5910 = vsub.f32 %v5469, %v5909
    %v5911 = vand.u32 %v5910, 4294901760
    %5912 = vmatmul.mubr.f32.gmra.mxu0 %v5911
    %v5913 = vpop.f32.mrf.mxu0
    %v5914 = vadd.f32 %v5820, %v5913
    %v5915 = vpop.f32.mrf.mxu0
    %5916 = vmatprep.mubr.f32.mxu0 0.0
    %v5917 = vand.u32 %v5472, 4294901760
    %v5918 = vsub.f32 %v5472, %v5917
    %v5919 = vand.u32 %v5918, 4294901760
    %5920 = vmatmul.mubr.f32.gmra.mxu0 %v5919
    %v5921 = vpop.f32.mrf.mxu0
    %v5922 = vadd.f32 %v5827, %v5921
    %v5923 = vpop.f32.mrf.mxu0
    %5924 = vdwg.mxu0
    %5925 = vmatprep.subr.mxu0 0.0
    %5926 = vmatpush1.msra.mxu0 0.0
    %5927 = vmatprep.subr.mxu0 0.0
    %5928 = vmatpush1.msra.mxu0 0.0
    %5929 = vmatprep.subr.mxu0 0.0
    %v5930 = vand.u32 %v5475, 4294901760
    %v5931 = vsub.f32 %v5475, %v5930
    %v5932 = vand.u32 %v5931, 4294901760
    %5933 = vmatpush1.msra.mxu0 %v5932
    %5934 = vmatprep.subr.mxu0 0.0
    %v5935 = vand.u32 %v2751, 4294901760
    %v5936 = vsub.f32 %v2751, %v5935
    %v5937 = vand.u32 %v5936, 4294901760
    %5938 = vmatpush1.msra.mxu0 %v5937
    %5939 = vmatprep.subr.mxu0 0.0
    %v5940 = vand.u32 %v2750, 4294901760
    %v5941 = vsub.f32 %v2750, %v5940
    %v5942 = vand.u32 %v5941, 4294901760
    %5943 = vmatpush1.msra.mxu0 %v5942
    %5944 = vmatprep.subr.mxu0 0.0
    %v5945 = vand.u32 %v2749, 4294901760
    %v5946 = vsub.f32 %v2749, %v5945
    %v5947 = vand.u32 %v5946, 4294901760
    %5948 = vmatpush1.msra.mxu0 %v5947
    %5949 = vmatprep.subr.mxu0 0.0
    %v5950 = vand.u32 %v2748, 4294901760
    %v5951 = vsub.f32 %v2748, %v5950
    %v5952 = vand.u32 %v5951, 4294901760
    %5953 = vmatpush1.msra.mxu0 %v5952
    %5954 = vmatprep.subr.mxu0 0.0
    %v5955 = vand.u32 %v2747, 4294901760
    %v5956 = vsub.f32 %v2747, %v5955
    %v5957 = vand.u32 %v5956, 4294901760
    %5958 = vmatpush1.msra.mxu0 %v5957
    %5959 = vmatprep.subr.mxu0 0.0
    %v5960 = vand.u32 %v2746, 4294901760
    %v5961 = vsub.f32 %v2746, %v5960
    %v5962 = vand.u32 %v5961, 4294901760
    %5963 = vmatpush1.msra.mxu0 %v5962
    %5964 = vmatprep.subr.mxu0 0.0
    %v5965 = vand.u32 %v2745, 4294901760
    %v5966 = vsub.f32 %v2745, %v5965
    %v5967 = vand.u32 %v5966, 4294901760
    %5968 = vmatpush1.msra.mxu0 %v5967
    %5969 = vmatprep.subr.mxu0 0.0
    %v5970 = vand.u32 %v2744, 4294901760
    %v5971 = vsub.f32 %v2744, %v5970
    %v5972 = vand.u32 %v5971, 4294901760
    %5973 = vmatpush1.msra.mxu0 %v5972
    %5974 = vmatprep.subr.mxu0 0.0
    %v5975 = vand.u32 %v2743, 4294901760
    %v5976 = vsub.f32 %v2743, %v5975
    %v5977 = vand.u32 %v5976, 4294901760
    %5978 = vmatpush1.msra.mxu0 %v5977
    %5979 = vmatprep.subr.mxu0 0.0
    %v5980 = vand.u32 %v2742, 4294901760
    %v5981 = vsub.f32 %v2742, %v5980
    %v5982 = vand.u32 %v5981, 4294901760
    %5983 = vmatpush1.msra.mxu0 %v5982
    %5984 = vmatprep.subr.mxu0 0.0
    %v5985 = vand.u32 %v2741, 4294901760
    %v5986 = vsub.f32 %v2741, %v5985
    %v5987 = vand.u32 %v5986, 4294901760
    %5988 = vmatpush1.msra.mxu0 %v5987
    %5989 = vmatprep.subr.mxu0 0.0
    %v5990 = vand.u32 %v2740, 4294901760
    %v5991 = vsub.f32 %v2740, %v5990
    %v5992 = vand.u32 %v5991, 4294901760
    %5993 = vmatpush1.msra.mxu0 %v5992
    %5994 = vmatprep.subr.mxu0 0.0
    %v5995 = vand.u32 %v2739, 4294901760
    %v5996 = vsub.f32 %v2739, %v5995
    %v5997 = vand.u32 %v5996, 4294901760
    %5998 = vmatpush1.msra.mxu0 %v5997
    %5999 = vmatprep.subr.mxu0 0.0
    %6000 = vmatpush2.msra.mxu0 0.0
    %6001 = vmatprep.subr.mxu0 0.0
    %6002 = vmatpush2.msra.mxu0 0.0
    %6003 = vmatprep.subr.mxu0 0.0
    %6004 = vmatpush2.msra.mxu0 0.0
    %6005 = vmatprep.subr.mxu0 0.0
    %6006 = vmatpush2.msra.mxu0 0.0
    %6007 = vmatprep.subr.mxu0 0.0
    %6008 = vmatpush2.msra.mxu0 0.0
    %6009 = vmatprep.subr.mxu0 0.0
    %6010 = vmatpush2.msra.mxu0 0.0
    %6011 = vmatprep.subr.mxu0 0.0
    %6012 = vmatpush2.msra.mxu0 0.0
    %6013 = vmatprep.subr.mxu0 0.0
    %6014 = vmatpush2.msra.mxu0 0.0
    %6015 = vmatprep.subr.mxu0 0.0
    %6016 = vmatpush2.msra.mxu0 0.0
    %6017 = vmatprep.subr.mxu0 0.0
    %6018 = vmatpush2.msra.mxu0 0.0
    %6019 = vmatprep.subr.mxu0 0.0
    %6020 = vmatpush2.msra.mxu0 0.0
    %6021 = vmatprep.subr.mxu0 0.0
    %6022 = vmatpush2.msra.mxu0 0.0
    %6023 = vmatprep.subr.mxu0 0.0
    %6024 = vmatpush2.msra.mxu0 0.0
    %6025 = vmatprep.subr.mxu0 0.0
    %6026 = vmatpush2.msra.mxu0 0.0
    %6027 = vmatprep.subr.mxu0 0.0
    %6028 = vmatpush2.msra.mxu0 0.0
    %6029 = vmatprep.subr.mxu0 0.0
    %6030 = vmatpush2.msra.mxu0 0.0
    %6031 = vmatprep.mubr.f32.mxu0 0.0
    %v6032 = vand.u32 %v5469, 4294901760
    %6033 = vmatmul.mubr.f32.gmra.mxu0 %v6032
    %v6034 = vpop.f32.mrf.mxu0
    %v6035 = vadd.f32 %v5914, %v6034
    %v6036 = vpop.f32.mrf.mxu0
    %6037 = vmatprep.mubr.f32.mxu0 0.0
    %v6038 = vand.u32 %v5472, 4294901760
    %6039 = vmatmul.mubr.f32.gmra.mxu0 %v6038
    %v6040 = vpop.f32.mrf.mxu0
    %v6041 = vadd.f32 %v5922, %v6040
    %v6042 = vpop.f32.mrf.mxu0
    %6043 = vdwg.mxu0
    %6044 = vmatprep.subr.mxu0 0.0
    %6045 = vmatpush1.msra.mxu0 0.0
    %6046 = vmatprep.subr.mxu0 0.0
    %6047 = vmatpush1.msra.mxu0 0.0
    %6048 = vmatprep.subr.mxu0 0.0
    %v6049 = vand.u32 %v5475, 4294901760
    %6050 = vmatpush1.msra.mxu0 %v6049
    %6051 = vmatprep.subr.mxu0 0.0
    %v6052 = vand.u32 %v2751, 4294901760
    %6053 = vmatpush1.msra.mxu0 %v6052
    %6054 = vmatprep.subr.mxu0 0.0
    %v6055 = vand.u32 %v2750, 4294901760
    %6056 = vmatpush1.msra.mxu0 %v6055
    %6057 = vmatprep.subr.mxu0 0.0
    %v6058 = vand.u32 %v2749, 4294901760
    %6059 = vmatpush1.msra.mxu0 %v6058
    %6060 = vmatprep.subr.mxu0 0.0
    %v6061 = vand.u32 %v2748, 4294901760
    %6062 = vmatpush1.msra.mxu0 %v6061
    %6063 = vmatprep.subr.mxu0 0.0
    %v6064 = vand.u32 %v2747, 4294901760
    %6065 = vmatpush1.msra.mxu0 %v6064
    %6066 = vmatprep.subr.mxu0 0.0
    %v6067 = vand.u32 %v2746, 4294901760
    %6068 = vmatpush1.msra.mxu0 %v6067
    %6069 = vmatprep.subr.mxu0 0.0
    %v6070 = vand.u32 %v2745, 4294901760
    %6071 = vmatpush1.msra.mxu0 %v6070
    %6072 = vmatprep.subr.mxu0 0.0
    %v6073 = vand.u32 %v2744, 4294901760
    %6074 = vmatpush1.msra.mxu0 %v6073
    %6075 = vmatprep.subr.mxu0 0.0
    %v6076 = vand.u32 %v2743, 4294901760
    %6077 = vmatpush1.msra.mxu0 %v6076
    %6078 = vmatprep.subr.mxu0 0.0
    %v6079 = vand.u32 %v2742, 4294901760
    %6080 = vmatpush1.msra.mxu0 %v6079
    %6081 = vmatprep.subr.mxu0 0.0
    %v6082 = vand.u32 %v2741, 4294901760
    %6083 = vmatpush1.msra.mxu0 %v6082
    %6084 = vmatprep.subr.mxu0 0.0
    %v6085 = vand.u32 %v2740, 4294901760
    %6086 = vmatpush1.msra.mxu0 %v6085
    %6087 = vmatprep.subr.mxu0 0.0
    %v6088 = vand.u32 %v2739, 4294901760
    %6089 = vmatpush1.msra.mxu0 %v6088
    %6090 = vmatprep.subr.mxu0 0.0
    %6091 = vmatpush2.msra.mxu0 0.0
    %6092 = vmatprep.subr.mxu0 0.0
    %6093 = vmatpush2.msra.mxu0 0.0
    %6094 = vmatprep.subr.mxu0 0.0
    %6095 = vmatpush2.msra.mxu0 0.0
    %6096 = vmatprep.subr.mxu0 0.0
    %6097 = vmatpush2.msra.mxu0 0.0
    %6098 = vmatprep.subr.mxu0 0.0
    %6099 = vmatpush2.msra.mxu0 0.0
    %6100 = vmatprep.subr.mxu0 0.0
    %6101 = vmatpush2.msra.mxu0 0.0
    %6102 = vmatprep.subr.mxu0 0.0
    %6103 = vmatpush2.msra.mxu0 0.0
    %6104 = vmatprep.subr.mxu0 0.0
    %6105 = vmatpush2.msra.mxu0 0.0
    %6106 = vmatprep.subr.mxu0 0.0
    %6107 = vmatpush2.msra.mxu0 0.0
    %6108 = vmatprep.subr.mxu0 0.0
    %6109 = vmatpush2.msra.mxu0 0.0
    %6110 = vmatprep.subr.mxu0 0.0
    %6111 = vmatpush2.msra.mxu0 0.0
    %6112 = vmatprep.subr.mxu0 0.0
    %6113 = vmatpush2.msra.mxu0 0.0
    %6114 = vmatprep.subr.mxu0 0.0
    %6115 = vmatpush2.msra.mxu0 0.0
    %6116 = vmatprep.subr.mxu0 0.0
    %6117 = vmatpush2.msra.mxu0 0.0
    %6118 = vmatprep.subr.mxu0 0.0
    %6119 = vmatpush2.msra.mxu0 0.0
    %6120 = vmatprep.subr.mxu0 0.0
    %6121 = vmatpush2.msra.mxu0 0.0
    %6122 = vmatprep.mubr.f32.mxu0 0.0
    %v6123 = vand.u32 %v5469, 4294901760
    %6124 = vmatmul.mubr.f32.gmra.mxu0 %v6123
    %v6125 = vpop.f32.mrf.mxu0
    %v6126 = vadd.f32 %v6035, %v6125
    %v6127 = vpop.f32.mrf.mxu0
    %6128 = vmatprep.mubr.f32.mxu0 0.0
    %v6129 = vand.u32 %v5472, 4294901760
    %6130 = vmatmul.mubr.f32.gmra.mxu0 %v6129
    %v6131 = vpop.f32.mrf.mxu0
    %v6132 = vadd.f32 %v6041, %v6131
    %v6133 = vpop.f32.mrf.mxu0
    %6134 = vdwg.mxu0
    %v6136 = vsel %vm1372, %v1322, 0
    %v6139 = vsel %vm1372, %v1328, 0
    %v6142 = vsel %vm1379, %v3449, 0
    %6144 = vmatprep.subr.mxu0 0.0
    %6145 = vmatpush1.msra.mxu0 0.0
    %6146 = vmatprep.subr.mxu0 0.0
    %6147 = vmatpush1.msra.mxu0 0.0
    %6148 = vmatprep.subr.mxu0 0.0
    %v6149 = vand.u32 %v6142, 4294901760
    %6150 = vmatpush1.msra.mxu0 %v6149
    %6151 = vmatprep.subr.mxu0 0.0
    %v6152 = vand.u32 %v3448, 4294901760
    %6153 = vmatpush1.msra.mxu0 %v6152
    %6154 = vmatprep.subr.mxu0 0.0
    %v6155 = vand.u32 %v3447, 4294901760
    %6156 = vmatpush1.msra.mxu0 %v6155
    %6157 = vmatprep.subr.mxu0 0.0
    %v6158 = vand.u32 %v3446, 4294901760
    %6159 = vmatpush1.msra.mxu0 %v6158
    %6160 = vmatprep.subr.mxu0 0.0
    %v6161 = vand.u32 %v3445, 4294901760
    %6162 = vmatpush1.msra.mxu0 %v6161
    %6163 = vmatprep.subr.mxu0 0.0
    %v6164 = vand.u32 %v3444, 4294901760
    %6165 = vmatpush1.msra.mxu0 %v6164
    %6166 = vmatprep.subr.mxu0 0.0
    %v6167 = vand.u32 %v3443, 4294901760
    %6168 = vmatpush1.msra.mxu0 %v6167
    %6169 = vmatprep.subr.mxu0 0.0
    %v6170 = vand.u32 %v3442, 4294901760
    %6171 = vmatpush1.msra.mxu0 %v6170
    %6172 = vmatprep.subr.mxu0 0.0
    %v6173 = vand.u32 %v3441, 4294901760
    %6174 = vmatpush1.msra.mxu0 %v6173
    %6175 = vmatprep.subr.mxu0 0.0
    %v6176 = vand.u32 %v3440, 4294901760
    %6177 = vmatpush1.msra.mxu0 %v6176
    %6178 = vmatprep.subr.mxu0 0.0
    %v6179 = vand.u32 %v3439, 4294901760
    %6180 = vmatpush1.msra.mxu0 %v6179
    %6181 = vmatprep.subr.mxu0 0.0
    %v6182 = vand.u32 %v3438, 4294901760
    %6183 = vmatpush1.msra.mxu0 %v6182
    %6184 = vmatprep.subr.mxu0 0.0
    %v6185 = vand.u32 %v3437, 4294901760
    %6186 = vmatpush1.msra.mxu0 %v6185
    %6187 = vmatprep.subr.mxu0 0.0
    %v6188 = vand.u32 %v3436, 4294901760
    %6189 = vmatpush1.msra.mxu0 %v6188
    %6190 = vmatprep.subr.mxu0 0.0
    %6191 = vmatpush2.msra.mxu0 0.0
    %6192 = vmatprep.subr.mxu0 0.0
    %6193 = vmatpush2.msra.mxu0 0.0
    %6194 = vmatprep.subr.mxu0 0.0
    %6195 = vmatpush2.msra.mxu0 0.0
    %6196 = vmatprep.subr.mxu0 0.0
    %6197 = vmatpush2.msra.mxu0 0.0
    %6198 = vmatprep.subr.mxu0 0.0
    %6199 = vmatpush2.msra.mxu0 0.0
    %6200 = vmatprep.subr.mxu0 0.0
    %6201 = vmatpush2.msra.mxu0 0.0
    %6202 = vmatprep.subr.mxu0 0.0
    %6203 = vmatpush2.msra.mxu0 0.0
    %6204 = vmatprep.subr.mxu0 0.0
    %6205 = vmatpush2.msra.mxu0 0.0
    %6206 = vmatprep.subr.mxu0 0.0
    %6207 = vmatpush2.msra.mxu0 0.0
    %6208 = vmatprep.subr.mxu0 0.0
    %6209 = vmatpush2.msra.mxu0 0.0
    %6210 = vmatprep.subr.mxu0 0.0
    %6211 = vmatpush2.msra.mxu0 0.0
    %6212 = vmatprep.subr.mxu0 0.0
    %6213 = vmatpush2.msra.mxu0 0.0
    %6214 = vmatprep.subr.mxu0 0.0
    %6215 = vmatpush2.msra.mxu0 0.0
    %6216 = vmatprep.subr.mxu0 0.0
    %6217 = vmatpush2.msra.mxu0 0.0
    %6218 = vmatprep.subr.mxu0 0.0
    %6219 = vmatpush2.msra.mxu0 0.0
    %6220 = vmatprep.subr.mxu0 0.0
    %6221 = vmatpush2.msra.mxu0 0.0
    %6222 = vmatprep.mubr.f32.mxu0 0.0
    %v6223 = vand.u32 %v6136, 4294901760
    %v6224 = vsub.f32 %v6136, %v6223
    %v6225 = vand.u32 %v6224, 4294901760
    %v6226 = vsub.f32 %v6224, %v6225
    %v6227 = vand.u32 %v6226, 4294901760
    %6228 = vmatmul.mubr.f32.gmra.mxu0 %v6227
    %v6229 = vpop.f32.mrf.mxu0
    %v6230 = vadd.f32 %v4123, %v6229
    %v6231 = vpop.f32.mrf.mxu0
    %6232 = vmatprep.mubr.f32.mxu0 0.0
    %v6233 = vand.u32 %v6139, 4294901760
    %v6234 = vsub.f32 %v6139, %v6233
    %v6235 = vand.u32 %v6234, 4294901760
    %v6236 = vsub.f32 %v6234, %v6235
    %v6237 = vand.u32 %v6236, 4294901760
    %6238 = vmatmul.mubr.f32.gmra.mxu0 %v6237
    %v6239 = vpop.f32.mrf.mxu0
    %v6240 = vadd.f32 %v4129, %v6239
    %v6241 = vpop.f32.mrf.mxu0
    %6242 = vdwg.mxu0
    %6243 = vmatprep.subr.mxu0 0.0
    %6244 = vmatpush1.msra.mxu0 0.0
    %6245 = vmatprep.subr.mxu0 0.0
    %6246 = vmatpush1.msra.mxu0 0.0
    %6247 = vmatprep.subr.mxu0 0.0
    %v6248 = vand.u32 %v6142, 4294901760
    %v6249 = vsub.f32 %v6142, %v6248
    %v6250 = vand.u32 %v6249, 4294901760
    %v6251 = vsub.f32 %v6249, %v6250
    %v6252 = vand.u32 %v6251, 4294901760
    %6253 = vmatpush1.msra.mxu0 %v6252
    %6254 = vmatprep.subr.mxu0 0.0
    %v6255 = vand.u32 %v3448, 4294901760
    %v6256 = vsub.f32 %v3448, %v6255
    %v6257 = vand.u32 %v6256, 4294901760
    %v6258 = vsub.f32 %v6256, %v6257
    %v6259 = vand.u32 %v6258, 4294901760
    %6260 = vmatpush1.msra.mxu0 %v6259
    %6261 = vmatprep.subr.mxu0 0.0
    %v6262 = vand.u32 %v3447, 4294901760
    %v6263 = vsub.f32 %v3447, %v6262
    %v6264 = vand.u32 %v6263, 4294901760
    %v6265 = vsub.f32 %v6263, %v6264
    %v6266 = vand.u32 %v6265, 4294901760
    %6267 = vmatpush1.msra.mxu0 %v6266
    %6268 = vmatprep.subr.mxu0 0.0
    %v6269 = vand.u32 %v3446, 4294901760
    %v6270 = vsub.f32 %v3446, %v6269
    %v6271 = vand.u32 %v6270, 4294901760
    %v6272 = vsub.f32 %v6270, %v6271
    %v6273 = vand.u32 %v6272, 4294901760
    %6274 = vmatpush1.msra.mxu0 %v6273
    %6275 = vmatprep.subr.mxu0 0.0
    %v6276 = vand.u32 %v3445, 4294901760
    %v6277 = vsub.f32 %v3445, %v6276
    %v6278 = vand.u32 %v6277, 4294901760
    %v6279 = vsub.f32 %v6277, %v6278
    %v6280 = vand.u32 %v6279, 4294901760
    %6281 = vmatpush1.msra.mxu0 %v6280
    %6282 = vmatprep.subr.mxu0 0.0
    %v6283 = vand.u32 %v3444, 4294901760
    %v6284 = vsub.f32 %v3444, %v6283
    %v6285 = vand.u32 %v6284, 4294901760
    %v6286 = vsub.f32 %v6284, %v6285
    %v6287 = vand.u32 %v6286, 4294901760
    %6288 = vmatpush1.msra.mxu0 %v6287
    %6289 = vmatprep.subr.mxu0 0.0
    %v6290 = vand.u32 %v3443, 4294901760
    %v6291 = vsub.f32 %v3443, %v6290
    %v6292 = vand.u32 %v6291, 4294901760
    %v6293 = vsub.f32 %v6291, %v6292
    %v6294 = vand.u32 %v6293, 4294901760
    %6295 = vmatpush1.msra.mxu0 %v6294
    %6296 = vmatprep.subr.mxu0 0.0
    %v6297 = vand.u32 %v3442, 4294901760
    %v6298 = vsub.f32 %v3442, %v6297
    %v6299 = vand.u32 %v6298, 4294901760
    %v6300 = vsub.f32 %v6298, %v6299
    %v6301 = vand.u32 %v6300, 4294901760
    %6302 = vmatpush1.msra.mxu0 %v6301
    %6303 = vmatprep.subr.mxu0 0.0
    %v6304 = vand.u32 %v3441, 4294901760
    %v6305 = vsub.f32 %v3441, %v6304
    %v6306 = vand.u32 %v6305, 4294901760
    %v6307 = vsub.f32 %v6305, %v6306
    %v6308 = vand.u32 %v6307, 4294901760
    %6309 = vmatpush1.msra.mxu0 %v6308
    %6310 = vmatprep.subr.mxu0 0.0
    %v6311 = vand.u32 %v3440, 4294901760
    %v6312 = vsub.f32 %v3440, %v6311
    %v6313 = vand.u32 %v6312, 4294901760
    %v6314 = vsub.f32 %v6312, %v6313
    %v6315 = vand.u32 %v6314, 4294901760
    %6316 = vmatpush1.msra.mxu0 %v6315
    %6317 = vmatprep.subr.mxu0 0.0
    %v6318 = vand.u32 %v3439, 4294901760
    %v6319 = vsub.f32 %v3439, %v6318
    %v6320 = vand.u32 %v6319, 4294901760
    %v6321 = vsub.f32 %v6319, %v6320
    %v6322 = vand.u32 %v6321, 4294901760
    %6323 = vmatpush1.msra.mxu0 %v6322
    %6324 = vmatprep.subr.mxu0 0.0
    %v6325 = vand.u32 %v3438, 4294901760
    %v6326 = vsub.f32 %v3438, %v6325
    %v6327 = vand.u32 %v6326, 4294901760
    %v6328 = vsub.f32 %v6326, %v6327
    %v6329 = vand.u32 %v6328, 4294901760
    %6330 = vmatpush1.msra.mxu0 %v6329
    %6331 = vmatprep.subr.mxu0 0.0
    %v6332 = vand.u32 %v3437, 4294901760
    %v6333 = vsub.f32 %v3437, %v6332
    %v6334 = vand.u32 %v6333, 4294901760
    %v6335 = vsub.f32 %v6333, %v6334
    %v6336 = vand.u32 %v6335, 4294901760
    %6337 = vmatpush1.msra.mxu0 %v6336
    %6338 = vmatprep.subr.mxu0 0.0
    %v6339 = vand.u32 %v3436, 4294901760
    %v6340 = vsub.f32 %v3436, %v6339
    %v6341 = vand.u32 %v6340, 4294901760
    %v6342 = vsub.f32 %v6340, %v6341
    %v6343 = vand.u32 %v6342, 4294901760
    %6344 = vmatpush1.msra.mxu0 %v6343
    %6345 = vmatprep.subr.mxu0 0.0
    %6346 = vmatpush2.msra.mxu0 0.0
    %6347 = vmatprep.subr.mxu0 0.0
    %6348 = vmatpush2.msra.mxu0 0.0
    %6349 = vmatprep.subr.mxu0 0.0
    %6350 = vmatpush2.msra.mxu0 0.0
    %6351 = vmatprep.subr.mxu0 0.0
    %6352 = vmatpush2.msra.mxu0 0.0
    %6353 = vmatprep.subr.mxu0 0.0
    %6354 = vmatpush2.msra.mxu0 0.0
    %6355 = vmatprep.subr.mxu0 0.0
    %6356 = vmatpush2.msra.mxu0 0.0
    %6357 = vmatprep.subr.mxu0 0.0
    %6358 = vmatpush2.msra.mxu0 0.0
    %6359 = vmatprep.subr.mxu0 0.0
    %6360 = vmatpush2.msra.mxu0 0.0
    %6361 = vmatprep.subr.mxu0 0.0
    %6362 = vmatpush2.msra.mxu0 0.0
    %6363 = vmatprep.subr.mxu0 0.0
    %6364 = vmatpush2.msra.mxu0 0.0
    %6365 = vmatprep.subr.mxu0 0.0
    %6366 = vmatpush2.msra.mxu0 0.0
    %6367 = vmatprep.subr.mxu0 0.0
    %6368 = vmatpush2.msra.mxu0 0.0
    %6369 = vmatprep.subr.mxu0 0.0
    %6370 = vmatpush2.msra.mxu0 0.0
    %6371 = vmatprep.subr.mxu0 0.0
    %6372 = vmatpush2.msra.mxu0 0.0
    %6373 = vmatprep.subr.mxu0 0.0
    %6374 = vmatpush2.msra.mxu0 0.0
    %6375 = vmatprep.subr.mxu0 0.0
    %6376 = vmatpush2.msra.mxu0 0.0
    %6377 = vmatprep.mubr.f32.mxu0 0.0
    %v6378 = vand.u32 %v6136, 4294901760
    %6379 = vmatmul.mubr.f32.gmra.mxu0 %v6378
    %v6380 = vpop.f32.mrf.mxu0
    %v6381 = vadd.f32 %v6230, %v6380
    %v6382 = vpop.f32.mrf.mxu0
    %6383 = vmatprep.mubr.f32.mxu0 0.0
    %v6384 = vand.u32 %v6139, 4294901760
    %6385 = vmatmul.mubr.f32.gmra.mxu0 %v6384
    %v6386 = vpop.f32.mrf.mxu0
    %v6387 = vadd.f32 %v6240, %v6386
    %v6388 = vpop.f32.mrf.mxu0
    %6389 = vdwg.mxu0
    %6390 = vmatprep.subr.mxu0 0.0
    %6391 = vmatpush1.msra.mxu0 0.0
    %6392 = vmatprep.subr.mxu0 0.0
    %6393 = vmatpush1.msra.mxu0 0.0
    %6394 = vmatprep.subr.mxu0 0.0
    %v6395 = vand.u32 %v6142, 4294901760
    %v6396 = vsub.f32 %v6142, %v6395
    %6397 = vmatpush1.msra.mxu0 %v6396
    %6398 = vmatprep.subr.mxu0 0.0
    %v6399 = vand.u32 %v3448, 4294901760
    %v6400 = vsub.f32 %v3448, %v6399
    %6401 = vmatpush1.msra.mxu0 %v6400
    %6402 = vmatprep.subr.mxu0 0.0
    %v6403 = vand.u32 %v3447, 4294901760
    %v6404 = vsub.f32 %v3447, %v6403
    %6405 = vmatpush1.msra.mxu0 %v6404
    %6406 = vmatprep.subr.mxu0 0.0
    %v6407 = vand.u32 %v3446, 4294901760
    %v6408 = vsub.f32 %v3446, %v6407
    %6409 = vmatpush1.msra.mxu0 %v6408
    %6410 = vmatprep.subr.mxu0 0.0
    %v6411 = vand.u32 %v3445, 4294901760
    %v6412 = vsub.f32 %v3445, %v6411
    %6413 = vmatpush1.msra.mxu0 %v6412
    %6414 = vmatprep.subr.mxu0 0.0
    %v6415 = vand.u32 %v3444, 4294901760
    %v6416 = vsub.f32 %v3444, %v6415
    %6417 = vmatpush1.msra.mxu0 %v6416
    %6418 = vmatprep.subr.mxu0 0.0
    %v6419 = vand.u32 %v3443, 4294901760
    %v6420 = vsub.f32 %v3443, %v6419
    %6421 = vmatpush1.msra.mxu0 %v6420
    %6422 = vmatprep.subr.mxu0 0.0
    %v6423 = vand.u32 %v3442, 4294901760
    %v6424 = vsub.f32 %v3442, %v6423
    %6425 = vmatpush1.msra.mxu0 %v6424
    %6426 = vmatprep.subr.mxu0 0.0
    %v6427 = vand.u32 %v3441, 4294901760
    %v6428 = vsub.f32 %v3441, %v6427
    %6429 = vmatpush1.msra.mxu0 %v6428
    %6430 = vmatprep.subr.mxu0 0.0
    %v6431 = vand.u32 %v3440, 4294901760
    %v6432 = vsub.f32 %v3440, %v6431
    %6433 = vmatpush1.msra.mxu0 %v6432
    %6434 = vmatprep.subr.mxu0 0.0
    %v6435 = vand.u32 %v3439, 4294901760
    %v6436 = vsub.f32 %v3439, %v6435
    %6437 = vmatpush1.msra.mxu0 %v6436
    %6438 = vmatprep.subr.mxu0 0.0
    %v6439 = vand.u32 %v3438, 4294901760
    %v6440 = vsub.f32 %v3438, %v6439
    %6441 = vmatpush1.msra.mxu0 %v6440
    %6442 = vmatprep.subr.mxu0 0.0
    %v6443 = vand.u32 %v3437, 4294901760
    %v6444 = vsub.f32 %v3437, %v6443
    %6445 = vmatpush1.msra.mxu0 %v6444
    %6446 = vmatprep.subr.mxu0 0.0
    %v6447 = vand.u32 %v3436, 4294901760
    %v6448 = vsub.f32 %v3436, %v6447
    %6449 = vmatpush1.msra.mxu0 %v6448
    %6450 = vmatprep.subr.mxu0 0.0
    %6451 = vmatpush2.msra.mxu0 0.0
    %6452 = vmatprep.subr.mxu0 0.0
    %6453 = vmatpush2.msra.mxu0 0.0
    %6454 = vmatprep.subr.mxu0 0.0
    %6455 = vmatpush2.msra.mxu0 0.0
    %6456 = vmatprep.subr.mxu0 0.0
    %6457 = vmatpush2.msra.mxu0 0.0
    %6458 = vmatprep.subr.mxu0 0.0
    %6459 = vmatpush2.msra.mxu0 0.0
    %6460 = vmatprep.subr.mxu0 0.0
    %6461 = vmatpush2.msra.mxu0 0.0
    %6462 = vmatprep.subr.mxu0 0.0
    %6463 = vmatpush2.msra.mxu0 0.0
    %6464 = vmatprep.subr.mxu0 0.0
    %6465 = vmatpush2.msra.mxu0 0.0
    %6466 = vmatprep.subr.mxu0 0.0
    %6467 = vmatpush2.msra.mxu0 0.0
    %6468 = vmatprep.subr.mxu0 0.0
    %6469 = vmatpush2.msra.mxu0 0.0
    %6470 = vmatprep.subr.mxu0 0.0
    %6471 = vmatpush2.msra.mxu0 0.0
    %6472 = vmatprep.subr.mxu0 0.0
    %6473 = vmatpush2.msra.mxu0 0.0
    %6474 = vmatprep.subr.mxu0 0.0
    %6475 = vmatpush2.msra.mxu0 0.0
    %6476 = vmatprep.subr.mxu0 0.0
    %6477 = vmatpush2.msra.mxu0 0.0
    %6478 = vmatprep.subr.mxu0 0.0
    %6479 = vmatpush2.msra.mxu0 0.0
    %6480 = vmatprep.subr.mxu0 0.0
    %6481 = vmatpush2.msra.mxu0 0.0
    %6482 = vmatprep.mubr.f32.mxu0 0.0
    %v6483 = vand.u32 %v6136, 4294901760
    %v6484 = vsub.f32 %v6136, %v6483
    %6485 = vmatmul.mubr.f32.gmra.mxu0 %v6484
    %v6486 = vpop.f32.mrf.mxu0
    %v6487 = vadd.f32 %v6381, %v6486
    %v6488 = vpop.f32.mrf.mxu0
    %6489 = vmatprep.mubr.f32.mxu0 0.0
    %v6490 = vand.u32 %v6139, 4294901760
    %v6491 = vsub.f32 %v6139, %v6490
    %6492 = vmatmul.mubr.f32.gmra.mxu0 %v6491
    %v6493 = vpop.f32.mrf.mxu0
    %v6494 = vadd.f32 %v6387, %v6493
    %v6495 = vpop.f32.mrf.mxu0
    %6496 = vdwg.mxu0
    %6497 = vmatprep.subr.mxu0 0.0
    %6498 = vmatpush1.msra.mxu0 0.0
    %6499 = vmatprep.subr.mxu0 0.0
    %6500 = vmatpush1.msra.mxu0 0.0
    %6501 = vmatprep.subr.mxu0 0.0
    %v6502 = vand.u32 %v6142, 4294901760
    %6503 = vmatpush1.msra.mxu0 %v6502
    %6504 = vmatprep.subr.mxu0 0.0
    %v6505 = vand.u32 %v3448, 4294901760
    %6506 = vmatpush1.msra.mxu0 %v6505
    %6507 = vmatprep.subr.mxu0 0.0
    %v6508 = vand.u32 %v3447, 4294901760
    %6509 = vmatpush1.msra.mxu0 %v6508
    %6510 = vmatprep.subr.mxu0 0.0
    %v6511 = vand.u32 %v3446, 4294901760
    %6512 = vmatpush1.msra.mxu0 %v6511
    %6513 = vmatprep.subr.mxu0 0.0
    %v6514 = vand.u32 %v3445, 4294901760
    %6515 = vmatpush1.msra.mxu0 %v6514
    %6516 = vmatprep.subr.mxu0 0.0
    %v6517 = vand.u32 %v3444, 4294901760
    %6518 = vmatpush1.msra.mxu0 %v6517
    %6519 = vmatprep.subr.mxu0 0.0
    %v6520 = vand.u32 %v3443, 4294901760
    %6521 = vmatpush1.msra.mxu0 %v6520
    %6522 = vmatprep.subr.mxu0 0.0
    %v6523 = vand.u32 %v3442, 4294901760
    %6524 = vmatpush1.msra.mxu0 %v6523
    %6525 = vmatprep.subr.mxu0 0.0
    %v6526 = vand.u32 %v3441, 4294901760
    %6527 = vmatpush1.msra.mxu0 %v6526
    %6528 = vmatprep.subr.mxu0 0.0
    %v6529 = vand.u32 %v3440, 4294901760
    %6530 = vmatpush1.msra.mxu0 %v6529
    %6531 = vmatprep.subr.mxu0 0.0
    %v6532 = vand.u32 %v3439, 4294901760
    %6533 = vmatpush1.msra.mxu0 %v6532
    %6534 = vmatprep.subr.mxu0 0.0
    %v6535 = vand.u32 %v3438, 4294901760
    %6536 = vmatpush1.msra.mxu0 %v6535
    %6537 = vmatprep.subr.mxu0 0.0
    %v6538 = vand.u32 %v3437, 4294901760
    %6539 = vmatpush1.msra.mxu0 %v6538
    %6540 = vmatprep.subr.mxu0 0.0
    %v6541 = vand.u32 %v3436, 4294901760
    %6542 = vmatpush1.msra.mxu0 %v6541
    %6543 = vmatprep.subr.mxu0 0.0
    %6544 = vmatpush2.msra.mxu0 0.0
    %6545 = vmatprep.subr.mxu0 0.0
    %6546 = vmatpush2.msra.mxu0 0.0
    %6547 = vmatprep.subr.mxu0 0.0
    %6548 = vmatpush2.msra.mxu0 0.0
    %6549 = vmatprep.subr.mxu0 0.0
    %6550 = vmatpush2.msra.mxu0 0.0
    %6551 = vmatprep.subr.mxu0 0.0
    %6552 = vmatpush2.msra.mxu0 0.0
    %6553 = vmatprep.subr.mxu0 0.0
    %6554 = vmatpush2.msra.mxu0 0.0
    %6555 = vmatprep.subr.mxu0 0.0
    %6556 = vmatpush2.msra.mxu0 0.0
    %6557 = vmatprep.subr.mxu0 0.0
    %6558 = vmatpush2.msra.mxu0 0.0
    %6559 = vmatprep.subr.mxu0 0.0
    %6560 = vmatpush2.msra.mxu0 0.0
    %6561 = vmatprep.subr.mxu0 0.0
    %6562 = vmatpush2.msra.mxu0 0.0
    %6563 = vmatprep.subr.mxu0 0.0
    %6564 = vmatpush2.msra.mxu0 0.0
    %6565 = vmatprep.subr.mxu0 0.0
    %6566 = vmatpush2.msra.mxu0 0.0
    %6567 = vmatprep.subr.mxu0 0.0
    %6568 = vmatpush2.msra.mxu0 0.0
    %6569 = vmatprep.subr.mxu0 0.0
    %6570 = vmatpush2.msra.mxu0 0.0
    %6571 = vmatprep.subr.mxu0 0.0
    %6572 = vmatpush2.msra.mxu0 0.0
    %6573 = vmatprep.subr.mxu0 0.0
    %6574 = vmatpush2.msra.mxu0 0.0
    %6575 = vmatprep.mubr.f32.mxu0 0.0
    %v6576 = vand.u32 %v6136, 4294901760
    %v6577 = vsub.f32 %v6136, %v6576
    %v6578 = vand.u32 %v6577, 4294901760
    %6579 = vmatmul.mubr.f32.gmra.mxu0 %v6578
    %v6580 = vpop.f32.mrf.mxu0
    %v6581 = vadd.f32 %v6487, %v6580
    %v6582 = vpop.f32.mrf.mxu0
    %6583 = vmatprep.mubr.f32.mxu0 0.0
    %v6584 = vand.u32 %v6139, 4294901760
    %v6585 = vsub.f32 %v6139, %v6584
    %v6586 = vand.u32 %v6585, 4294901760
    %6587 = vmatmul.mubr.f32.gmra.mxu0 %v6586
    %v6588 = vpop.f32.mrf.mxu0
    %v6589 = vadd.f32 %v6494, %v6588
    %v6590 = vpop.f32.mrf.mxu0
    %6591 = vdwg.mxu0
    %6592 = vmatprep.subr.mxu0 0.0
    %6593 = vmatpush1.msra.mxu0 0.0
    %6594 = vmatprep.subr.mxu0 0.0
    %6595 = vmatpush1.msra.mxu0 0.0
    %6596 = vmatprep.subr.mxu0 0.0
    %v6597 = vand.u32 %v6142, 4294901760
    %v6598 = vsub.f32 %v6142, %v6597
    %v6599 = vand.u32 %v6598, 4294901760
    %6600 = vmatpush1.msra.mxu0 %v6599
    %6601 = vmatprep.subr.mxu0 0.0
    %v6602 = vand.u32 %v3448, 4294901760
    %v6603 = vsub.f32 %v3448, %v6602
    %v6604 = vand.u32 %v6603, 4294901760
    %6605 = vmatpush1.msra.mxu0 %v6604
    %6606 = vmatprep.subr.mxu0 0.0
    %v6607 = vand.u32 %v3447, 4294901760
    %v6608 = vsub.f32 %v3447, %v6607
    %v6609 = vand.u32 %v6608, 4294901760
    %6610 = vmatpush1.msra.mxu0 %v6609
    %6611 = vmatprep.subr.mxu0 0.0
    %v6612 = vand.u32 %v3446, 4294901760
    %v6613 = vsub.f32 %v3446, %v6612
    %v6614 = vand.u32 %v6613, 4294901760
    %6615 = vmatpush1.msra.mxu0 %v6614
    %6616 = vmatprep.subr.mxu0 0.0
    %v6617 = vand.u32 %v3445, 4294901760
    %v6618 = vsub.f32 %v3445, %v6617
    %v6619 = vand.u32 %v6618, 4294901760
    %6620 = vmatpush1.msra.mxu0 %v6619
    %6621 = vmatprep.subr.mxu0 0.0
    %v6622 = vand.u32 %v3444, 4294901760
    %v6623 = vsub.f32 %v3444, %v6622
    %v6624 = vand.u32 %v6623, 4294901760
    %6625 = vmatpush1.msra.mxu0 %v6624
    %6626 = vmatprep.subr.mxu0 0.0
    %v6627 = vand.u32 %v3443, 4294901760
    %v6628 = vsub.f32 %v3443, %v6627
    %v6629 = vand.u32 %v6628, 4294901760
    %6630 = vmatpush1.msra.mxu0 %v6629
    %6631 = vmatprep.subr.mxu0 0.0
    %v6632 = vand.u32 %v3442, 4294901760
    %v6633 = vsub.f32 %v3442, %v6632
    %v6634 = vand.u32 %v6633, 4294901760
    %6635 = vmatpush1.msra.mxu0 %v6634
    %6636 = vmatprep.subr.mxu0 0.0
    %v6637 = vand.u32 %v3441, 4294901760
    %v6638 = vsub.f32 %v3441, %v6637
    %v6639 = vand.u32 %v6638, 4294901760
    %6640 = vmatpush1.msra.mxu0 %v6639
    %6641 = vmatprep.subr.mxu0 0.0
    %v6642 = vand.u32 %v3440, 4294901760
    %v6643 = vsub.f32 %v3440, %v6642
    %v6644 = vand.u32 %v6643, 4294901760
    %6645 = vmatpush1.msra.mxu0 %v6644
    %6646 = vmatprep.subr.mxu0 0.0
    %v6647 = vand.u32 %v3439, 4294901760
    %v6648 = vsub.f32 %v3439, %v6647
    %v6649 = vand.u32 %v6648, 4294901760
    %6650 = vmatpush1.msra.mxu0 %v6649
    %6651 = vmatprep.subr.mxu0 0.0
    %v6652 = vand.u32 %v3438, 4294901760
    %v6653 = vsub.f32 %v3438, %v6652
    %v6654 = vand.u32 %v6653, 4294901760
    %6655 = vmatpush1.msra.mxu0 %v6654
    %6656 = vmatprep.subr.mxu0 0.0
    %v6657 = vand.u32 %v3437, 4294901760
    %v6658 = vsub.f32 %v3437, %v6657
    %v6659 = vand.u32 %v6658, 4294901760
    %6660 = vmatpush1.msra.mxu0 %v6659
    %6661 = vmatprep.subr.mxu0 0.0
    %v6662 = vand.u32 %v3436, 4294901760
    %v6663 = vsub.f32 %v3436, %v6662
    %v6664 = vand.u32 %v6663, 4294901760
    %6665 = vmatpush1.msra.mxu0 %v6664
    %6666 = vmatprep.subr.mxu0 0.0
    %6667 = vmatpush2.msra.mxu0 0.0
    %6668 = vmatprep.subr.mxu0 0.0
    %6669 = vmatpush2.msra.mxu0 0.0
    %6670 = vmatprep.subr.mxu0 0.0
    %6671 = vmatpush2.msra.mxu0 0.0
    %6672 = vmatprep.subr.mxu0 0.0
    %6673 = vmatpush2.msra.mxu0 0.0
    %6674 = vmatprep.subr.mxu0 0.0
    %6675 = vmatpush2.msra.mxu0 0.0
    %6676 = vmatprep.subr.mxu0 0.0
    %6677 = vmatpush2.msra.mxu0 0.0
    %6678 = vmatprep.subr.mxu0 0.0
    %6679 = vmatpush2.msra.mxu0 0.0
    %6680 = vmatprep.subr.mxu0 0.0
    %6681 = vmatpush2.msra.mxu0 0.0
    %6682 = vmatprep.subr.mxu0 0.0
    %6683 = vmatpush2.msra.mxu0 0.0
    %6684 = vmatprep.subr.mxu0 0.0
    %6685 = vmatpush2.msra.mxu0 0.0
    %6686 = vmatprep.subr.mxu0 0.0
    %6687 = vmatpush2.msra.mxu0 0.0
    %6688 = vmatprep.subr.mxu0 0.0
    %6689 = vmatpush2.msra.mxu0 0.0
    %6690 = vmatprep.subr.mxu0 0.0
    %6691 = vmatpush2.msra.mxu0 0.0
    %6692 = vmatprep.subr.mxu0 0.0
    %6693 = vmatpush2.msra.mxu0 0.0
    %6694 = vmatprep.subr.mxu0 0.0
    %6695 = vmatpush2.msra.mxu0 0.0
    %6696 = vmatprep.subr.mxu0 0.0
    %6697 = vmatpush2.msra.mxu0 0.0
    %6698 = vmatprep.mubr.f32.mxu0 0.0
    %v6699 = vand.u32 %v6136, 4294901760
    %6700 = vmatmul.mubr.f32.gmra.mxu0 %v6699
    %v6701 = vpop.f32.mrf.mxu0
    %v6702 = vadd.f32 %v6581, %v6701
    %v6703 = vpop.f32.mrf.mxu0
    %6704 = vmatprep.mubr.f32.mxu0 0.0
    %v6705 = vand.u32 %v6139, 4294901760
    %6706 = vmatmul.mubr.f32.gmra.mxu0 %v6705
    %v6707 = vpop.f32.mrf.mxu0
    %v6708 = vadd.f32 %v6589, %v6707
    %v6709 = vpop.f32.mrf.mxu0
    %6710 = vdwg.mxu0
    %6711 = vmatprep.subr.mxu0 0.0
    %6712 = vmatpush1.msra.mxu0 0.0
    %6713 = vmatprep.subr.mxu0 0.0
    %6714 = vmatpush1.msra.mxu0 0.0
    %6715 = vmatprep.subr.mxu0 0.0
    %v6716 = vand.u32 %v6142, 4294901760
    %6717 = vmatpush1.msra.mxu0 %v6716
    %6718 = vmatprep.subr.mxu0 0.0
    %v6719 = vand.u32 %v3448, 4294901760
    %6720 = vmatpush1.msra.mxu0 %v6719
    %6721 = vmatprep.subr.mxu0 0.0
    %v6722 = vand.u32 %v3447, 4294901760
    %6723 = vmatpush1.msra.mxu0 %v6722
    %6724 = vmatprep.subr.mxu0 0.0
    %v6725 = vand.u32 %v3446, 4294901760
    %6726 = vmatpush1.msra.mxu0 %v6725
    %6727 = vmatprep.subr.mxu0 0.0
    %v6728 = vand.u32 %v3445, 4294901760
    %6729 = vmatpush1.msra.mxu0 %v6728
    %6730 = vmatprep.subr.mxu0 0.0
    %v6731 = vand.u32 %v3444, 4294901760
    %6732 = vmatpush1.msra.mxu0 %v6731
    %6733 = vmatprep.subr.mxu0 0.0
    %v6734 = vand.u32 %v3443, 4294901760
    %6735 = vmatpush1.msra.mxu0 %v6734
    %6736 = vmatprep.subr.mxu0 0.0
    %v6737 = vand.u32 %v3442, 4294901760
    %6738 = vmatpush1.msra.mxu0 %v6737
    %6739 = vmatprep.subr.mxu0 0.0
    %v6740 = vand.u32 %v3441, 4294901760
    %6741 = vmatpush1.msra.mxu0 %v6740
    %6742 = vmatprep.subr.mxu0 0.0
    %v6743 = vand.u32 %v3440, 4294901760
    %6744 = vmatpush1.msra.mxu0 %v6743
    %6745 = vmatprep.subr.mxu0 0.0
    %v6746 = vand.u32 %v3439, 4294901760
    %6747 = vmatpush1.msra.mxu0 %v6746
    %6748 = vmatprep.subr.mxu0 0.0
    %v6749 = vand.u32 %v3438, 4294901760
    %6750 = vmatpush1.msra.mxu0 %v6749
    %6751 = vmatprep.subr.mxu0 0.0
    %v6752 = vand.u32 %v3437, 4294901760
    %6753 = vmatpush1.msra.mxu0 %v6752
    %6754 = vmatprep.subr.mxu0 0.0
    %v6755 = vand.u32 %v3436, 4294901760
    %6756 = vmatpush1.msra.mxu0 %v6755
    %6757 = vmatprep.subr.mxu0 0.0
    %6758 = vmatpush2.msra.mxu0 0.0
    %6759 = vmatprep.subr.mxu0 0.0
    %6760 = vmatpush2.msra.mxu0 0.0
    %6761 = vmatprep.subr.mxu0 0.0
    %6762 = vmatpush2.msra.mxu0 0.0
    %6763 = vmatprep.subr.mxu0 0.0
    %6764 = vmatpush2.msra.mxu0 0.0
    %6765 = vmatprep.subr.mxu0 0.0
    %6766 = vmatpush2.msra.mxu0 0.0
    %6767 = vmatprep.subr.mxu0 0.0
    %6768 = vmatpush2.msra.mxu0 0.0
    %6769 = vmatprep.subr.mxu0 0.0
    %6770 = vmatpush2.msra.mxu0 0.0
    %6771 = vmatprep.subr.mxu0 0.0
    %6772 = vmatpush2.msra.mxu0 0.0
    %6773 = vmatprep.subr.mxu0 0.0
    %6774 = vmatpush2.msra.mxu0 0.0
    %6775 = vmatprep.subr.mxu0 0.0
    %6776 = vmatpush2.msra.mxu0 0.0
    %6777 = vmatprep.subr.mxu0 0.0
    %6778 = vmatpush2.msra.mxu0 0.0
    %6779 = vmatprep.subr.mxu0 0.0
    %6780 = vmatpush2.msra.mxu0 0.0
    %6781 = vmatprep.subr.mxu0 0.0
    %6782 = vmatpush2.msra.mxu0 0.0
    %6783 = vmatprep.subr.mxu0 0.0
    %6784 = vmatpush2.msra.mxu0 0.0
    %6785 = vmatprep.subr.mxu0 0.0
    %6786 = vmatpush2.msra.mxu0 0.0
    %6787 = vmatprep.subr.mxu0 0.0
    %6788 = vmatpush2.msra.mxu0 0.0
    %6789 = vmatprep.mubr.f32.mxu0 0.0
    %v6790 = vand.u32 %v6136, 4294901760
    %6791 = vmatmul.mubr.f32.gmra.mxu0 %v6790
    %v6792 = vpop.f32.mrf.mxu0
    %v6793 = vadd.f32 %v6702, %v6792
    %v6794 = vpop.f32.mrf.mxu0
    %6795 = vmatprep.mubr.f32.mxu0 0.0
    %v6796 = vand.u32 %v6139, 4294901760
    %6797 = vmatmul.mubr.f32.gmra.mxu0 %v6796
    %v6798 = vpop.f32.mrf.mxu0
    %v6799 = vadd.f32 %v6708, %v6798
    %v6800 = vpop.f32.mrf.mxu0
    %6801 = vdwg.mxu0
    %v6802 = vadd.f32 %v4792, %v5459
    %v6803 = vadd.f32 %v4798, %v5465
    %v6804 = vadd.f32 %v6126, %v6793
    %v6805 = vadd.f32 %v6132, %v6799
    %v6806 = vadd.f32 %v6802, %v6804
    %v6807 = vadd.f32 %v6803, %v6805
    %v6808 = vadd.f32 %v4132, %v6806
    %v6809 = vadd.f32 %v4133, %v6807
    %vm6810 = vcmp.gt.f32.partialorder %v6808, 0.0
    %vm6811 = vcmp.gt.f32.partialorder %v6809, 0.0
    %v6812 = vmin.f32 %v6808, 0.0
    %v6813 = vmin.f32 %v6809, 0.0
    %v6814 = vmul.f32 %v6812, 1.442695
    %v6815 = vpow.pop %v6814
    %v6816 = vmul.f32 %v6813, 1.442695
    %v6817 = vpow.pop %v6816
    %v6818 = vsub.f32 %v6815, 1.0
    %v6819 = vsub.f32 %v6817, 1.0
    %v6820 = vsel %vm6810, %v6808, %v6818
    %v6821 = vsel %vm6811, %v6809, %v6819
    %v6822 = vld [vmem:[%s4] sm:$0xff]
    %v6823 = vld [vmem:[%s4 + $0x8] sm:$0xff]
    %v6824 = vld [vmem:[%s4 + $0x10] sm:$0xff]
    %v6825 = vld [vmem:[%s4 + $0x18] sm:$0xff]
    %vm6826 = vcmask 130048
    %v6828 = vsel %vm6826, %v6822, 0
    %v6831 = vsel %vm6826, %v6823, 0
    %v6834 = vsel %vm6826, %v6824, 0
    %v6837 = vsel %vm6826, %v6825, 0
    %6839 = vmatprep.subr.mxu0 0.0
    %6840 = vmatpush1.msra.mxu0 0.0
    %6841 = vmatprep.subr.mxu0 0.0
    %6842 = vmatpush1.msra.mxu0 0.0
    %6843 = vmatprep.subr.mxu0 0.0
    %6844 = vmatpush1.msra.mxu0 0.0
    %6845 = vmatprep.subr.mxu0 0.0
    %6846 = vmatpush1.msra.mxu0 0.0
    %6847 = vmatprep.subr.mxu0 0.0
    %6848 = vmatpush1.msra.mxu0 0.0
    %6849 = vmatprep.subr.mxu0 0.0
    %6850 = vmatpush1.msra.mxu0 0.0
    %6851 = vmatprep.subr.mxu0 0.0
    %6852 = vmatpush1.msra.mxu0 0.0
    %6853 = vmatprep.subr.mxu0 0.0
    %6854 = vmatpush1.msra.mxu0 0.0
    %6855 = vmatprep.subr.mxu0 0.0
    %6856 = vmatpush1.msra.mxu0 0.0
    %6857 = vmatprep.subr.mxu0 0.0
    %6858 = vmatpush1.msra.mxu0 0.0
    %6859 = vmatprep.subr.mxu0 0.0
    %6860 = vmatpush1.msra.mxu0 0.0
    %6861 = vmatprep.subr.mxu0 0.0
    %6862 = vmatpush1.msra.mxu0 0.0
    %6863 = vmatprep.subr.mxu0 0.0
    %6864 = vmatpush1.msra.mxu0 0.0
    %6865 = vmatprep.subr.mxu0 0.0
    %6866 = vmatpush1.msra.mxu0 0.0
    %6867 = vmatprep.subr.mxu0 0.0
    %v6868 = vand.u32 %v6821, 4294901760
    %6869 = vmatpush1.msra.mxu0 %v6868
    %6870 = vmatprep.subr.mxu0 0.0
    %v6871 = vand.u32 %v6820, 4294901760
    %6872 = vmatpush1.msra.mxu0 %v6871
    %6873 = vmatprep.subr.mxu0 0.0
    %6874 = vmatpush2.msra.mxu0 0.0
    %6875 = vmatprep.subr.mxu0 0.0
    %6876 = vmatpush2.msra.mxu0 0.0
    %6877 = vmatprep.subr.mxu0 0.0
    %6878 = vmatpush2.msra.mxu0 0.0
    %6879 = vmatprep.subr.mxu0 0.0
    %6880 = vmatpush2.msra.mxu0 0.0
    %6881 = vmatprep.subr.mxu0 0.0
    %6882 = vmatpush2.msra.mxu0 0.0
    %6883 = vmatprep.subr.mxu0 0.0
    %6884 = vmatpush2.msra.mxu0 0.0
    %6885 = vmatprep.subr.mxu0 0.0
    %6886 = vmatpush2.msra.mxu0 0.0
    %6887 = vmatprep.subr.mxu0 0.0
    %6888 = vmatpush2.msra.mxu0 0.0
    %6889 = vmatprep.subr.mxu0 0.0
    %6890 = vmatpush2.msra.mxu0 0.0
    %6891 = vmatprep.subr.mxu0 0.0
    %6892 = vmatpush2.msra.mxu0 0.0
    %6893 = vmatprep.subr.mxu0 0.0
    %6894 = vmatpush2.msra.mxu0 0.0
    %6895 = vmatprep.subr.mxu0 0.0
    %6896 = vmatpush2.msra.mxu0 0.0
    %6897 = vmatprep.subr.mxu0 0.0
    %6898 = vmatpush2.msra.mxu0 0.0
    %6899 = vmatprep.subr.mxu0 0.0
    %6900 = vmatpush2.msra.mxu0 0.0
    %6901 = vmatprep.subr.mxu0 0.0
    %6902 = vmatpush2.msra.mxu0 0.0
    %6903 = vmatprep.subr.mxu0 0.0
    %6904 = vmatpush2.msra.mxu0 0.0
    %6905 = vmatprep.mubr.f32.mxu0 0.0
    %v6906 = vand.u32 %v6828, 4294901760
    %v6907 = vsub.f32 %v6828, %v6906
    %v6908 = vand.u32 %v6907, 4294901760
    %v6909 = vsub.f32 %v6907, %v6908
    %v6910 = vand.u32 %v6909, 4294901760
    %6911 = vmatmul.mubr.f32.gmra.mxu0 %v6910
    %v6912 = vpop.f32.mrf.mxu0
    %v6913 = vadd.f32 0.0, %v6912
    %v6914 = vpop.f32.mrf.mxu0
    %6915 = vmatprep.mubr.f32.mxu0 0.0
    %v6916 = vand.u32 %v6831, 4294901760
    %v6917 = vsub.f32 %v6831, %v6916
    %v6918 = vand.u32 %v6917, 4294901760
    %v6919 = vsub.f32 %v6917, %v6918
    %v6920 = vand.u32 %v6919, 4294901760
    %6921 = vmatmul.mubr.f32.gmra.mxu0 %v6920
    %v6922 = vpop.f32.mrf.mxu0
    %v6923 = vadd.f32 0.0, %v6922
    %v6924 = vpop.f32.mrf.mxu0
    %6925 = vmatprep.mubr.f32.mxu0 0.0
    %v6926 = vand.u32 %v6834, 4294901760
    %v6927 = vsub.f32 %v6834, %v6926
    %v6928 = vand.u32 %v6927, 4294901760
    %v6929 = vsub.f32 %v6927, %v6928
    %v6930 = vand.u32 %v6929, 4294901760
    %6931 = vmatmul.mubr.f32.gmra.mxu0 %v6930
    %v6932 = vpop.f32.mrf.mxu0
    %v6933 = vadd.f32 0.0, %v6932
    %v6934 = vpop.f32.mrf.mxu0
    %6935 = vmatprep.mubr.f32.mxu0 0.0
    %v6936 = vand.u32 %v6837, 4294901760
    %v6937 = vsub.f32 %v6837, %v6936
    %v6938 = vand.u32 %v6937, 4294901760
    %v6939 = vsub.f32 %v6937, %v6938
    %v6940 = vand.u32 %v6939, 4294901760
    %6941 = vmatmul.mubr.f32.gmra.mxu0 %v6940
    %v6942 = vpop.f32.mrf.mxu0
    %v6943 = vadd.f32 0.0, %v6942
    %v6944 = vpop.f32.mrf.mxu0
    %6945 = vdwg.mxu0
    %6946 = vmatprep.subr.mxu0 0.0
    %6947 = vmatpush1.msra.mxu0 0.0
    %6948 = vmatprep.subr.mxu0 0.0
    %6949 = vmatpush1.msra.mxu0 0.0
    %6950 = vmatprep.subr.mxu0 0.0
    %6951 = vmatpush1.msra.mxu0 0.0
    %6952 = vmatprep.subr.mxu0 0.0
    %6953 = vmatpush1.msra.mxu0 0.0
    %6954 = vmatprep.subr.mxu0 0.0
    %6955 = vmatpush1.msra.mxu0 0.0
    %6956 = vmatprep.subr.mxu0 0.0
    %6957 = vmatpush1.msra.mxu0 0.0
    %6958 = vmatprep.subr.mxu0 0.0
    %6959 = vmatpush1.msra.mxu0 0.0
    %6960 = vmatprep.subr.mxu0 0.0
    %6961 = vmatpush1.msra.mxu0 0.0
    %6962 = vmatprep.subr.mxu0 0.0
    %6963 = vmatpush1.msra.mxu0 0.0
    %6964 = vmatprep.subr.mxu0 0.0
    %6965 = vmatpush1.msra.mxu0 0.0
    %6966 = vmatprep.subr.mxu0 0.0
    %6967 = vmatpush1.msra.mxu0 0.0
    %6968 = vmatprep.subr.mxu0 0.0
    %6969 = vmatpush1.msra.mxu0 0.0
    %6970 = vmatprep.subr.mxu0 0.0
    %6971 = vmatpush1.msra.mxu0 0.0
    %6972 = vmatprep.subr.mxu0 0.0
    %6973 = vmatpush1.msra.mxu0 0.0
    %6974 = vmatprep.subr.mxu0 0.0
    %v6975 = vand.u32 %v6821, 4294901760
    %v6976 = vsub.f32 %v6821, %v6975
    %v6977 = vand.u32 %v6976, 4294901760
    %v6978 = vsub.f32 %v6976, %v6977
    %v6979 = vand.u32 %v6978, 4294901760
    %6980 = vmatpush1.msra.mxu0 %v6979
    %6981 = vmatprep.subr.mxu0 0.0
    %v6982 = vand.u32 %v6820, 4294901760
    %v6983 = vsub.f32 %v6820, %v6982
    %v6984 = vand.u32 %v6983, 4294901760
    %v6985 = vsub.f32 %v6983, %v6984
    %v6986 = vand.u32 %v6985, 4294901760
    %6987 = vmatpush1.msra.mxu0 %v6986
    %6988 = vmatprep.subr.mxu0 0.0
    %6989 = vmatpush2.msra.mxu0 0.0
    %6990 = vmatprep.subr.mxu0 0.0
    %6991 = vmatpush2.msra.mxu0 0.0
    %6992 = vmatprep.subr.mxu0 0.0
    %6993 = vmatpush2.msra.mxu0 0.0
    %6994 = vmatprep.subr.mxu0 0.0
    %6995 = vmatpush2.msra.mxu0 0.0
    %6996 = vmatprep.subr.mxu0 0.0
    %6997 = vmatpush2.msra.mxu0 0.0
    %6998 = vmatprep.subr.mxu0 0.0
    %6999 = vmatpush2.msra.mxu0 0.0
    %7000 = vmatprep.subr.mxu0 0.0
    %7001 = vmatpush2.msra.mxu0 0.0
    %7002 = vmatprep.subr.mxu0 0.0
    %7003 = vmatpush2.msra.mxu0 0.0
    %7004 = vmatprep.subr.mxu0 0.0
    %7005 = vmatpush2.msra.mxu0 0.0
    %7006 = vmatprep.subr.mxu0 0.0
    %7007 = vmatpush2.msra.mxu0 0.0
    %7008 = vmatprep.subr.mxu0 0.0
    %7009 = vmatpush2.msra.mxu0 0.0
    %7010 = vmatprep.subr.mxu0 0.0
    %7011 = vmatpush2.msra.mxu0 0.0
    %7012 = vmatprep.subr.mxu0 0.0
    %7013 = vmatpush2.msra.mxu0 0.0
    %7014 = vmatprep.subr.mxu0 0.0
    %7015 = vmatpush2.msra.mxu0 0.0
    %7016 = vmatprep.subr.mxu0 0.0
    %7017 = vmatpush2.msra.mxu0 0.0
    %7018 = vmatprep.subr.mxu0 0.0
    %7019 = vmatpush2.msra.mxu0 0.0
    %7020 = vmatprep.mubr.f32.mxu0 0.0
    %v7021 = vand.u32 %v6828, 4294901760
    %7022 = vmatmul.mubr.f32.gmra.mxu0 %v7021
    %v7023 = vpop.f32.mrf.mxu0
    %v7024 = vadd.f32 %v6913, %v7023
    %v7025 = vpop.f32.mrf.mxu0
    %7026 = vmatprep.mubr.f32.mxu0 0.0
    %v7027 = vand.u32 %v6831, 4294901760
    %7028 = vmatmul.mubr.f32.gmra.mxu0 %v7027
    %v7029 = vpop.f32.mrf.mxu0
    %v7030 = vadd.f32 %v6923, %v7029
    %v7031 = vpop.f32.mrf.mxu0
    %7032 = vmatprep.mubr.f32.mxu0 0.0
    %v7033 = vand.u32 %v6834, 4294901760
    %7034 = vmatmul.mubr.f32.gmra.mxu0 %v7033
    %v7035 = vpop.f32.mrf.mxu0
    %v7036 = vadd.f32 %v6933, %v7035
    %v7037 = vpop.f32.mrf.mxu0
    %7038 = vmatprep.mubr.f32.mxu0 0.0
    %v7039 = vand.u32 %v6837, 4294901760
    %7040 = vmatmul.mubr.f32.gmra.mxu0 %v7039
    %v7041 = vpop.f32.mrf.mxu0
    %v7042 = vadd.f32 %v6943, %v7041
    %v7043 = vpop.f32.mrf.mxu0
    %7044 = vdwg.mxu0
    %7045 = vmatprep.subr.mxu0 0.0
    %7046 = vmatpush1.msra.mxu0 0.0
    %7047 = vmatprep.subr.mxu0 0.0
    %7048 = vmatpush1.msra.mxu0 0.0
    %7049 = vmatprep.subr.mxu0 0.0
    %7050 = vmatpush1.msra.mxu0 0.0
    %7051 = vmatprep.subr.mxu0 0.0
    %7052 = vmatpush1.msra.mxu0 0.0
    %7053 = vmatprep.subr.mxu0 0.0
    %7054 = vmatpush1.msra.mxu0 0.0
    %7055 = vmatprep.subr.mxu0 0.0
    %7056 = vmatpush1.msra.mxu0 0.0
    %7057 = vmatprep.subr.mxu0 0.0
    %7058 = vmatpush1.msra.mxu0 0.0
    %7059 = vmatprep.subr.mxu0 0.0
    %7060 = vmatpush1.msra.mxu0 0.0
    %7061 = vmatprep.subr.mxu0 0.0
    %7062 = vmatpush1.msra.mxu0 0.0
    %7063 = vmatprep.subr.mxu0 0.0
    %7064 = vmatpush1.msra.mxu0 0.0
    %7065 = vmatprep.subr.mxu0 0.0
    %7066 = vmatpush1.msra.mxu0 0.0
    %7067 = vmatprep.subr.mxu0 0.0
    %7068 = vmatpush1.msra.mxu0 0.0
    %7069 = vmatprep.subr.mxu0 0.0
    %7070 = vmatpush1.msra.mxu0 0.0
    %7071 = vmatprep.subr.mxu0 0.0
    %7072 = vmatpush1.msra.mxu0 0.0
    %7073 = vmatprep.subr.mxu0 0.0
    %v7074 = vand.u32 %v6821, 4294901760
    %v7075 = vsub.f32 %v6821, %v7074
    %7076 = vmatpush1.msra.mxu0 %v7075
    %7077 = vmatprep.subr.mxu0 0.0
    %v7078 = vand.u32 %v6820, 4294901760
    %v7079 = vsub.f32 %v6820, %v7078
    %7080 = vmatpush1.msra.mxu0 %v7079
    %7081 = vmatprep.subr.mxu0 0.0
    %7082 = vmatpush2.msra.mxu0 0.0
    %7083 = vmatprep.subr.mxu0 0.0
    %7084 = vmatpush2.msra.mxu0 0.0
    %7085 = vmatprep.subr.mxu0 0.0
    %7086 = vmatpush2.msra.mxu0 0.0
    %7087 = vmatprep.subr.mxu0 0.0
    %7088 = vmatpush2.msra.mxu0 0.0
    %7089 = vmatprep.subr.mxu0 0.0
    %7090 = vmatpush2.msra.mxu0 0.0
    %7091 = vmatprep.subr.mxu0 0.0
    %7092 = vmatpush2.msra.mxu0 0.0
    %7093 = vmatprep.subr.mxu0 0.0
    %7094 = vmatpush2.msra.mxu0 0.0
    %7095 = vmatprep.subr.mxu0 0.0
    %7096 = vmatpush2.msra.mxu0 0.0
    %7097 = vmatprep.subr.mxu0 0.0
    %7098 = vmatpush2.msra.mxu0 0.0
    %7099 = vmatprep.subr.mxu0 0.0
    %7100 = vmatpush2.msra.mxu0 0.0
    %7101 = vmatprep.subr.mxu0 0.0
    %7102 = vmatpush2.msra.mxu0 0.0
    %7103 = vmatprep.subr.mxu0 0.0
    %7104 = vmatpush2.msra.mxu0 0.0
    %7105 = vmatprep.subr.mxu0 0.0
    %7106 = vmatpush2.msra.mxu0 0.0
    %7107 = vmatprep.subr.mxu0 0.0
    %7108 = vmatpush2.msra.mxu0 0.0
    %7109 = vmatprep.subr.mxu0 0.0
    %7110 = vmatpush2.msra.mxu0 0.0
    %7111 = vmatprep.subr.mxu0 0.0
    %7112 = vmatpush2.msra.mxu0 0.0
    %7113 = vmatprep.mubr.f32.mxu0 0.0
    %v7114 = vand.u32 %v6828, 4294901760
    %v7115 = vsub.f32 %v6828, %v7114
    %7116 = vmatmul.mubr.f32.gmra.mxu0 %v7115
    %v7117 = vpop.f32.mrf.mxu0
    %v7118 = vadd.f32 %v7024, %v7117
    %v7119 = vpop.f32.mrf.mxu0
    %7120 = vmatprep.mubr.f32.mxu0 0.0
    %v7121 = vand.u32 %v6831, 4294901760
    %v7122 = vsub.f32 %v6831, %v7121
    %7123 = vmatmul.mubr.f32.gmra.mxu0 %v7122
    %v7124 = vpop.f32.mrf.mxu0
    %v7125 = vadd.f32 %v7030, %v7124
    %v7126 = vpop.f32.mrf.mxu0
    %7127 = vmatprep.mubr.f32.mxu0 0.0
    %v7128 = vand.u32 %v6834, 4294901760
    %v7129 = vsub.f32 %v6834, %v7128
    %7130 = vmatmul.mubr.f32.gmra.mxu0 %v7129
    %v7131 = vpop.f32.mrf.mxu0
    %v7132 = vadd.f32 %v7036, %v7131
    %v7133 = vpop.f32.mrf.mxu0
    %7134 = vmatprep.mubr.f32.mxu0 0.0
    %v7135 = vand.u32 %v6837, 4294901760
    %v7136 = vsub.f32 %v6837, %v7135
    %7137 = vmatmul.mubr.f32.gmra.mxu0 %v7136
    %v7138 = vpop.f32.mrf.mxu0
    %v7139 = vadd.f32 %v7042, %v7138
    %v7140 = vpop.f32.mrf.mxu0
    %7141 = vdwg.mxu0
    %7142 = vmatprep.subr.mxu0 0.0
    %7143 = vmatpush1.msra.mxu0 0.0
    %7144 = vmatprep.subr.mxu0 0.0
    %7145 = vmatpush1.msra.mxu0 0.0
    %7146 = vmatprep.subr.mxu0 0.0
    %7147 = vmatpush1.msra.mxu0 0.0
    %7148 = vmatprep.subr.mxu0 0.0
    %7149 = vmatpush1.msra.mxu0 0.0
    %7150 = vmatprep.subr.mxu0 0.0
    %7151 = vmatpush1.msra.mxu0 0.0
    %7152 = vmatprep.subr.mxu0 0.0
    %7153 = vmatpush1.msra.mxu0 0.0
    %7154 = vmatprep.subr.mxu0 0.0
    %7155 = vmatpush1.msra.mxu0 0.0
    %7156 = vmatprep.subr.mxu0 0.0
    %7157 = vmatpush1.msra.mxu0 0.0
    %7158 = vmatprep.subr.mxu0 0.0
    %7159 = vmatpush1.msra.mxu0 0.0
    %7160 = vmatprep.subr.mxu0 0.0
    %7161 = vmatpush1.msra.mxu0 0.0
    %7162 = vmatprep.subr.mxu0 0.0
    %7163 = vmatpush1.msra.mxu0 0.0
    %7164 = vmatprep.subr.mxu0 0.0
    %7165 = vmatpush1.msra.mxu0 0.0
    %7166 = vmatprep.subr.mxu0 0.0
    %7167 = vmatpush1.msra.mxu0 0.0
    %7168 = vmatprep.subr.mxu0 0.0
    %7169 = vmatpush1.msra.mxu0 0.0
    %7170 = vmatprep.subr.mxu0 0.0
    %v7171 = vand.u32 %v6821, 4294901760
    %7172 = vmatpush1.msra.mxu0 %v7171
    %7173 = vmatprep.subr.mxu0 0.0
    %v7174 = vand.u32 %v6820, 4294901760
    %7175 = vmatpush1.msra.mxu0 %v7174
    %7176 = vmatprep.subr.mxu0 0.0
    %7177 = vmatpush2.msra.mxu0 0.0
    %7178 = vmatprep.subr.mxu0 0.0
    %7179 = vmatpush2.msra.mxu0 0.0
    %7180 = vmatprep.subr.mxu0 0.0
    %7181 = vmatpush2.msra.mxu0 0.0
    %7182 = vmatprep.subr.mxu0 0.0
    %7183 = vmatpush2.msra.mxu0 0.0
    %7184 = vmatprep.subr.mxu0 0.0
    %7185 = vmatpush2.msra.mxu0 0.0
    %7186 = vmatprep.subr.mxu0 0.0
    %7187 = vmatpush2.msra.mxu0 0.0
    %7188 = vmatprep.subr.mxu0 0.0
    %7189 = vmatpush2.msra.mxu0 0.0
    %7190 = vmatprep.subr.mxu0 0.0
    %7191 = vmatpush2.msra.mxu0 0.0
    %7192 = vmatprep.subr.mxu0 0.0
    %7193 = vmatpush2.msra.mxu0 0.0
    %7194 = vmatprep.subr.mxu0 0.0
    %7195 = vmatpush2.msra.mxu0 0.0
    %7196 = vmatprep.subr.mxu0 0.0
    %7197 = vmatpush2.msra.mxu0 0.0
    %7198 = vmatprep.subr.mxu0 0.0
    %7199 = vmatpush2.msra.mxu0 0.0
    %7200 = vmatprep.subr.mxu0 0.0
    %7201 = vmatpush2.msra.mxu0 0.0
    %7202 = vmatprep.subr.mxu0 0.0
    %7203 = vmatpush2.msra.mxu0 0.0
    %7204 = vmatprep.subr.mxu0 0.0
    %7205 = vmatpush2.msra.mxu0 0.0
    %7206 = vmatprep.subr.mxu0 0.0
    %7207 = vmatpush2.msra.mxu0 0.0
    %7208 = vmatprep.mubr.f32.mxu0 0.0
    %v7209 = vand.u32 %v6828, 4294901760
    %v7210 = vsub.f32 %v6828, %v7209
    %v7211 = vand.u32 %v7210, 4294901760
    %7212 = vmatmul.mubr.f32.gmra.mxu0 %v7211
    %v7213 = vpop.f32.mrf.mxu0
    %v7214 = vadd.f32 %v7118, %v7213
    %v7215 = vpop.f32.mrf.mxu0
    %7216 = vmatprep.mubr.f32.mxu0 0.0
    %v7217 = vand.u32 %v6831, 4294901760
    %v7218 = vsub.f32 %v6831, %v7217
    %v7219 = vand.u32 %v7218, 4294901760
    %7220 = vmatmul.mubr.f32.gmra.mxu0 %v7219
    %v7221 = vpop.f32.mrf.mxu0
    %v7222 = vadd.f32 %v7125, %v7221
    %v7223 = vpop.f32.mrf.mxu0
    %7224 = vmatprep.mubr.f32.mxu0 0.0
    %v7225 = vand.u32 %v6834, 4294901760
    %v7226 = vsub.f32 %v6834, %v7225
    %v7227 = vand.u32 %v7226, 4294901760
    %7228 = vmatmul.mubr.f32.gmra.mxu0 %v7227
    %v7229 = vpop.f32.mrf.mxu0
    %v7230 = vadd.f32 %v7132, %v7229
    %v7231 = vpop.f32.mrf.mxu0
    %7232 = vmatprep.mubr.f32.mxu0 0.0
    %v7233 = vand.u32 %v6837, 4294901760
    %v7234 = vsub.f32 %v6837, %v7233
    %v7235 = vand.u32 %v7234, 4294901760
    %7236 = vmatmul.mubr.f32.gmra.mxu0 %v7235
    %v7237 = vpop.f32.mrf.mxu0
    %v7238 = vadd.f32 %v7139, %v7237
    %v7239 = vpop.f32.mrf.mxu0
    %7240 = vdwg.mxu0
    %7241 = vmatprep.subr.mxu0 0.0
    %7242 = vmatpush1.msra.mxu0 0.0
    %7243 = vmatprep.subr.mxu0 0.0
    %7244 = vmatpush1.msra.mxu0 0.0
    %7245 = vmatprep.subr.mxu0 0.0
    %7246 = vmatpush1.msra.mxu0 0.0
    %7247 = vmatprep.subr.mxu0 0.0
    %7248 = vmatpush1.msra.mxu0 0.0
    %7249 = vmatprep.subr.mxu0 0.0
    %7250 = vmatpush1.msra.mxu0 0.0
    %7251 = vmatprep.subr.mxu0 0.0
    %7252 = vmatpush1.msra.mxu0 0.0
    %7253 = vmatprep.subr.mxu0 0.0
    %7254 = vmatpush1.msra.mxu0 0.0
    %7255 = vmatprep.subr.mxu0 0.0
    %7256 = vmatpush1.msra.mxu0 0.0
    %7257 = vmatprep.subr.mxu0 0.0
    %7258 = vmatpush1.msra.mxu0 0.0
    %7259 = vmatprep.subr.mxu0 0.0
    %7260 = vmatpush1.msra.mxu0 0.0
    %7261 = vmatprep.subr.mxu0 0.0
    %7262 = vmatpush1.msra.mxu0 0.0
    %7263 = vmatprep.subr.mxu0 0.0
    %7264 = vmatpush1.msra.mxu0 0.0
    %7265 = vmatprep.subr.mxu0 0.0
    %7266 = vmatpush1.msra.mxu0 0.0
    %7267 = vmatprep.subr.mxu0 0.0
    %7268 = vmatpush1.msra.mxu0 0.0
    %7269 = vmatprep.subr.mxu0 0.0
    %v7270 = vand.u32 %v6821, 4294901760
    %v7271 = vsub.f32 %v6821, %v7270
    %v7272 = vand.u32 %v7271, 4294901760
    %7273 = vmatpush1.msra.mxu0 %v7272
    %7274 = vmatprep.subr.mxu0 0.0
    %v7275 = vand.u32 %v6820, 4294901760
    %v7276 = vsub.f32 %v6820, %v7275
    %v7277 = vand.u32 %v7276, 4294901760
    %7278 = vmatpush1.msra.mxu0 %v7277
    %7279 = vmatprep.subr.mxu0 0.0
    %7280 = vmatpush2.msra.mxu0 0.0
    %7281 = vmatprep.subr.mxu0 0.0
    %7282 = vmatpush2.msra.mxu0 0.0
    %7283 = vmatprep.subr.mxu0 0.0
    %7284 = vmatpush2.msra.mxu0 0.0
    %7285 = vmatprep.subr.mxu0 0.0
    %7286 = vmatpush2.msra.mxu0 0.0
    %7287 = vmatprep.subr.mxu0 0.0
    %7288 = vmatpush2.msra.mxu0 0.0
    %7289 = vmatprep.subr.mxu0 0.0
    %7290 = vmatpush2.msra.mxu0 0.0
    %7291 = vmatprep.subr.mxu0 0.0
    %7292 = vmatpush2.msra.mxu0 0.0
    %7293 = vmatprep.subr.mxu0 0.0
    %7294 = vmatpush2.msra.mxu0 0.0
    %7295 = vmatprep.subr.mxu0 0.0
    %7296 = vmatpush2.msra.mxu0 0.0
    %7297 = vmatprep.subr.mxu0 0.0
    %7298 = vmatpush2.msra.mxu0 0.0
    %7299 = vmatprep.subr.mxu0 0.0
    %7300 = vmatpush2.msra.mxu0 0.0
    %7301 = vmatprep.subr.mxu0 0.0
    %7302 = vmatpush2.msra.mxu0 0.0
    %7303 = vmatprep.subr.mxu0 0.0
    %7304 = vmatpush2.msra.mxu0 0.0
    %7305 = vmatprep.subr.mxu0 0.0
    %7306 = vmatpush2.msra.mxu0 0.0
    %7307 = vmatprep.subr.mxu0 0.0
    %7308 = vmatpush2.msra.mxu0 0.0
    %7309 = vmatprep.subr.mxu0 0.0
    %7310 = vmatpush2.msra.mxu0 0.0
    %7311 = vmatprep.mubr.f32.mxu0 0.0
    %v7312 = vand.u32 %v6828, 4294901760
    %7313 = vmatmul.mubr.f32.gmra.mxu0 %v7312
    %v7314 = vpop.f32.mrf.mxu0
    %v7315 = vadd.f32 %v7214, %v7314
    %v7316 = vpop.f32.mrf.mxu0
    %7317 = vmatprep.mubr.f32.mxu0 0.0
    %v7318 = vand.u32 %v6831, 4294901760
    %7319 = vmatmul.mubr.f32.gmra.mxu0 %v7318
    %v7320 = vpop.f32.mrf.mxu0
    %v7321 = vadd.f32 %v7222, %v7320
    %v7322 = vpop.f32.mrf.mxu0
    %7323 = vmatprep.mubr.f32.mxu0 0.0
    %v7324 = vand.u32 %v6834, 4294901760
    %7325 = vmatmul.mubr.f32.gmra.mxu0 %v7324
    %v7326 = vpop.f32.mrf.mxu0
    %v7327 = vadd.f32 %v7230, %v7326
    %v7328 = vpop.f32.mrf.mxu0
    %7329 = vmatprep.mubr.f32.mxu0 0.0
    %v7330 = vand.u32 %v6837, 4294901760
    %7331 = vmatmul.mubr.f32.gmra.mxu0 %v7330
    %v7332 = vpop.f32.mrf.mxu0
    %v7333 = vadd.f32 %v7238, %v7332
    %v7334 = vpop.f32.mrf.mxu0
    %7335 = vdwg.mxu0
    %7336 = vmatprep.subr.mxu0 0.0
    %7337 = vmatpush1.msra.mxu0 0.0
    %7338 = vmatprep.subr.mxu0 0.0
    %7339 = vmatpush1.msra.mxu0 0.0
    %7340 = vmatprep.subr.mxu0 0.0
    %7341 = vmatpush1.msra.mxu0 0.0
    %7342 = vmatprep.subr.mxu0 0.0
    %7343 = vmatpush1.msra.mxu0 0.0
    %7344 = vmatprep.subr.mxu0 0.0
    %7345 = vmatpush1.msra.mxu0 0.0
    %7346 = vmatprep.subr.mxu0 0.0
    %7347 = vmatpush1.msra.mxu0 0.0
    %7348 = vmatprep.subr.mxu0 0.0
    %7349 = vmatpush1.msra.mxu0 0.0
    %7350 = vmatprep.subr.mxu0 0.0
    %7351 = vmatpush1.msra.mxu0 0.0
    %7352 = vmatprep.subr.mxu0 0.0
    %7353 = vmatpush1.msra.mxu0 0.0
    %7354 = vmatprep.subr.mxu0 0.0
    %7355 = vmatpush1.msra.mxu0 0.0
    %7356 = vmatprep.subr.mxu0 0.0
    %7357 = vmatpush1.msra.mxu0 0.0
    %7358 = vmatprep.subr.mxu0 0.0
    %7359 = vmatpush1.msra.mxu0 0.0
    %7360 = vmatprep.subr.mxu0 0.0
    %7361 = vmatpush1.msra.mxu0 0.0
    %7362 = vmatprep.subr.mxu0 0.0
    %7363 = vmatpush1.msra.mxu0 0.0
    %7364 = vmatprep.subr.mxu0 0.0
    %v7365 = vand.u32 %v6821, 4294901760
    %7366 = vmatpush1.msra.mxu0 %v7365
    %7367 = vmatprep.subr.mxu0 0.0
    %v7368 = vand.u32 %v6820, 4294901760
    %7369 = vmatpush1.msra.mxu0 %v7368
    %7370 = vmatprep.subr.mxu0 0.0
    %7371 = vmatpush2.msra.mxu0 0.0
    %7372 = vmatprep.subr.mxu0 0.0
    %7373 = vmatpush2.msra.mxu0 0.0
    %7374 = vmatprep.subr.mxu0 0.0
    %7375 = vmatpush2.msra.mxu0 0.0
    %7376 = vmatprep.subr.mxu0 0.0
    %7377 = vmatpush2.msra.mxu0 0.0
    %7378 = vmatprep.subr.mxu0 0.0
    %7379 = vmatpush2.msra.mxu0 0.0
    %7380 = vmatprep.subr.mxu0 0.0
    %7381 = vmatpush2.msra.mxu0 0.0
    %7382 = vmatprep.subr.mxu0 0.0
    %7383 = vmatpush2.msra.mxu0 0.0
    %7384 = vmatprep.subr.mxu0 0.0
    %7385 = vmatpush2.msra.mxu0 0.0
    %7386 = vmatprep.subr.mxu0 0.0
    %7387 = vmatpush2.msra.mxu0 0.0
    %7388 = vmatprep.subr.mxu0 0.0
    %7389 = vmatpush2.msra.mxu0 0.0
    %7390 = vmatprep.subr.mxu0 0.0
    %7391 = vmatpush2.msra.mxu0 0.0
    %7392 = vmatprep.subr.mxu0 0.0
    %7393 = vmatpush2.msra.mxu0 0.0
    %7394 = vmatprep.subr.mxu0 0.0
    %7395 = vmatpush2.msra.mxu0 0.0
    %7396 = vmatprep.subr.mxu0 0.0
    %7397 = vmatpush2.msra.mxu0 0.0
    %7398 = vmatprep.subr.mxu0 0.0
    %7399 = vmatpush2.msra.mxu0 0.0
    %7400 = vmatprep.subr.mxu0 0.0
    %7401 = vmatpush2.msra.mxu0 0.0
    %7402 = vmatprep.mubr.f32.mxu0 0.0
    %v7403 = vand.u32 %v6828, 4294901760
    %7404 = vmatmul.mubr.f32.gmra.mxu0 %v7403
    %v7405 = vpop.f32.mrf.mxu0
    %v7406 = vadd.f32 %v7315, %v7405
    %v7407 = vpop.f32.mrf.mxu0
    %7408 = vmatprep.mubr.f32.mxu0 0.0
    %v7409 = vand.u32 %v6831, 4294901760
    %7410 = vmatmul.mubr.f32.gmra.mxu0 %v7409
    %v7411 = vpop.f32.mrf.mxu0
    %v7412 = vadd.f32 %v7321, %v7411
    %v7413 = vpop.f32.mrf.mxu0
    %7414 = vmatprep.mubr.f32.mxu0 0.0
    %v7415 = vand.u32 %v6834, 4294901760
    %7416 = vmatmul.mubr.f32.gmra.mxu0 %v7415
    %v7417 = vpop.f32.mrf.mxu0
    %v7418 = vadd.f32 %v7327, %v7417
    %v7419 = vpop.f32.mrf.mxu0
    %7420 = vmatprep.mubr.f32.mxu0 0.0
    %v7421 = vand.u32 %v6837, 4294901760
    %7422 = vmatmul.mubr.f32.gmra.mxu0 %v7421
    %v7423 = vpop.f32.mrf.mxu0
    %v7424 = vadd.f32 %v7333, %v7423
    %v7425 = vpop.f32.mrf.mxu0
    %7426 = vdwg.mxu0
    %v7427 = vld [vmem:[#allocation5] sm:$0xff]
    %v7428 = vld [vmem:[#allocation5 + $0x8] sm:$0xff]
    %v7429 = vld [vmem:[#allocation5 + $0x10] sm:$0xff]
    %v7430 = vld [vmem:[#allocation5 + $0x18] sm:$0xff]
    %v7431 = vld [vmem:[#allocation5 + $0x20] sm:$0xff]
    %v7432 = vld [vmem:[#allocation5 + $0x28] sm:$0xff]
    %v7433 = vld [vmem:[#allocation5 + $0x30] sm:$0xff]
    %v7434 = vld [vmem:[#allocation5 + $0x38] sm:$0xff]
    %s7435 = scalar_lea.vmem [#allocation5], 64
    %v7436 = vld [vmem:[%s7435] sm:$0xff]
    %v7437 = vld [vmem:[%s7435 + $0x8] sm:$0xff]
    %v7438 = vld [vmem:[%s7435 + $0x10] sm:$0xff]
    %v7439 = vld [vmem:[%s7435 + $0x18] sm:$0xff]
    %v7440 = vld [vmem:[%s7435 + $0x20] sm:$0xff]
    %v7441 = vld [vmem:[%s7435 + $0x28] sm:$0xff]
    %v7442 = vld [vmem:[%s7435 + $0x30] sm:$0xff]
    %v7443 = vld [vmem:[%s7435 + $0x38] sm:$0xff]
    %vm7444 = vcmask 523264
    %v7446 = vsel %vm7444, %v7412, 0
    %7448 = vmatprep.subr.mxu0 0.0
    %7449 = vmatpush1.msra.mxu0 0.0
    %7450 = vmatprep.subr.mxu0 0.0
    %7451 = vmatpush1.msra.mxu0 0.0
    %7452 = vmatprep.subr.mxu0 0.0
    %7453 = vmatpush1.msra.mxu0 0.0
    %7454 = vmatprep.subr.mxu0 0.0
    %7455 = vmatpush1.msra.mxu0 0.0
    %7456 = vmatprep.subr.mxu0 0.0
    %7457 = vmatpush1.msra.mxu0 0.0
    %7458 = vmatprep.subr.mxu0 0.0
    %7459 = vmatpush1.msra.mxu0 0.0
    %7460 = vmatprep.subr.mxu0 0.0
    %7461 = vmatpush1.msra.mxu0 0.0
    %7462 = vmatprep.subr.mxu0 0.0
    %7463 = vmatpush1.msra.mxu0 0.0
    %7464 = vmatprep.subr.mxu0 0.0
    %v7465 = vand.u32 %v7443, 4294901760
    %7466 = vmatpush1.msra.mxu0 %v7465
    %7467 = vmatprep.subr.mxu0 0.0
    %v7468 = vand.u32 %v7442, 4294901760
    %7469 = vmatpush1.msra.mxu0 %v7468
    %7470 = vmatprep.subr.mxu0 0.0
    %v7471 = vand.u32 %v7441, 4294901760
    %7472 = vmatpush1.msra.mxu0 %v7471
    %7473 = vmatprep.subr.mxu0 0.0
    %v7474 = vand.u32 %v7440, 4294901760
    %7475 = vmatpush1.msra.mxu0 %v7474
    %7476 = vmatprep.subr.mxu0 0.0
    %v7477 = vand.u32 %v7439, 4294901760
    %7478 = vmatpush1.msra.mxu0 %v7477
    %7479 = vmatprep.subr.mxu0 0.0
    %v7480 = vand.u32 %v7438, 4294901760
    %7481 = vmatpush1.msra.mxu0 %v7480
    %7482 = vmatprep.subr.mxu0 0.0
    %v7483 = vand.u32 %v7437, 4294901760
    %7484 = vmatpush1.msra.mxu0 %v7483
    %7485 = vmatprep.subr.mxu0 0.0
    %v7486 = vand.u32 %v7436, 4294901760
    %7487 = vmatpush1.msra.mxu0 %v7486
    %7488 = vmatprep.subr.mxu0 0.0
    %7489 = vmatpush2.msra.mxu0 0.0
    %7490 = vmatprep.subr.mxu0 0.0
    %7491 = vmatpush2.msra.mxu0 0.0
    %7492 = vmatprep.subr.mxu0 0.0
    %7493 = vmatpush2.msra.mxu0 0.0
    %7494 = vmatprep.subr.mxu0 0.0
    %7495 = vmatpush2.msra.mxu0 0.0
    %7496 = vmatprep.subr.mxu0 0.0
    %7497 = vmatpush2.msra.mxu0 0.0
    %7498 = vmatprep.subr.mxu0 0.0
    %7499 = vmatpush2.msra.mxu0 0.0
    %7500 = vmatprep.subr.mxu0 0.0
    %7501 = vmatpush2.msra.mxu0 0.0
    %7502 = vmatprep.subr.mxu0 0.0
    %7503 = vmatpush2.msra.mxu0 0.0
    %7504 = vmatprep.subr.mxu0 0.0
    %7505 = vmatpush2.msra.mxu0 0.0
    %7506 = vmatprep.subr.mxu0 0.0
    %7507 = vmatpush2.msra.mxu0 0.0
    %7508 = vmatprep.subr.mxu0 0.0
    %7509 = vmatpush2.msra.mxu0 0.0
    %7510 = vmatprep.subr.mxu0 0.0
    %7511 = vmatpush2.msra.mxu0 0.0
    %7512 = vmatprep.subr.mxu0 0.0
    %7513 = vmatpush2.msra.mxu0 0.0
    %7514 = vmatprep.subr.mxu0 0.0
    %7515 = vmatpush2.msra.mxu0 0.0
    %7516 = vmatprep.subr.mxu0 0.0
    %7517 = vmatpush2.msra.mxu0 0.0
    %7518 = vmatprep.subr.mxu0 0.0
    %7519 = vmatpush2.msra.mxu0 0.0
    %7520 = vmatprep.mubr.f32.mxu0 0.0
    %v7521 = vand.u32 %v7446, 4294901760
    %v7522 = vsub.f32 %v7446, %v7521
    %v7523 = vand.u32 %v7522, 4294901760
    %v7524 = vsub.f32 %v7522, %v7523
    %v7525 = vand.u32 %v7524, 4294901760
    %7526 = vmatmul.mubr.f32.gmra.mxu0 %v7525
    %v7527 = vpop.f32.mrf.mxu0
    %v7528 = vadd.f32 0.0, %v7527
    %v7529 = vpop.f32.mrf.mxu0
    %7530 = vdwg.mxu0
    %7531 = vmatprep.subr.mxu0 0.0
    %7532 = vmatpush1.msra.mxu0 0.0
    %7533 = vmatprep.subr.mxu0 0.0
    %7534 = vmatpush1.msra.mxu0 0.0
    %7535 = vmatprep.subr.mxu0 0.0
    %7536 = vmatpush1.msra.mxu0 0.0
    %7537 = vmatprep.subr.mxu0 0.0
    %7538 = vmatpush1.msra.mxu0 0.0
    %7539 = vmatprep.subr.mxu0 0.0
    %7540 = vmatpush1.msra.mxu0 0.0
    %7541 = vmatprep.subr.mxu0 0.0
    %7542 = vmatpush1.msra.mxu0 0.0
    %7543 = vmatprep.subr.mxu0 0.0
    %7544 = vmatpush1.msra.mxu0 0.0
    %7545 = vmatprep.subr.mxu0 0.0
    %7546 = vmatpush1.msra.mxu0 0.0
    %7547 = vmatprep.subr.mxu0 0.0
    %v7548 = vand.u32 %v7443, 4294901760
    %v7549 = vsub.f32 %v7443, %v7548
    %v7550 = vand.u32 %v7549, 4294901760
    %v7551 = vsub.f32 %v7549, %v7550
    %v7552 = vand.u32 %v7551, 4294901760
    %7553 = vmatpush1.msra.mxu0 %v7552
    %7554 = vmatprep.subr.mxu0 0.0
    %v7555 = vand.u32 %v7442, 4294901760
    %v7556 = vsub.f32 %v7442, %v7555
    %v7557 = vand.u32 %v7556, 4294901760
    %v7558 = vsub.f32 %v7556, %v7557
    %v7559 = vand.u32 %v7558, 4294901760
    %7560 = vmatpush1.msra.mxu0 %v7559
    %7561 = vmatprep.subr.mxu0 0.0
    %v7562 = vand.u32 %v7441, 4294901760
    %v7563 = vsub.f32 %v7441, %v7562
    %v7564 = vand.u32 %v7563, 4294901760
    %v7565 = vsub.f32 %v7563, %v7564
    %v7566 = vand.u32 %v7565, 4294901760
    %7567 = vmatpush1.msra.mxu0 %v7566
    %7568 = vmatprep.subr.mxu0 0.0
    %v7569 = vand.u32 %v7440, 4294901760
    %v7570 = vsub.f32 %v7440, %v7569
    %v7571 = vand.u32 %v7570, 4294901760
    %v7572 = vsub.f32 %v7570, %v7571
    %v7573 = vand.u32 %v7572, 4294901760
    %7574 = vmatpush1.msra.mxu0 %v7573
    %7575 = vmatprep.subr.mxu0 0.0
    %v7576 = vand.u32 %v7439, 4294901760
    %v7577 = vsub.f32 %v7439, %v7576
    %v7578 = vand.u32 %v7577, 4294901760
    %v7579 = vsub.f32 %v7577, %v7578
    %v7580 = vand.u32 %v7579, 4294901760
    %7581 = vmatpush1.msra.mxu0 %v7580
    %7582 = vmatprep.subr.mxu0 0.0
    %v7583 = vand.u32 %v7438, 4294901760
    %v7584 = vsub.f32 %v7438, %v7583
    %v7585 = vand.u32 %v7584, 4294901760
    %v7586 = vsub.f32 %v7584, %v7585
    %v7587 = vand.u32 %v7586, 4294901760
    %7588 = vmatpush1.msra.mxu0 %v7587
    %7589 = vmatprep.subr.mxu0 0.0
    %v7590 = vand.u32 %v7437, 4294901760
    %v7591 = vsub.f32 %v7437, %v7590
    %v7592 = vand.u32 %v7591, 4294901760
    %v7593 = vsub.f32 %v7591, %v7592
    %v7594 = vand.u32 %v7593, 4294901760
    %7595 = vmatpush1.msra.mxu0 %v7594
    %7596 = vmatprep.subr.mxu0 0.0
    %v7597 = vand.u32 %v7436, 4294901760
    %v7598 = vsub.f32 %v7436, %v7597
    %v7599 = vand.u32 %v7598, 4294901760
    %v7600 = vsub.f32 %v7598, %v7599
    %v7601 = vand.u32 %v7600, 4294901760
    %7602 = vmatpush1.msra.mxu0 %v7601
    %7603 = vmatprep.subr.mxu0 0.0
    %7604 = vmatpush2.msra.mxu0 0.0
    %7605 = vmatprep.subr.mxu0 0.0
    %7606 = vmatpush2.msra.mxu0 0.0
    %7607 = vmatprep.subr.mxu0 0.0
    %7608 = vmatpush2.msra.mxu0 0.0
    %7609 = vmatprep.subr.mxu0 0.0
    %7610 = vmatpush2.msra.mxu0 0.0
    %7611 = vmatprep.subr.mxu0 0.0
    %7612 = vmatpush2.msra.mxu0 0.0
    %7613 = vmatprep.subr.mxu0 0.0
    %7614 = vmatpush2.msra.mxu0 0.0
    %7615 = vmatprep.subr.mxu0 0.0
    %7616 = vmatpush2.msra.mxu0 0.0
    %7617 = vmatprep.subr.mxu0 0.0
    %7618 = vmatpush2.msra.mxu0 0.0
    %7619 = vmatprep.subr.mxu0 0.0
    %7620 = vmatpush2.msra.mxu0 0.0
    %7621 = vmatprep.subr.mxu0 0.0
    %7622 = vmatpush2.msra.mxu0 0.0
    %7623 = vmatprep.subr.mxu0 0.0
    %7624 = vmatpush2.msra.mxu0 0.0
    %7625 = vmatprep.subr.mxu0 0.0
    %7626 = vmatpush2.msra.mxu0 0.0
    %7627 = vmatprep.subr.mxu0 0.0
    %7628 = vmatpush2.msra.mxu0 0.0
    %7629 = vmatprep.subr.mxu0 0.0
    %7630 = vmatpush2.msra.mxu0 0.0
    %7631 = vmatprep.subr.mxu0 0.0
    %7632 = vmatpush2.msra.mxu0 0.0
    %7633 = vmatprep.subr.mxu0 0.0
    %7634 = vmatpush2.msra.mxu0 0.0
    %7635 = vmatprep.mubr.f32.mxu0 0.0
    %v7636 = vand.u32 %v7446, 4294901760
    %7637 = vmatmul.mubr.f32.gmra.mxu0 %v7636
    %v7638 = vpop.f32.mrf.mxu0
    %v7639 = vadd.f32 %v7528, %v7638
    %v7640 = vpop.f32.mrf.mxu0
    %7641 = vdwg.mxu0
    %7642 = vmatprep.subr.mxu0 0.0
    %7643 = vmatpush1.msra.mxu0 0.0
    %7644 = vmatprep.subr.mxu0 0.0
    %7645 = vmatpush1.msra.mxu0 0.0
    %7646 = vmatprep.subr.mxu0 0.0
    %7647 = vmatpush1.msra.mxu0 0.0
    %7648 = vmatprep.subr.mxu0 0.0
    %7649 = vmatpush1.msra.mxu0 0.0
    %7650 = vmatprep.subr.mxu0 0.0
    %7651 = vmatpush1.msra.mxu0 0.0
    %7652 = vmatprep.subr.mxu0 0.0
    %7653 = vmatpush1.msra.mxu0 0.0
    %7654 = vmatprep.subr.mxu0 0.0
    %7655 = vmatpush1.msra.mxu0 0.0
    %7656 = vmatprep.subr.mxu0 0.0
    %7657 = vmatpush1.msra.mxu0 0.0
    %7658 = vmatprep.subr.mxu0 0.0
    %v7659 = vand.u32 %v7443, 4294901760
    %v7660 = vsub.f32 %v7443, %v7659
    %7661 = vmatpush1.msra.mxu0 %v7660
    %7662 = vmatprep.subr.mxu0 0.0
    %v7663 = vand.u32 %v7442, 4294901760
    %v7664 = vsub.f32 %v7442, %v7663
    %7665 = vmatpush1.msra.mxu0 %v7664
    %7666 = vmatprep.subr.mxu0 0.0
    %v7667 = vand.u32 %v7441, 4294901760
    %v7668 = vsub.f32 %v7441, %v7667
    %7669 = vmatpush1.msra.mxu0 %v7668
    %7670 = vmatprep.subr.mxu0 0.0
    %v7671 = vand.u32 %v7440, 4294901760
    %v7672 = vsub.f32 %v7440, %v7671
    %7673 = vmatpush1.msra.mxu0 %v7672
    %7674 = vmatprep.subr.mxu0 0.0
    %v7675 = vand.u32 %v7439, 4294901760
    %v7676 = vsub.f32 %v7439, %v7675
    %7677 = vmatpush1.msra.mxu0 %v7676
    %7678 = vmatprep.subr.mxu0 0.0
    %v7679 = vand.u32 %v7438, 4294901760
    %v7680 = vsub.f32 %v7438, %v7679
    %7681 = vmatpush1.msra.mxu0 %v7680
    %7682 = vmatprep.subr.mxu0 0.0
    %v7683 = vand.u32 %v7437, 4294901760
    %v7684 = vsub.f32 %v7437, %v7683
    %7685 = vmatpush1.msra.mxu0 %v7684
    %7686 = vmatprep.subr.mxu0 0.0
    %v7687 = vand.u32 %v7436, 4294901760
    %v7688 = vsub.f32 %v7436, %v7687
    %7689 = vmatpush1.msra.mxu0 %v7688
    %7690 = vmatprep.subr.mxu0 0.0
    %7691 = vmatpush2.msra.mxu0 0.0
    %7692 = vmatprep.subr.mxu0 0.0
    %7693 = vmatpush2.msra.mxu0 0.0
    %7694 = vmatprep.subr.mxu0 0.0
    %7695 = vmatpush2.msra.mxu0 0.0
    %7696 = vmatprep.subr.mxu0 0.0
    %7697 = vmatpush2.msra.mxu0 0.0
    %7698 = vmatprep.subr.mxu0 0.0
    %7699 = vmatpush2.msra.mxu0 0.0
    %7700 = vmatprep.subr.mxu0 0.0
    %7701 = vmatpush2.msra.mxu0 0.0
    %7702 = vmatprep.subr.mxu0 0.0
    %7703 = vmatpush2.msra.mxu0 0.0
    %7704 = vmatprep.subr.mxu0 0.0
    %7705 = vmatpush2.msra.mxu0 0.0
    %7706 = vmatprep.subr.mxu0 0.0
    %7707 = vmatpush2.msra.mxu0 0.0
    %7708 = vmatprep.subr.mxu0 0.0
    %7709 = vmatpush2.msra.mxu0 0.0
    %7710 = vmatprep.subr.mxu0 0.0
    %7711 = vmatpush2.msra.mxu0 0.0
    %7712 = vmatprep.subr.mxu0 0.0
    %7713 = vmatpush2.msra.mxu0 0.0
    %7714 = vmatprep.subr.mxu0 0.0
    %7715 = vmatpush2.msra.mxu0 0.0
    %7716 = vmatprep.subr.mxu0 0.0
    %7717 = vmatpush2.msra.mxu0 0.0
    %7718 = vmatprep.subr.mxu0 0.0
    %7719 = vmatpush2.msra.mxu0 0.0
    %7720 = vmatprep.subr.mxu0 0.0
    %7721 = vmatpush2.msra.mxu0 0.0
    %7722 = vmatprep.mubr.f32.mxu0 0.0
    %v7723 = vand.u32 %v7446, 4294901760
    %v7724 = vsub.f32 %v7446, %v7723
    %7725 = vmatmul.mubr.f32.gmra.mxu0 %v7724
    %v7726 = vpop.f32.mrf.mxu0
    %v7727 = vadd.f32 %v7639, %v7726
    %v7728 = vpop.f32.mrf.mxu0
    %7729 = vdwg.mxu0
    %7730 = vmatprep.subr.mxu0 0.0
    %7731 = vmatpush1.msra.mxu0 0.0
    %7732 = vmatprep.subr.mxu0 0.0
    %7733 = vmatpush1.msra.mxu0 0.0
    %7734 = vmatprep.subr.mxu0 0.0
    %7735 = vmatpush1.msra.mxu0 0.0
    %7736 = vmatprep.subr.mxu0 0.0
    %7737 = vmatpush1.msra.mxu0 0.0
    %7738 = vmatprep.subr.mxu0 0.0
    %7739 = vmatpush1.msra.mxu0 0.0
    %7740 = vmatprep.subr.mxu0 0.0
    %7741 = vmatpush1.msra.mxu0 0.0
    %7742 = vmatprep.subr.mxu0 0.0
    %7743 = vmatpush1.msra.mxu0 0.0
    %7744 = vmatprep.subr.mxu0 0.0
    %7745 = vmatpush1.msra.mxu0 0.0
    %7746 = vmatprep.subr.mxu0 0.0
    %v7747 = vand.u32 %v7443, 4294901760
    %7748 = vmatpush1.msra.mxu0 %v7747
    %7749 = vmatprep.subr.mxu0 0.0
    %v7750 = vand.u32 %v7442, 4294901760
    %7751 = vmatpush1.msra.mxu0 %v7750
    %7752 = vmatprep.subr.mxu0 0.0
    %v7753 = vand.u32 %v7441, 4294901760
    %7754 = vmatpush1.msra.mxu0 %v7753
    %7755 = vmatprep.subr.mxu0 0.0
    %v7756 = vand.u32 %v7440, 4294901760
    %7757 = vmatpush1.msra.mxu0 %v7756
    %7758 = vmatprep.subr.mxu0 0.0
    %v7759 = vand.u32 %v7439, 4294901760
    %7760 = vmatpush1.msra.mxu0 %v7759
    %7761 = vmatprep.subr.mxu0 0.0
    %v7762 = vand.u32 %v7438, 4294901760
    %7763 = vmatpush1.msra.mxu0 %v7762
    %7764 = vmatprep.subr.mxu0 0.0
    %v7765 = vand.u32 %v7437, 4294901760
    %7766 = vmatpush1.msra.mxu0 %v7765
    %7767 = vmatprep.subr.mxu0 0.0
    %v7768 = vand.u32 %v7436, 4294901760
    %7769 = vmatpush1.msra.mxu0 %v7768
    %7770 = vmatprep.subr.mxu0 0.0
    %7771 = vmatpush2.msra.mxu0 0.0
    %7772 = vmatprep.subr.mxu0 0.0
    %7773 = vmatpush2.msra.mxu0 0.0
    %7774 = vmatprep.subr.mxu0 0.0
    %7775 = vmatpush2.msra.mxu0 0.0
    %7776 = vmatprep.subr.mxu0 0.0
    %7777 = vmatpush2.msra.mxu0 0.0
    %7778 = vmatprep.subr.mxu0 0.0
    %7779 = vmatpush2.msra.mxu0 0.0
    %7780 = vmatprep.subr.mxu0 0.0
    %7781 = vmatpush2.msra.mxu0 0.0
    %7782 = vmatprep.subr.mxu0 0.0
    %7783 = vmatpush2.msra.mxu0 0.0
    %7784 = vmatprep.subr.mxu0 0.0
    %7785 = vmatpush2.msra.mxu0 0.0
    %7786 = vmatprep.subr.mxu0 0.0
    %7787 = vmatpush2.msra.mxu0 0.0
    %7788 = vmatprep.subr.mxu0 0.0
    %7789 = vmatpush2.msra.mxu0 0.0
    %7790 = vmatprep.subr.mxu0 0.0
    %7791 = vmatpush2.msra.mxu0 0.0
    %7792 = vmatprep.subr.mxu0 0.0
    %7793 = vmatpush2.msra.mxu0 0.0
    %7794 = vmatprep.subr.mxu0 0.0
    %7795 = vmatpush2.msra.mxu0 0.0
    %7796 = vmatprep.subr.mxu0 0.0
    %7797 = vmatpush2.msra.mxu0 0.0
    %7798 = vmatprep.subr.mxu0 0.0
    %7799 = vmatpush2.msra.mxu0 0.0
    %7800 = vmatprep.subr.mxu0 0.0
    %7801 = vmatpush2.msra.mxu0 0.0
    %7802 = vmatprep.mubr.f32.mxu0 0.0
    %v7803 = vand.u32 %v7446, 4294901760
    %v7804 = vsub.f32 %v7446, %v7803
    %v7805 = vand.u32 %v7804, 4294901760
    %7806 = vmatmul.mubr.f32.gmra.mxu0 %v7805
    %v7807 = vpop.f32.mrf.mxu0
    %v7808 = vadd.f32 %v7727, %v7807
    %v7809 = vpop.f32.mrf.mxu0
    %7810 = vdwg.mxu0
    %7811 = vmatprep.subr.mxu0 0.0
    %7812 = vmatpush1.msra.mxu0 0.0
    %7813 = vmatprep.subr.mxu0 0.0
    %7814 = vmatpush1.msra.mxu0 0.0
    %7815 = vmatprep.subr.mxu0 0.0
    %7816 = vmatpush1.msra.mxu0 0.0
    %7817 = vmatprep.subr.mxu0 0.0
    %7818 = vmatpush1.msra.mxu0 0.0
    %7819 = vmatprep.subr.mxu0 0.0
    %7820 = vmatpush1.msra.mxu0 0.0
    %7821 = vmatprep.subr.mxu0 0.0
    %7822 = vmatpush1.msra.mxu0 0.0
    %7823 = vmatprep.subr.mxu0 0.0
    %7824 = vmatpush1.msra.mxu0 0.0
    %7825 = vmatprep.subr.mxu0 0.0
    %7826 = vmatpush1.msra.mxu0 0.0
    %7827 = vmatprep.subr.mxu0 0.0
    %v7828 = vand.u32 %v7443, 4294901760
    %v7829 = vsub.f32 %v7443, %v7828
    %v7830 = vand.u32 %v7829, 4294901760
    %7831 = vmatpush1.msra.mxu0 %v7830
    %7832 = vmatprep.subr.mxu0 0.0
    %v7833 = vand.u32 %v7442, 4294901760
    %v7834 = vsub.f32 %v7442, %v7833
    %v7835 = vand.u32 %v7834, 4294901760
    %7836 = vmatpush1.msra.mxu0 %v7835
    %7837 = vmatprep.subr.mxu0 0.0
    %v7838 = vand.u32 %v7441, 4294901760
    %v7839 = vsub.f32 %v7441, %v7838
    %v7840 = vand.u32 %v7839, 4294901760
    %7841 = vmatpush1.msra.mxu0 %v7840
    %7842 = vmatprep.subr.mxu0 0.0
    %v7843 = vand.u32 %v7440, 4294901760
    %v7844 = vsub.f32 %v7440, %v7843
    %v7845 = vand.u32 %v7844, 4294901760
    %7846 = vmatpush1.msra.mxu0 %v7845
    %7847 = vmatprep.subr.mxu0 0.0
    %v7848 = vand.u32 %v7439, 4294901760
    %v7849 = vsub.f32 %v7439, %v7848
    %v7850 = vand.u32 %v7849, 4294901760
    %7851 = vmatpush1.msra.mxu0 %v7850
    %7852 = vmatprep.subr.mxu0 0.0
    %v7853 = vand.u32 %v7438, 4294901760
    %v7854 = vsub.f32 %v7438, %v7853
    %v7855 = vand.u32 %v7854, 4294901760
    %7856 = vmatpush1.msra.mxu0 %v7855
    %7857 = vmatprep.subr.mxu0 0.0
    %v7858 = vand.u32 %v7437, 4294901760
    %v7859 = vsub.f32 %v7437, %v7858
    %v7860 = vand.u32 %v7859, 4294901760
    %7861 = vmatpush1.msra.mxu0 %v7860
    %7862 = vmatprep.subr.mxu0 0.0
    %v7863 = vand.u32 %v7436, 4294901760
    %v7864 = vsub.f32 %v7436, %v7863
    %v7865 = vand.u32 %v7864, 4294901760
    %7866 = vmatpush1.msra.mxu0 %v7865
    %7867 = vmatprep.subr.mxu0 0.0
    %7868 = vmatpush2.msra.mxu0 0.0
    %7869 = vmatprep.subr.mxu0 0.0
    %7870 = vmatpush2.msra.mxu0 0.0
    %7871 = vmatprep.subr.mxu0 0.0
    %7872 = vmatpush2.msra.mxu0 0.0
    %7873 = vmatprep.subr.mxu0 0.0
    %7874 = vmatpush2.msra.mxu0 0.0
    %7875 = vmatprep.subr.mxu0 0.0
    %7876 = vmatpush2.msra.mxu0 0.0
    %7877 = vmatprep.subr.mxu0 0.0
    %7878 = vmatpush2.msra.mxu0 0.0
    %7879 = vmatprep.subr.mxu0 0.0
    %7880 = vmatpush2.msra.mxu0 0.0
    %7881 = vmatprep.subr.mxu0 0.0
    %7882 = vmatpush2.msra.mxu0 0.0
    %7883 = vmatprep.subr.mxu0 0.0
    %7884 = vmatpush2.msra.mxu0 0.0
    %7885 = vmatprep.subr.mxu0 0.0
    %7886 = vmatpush2.msra.mxu0 0.0
    %7887 = vmatprep.subr.mxu0 0.0
    %7888 = vmatpush2.msra.mxu0 0.0
    %7889 = vmatprep.subr.mxu0 0.0
    %7890 = vmatpush2.msra.mxu0 0.0
    %7891 = vmatprep.subr.mxu0 0.0
    %7892 = vmatpush2.msra.mxu0 0.0
    %7893 = vmatprep.subr.mxu0 0.0
    %7894 = vmatpush2.msra.mxu0 0.0
    %7895 = vmatprep.subr.mxu0 0.0
    %7896 = vmatpush2.msra.mxu0 0.0
    %7897 = vmatprep.subr.mxu0 0.0
    %7898 = vmatpush2.msra.mxu0 0.0
    %7899 = vmatprep.mubr.f32.mxu0 0.0
    %v7900 = vand.u32 %v7446, 4294901760
    %7901 = vmatmul.mubr.f32.gmra.mxu0 %v7900
    %v7902 = vpop.f32.mrf.mxu0
    %v7903 = vadd.f32 %v7808, %v7902
    %v7904 = vpop.f32.mrf.mxu0
    %7905 = vdwg.mxu0
    %7906 = vmatprep.subr.mxu0 0.0
    %7907 = vmatpush1.msra.mxu0 0.0
    %7908 = vmatprep.subr.mxu0 0.0
    %7909 = vmatpush1.msra.mxu0 0.0
    %7910 = vmatprep.subr.mxu0 0.0
    %7911 = vmatpush1.msra.mxu0 0.0
    %7912 = vmatprep.subr.mxu0 0.0
    %7913 = vmatpush1.msra.mxu0 0.0
    %7914 = vmatprep.subr.mxu0 0.0
    %7915 = vmatpush1.msra.mxu0 0.0
    %7916 = vmatprep.subr.mxu0 0.0
    %7917 = vmatpush1.msra.mxu0 0.0
    %7918 = vmatprep.subr.mxu0 0.0
    %7919 = vmatpush1.msra.mxu0 0.0
    %7920 = vmatprep.subr.mxu0 0.0
    %7921 = vmatpush1.msra.mxu0 0.0
    %7922 = vmatprep.subr.mxu0 0.0
    %v7923 = vand.u32 %v7443, 4294901760
    %7924 = vmatpush1.msra.mxu0 %v7923
    %7925 = vmatprep.subr.mxu0 0.0
    %v7926 = vand.u32 %v7442, 4294901760
    %7927 = vmatpush1.msra.mxu0 %v7926
    %7928 = vmatprep.subr.mxu0 0.0
    %v7929 = vand.u32 %v7441, 4294901760
    %7930 = vmatpush1.msra.mxu0 %v7929
    %7931 = vmatprep.subr.mxu0 0.0
    %v7932 = vand.u32 %v7440, 4294901760
    %7933 = vmatpush1.msra.mxu0 %v7932
    %7934 = vmatprep.subr.mxu0 0.0
    %v7935 = vand.u32 %v7439, 4294901760
    %7936 = vmatpush1.msra.mxu0 %v7935
    %7937 = vmatprep.subr.mxu0 0.0
    %v7938 = vand.u32 %v7438, 4294901760
    %7939 = vmatpush1.msra.mxu0 %v7938
    %7940 = vmatprep.subr.mxu0 0.0
    %v7941 = vand.u32 %v7437, 4294901760
    %7942 = vmatpush1.msra.mxu0 %v7941
    %7943 = vmatprep.subr.mxu0 0.0
    %v7944 = vand.u32 %v7436, 4294901760
    %7945 = vmatpush1.msra.mxu0 %v7944
    %7946 = vmatprep.subr.mxu0 0.0
    %7947 = vmatpush2.msra.mxu0 0.0
    %7948 = vmatprep.subr.mxu0 0.0
    %7949 = vmatpush2.msra.mxu0 0.0
    %7950 = vmatprep.subr.mxu0 0.0
    %7951 = vmatpush2.msra.mxu0 0.0
    %7952 = vmatprep.subr.mxu0 0.0
    %7953 = vmatpush2.msra.mxu0 0.0
    %7954 = vmatprep.subr.mxu0 0.0
    %7955 = vmatpush2.msra.mxu0 0.0
    %7956 = vmatprep.subr.mxu0 0.0
    %7957 = vmatpush2.msra.mxu0 0.0
    %7958 = vmatprep.subr.mxu0 0.0
    %7959 = vmatpush2.msra.mxu0 0.0
    %7960 = vmatprep.subr.mxu0 0.0
    %7961 = vmatpush2.msra.mxu0 0.0
    %7962 = vmatprep.subr.mxu0 0.0
    %7963 = vmatpush2.msra.mxu0 0.0
    %7964 = vmatprep.subr.mxu0 0.0
    %7965 = vmatpush2.msra.mxu0 0.0
    %7966 = vmatprep.subr.mxu0 0.0
    %7967 = vmatpush2.msra.mxu0 0.0
    %7968 = vmatprep.subr.mxu0 0.0
    %7969 = vmatpush2.msra.mxu0 0.0
    %7970 = vmatprep.subr.mxu0 0.0
    %7971 = vmatpush2.msra.mxu0 0.0
    %7972 = vmatprep.subr.mxu0 0.0
    %7973 = vmatpush2.msra.mxu0 0.0
    %7974 = vmatprep.subr.mxu0 0.0
    %7975 = vmatpush2.msra.mxu0 0.0
    %7976 = vmatprep.subr.mxu0 0.0
    %7977 = vmatpush2.msra.mxu0 0.0
    %7978 = vmatprep.mubr.f32.mxu0 0.0
    %v7979 = vand.u32 %v7446, 4294901760
    %7980 = vmatmul.mubr.f32.gmra.mxu0 %v7979
    %v7981 = vpop.f32.mrf.mxu0
    %v7982 = vadd.f32 %v7903, %v7981
    %v7983 = vpop.f32.mrf.mxu0
    %7984 = vdwg.mxu0
    %s7985 = scalar_lea.vmem [#allocation5], 128
    %v7986 = vld [vmem:[%s7985] sm:$0xff]
    %v7987 = vld [vmem:[%s7985 + $0x8] sm:$0xff]
    %v7988 = vld [vmem:[%s7985 + $0x10] sm:$0xff]
    %v7989 = vld [vmem:[%s7985 + $0x18] sm:$0xff]
    %v7990 = vld [vmem:[%s7985 + $0x20] sm:$0xff]
    %v7991 = vld [vmem:[%s7985 + $0x28] sm:$0xff]
    %v7992 = vld [vmem:[%s7985 + $0x30] sm:$0xff]
    %v7993 = vld [vmem:[%s7985 + $0x38] sm:$0xff]
    %s7994 = scalar_lea.vmem [#allocation5], 192
    %v7995 = vld [vmem:[%s7994] sm:$0xff]
    %v7996 = vld [vmem:[%s7994 + $0x8] sm:$0xff]
    %v7997 = vld [vmem:[%s7994 + $0x10] sm:$0xff]
    %v7998 = vld [vmem:[%s7994 + $0x18] sm:$0xff]
    %v7999 = vld [vmem:[%s7994 + $0x20] sm:$0xff]
    %v8000 = vld [vmem:[%s7994 + $0x28] sm:$0xff]
    %v8001 = vld [vmem:[%s7994 + $0x30] sm:$0xff]
    %v8002 = vld [vmem:[%s7994 + $0x38] sm:$0xff]
    %v8004 = vsel %vm7444, %v7424, 0
    %8006 = vmatprep.subr.mxu0 0.0
    %8007 = vmatpush1.msra.mxu0 0.0
    %8008 = vmatprep.subr.mxu0 0.0
    %8009 = vmatpush1.msra.mxu0 0.0
    %8010 = vmatprep.subr.mxu0 0.0
    %8011 = vmatpush1.msra.mxu0 0.0
    %8012 = vmatprep.subr.mxu0 0.0
    %8013 = vmatpush1.msra.mxu0 0.0
    %8014 = vmatprep.subr.mxu0 0.0
    %8015 = vmatpush1.msra.mxu0 0.0
    %8016 = vmatprep.subr.mxu0 0.0
    %8017 = vmatpush1.msra.mxu0 0.0
    %8018 = vmatprep.subr.mxu0 0.0
    %8019 = vmatpush1.msra.mxu0 0.0
    %8020 = vmatprep.subr.mxu0 0.0
    %8021 = vmatpush1.msra.mxu0 0.0
    %8022 = vmatprep.subr.mxu0 0.0
    %v8023 = vand.u32 %v8002, 4294901760
    %8024 = vmatpush1.msra.mxu0 %v8023
    %8025 = vmatprep.subr.mxu0 0.0
    %v8026 = vand.u32 %v8001, 4294901760
    %8027 = vmatpush1.msra.mxu0 %v8026
    %8028 = vmatprep.subr.mxu0 0.0
    %v8029 = vand.u32 %v8000, 4294901760
    %8030 = vmatpush1.msra.mxu0 %v8029
    %8031 = vmatprep.subr.mxu0 0.0
    %v8032 = vand.u32 %v7999, 4294901760
    %8033 = vmatpush1.msra.mxu0 %v8032
    %8034 = vmatprep.subr.mxu0 0.0
    %v8035 = vand.u32 %v7998, 4294901760
    %8036 = vmatpush1.msra.mxu0 %v8035
    %8037 = vmatprep.subr.mxu0 0.0
    %v8038 = vand.u32 %v7997, 4294901760
    %8039 = vmatpush1.msra.mxu0 %v8038
    %8040 = vmatprep.subr.mxu0 0.0
    %v8041 = vand.u32 %v7996, 4294901760
    %8042 = vmatpush1.msra.mxu0 %v8041
    %8043 = vmatprep.subr.mxu0 0.0
    %v8044 = vand.u32 %v7995, 4294901760
    %8045 = vmatpush1.msra.mxu0 %v8044
    %8046 = vmatprep.subr.mxu0 0.0
    %8047 = vmatpush2.msra.mxu0 0.0
    %8048 = vmatprep.subr.mxu0 0.0
    %8049 = vmatpush2.msra.mxu0 0.0
    %8050 = vmatprep.subr.mxu0 0.0
    %8051 = vmatpush2.msra.mxu0 0.0
    %8052 = vmatprep.subr.mxu0 0.0
    %8053 = vmatpush2.msra.mxu0 0.0
    %8054 = vmatprep.subr.mxu0 0.0
    %8055 = vmatpush2.msra.mxu0 0.0
    %8056 = vmatprep.subr.mxu0 0.0
    %8057 = vmatpush2.msra.mxu0 0.0
    %8058 = vmatprep.subr.mxu0 0.0
    %8059 = vmatpush2.msra.mxu0 0.0
    %8060 = vmatprep.subr.mxu0 0.0
    %8061 = vmatpush2.msra.mxu0 0.0
    %8062 = vmatprep.subr.mxu0 0.0
    %8063 = vmatpush2.msra.mxu0 0.0
    %8064 = vmatprep.subr.mxu0 0.0
    %8065 = vmatpush2.msra.mxu0 0.0
    %8066 = vmatprep.subr.mxu0 0.0
    %8067 = vmatpush2.msra.mxu0 0.0
    %8068 = vmatprep.subr.mxu0 0.0
    %8069 = vmatpush2.msra.mxu0 0.0
    %8070 = vmatprep.subr.mxu0 0.0
    %8071 = vmatpush2.msra.mxu0 0.0
    %8072 = vmatprep.subr.mxu0 0.0
    %8073 = vmatpush2.msra.mxu0 0.0
    %8074 = vmatprep.subr.mxu0 0.0
    %8075 = vmatpush2.msra.mxu0 0.0
    %8076 = vmatprep.subr.mxu0 0.0
    %8077 = vmatpush2.msra.mxu0 0.0
    %8078 = vmatprep.mubr.f32.mxu0 0.0
    %v8079 = vand.u32 %v8004, 4294901760
    %v8080 = vsub.f32 %v8004, %v8079
    %v8081 = vand.u32 %v8080, 4294901760
    %v8082 = vsub.f32 %v8080, %v8081
    %v8083 = vand.u32 %v8082, 4294901760
    %8084 = vmatmul.mubr.f32.gmra.mxu0 %v8083
    %v8085 = vpop.f32.mrf.mxu0
    %v8086 = vadd.f32 0.0, %v8085
    %v8087 = vpop.f32.mrf.mxu0
    %8088 = vdwg.mxu0
    %8089 = vmatprep.subr.mxu0 0.0
    %8090 = vmatpush1.msra.mxu0 0.0
    %8091 = vmatprep.subr.mxu0 0.0
    %8092 = vmatpush1.msra.mxu0 0.0
    %8093 = vmatprep.subr.mxu0 0.0
    %8094 = vmatpush1.msra.mxu0 0.0
    %8095 = vmatprep.subr.mxu0 0.0
    %8096 = vmatpush1.msra.mxu0 0.0
    %8097 = vmatprep.subr.mxu0 0.0
    %8098 = vmatpush1.msra.mxu0 0.0
    %8099 = vmatprep.subr.mxu0 0.0
    %8100 = vmatpush1.msra.mxu0 0.0
    %8101 = vmatprep.subr.mxu0 0.0
    %8102 = vmatpush1.msra.mxu0 0.0
    %8103 = vmatprep.subr.mxu0 0.0
    %8104 = vmatpush1.msra.mxu0 0.0
    %8105 = vmatprep.subr.mxu0 0.0
    %v8106 = vand.u32 %v8002, 4294901760
    %v8107 = vsub.f32 %v8002, %v8106
    %v8108 = vand.u32 %v8107, 4294901760
    %v8109 = vsub.f32 %v8107, %v8108
    %v8110 = vand.u32 %v8109, 4294901760
    %8111 = vmatpush1.msra.mxu0 %v8110
    %8112 = vmatprep.subr.mxu0 0.0
    %v8113 = vand.u32 %v8001, 4294901760
    %v8114 = vsub.f32 %v8001, %v8113
    %v8115 = vand.u32 %v8114, 4294901760
    %v8116 = vsub.f32 %v8114, %v8115
    %v8117 = vand.u32 %v8116, 4294901760
    %8118 = vmatpush1.msra.mxu0 %v8117
    %8119 = vmatprep.subr.mxu0 0.0
    %v8120 = vand.u32 %v8000, 4294901760
    %v8121 = vsub.f32 %v8000, %v8120
    %v8122 = vand.u32 %v8121, 4294901760
    %v8123 = vsub.f32 %v8121, %v8122
    %v8124 = vand.u32 %v8123, 4294901760
    %8125 = vmatpush1.msra.mxu0 %v8124
    %8126 = vmatprep.subr.mxu0 0.0
    %v8127 = vand.u32 %v7999, 4294901760
    %v8128 = vsub.f32 %v7999, %v8127
    %v8129 = vand.u32 %v8128, 4294901760
    %v8130 = vsub.f32 %v8128, %v8129
    %v8131 = vand.u32 %v8130, 4294901760
    %8132 = vmatpush1.msra.mxu0 %v8131
    %8133 = vmatprep.subr.mxu0 0.0
    %v8134 = vand.u32 %v7998, 4294901760
    %v8135 = vsub.f32 %v7998, %v8134
    %v8136 = vand.u32 %v8135, 4294901760
    %v8137 = vsub.f32 %v8135, %v8136
    %v8138 = vand.u32 %v8137, 4294901760
    %8139 = vmatpush1.msra.mxu0 %v8138
    %8140 = vmatprep.subr.mxu0 0.0
    %v8141 = vand.u32 %v7997, 4294901760
    %v8142 = vsub.f32 %v7997, %v8141
    %v8143 = vand.u32 %v8142, 4294901760
    %v8144 = vsub.f32 %v8142, %v8143
    %v8145 = vand.u32 %v8144, 4294901760
    %8146 = vmatpush1.msra.mxu0 %v8145
    %8147 = vmatprep.subr.mxu0 0.0
    %v8148 = vand.u32 %v7996, 4294901760
    %v8149 = vsub.f32 %v7996, %v8148
    %v8150 = vand.u32 %v8149, 4294901760
    %v8151 = vsub.f32 %v8149, %v8150
    %v8152 = vand.u32 %v8151, 4294901760
    %8153 = vmatpush1.msra.mxu0 %v8152
    %8154 = vmatprep.subr.mxu0 0.0
    %v8155 = vand.u32 %v7995, 4294901760
    %v8156 = vsub.f32 %v7995, %v8155
    %v8157 = vand.u32 %v8156, 4294901760
    %v8158 = vsub.f32 %v8156, %v8157
    %v8159 = vand.u32 %v8158, 4294901760
    %8160 = vmatpush1.msra.mxu0 %v8159
    %8161 = vmatprep.subr.mxu0 0.0
    %8162 = vmatpush2.msra.mxu0 0.0
    %8163 = vmatprep.subr.mxu0 0.0
    %8164 = vmatpush2.msra.mxu0 0.0
    %8165 = vmatprep.subr.mxu0 0.0
    %8166 = vmatpush2.msra.mxu0 0.0
    %8167 = vmatprep.subr.mxu0 0.0
    %8168 = vmatpush2.msra.mxu0 0.0
    %8169 = vmatprep.subr.mxu0 0.0
    %8170 = vmatpush2.msra.mxu0 0.0
    %8171 = vmatprep.subr.mxu0 0.0
    %8172 = vmatpush2.msra.mxu0 0.0
    %8173 = vmatprep.subr.mxu0 0.0
    %8174 = vmatpush2.msra.mxu0 0.0
    %8175 = vmatprep.subr.mxu0 0.0
    %8176 = vmatpush2.msra.mxu0 0.0
    %8177 = vmatprep.subr.mxu0 0.0
    %8178 = vmatpush2.msra.mxu0 0.0
    %8179 = vmatprep.subr.mxu0 0.0
    %8180 = vmatpush2.msra.mxu0 0.0
    %8181 = vmatprep.subr.mxu0 0.0
    %8182 = vmatpush2.msra.mxu0 0.0
    %8183 = vmatprep.subr.mxu0 0.0
    %8184 = vmatpush2.msra.mxu0 0.0
    %8185 = vmatprep.subr.mxu0 0.0
    %8186 = vmatpush2.msra.mxu0 0.0
    %8187 = vmatprep.subr.mxu0 0.0
    %8188 = vmatpush2.msra.mxu0 0.0
    %8189 = vmatprep.subr.mxu0 0.0
    %8190 = vmatpush2.msra.mxu0 0.0
    %8191 = vmatprep.subr.mxu0 0.0
    %8192 = vmatpush2.msra.mxu0 0.0
    %8193 = vmatprep.mubr.f32.mxu0 0.0
    %v8194 = vand.u32 %v8004, 4294901760
    %8195 = vmatmul.mubr.f32.gmra.mxu0 %v8194
    %v8196 = vpop.f32.mrf.mxu0
    %v8197 = vadd.f32 %v8086, %v8196
    %v8198 = vpop.f32.mrf.mxu0
    %8199 = vdwg.mxu0
    %8200 = vmatprep.subr.mxu0 0.0
    %8201 = vmatpush1.msra.mxu0 0.0
    %8202 = vmatprep.subr.mxu0 0.0
    %8203 = vmatpush1.msra.mxu0 0.0
    %8204 = vmatprep.subr.mxu0 0.0
    %8205 = vmatpush1.msra.mxu0 0.0
    %8206 = vmatprep.subr.mxu0 0.0
    %8207 = vmatpush1.msra.mxu0 0.0
    %8208 = vmatprep.subr.mxu0 0.0
    %8209 = vmatpush1.msra.mxu0 0.0
    %8210 = vmatprep.subr.mxu0 0.0
    %8211 = vmatpush1.msra.mxu0 0.0
    %8212 = vmatprep.subr.mxu0 0.0
    %8213 = vmatpush1.msra.mxu0 0.0
    %8214 = vmatprep.subr.mxu0 0.0
    %8215 = vmatpush1.msra.mxu0 0.0
    %8216 = vmatprep.subr.mxu0 0.0
    %v8217 = vand.u32 %v8002, 4294901760
    %v8218 = vsub.f32 %v8002, %v8217
    %8219 = vmatpush1.msra.mxu0 %v8218
    %8220 = vmatprep.subr.mxu0 0.0
    %v8221 = vand.u32 %v8001, 4294901760
    %v8222 = vsub.f32 %v8001, %v8221
    %8223 = vmatpush1.msra.mxu0 %v8222
    %8224 = vmatprep.subr.mxu0 0.0
    %v8225 = vand.u32 %v8000, 4294901760
    %v8226 = vsub.f32 %v8000, %v8225
    %8227 = vmatpush1.msra.mxu0 %v8226
    %8228 = vmatprep.subr.mxu0 0.0
    %v8229 = vand.u32 %v7999, 4294901760
    %v8230 = vsub.f32 %v7999, %v8229
    %8231 = vmatpush1.msra.mxu0 %v8230
    %8232 = vmatprep.subr.mxu0 0.0
    %v8233 = vand.u32 %v7998, 4294901760
    %v8234 = vsub.f32 %v7998, %v8233
    %8235 = vmatpush1.msra.mxu0 %v8234
    %8236 = vmatprep.subr.mxu0 0.0
    %v8237 = vand.u32 %v7997, 4294901760
    %v8238 = vsub.f32 %v7997, %v8237
    %8239 = vmatpush1.msra.mxu0 %v8238
    %8240 = vmatprep.subr.mxu0 0.0
    %v8241 = vand.u32 %v7996, 4294901760
    %v8242 = vsub.f32 %v7996, %v8241
    %8243 = vmatpush1.msra.mxu0 %v8242
    %8244 = vmatprep.subr.mxu0 0.0
    %v8245 = vand.u32 %v7995, 4294901760
    %v8246 = vsub.f32 %v7995, %v8245
    %8247 = vmatpush1.msra.mxu0 %v8246
    %8248 = vmatprep.subr.mxu0 0.0
    %8249 = vmatpush2.msra.mxu0 0.0
    %8250 = vmatprep.subr.mxu0 0.0
    %8251 = vmatpush2.msra.mxu0 0.0
    %8252 = vmatprep.subr.mxu0 0.0
    %8253 = vmatpush2.msra.mxu0 0.0
    %8254 = vmatprep.subr.mxu0 0.0
    %8255 = vmatpush2.msra.mxu0 0.0
    %8256 = vmatprep.subr.mxu0 0.0
    %8257 = vmatpush2.msra.mxu0 0.0
    %8258 = vmatprep.subr.mxu0 0.0
    %8259 = vmatpush2.msra.mxu0 0.0
    %8260 = vmatprep.subr.mxu0 0.0
    %8261 = vmatpush2.msra.mxu0 0.0
    %8262 = vmatprep.subr.mxu0 0.0
    %8263 = vmatpush2.msra.mxu0 0.0
    %8264 = vmatprep.subr.mxu0 0.0
    %8265 = vmatpush2.msra.mxu0 0.0
    %8266 = vmatprep.subr.mxu0 0.0
    %8267 = vmatpush2.msra.mxu0 0.0
    %8268 = vmatprep.subr.mxu0 0.0
    %8269 = vmatpush2.msra.mxu0 0.0
    %8270 = vmatprep.subr.mxu0 0.0
    %8271 = vmatpush2.msra.mxu0 0.0
    %8272 = vmatprep.subr.mxu0 0.0
    %8273 = vmatpush2.msra.mxu0 0.0
    %8274 = vmatprep.subr.mxu0 0.0
    %8275 = vmatpush2.msra.mxu0 0.0
    %8276 = vmatprep.subr.mxu0 0.0
    %8277 = vmatpush2.msra.mxu0 0.0
    %8278 = vmatprep.subr.mxu0 0.0
    %8279 = vmatpush2.msra.mxu0 0.0
    %8280 = vmatprep.mubr.f32.mxu0 0.0
    %v8281 = vand.u32 %v8004, 4294901760
    %v8282 = vsub.f32 %v8004, %v8281
    %8283 = vmatmul.mubr.f32.gmra.mxu0 %v8282
    %v8284 = vpop.f32.mrf.mxu0
    %v8285 = vadd.f32 %v8197, %v8284
    %v8286 = vpop.f32.mrf.mxu0
    %8287 = vdwg.mxu0
    %8288 = vmatprep.subr.mxu0 0.0
    %8289 = vmatpush1.msra.mxu0 0.0
    %8290 = vmatprep.subr.mxu0 0.0
    %8291 = vmatpush1.msra.mxu0 0.0
    %8292 = vmatprep.subr.mxu0 0.0
    %8293 = vmatpush1.msra.mxu0 0.0
    %8294 = vmatprep.subr.mxu0 0.0
    %8295 = vmatpush1.msra.mxu0 0.0
    %8296 = vmatprep.subr.mxu0 0.0
    %8297 = vmatpush1.msra.mxu0 0.0
    %8298 = vmatprep.subr.mxu0 0.0
    %8299 = vmatpush1.msra.mxu0 0.0
    %8300 = vmatprep.subr.mxu0 0.0
    %8301 = vmatpush1.msra.mxu0 0.0
    %8302 = vmatprep.subr.mxu0 0.0
    %8303 = vmatpush1.msra.mxu0 0.0
    %8304 = vmatprep.subr.mxu0 0.0
    %v8305 = vand.u32 %v8002, 4294901760
    %8306 = vmatpush1.msra.mxu0 %v8305
    %8307 = vmatprep.subr.mxu0 0.0
    %v8308 = vand.u32 %v8001, 4294901760
    %8309 = vmatpush1.msra.mxu0 %v8308
    %8310 = vmatprep.subr.mxu0 0.0
    %v8311 = vand.u32 %v8000, 4294901760
    %8312 = vmatpush1.msra.mxu0 %v8311
    %8313 = vmatprep.subr.mxu0 0.0
    %v8314 = vand.u32 %v7999, 4294901760
    %8315 = vmatpush1.msra.mxu0 %v8314
    %8316 = vmatprep.subr.mxu0 0.0
    %v8317 = vand.u32 %v7998, 4294901760
    %8318 = vmatpush1.msra.mxu0 %v8317
    %8319 = vmatprep.subr.mxu0 0.0
    %v8320 = vand.u32 %v7997, 4294901760
    %8321 = vmatpush1.msra.mxu0 %v8320
    %8322 = vmatprep.subr.mxu0 0.0
    %v8323 = vand.u32 %v7996, 4294901760
    %8324 = vmatpush1.msra.mxu0 %v8323
    %8325 = vmatprep.subr.mxu0 0.0
    %v8326 = vand.u32 %v7995, 4294901760
    %8327 = vmatpush1.msra.mxu0 %v8326
    %8328 = vmatprep.subr.mxu0 0.0
    %8329 = vmatpush2.msra.mxu0 0.0
    %8330 = vmatprep.subr.mxu0 0.0
    %8331 = vmatpush2.msra.mxu0 0.0
    %8332 = vmatprep.subr.mxu0 0.0
    %8333 = vmatpush2.msra.mxu0 0.0
    %8334 = vmatprep.subr.mxu0 0.0
    %8335 = vmatpush2.msra.mxu0 0.0
    %8336 = vmatprep.subr.mxu0 0.0
    %8337 = vmatpush2.msra.mxu0 0.0
    %8338 = vmatprep.subr.mxu0 0.0
    %8339 = vmatpush2.msra.mxu0 0.0
    %8340 = vmatprep.subr.mxu0 0.0
    %8341 = vmatpush2.msra.mxu0 0.0
    %8342 = vmatprep.subr.mxu0 0.0
    %8343 = vmatpush2.msra.mxu0 0.0
    %8344 = vmatprep.subr.mxu0 0.0
    %8345 = vmatpush2.msra.mxu0 0.0
    %8346 = vmatprep.subr.mxu0 0.0
    %8347 = vmatpush2.msra.mxu0 0.0
    %8348 = vmatprep.subr.mxu0 0.0
    %8349 = vmatpush2.msra.mxu0 0.0
    %8350 = vmatprep.subr.mxu0 0.0
    %8351 = vmatpush2.msra.mxu0 0.0
    %8352 = vmatprep.subr.mxu0 0.0
    %8353 = vmatpush2.msra.mxu0 0.0
    %8354 = vmatprep.subr.mxu0 0.0
    %8355 = vmatpush2.msra.mxu0 0.0
    %8356 = vmatprep.subr.mxu0 0.0
    %8357 = vmatpush2.msra.mxu0 0.0
    %8358 = vmatprep.subr.mxu0 0.0
    %8359 = vmatpush2.msra.mxu0 0.0
    %8360 = vmatprep.mubr.f32.mxu0 0.0
    %v8361 = vand.u32 %v8004, 4294901760
    %v8362 = vsub.f32 %v8004, %v8361
    %v8363 = vand.u32 %v8362, 4294901760
    %8364 = vmatmul.mubr.f32.gmra.mxu0 %v8363
    %v8365 = vpop.f32.mrf.mxu0
    %v8366 = vadd.f32 %v8285, %v8365
    %v8367 = vpop.f32.mrf.mxu0
    %8368 = vdwg.mxu0
    %8369 = vmatprep.subr.mxu0 0.0
    %8370 = vmatpush1.msra.mxu0 0.0
    %8371 = vmatprep.subr.mxu0 0.0
    %8372 = vmatpush1.msra.mxu0 0.0
    %8373 = vmatprep.subr.mxu0 0.0
    %8374 = vmatpush1.msra.mxu0 0.0
    %8375 = vmatprep.subr.mxu0 0.0
    %8376 = vmatpush1.msra.mxu0 0.0
    %8377 = vmatprep.subr.mxu0 0.0
    %8378 = vmatpush1.msra.mxu0 0.0
    %8379 = vmatprep.subr.mxu0 0.0
    %8380 = vmatpush1.msra.mxu0 0.0
    %8381 = vmatprep.subr.mxu0 0.0
    %8382 = vmatpush1.msra.mxu0 0.0
    %8383 = vmatprep.subr.mxu0 0.0
    %8384 = vmatpush1.msra.mxu0 0.0
    %8385 = vmatprep.subr.mxu0 0.0
    %v8386 = vand.u32 %v8002, 4294901760
    %v8387 = vsub.f32 %v8002, %v8386
    %v8388 = vand.u32 %v8387, 4294901760
    %8389 = vmatpush1.msra.mxu0 %v8388
    %8390 = vmatprep.subr.mxu0 0.0
    %v8391 = vand.u32 %v8001, 4294901760
    %v8392 = vsub.f32 %v8001, %v8391
    %v8393 = vand.u32 %v8392, 4294901760
    %8394 = vmatpush1.msra.mxu0 %v8393
    %8395 = vmatprep.subr.mxu0 0.0
    %v8396 = vand.u32 %v8000, 4294901760
    %v8397 = vsub.f32 %v8000, %v8396
    %v8398 = vand.u32 %v8397, 4294901760
    %8399 = vmatpush1.msra.mxu0 %v8398
    %8400 = vmatprep.subr.mxu0 0.0
    %v8401 = vand.u32 %v7999, 4294901760
    %v8402 = vsub.f32 %v7999, %v8401
    %v8403 = vand.u32 %v8402, 4294901760
    %8404 = vmatpush1.msra.mxu0 %v8403
    %8405 = vmatprep.subr.mxu0 0.0
    %v8406 = vand.u32 %v7998, 4294901760
    %v8407 = vsub.f32 %v7998, %v8406
    %v8408 = vand.u32 %v8407, 4294901760
    %8409 = vmatpush1.msra.mxu0 %v8408
    %8410 = vmatprep.subr.mxu0 0.0
    %v8411 = vand.u32 %v7997, 4294901760
    %v8412 = vsub.f32 %v7997, %v8411
    %v8413 = vand.u32 %v8412, 4294901760
    %8414 = vmatpush1.msra.mxu0 %v8413
    %8415 = vmatprep.subr.mxu0 0.0
    %v8416 = vand.u32 %v7996, 4294901760
    %v8417 = vsub.f32 %v7996, %v8416
    %v8418 = vand.u32 %v8417, 4294901760
    %8419 = vmatpush1.msra.mxu0 %v8418
    %8420 = vmatprep.subr.mxu0 0.0
    %v8421 = vand.u32 %v7995, 4294901760
    %v8422 = vsub.f32 %v7995, %v8421
    %v8423 = vand.u32 %v8422, 4294901760
    %8424 = vmatpush1.msra.mxu0 %v8423
    %8425 = vmatprep.subr.mxu0 0.0
    %8426 = vmatpush2.msra.mxu0 0.0
    %8427 = vmatprep.subr.mxu0 0.0
    %8428 = vmatpush2.msra.mxu0 0.0
    %8429 = vmatprep.subr.mxu0 0.0
    %8430 = vmatpush2.msra.mxu0 0.0
    %8431 = vmatprep.subr.mxu0 0.0
    %8432 = vmatpush2.msra.mxu0 0.0
    %8433 = vmatprep.subr.mxu0 0.0
    %8434 = vmatpush2.msra.mxu0 0.0
    %8435 = vmatprep.subr.mxu0 0.0
    %8436 = vmatpush2.msra.mxu0 0.0
    %8437 = vmatprep.subr.mxu0 0.0
    %8438 = vmatpush2.msra.mxu0 0.0
    %8439 = vmatprep.subr.mxu0 0.0
    %8440 = vmatpush2.msra.mxu0 0.0
    %8441 = vmatprep.subr.mxu0 0.0
    %8442 = vmatpush2.msra.mxu0 0.0
    %8443 = vmatprep.subr.mxu0 0.0
    %8444 = vmatpush2.msra.mxu0 0.0
    %8445 = vmatprep.subr.mxu0 0.0
    %8446 = vmatpush2.msra.mxu0 0.0
    %8447 = vmatprep.subr.mxu0 0.0
    %8448 = vmatpush2.msra.mxu0 0.0
    %8449 = vmatprep.subr.mxu0 0.0
    %8450 = vmatpush2.msra.mxu0 0.0
    %8451 = vmatprep.subr.mxu0 0.0
    %8452 = vmatpush2.msra.mxu0 0.0
    %8453 = vmatprep.subr.mxu0 0.0
    %8454 = vmatpush2.msra.mxu0 0.0
    %8455 = vmatprep.subr.mxu0 0.0
    %8456 = vmatpush2.msra.mxu0 0.0
    %8457 = vmatprep.mubr.f32.mxu0 0.0
    %v8458 = vand.u32 %v8004, 4294901760
    %8459 = vmatmul.mubr.f32.gmra.mxu0 %v8458
    %v8460 = vpop.f32.mrf.mxu0
    %v8461 = vadd.f32 %v8366, %v8460
    %v8462 = vpop.f32.mrf.mxu0
    %8463 = vdwg.mxu0
    %8464 = vmatprep.subr.mxu0 0.0
    %8465 = vmatpush1.msra.mxu0 0.0
    %8466 = vmatprep.subr.mxu0 0.0
    %8467 = vmatpush1.msra.mxu0 0.0
    %8468 = vmatprep.subr.mxu0 0.0
    %8469 = vmatpush1.msra.mxu0 0.0
    %8470 = vmatprep.subr.mxu0 0.0
    %8471 = vmatpush1.msra.mxu0 0.0
    %8472 = vmatprep.subr.mxu0 0.0
    %8473 = vmatpush1.msra.mxu0 0.0
    %8474 = vmatprep.subr.mxu0 0.0
    %8475 = vmatpush1.msra.mxu0 0.0
    %8476 = vmatprep.subr.mxu0 0.0
    %8477 = vmatpush1.msra.mxu0 0.0
    %8478 = vmatprep.subr.mxu0 0.0
    %8479 = vmatpush1.msra.mxu0 0.0
    %8480 = vmatprep.subr.mxu0 0.0
    %v8481 = vand.u32 %v8002, 4294901760
    %8482 = vmatpush1.msra.mxu0 %v8481
    %8483 = vmatprep.subr.mxu0 0.0
    %v8484 = vand.u32 %v8001, 4294901760
    %8485 = vmatpush1.msra.mxu0 %v8484
    %8486 = vmatprep.subr.mxu0 0.0
    %v8487 = vand.u32 %v8000, 4294901760
    %8488 = vmatpush1.msra.mxu0 %v8487
    %8489 = vmatprep.subr.mxu0 0.0
    %v8490 = vand.u32 %v7999, 4294901760
    %8491 = vmatpush1.msra.mxu0 %v8490
    %8492 = vmatprep.subr.mxu0 0.0
    %v8493 = vand.u32 %v7998, 4294901760
    %8494 = vmatpush1.msra.mxu0 %v8493
    %8495 = vmatprep.subr.mxu0 0.0
    %v8496 = vand.u32 %v7997, 4294901760
    %8497 = vmatpush1.msra.mxu0 %v8496
    %8498 = vmatprep.subr.mxu0 0.0
    %v8499 = vand.u32 %v7996, 4294901760
    %8500 = vmatpush1.msra.mxu0 %v8499
    %8501 = vmatprep.subr.mxu0 0.0
    %v8502 = vand.u32 %v7995, 4294901760
    %8503 = vmatpush1.msra.mxu0 %v8502
    %8504 = vmatprep.subr.mxu0 0.0
    %8505 = vmatpush2.msra.mxu0 0.0
    %8506 = vmatprep.subr.mxu0 0.0
    %8507 = vmatpush2.msra.mxu0 0.0
    %8508 = vmatprep.subr.mxu0 0.0
    %8509 = vmatpush2.msra.mxu0 0.0
    %8510 = vmatprep.subr.mxu0 0.0
    %8511 = vmatpush2.msra.mxu0 0.0
    %8512 = vmatprep.subr.mxu0 0.0
    %8513 = vmatpush2.msra.mxu0 0.0
    %8514 = vmatprep.subr.mxu0 0.0
    %8515 = vmatpush2.msra.mxu0 0.0
    %8516 = vmatprep.subr.mxu0 0.0
    %8517 = vmatpush2.msra.mxu0 0.0
    %8518 = vmatprep.subr.mxu0 0.0
    %8519 = vmatpush2.msra.mxu0 0.0
    %8520 = vmatprep.subr.mxu0 0.0
    %8521 = vmatpush2.msra.mxu0 0.0
    %8522 = vmatprep.subr.mxu0 0.0
    %8523 = vmatpush2.msra.mxu0 0.0
    %8524 = vmatprep.subr.mxu0 0.0
    %8525 = vmatpush2.msra.mxu0 0.0
    %8526 = vmatprep.subr.mxu0 0.0
    %8527 = vmatpush2.msra.mxu0 0.0
    %8528 = vmatprep.subr.mxu0 0.0
    %8529 = vmatpush2.msra.mxu0 0.0
    %8530 = vmatprep.subr.mxu0 0.0
    %8531 = vmatpush2.msra.mxu0 0.0
    %8532 = vmatprep.subr.mxu0 0.0
    %8533 = vmatpush2.msra.mxu0 0.0
    %8534 = vmatprep.subr.mxu0 0.0
    %8535 = vmatpush2.msra.mxu0 0.0
    %8536 = vmatprep.mubr.f32.mxu0 0.0
    %v8537 = vand.u32 %v8004, 4294901760
    %8538 = vmatmul.mubr.f32.gmra.mxu0 %v8537
    %v8539 = vpop.f32.mrf.mxu0
    %v8540 = vadd.f32 %v8461, %v8539
    %v8541 = vpop.f32.mrf.mxu0
    %8542 = vdwg.mxu0
    %v8543 = vld [vmem:[%s6] sm:$0x1]
    %v8545 = vlaneseq
    %v8546 = vshrl.u32 %v8545, 7
    %v8547 = vsub.s32 0, %v8546
    %v8548 = vrot.slane %v8543, %v8547
    %v8551 = vsel %vm7444, %v7406, 0
    %8553 = vmatprep.subr.mxu0 0.0
    %8554 = vmatpush1.msra.mxu0 0.0
    %8555 = vmatprep.subr.mxu0 0.0
    %8556 = vmatpush1.msra.mxu0 0.0
    %8557 = vmatprep.subr.mxu0 0.0
    %8558 = vmatpush1.msra.mxu0 0.0
    %8559 = vmatprep.subr.mxu0 0.0
    %8560 = vmatpush1.msra.mxu0 0.0
    %8561 = vmatprep.subr.mxu0 0.0
    %8562 = vmatpush1.msra.mxu0 0.0
    %8563 = vmatprep.subr.mxu0 0.0
    %8564 = vmatpush1.msra.mxu0 0.0
    %8565 = vmatprep.subr.mxu0 0.0
    %8566 = vmatpush1.msra.mxu0 0.0
    %8567 = vmatprep.subr.mxu0 0.0
    %8568 = vmatpush1.msra.mxu0 0.0
    %8569 = vmatprep.subr.mxu0 0.0
    %v8570 = vand.u32 %v7434, 4294901760
    %8571 = vmatpush1.msra.mxu0 %v8570
    %8572 = vmatprep.subr.mxu0 0.0
    %v8573 = vand.u32 %v7433, 4294901760
    %8574 = vmatpush1.msra.mxu0 %v8573
    %8575 = vmatprep.subr.mxu0 0.0
    %v8576 = vand.u32 %v7432, 4294901760
    %8577 = vmatpush1.msra.mxu0 %v8576
    %8578 = vmatprep.subr.mxu0 0.0
    %v8579 = vand.u32 %v7431, 4294901760
    %8580 = vmatpush1.msra.mxu0 %v8579
    %8581 = vmatprep.subr.mxu0 0.0
    %v8582 = vand.u32 %v7430, 4294901760
    %8583 = vmatpush1.msra.mxu0 %v8582
    %8584 = vmatprep.subr.mxu0 0.0
    %v8585 = vand.u32 %v7429, 4294901760
    %8586 = vmatpush1.msra.mxu0 %v8585
    %8587 = vmatprep.subr.mxu0 0.0
    %v8588 = vand.u32 %v7428, 4294901760
    %8589 = vmatpush1.msra.mxu0 %v8588
    %8590 = vmatprep.subr.mxu0 0.0
    %v8591 = vand.u32 %v7427, 4294901760
    %8592 = vmatpush1.msra.mxu0 %v8591
    %8593 = vmatprep.subr.mxu0 0.0
    %8594 = vmatpush2.msra.mxu0 0.0
    %8595 = vmatprep.subr.mxu0 0.0
    %8596 = vmatpush2.msra.mxu0 0.0
    %8597 = vmatprep.subr.mxu0 0.0
    %8598 = vmatpush2.msra.mxu0 0.0
    %8599 = vmatprep.subr.mxu0 0.0
    %8600 = vmatpush2.msra.mxu0 0.0
    %8601 = vmatprep.subr.mxu0 0.0
    %8602 = vmatpush2.msra.mxu0 0.0
    %8603 = vmatprep.subr.mxu0 0.0
    %8604 = vmatpush2.msra.mxu0 0.0
    %8605 = vmatprep.subr.mxu0 0.0
    %8606 = vmatpush2.msra.mxu0 0.0
    %8607 = vmatprep.subr.mxu0 0.0
    %8608 = vmatpush2.msra.mxu0 0.0
    %8609 = vmatprep.subr.mxu0 0.0
    %8610 = vmatpush2.msra.mxu0 0.0
    %8611 = vmatprep.subr.mxu0 0.0
    %8612 = vmatpush2.msra.mxu0 0.0
    %8613 = vmatprep.subr.mxu0 0.0
    %8614 = vmatpush2.msra.mxu0 0.0
    %8615 = vmatprep.subr.mxu0 0.0
    %8616 = vmatpush2.msra.mxu0 0.0
    %8617 = vmatprep.subr.mxu0 0.0
    %8618 = vmatpush2.msra.mxu0 0.0
    %8619 = vmatprep.subr.mxu0 0.0
    %8620 = vmatpush2.msra.mxu0 0.0
    %8621 = vmatprep.subr.mxu0 0.0
    %8622 = vmatpush2.msra.mxu0 0.0
    %8623 = vmatprep.subr.mxu0 0.0
    %8624 = vmatpush2.msra.mxu0 0.0
    %8625 = vmatprep.mubr.f32.mxu0 0.0
    %v8626 = vand.u32 %v8551, 4294901760
    %v8627 = vsub.f32 %v8551, %v8626
    %v8628 = vand.u32 %v8627, 4294901760
    %v8629 = vsub.f32 %v8627, %v8628
    %v8630 = vand.u32 %v8629, 4294901760
    %8631 = vmatmul.mubr.f32.gmra.mxu0 %v8630
    %v8632 = vpop.f32.mrf.mxu0
    %v8633 = vadd.f32 %v7982, %v8632
    %v8634 = vpop.f32.mrf.mxu0
    %8635 = vdwg.mxu0
    %8636 = vmatprep.subr.mxu0 0.0
    %8637 = vmatpush1.msra.mxu0 0.0
    %8638 = vmatprep.subr.mxu0 0.0
    %8639 = vmatpush1.msra.mxu0 0.0
    %8640 = vmatprep.subr.mxu0 0.0
    %8641 = vmatpush1.msra.mxu0 0.0
    %8642 = vmatprep.subr.mxu0 0.0
    %8643 = vmatpush1.msra.mxu0 0.0
    %8644 = vmatprep.subr.mxu0 0.0
    %8645 = vmatpush1.msra.mxu0 0.0
    %8646 = vmatprep.subr.mxu0 0.0
    %8647 = vmatpush1.msra.mxu0 0.0
    %8648 = vmatprep.subr.mxu0 0.0
    %8649 = vmatpush1.msra.mxu0 0.0
    %8650 = vmatprep.subr.mxu0 0.0
    %8651 = vmatpush1.msra.mxu0 0.0
    %8652 = vmatprep.subr.mxu0 0.0
    %v8653 = vand.u32 %v7434, 4294901760
    %v8654 = vsub.f32 %v7434, %v8653
    %v8655 = vand.u32 %v8654, 4294901760
    %v8656 = vsub.f32 %v8654, %v8655
    %v8657 = vand.u32 %v8656, 4294901760
    %8658 = vmatpush1.msra.mxu0 %v8657
    %8659 = vmatprep.subr.mxu0 0.0
    %v8660 = vand.u32 %v7433, 4294901760
    %v8661 = vsub.f32 %v7433, %v8660
    %v8662 = vand.u32 %v8661, 4294901760
    %v8663 = vsub.f32 %v8661, %v8662
    %v8664 = vand.u32 %v8663, 4294901760
    %8665 = vmatpush1.msra.mxu0 %v8664
    %8666 = vmatprep.subr.mxu0 0.0
    %v8667 = vand.u32 %v7432, 4294901760
    %v8668 = vsub.f32 %v7432, %v8667
    %v8669 = vand.u32 %v8668, 4294901760
    %v8670 = vsub.f32 %v8668, %v8669
    %v8671 = vand.u32 %v8670, 4294901760
    %8672 = vmatpush1.msra.mxu0 %v8671
    %8673 = vmatprep.subr.mxu0 0.0
    %v8674 = vand.u32 %v7431, 4294901760
    %v8675 = vsub.f32 %v7431, %v8674
    %v8676 = vand.u32 %v8675, 4294901760
    %v8677 = vsub.f32 %v8675, %v8676
    %v8678 = vand.u32 %v8677, 4294901760
    %8679 = vmatpush1.msra.mxu0 %v8678
    %8680 = vmatprep.subr.mxu0 0.0
    %v8681 = vand.u32 %v7430, 4294901760
    %v8682 = vsub.f32 %v7430, %v8681
    %v8683 = vand.u32 %v8682, 4294901760
    %v8684 = vsub.f32 %v8682, %v8683
    %v8685 = vand.u32 %v8684, 4294901760
    %8686 = vmatpush1.msra.mxu0 %v8685
    %8687 = vmatprep.subr.mxu0 0.0
    %v8688 = vand.u32 %v7429, 4294901760
    %v8689 = vsub.f32 %v7429, %v8688
    %v8690 = vand.u32 %v8689, 4294901760
    %v8691 = vsub.f32 %v8689, %v8690
    %v8692 = vand.u32 %v8691, 4294901760
    %8693 = vmatpush1.msra.mxu0 %v8692
    %8694 = vmatprep.subr.mxu0 0.0
    %v8695 = vand.u32 %v7428, 4294901760
    %v8696 = vsub.f32 %v7428, %v8695
    %v8697 = vand.u32 %v8696, 4294901760
    %v8698 = vsub.f32 %v8696, %v8697
    %v8699 = vand.u32 %v8698, 4294901760
    %8700 = vmatpush1.msra.mxu0 %v8699
    %8701 = vmatprep.subr.mxu0 0.0
    %v8702 = vand.u32 %v7427, 4294901760
    %v8703 = vsub.f32 %v7427, %v8702
    %v8704 = vand.u32 %v8703, 4294901760
    %v8705 = vsub.f32 %v8703, %v8704
    %v8706 = vand.u32 %v8705, 4294901760
    %8707 = vmatpush1.msra.mxu0 %v8706
    %8708 = vmatprep.subr.mxu0 0.0
    %8709 = vmatpush2.msra.mxu0 0.0
    %8710 = vmatprep.subr.mxu0 0.0
    %8711 = vmatpush2.msra.mxu0 0.0
    %8712 = vmatprep.subr.mxu0 0.0
    %8713 = vmatpush2.msra.mxu0 0.0
    %8714 = vmatprep.subr.mxu0 0.0
    %8715 = vmatpush2.msra.mxu0 0.0
    %8716 = vmatprep.subr.mxu0 0.0
    %8717 = vmatpush2.msra.mxu0 0.0
    %8718 = vmatprep.subr.mxu0 0.0
    %8719 = vmatpush2.msra.mxu0 0.0
    %8720 = vmatprep.subr.mxu0 0.0
    %8721 = vmatpush2.msra.mxu0 0.0
    %8722 = vmatprep.subr.mxu0 0.0
    %8723 = vmatpush2.msra.mxu0 0.0
    %8724 = vmatprep.subr.mxu0 0.0
    %8725 = vmatpush2.msra.mxu0 0.0
    %8726 = vmatprep.subr.mxu0 0.0
    %8727 = vmatpush2.msra.mxu0 0.0
    %8728 = vmatprep.subr.mxu0 0.0
    %8729 = vmatpush2.msra.mxu0 0.0
    %8730 = vmatprep.subr.mxu0 0.0
    %8731 = vmatpush2.msra.mxu0 0.0
    %8732 = vmatprep.subr.mxu0 0.0
    %8733 = vmatpush2.msra.mxu0 0.0
    %8734 = vmatprep.subr.mxu0 0.0
    %8735 = vmatpush2.msra.mxu0 0.0
    %8736 = vmatprep.subr.mxu0 0.0
    %8737 = vmatpush2.msra.mxu0 0.0
    %8738 = vmatprep.subr.mxu0 0.0
    %8739 = vmatpush2.msra.mxu0 0.0
    %8740 = vmatprep.mubr.f32.mxu0 0.0
    %v8741 = vand.u32 %v8551, 4294901760
    %8742 = vmatmul.mubr.f32.gmra.mxu0 %v8741
    %v8743 = vpop.f32.mrf.mxu0
    %v8744 = vadd.f32 %v8633, %v8743
    %v8745 = vpop.f32.mrf.mxu0
    %8746 = vdwg.mxu0
    %8747 = vmatprep.subr.mxu0 0.0
    %8748 = vmatpush1.msra.mxu0 0.0
    %8749 = vmatprep.subr.mxu0 0.0
    %8750 = vmatpush1.msra.mxu0 0.0
    %8751 = vmatprep.subr.mxu0 0.0
    %8752 = vmatpush1.msra.mxu0 0.0
    %8753 = vmatprep.subr.mxu0 0.0
    %8754 = vmatpush1.msra.mxu0 0.0
    %8755 = vmatprep.subr.mxu0 0.0
    %8756 = vmatpush1.msra.mxu0 0.0
    %8757 = vmatprep.subr.mxu0 0.0
    %8758 = vmatpush1.msra.mxu0 0.0
    %8759 = vmatprep.subr.mxu0 0.0
    %8760 = vmatpush1.msra.mxu0 0.0
    %8761 = vmatprep.subr.mxu0 0.0
    %8762 = vmatpush1.msra.mxu0 0.0
    %8763 = vmatprep.subr.mxu0 0.0
    %v8764 = vand.u32 %v7434, 4294901760
    %v8765 = vsub.f32 %v7434, %v8764
    %8766 = vmatpush1.msra.mxu0 %v8765
    %8767 = vmatprep.subr.mxu0 0.0
    %v8768 = vand.u32 %v7433, 4294901760
    %v8769 = vsub.f32 %v7433, %v8768
    %8770 = vmatpush1.msra.mxu0 %v8769
    %8771 = vmatprep.subr.mxu0 0.0
    %v8772 = vand.u32 %v7432, 4294901760
    %v8773 = vsub.f32 %v7432, %v8772
    %8774 = vmatpush1.msra.mxu0 %v8773
    %8775 = vmatprep.subr.mxu0 0.0
    %v8776 = vand.u32 %v7431, 4294901760
    %v8777 = vsub.f32 %v7431, %v8776
    %8778 = vmatpush1.msra.mxu0 %v8777
    %8779 = vmatprep.subr.mxu0 0.0
    %v8780 = vand.u32 %v7430, 4294901760
    %v8781 = vsub.f32 %v7430, %v8780
    %8782 = vmatpush1.msra.mxu0 %v8781
    %8783 = vmatprep.subr.mxu0 0.0
    %v8784 = vand.u32 %v7429, 4294901760
    %v8785 = vsub.f32 %v7429, %v8784
    %8786 = vmatpush1.msra.mxu0 %v8785
    %8787 = vmatprep.subr.mxu0 0.0
    %v8788 = vand.u32 %v7428, 4294901760
    %v8789 = vsub.f32 %v7428, %v8788
    %8790 = vmatpush1.msra.mxu0 %v8789
    %8791 = vmatprep.subr.mxu0 0.0
    %v8792 = vand.u32 %v7427, 4294901760
    %v8793 = vsub.f32 %v7427, %v8792
    %8794 = vmatpush1.msra.mxu0 %v8793
    %8795 = vmatprep.subr.mxu0 0.0
    %8796 = vmatpush2.msra.mxu0 0.0
    %8797 = vmatprep.subr.mxu0 0.0
    %8798 = vmatpush2.msra.mxu0 0.0
    %8799 = vmatprep.subr.mxu0 0.0
    %8800 = vmatpush2.msra.mxu0 0.0
    %8801 = vmatprep.subr.mxu0 0.0
    %8802 = vmatpush2.msra.mxu0 0.0
    %8803 = vmatprep.subr.mxu0 0.0
    %8804 = vmatpush2.msra.mxu0 0.0
    %8805 = vmatprep.subr.mxu0 0.0
    %8806 = vmatpush2.msra.mxu0 0.0
    %8807 = vmatprep.subr.mxu0 0.0
    %8808 = vmatpush2.msra.mxu0 0.0
    %8809 = vmatprep.subr.mxu0 0.0
    %8810 = vmatpush2.msra.mxu0 0.0
    %8811 = vmatprep.subr.mxu0 0.0
    %8812 = vmatpush2.msra.mxu0 0.0
    %8813 = vmatprep.subr.mxu0 0.0
    %8814 = vmatpush2.msra.mxu0 0.0
    %8815 = vmatprep.subr.mxu0 0.0
    %8816 = vmatpush2.msra.mxu0 0.0
    %8817 = vmatprep.subr.mxu0 0.0
    %8818 = vmatpush2.msra.mxu0 0.0
    %8819 = vmatprep.subr.mxu0 0.0
    %8820 = vmatpush2.msra.mxu0 0.0
    %8821 = vmatprep.subr.mxu0 0.0
    %8822 = vmatpush2.msra.mxu0 0.0
    %8823 = vmatprep.subr.mxu0 0.0
    %8824 = vmatpush2.msra.mxu0 0.0
    %8825 = vmatprep.subr.mxu0 0.0
    %8826 = vmatpush2.msra.mxu0 0.0
    %8827 = vmatprep.mubr.f32.mxu0 0.0
    %v8828 = vand.u32 %v8551, 4294901760
    %v8829 = vsub.f32 %v8551, %v8828
    %8830 = vmatmul.mubr.f32.gmra.mxu0 %v8829
    %v8831 = vpop.f32.mrf.mxu0
    %v8832 = vadd.f32 %v8744, %v8831
    %v8833 = vpop.f32.mrf.mxu0
    %8834 = vdwg.mxu0
    %8835 = vmatprep.subr.mxu0 0.0
    %8836 = vmatpush1.msra.mxu0 0.0
    %8837 = vmatprep.subr.mxu0 0.0
    %8838 = vmatpush1.msra.mxu0 0.0
    %8839 = vmatprep.subr.mxu0 0.0
    %8840 = vmatpush1.msra.mxu0 0.0
    %8841 = vmatprep.subr.mxu0 0.0
    %8842 = vmatpush1.msra.mxu0 0.0
    %8843 = vmatprep.subr.mxu0 0.0
    %8844 = vmatpush1.msra.mxu0 0.0
    %8845 = vmatprep.subr.mxu0 0.0
    %8846 = vmatpush1.msra.mxu0 0.0
    %8847 = vmatprep.subr.mxu0 0.0
    %8848 = vmatpush1.msra.mxu0 0.0
    %8849 = vmatprep.subr.mxu0 0.0
    %8850 = vmatpush1.msra.mxu0 0.0
    %8851 = vmatprep.subr.mxu0 0.0
    %v8852 = vand.u32 %v7434, 4294901760
    %8853 = vmatpush1.msra.mxu0 %v8852
    %8854 = vmatprep.subr.mxu0 0.0
    %v8855 = vand.u32 %v7433, 4294901760
    %8856 = vmatpush1.msra.mxu0 %v8855
    %8857 = vmatprep.subr.mxu0 0.0
    %v8858 = vand.u32 %v7432, 4294901760
    %8859 = vmatpush1.msra.mxu0 %v8858
    %8860 = vmatprep.subr.mxu0 0.0
    %v8861 = vand.u32 %v7431, 4294901760
    %8862 = vmatpush1.msra.mxu0 %v8861
    %8863 = vmatprep.subr.mxu0 0.0
    %v8864 = vand.u32 %v7430, 4294901760
    %8865 = vmatpush1.msra.mxu0 %v8864
    %8866 = vmatprep.subr.mxu0 0.0
    %v8867 = vand.u32 %v7429, 4294901760
    %8868 = vmatpush1.msra.mxu0 %v8867
    %8869 = vmatprep.subr.mxu0 0.0
    %v8870 = vand.u32 %v7428, 4294901760
    %8871 = vmatpush1.msra.mxu0 %v8870
    %8872 = vmatprep.subr.mxu0 0.0
    %v8873 = vand.u32 %v7427, 4294901760
    %8874 = vmatpush1.msra.mxu0 %v8873
    %8875 = vmatprep.subr.mxu0 0.0
    %8876 = vmatpush2.msra.mxu0 0.0
    %8877 = vmatprep.subr.mxu0 0.0
    %8878 = vmatpush2.msra.mxu0 0.0
    %8879 = vmatprep.subr.mxu0 0.0
    %8880 = vmatpush2.msra.mxu0 0.0
    %8881 = vmatprep.subr.mxu0 0.0
    %8882 = vmatpush2.msra.mxu0 0.0
    %8883 = vmatprep.subr.mxu0 0.0
    %8884 = vmatpush2.msra.mxu0 0.0
    %8885 = vmatprep.subr.mxu0 0.0
    %8886 = vmatpush2.msra.mxu0 0.0
    %8887 = vmatprep.subr.mxu0 0.0
    %8888 = vmatpush2.msra.mxu0 0.0
    %8889 = vmatprep.subr.mxu0 0.0
    %8890 = vmatpush2.msra.mxu0 0.0
    %8891 = vmatprep.subr.mxu0 0.0
    %8892 = vmatpush2.msra.mxu0 0.0
    %8893 = vmatprep.subr.mxu0 0.0
    %8894 = vmatpush2.msra.mxu0 0.0
    %8895 = vmatprep.subr.mxu0 0.0
    %8896 = vmatpush2.msra.mxu0 0.0
    %8897 = vmatprep.subr.mxu0 0.0
    %8898 = vmatpush2.msra.mxu0 0.0
    %8899 = vmatprep.subr.mxu0 0.0
    %8900 = vmatpush2.msra.mxu0 0.0
    %8901 = vmatprep.subr.mxu0 0.0
    %8902 = vmatpush2.msra.mxu0 0.0
    %8903 = vmatprep.subr.mxu0 0.0
    %8904 = vmatpush2.msra.mxu0 0.0
    %8905 = vmatprep.subr.mxu0 0.0
    %8906 = vmatpush2.msra.mxu0 0.0
    %8907 = vmatprep.mubr.f32.mxu0 0.0
    %v8908 = vand.u32 %v8551, 4294901760
    %v8909 = vsub.f32 %v8551, %v8908
    %v8910 = vand.u32 %v8909, 4294901760
    %8911 = vmatmul.mubr.f32.gmra.mxu0 %v8910
    %v8912 = vpop.f32.mrf.mxu0
    %v8913 = vadd.f32 %v8832, %v8912
    %v8914 = vpop.f32.mrf.mxu0
    %8915 = vdwg.mxu0
    %8916 = vmatprep.subr.mxu0 0.0
    %8917 = vmatpush1.msra.mxu0 0.0
    %8918 = vmatprep.subr.mxu0 0.0
    %8919 = vmatpush1.msra.mxu0 0.0
    %8920 = vmatprep.subr.mxu0 0.0
    %8921 = vmatpush1.msra.mxu0 0.0
    %8922 = vmatprep.subr.mxu0 0.0
    %8923 = vmatpush1.msra.mxu0 0.0
    %8924 = vmatprep.subr.mxu0 0.0
    %8925 = vmatpush1.msra.mxu0 0.0
    %8926 = vmatprep.subr.mxu0 0.0
    %8927 = vmatpush1.msra.mxu0 0.0
    %8928 = vmatprep.subr.mxu0 0.0
    %8929 = vmatpush1.msra.mxu0 0.0
    %8930 = vmatprep.subr.mxu0 0.0
    %8931 = vmatpush1.msra.mxu0 0.0
    %8932 = vmatprep.subr.mxu0 0.0
    %v8933 = vand.u32 %v7434, 4294901760
    %v8934 = vsub.f32 %v7434, %v8933
    %v8935 = vand.u32 %v8934, 4294901760
    %8936 = vmatpush1.msra.mxu0 %v8935
    %8937 = vmatprep.subr.mxu0 0.0
    %v8938 = vand.u32 %v7433, 4294901760
    %v8939 = vsub.f32 %v7433, %v8938
    %v8940 = vand.u32 %v8939, 4294901760
    %8941 = vmatpush1.msra.mxu0 %v8940
    %8942 = vmatprep.subr.mxu0 0.0
    %v8943 = vand.u32 %v7432, 4294901760
    %v8944 = vsub.f32 %v7432, %v8943
    %v8945 = vand.u32 %v8944, 4294901760
    %8946 = vmatpush1.msra.mxu0 %v8945
    %8947 = vmatprep.subr.mxu0 0.0
    %v8948 = vand.u32 %v7431, 4294901760
    %v8949 = vsub.f32 %v7431, %v8948
    %v8950 = vand.u32 %v8949, 4294901760
    %8951 = vmatpush1.msra.mxu0 %v8950
    %8952 = vmatprep.subr.mxu0 0.0
    %v8953 = vand.u32 %v7430, 4294901760
    %v8954 = vsub.f32 %v7430, %v8953
    %v8955 = vand.u32 %v8954, 4294901760
    %8956 = vmatpush1.msra.mxu0 %v8955
    %8957 = vmatprep.subr.mxu0 0.0
    %v8958 = vand.u32 %v7429, 4294901760
    %v8959 = vsub.f32 %v7429, %v8958
    %v8960 = vand.u32 %v8959, 4294901760
    %8961 = vmatpush1.msra.mxu0 %v8960
    %8962 = vmatprep.subr.mxu0 0.0
    %v8963 = vand.u32 %v7428, 4294901760
    %v8964 = vsub.f32 %v7428, %v8963
    %v8965 = vand.u32 %v8964, 4294901760
    %8966 = vmatpush1.msra.mxu0 %v8965
    %8967 = vmatprep.subr.mxu0 0.0
    %v8968 = vand.u32 %v7427, 4294901760
    %v8969 = vsub.f32 %v7427, %v8968
    %v8970 = vand.u32 %v8969, 4294901760
    %8971 = vmatpush1.msra.mxu0 %v8970
    %8972 = vmatprep.subr.mxu0 0.0
    %8973 = vmatpush2.msra.mxu0 0.0
    %8974 = vmatprep.subr.mxu0 0.0
    %8975 = vmatpush2.msra.mxu0 0.0
    %8976 = vmatprep.subr.mxu0 0.0
    %8977 = vmatpush2.msra.mxu0 0.0
    %8978 = vmatprep.subr.mxu0 0.0
    %8979 = vmatpush2.msra.mxu0 0.0
    %8980 = vmatprep.subr.mxu0 0.0
    %8981 = vmatpush2.msra.mxu0 0.0
    %8982 = vmatprep.subr.mxu0 0.0
    %8983 = vmatpush2.msra.mxu0 0.0
    %8984 = vmatprep.subr.mxu0 0.0
    %8985 = vmatpush2.msra.mxu0 0.0
    %8986 = vmatprep.subr.mxu0 0.0
    %8987 = vmatpush2.msra.mxu0 0.0
    %8988 = vmatprep.subr.mxu0 0.0
    %8989 = vmatpush2.msra.mxu0 0.0
    %8990 = vmatprep.subr.mxu0 0.0
    %8991 = vmatpush2.msra.mxu0 0.0
    %8992 = vmatprep.subr.mxu0 0.0
    %8993 = vmatpush2.msra.mxu0 0.0
    %8994 = vmatprep.subr.mxu0 0.0
    %8995 = vmatpush2.msra.mxu0 0.0
    %8996 = vmatprep.subr.mxu0 0.0
    %8997 = vmatpush2.msra.mxu0 0.0
    %8998 = vmatprep.subr.mxu0 0.0
    %8999 = vmatpush2.msra.mxu0 0.0
    %9000 = vmatprep.subr.mxu0 0.0
    %9001 = vmatpush2.msra.mxu0 0.0
    %9002 = vmatprep.subr.mxu0 0.0
    %9003 = vmatpush2.msra.mxu0 0.0
    %9004 = vmatprep.mubr.f32.mxu0 0.0
    %v9005 = vand.u32 %v8551, 4294901760
    %9006 = vmatmul.mubr.f32.gmra.mxu0 %v9005
    %v9007 = vpop.f32.mrf.mxu0
    %v9008 = vadd.f32 %v8913, %v9007
    %v9009 = vpop.f32.mrf.mxu0
    %9010 = vdwg.mxu0
    %9011 = vmatprep.subr.mxu0 0.0
    %9012 = vmatpush1.msra.mxu0 0.0
    %9013 = vmatprep.subr.mxu0 0.0
    %9014 = vmatpush1.msra.mxu0 0.0
    %9015 = vmatprep.subr.mxu0 0.0
    %9016 = vmatpush1.msra.mxu0 0.0
    %9017 = vmatprep.subr.mxu0 0.0
    %9018 = vmatpush1.msra.mxu0 0.0
    %9019 = vmatprep.subr.mxu0 0.0
    %9020 = vmatpush1.msra.mxu0 0.0
    %9021 = vmatprep.subr.mxu0 0.0
    %9022 = vmatpush1.msra.mxu0 0.0
    %9023 = vmatprep.subr.mxu0 0.0
    %9024 = vmatpush1.msra.mxu0 0.0
    %9025 = vmatprep.subr.mxu0 0.0
    %9026 = vmatpush1.msra.mxu0 0.0
    %9027 = vmatprep.subr.mxu0 0.0
    %v9028 = vand.u32 %v7434, 4294901760
    %9029 = vmatpush1.msra.mxu0 %v9028
    %9030 = vmatprep.subr.mxu0 0.0
    %v9031 = vand.u32 %v7433, 4294901760
    %9032 = vmatpush1.msra.mxu0 %v9031
    %9033 = vmatprep.subr.mxu0 0.0
    %v9034 = vand.u32 %v7432, 4294901760
    %9035 = vmatpush1.msra.mxu0 %v9034
    %9036 = vmatprep.subr.mxu0 0.0
    %v9037 = vand.u32 %v7431, 4294901760
    %9038 = vmatpush1.msra.mxu0 %v9037
    %9039 = vmatprep.subr.mxu0 0.0
    %v9040 = vand.u32 %v7430, 4294901760
    %9041 = vmatpush1.msra.mxu0 %v9040
    %9042 = vmatprep.subr.mxu0 0.0
    %v9043 = vand.u32 %v7429, 4294901760
    %9044 = vmatpush1.msra.mxu0 %v9043
    %9045 = vmatprep.subr.mxu0 0.0
    %v9046 = vand.u32 %v7428, 4294901760
    %9047 = vmatpush1.msra.mxu0 %v9046
    %9048 = vmatprep.subr.mxu0 0.0
    %v9049 = vand.u32 %v7427, 4294901760
    %9050 = vmatpush1.msra.mxu0 %v9049
    %9051 = vmatprep.subr.mxu0 0.0
    %9052 = vmatpush2.msra.mxu0 0.0
    %9053 = vmatprep.subr.mxu0 0.0
    %9054 = vmatpush2.msra.mxu0 0.0
    %9055 = vmatprep.subr.mxu0 0.0
    %9056 = vmatpush2.msra.mxu0 0.0
    %9057 = vmatprep.subr.mxu0 0.0
    %9058 = vmatpush2.msra.mxu0 0.0
    %9059 = vmatprep.subr.mxu0 0.0
    %9060 = vmatpush2.msra.mxu0 0.0
    %9061 = vmatprep.subr.mxu0 0.0
    %9062 = vmatpush2.msra.mxu0 0.0
    %9063 = vmatprep.subr.mxu0 0.0
    %9064 = vmatpush2.msra.mxu0 0.0
    %9065 = vmatprep.subr.mxu0 0.0
    %9066 = vmatpush2.msra.mxu0 0.0
    %9067 = vmatprep.subr.mxu0 0.0
    %9068 = vmatpush2.msra.mxu0 0.0
    %9069 = vmatprep.subr.mxu0 0.0
    %9070 = vmatpush2.msra.mxu0 0.0
    %9071 = vmatprep.subr.mxu0 0.0
    %9072 = vmatpush2.msra.mxu0 0.0
    %9073 = vmatprep.subr.mxu0 0.0
    %9074 = vmatpush2.msra.mxu0 0.0
    %9075 = vmatprep.subr.mxu0 0.0
    %9076 = vmatpush2.msra.mxu0 0.0
    %9077 = vmatprep.subr.mxu0 0.0
    %9078 = vmatpush2.msra.mxu0 0.0
    %9079 = vmatprep.subr.mxu0 0.0
    %9080 = vmatpush2.msra.mxu0 0.0
    %9081 = vmatprep.subr.mxu0 0.0
    %9082 = vmatpush2.msra.mxu0 0.0
    %9083 = vmatprep.mubr.f32.mxu0 0.0
    %v9084 = vand.u32 %v8551, 4294901760
    %9085 = vmatmul.mubr.f32.gmra.mxu0 %v9084
    %v9086 = vpop.f32.mrf.mxu0
    %v9087 = vadd.f32 %v9008, %v9086
    %v9088 = vpop.f32.mrf.mxu0
    %9089 = vdwg.mxu0
    %v9091 = vsel %vm7444, %v7418, 0
    %9093 = vmatprep.subr.mxu0 0.0
    %9094 = vmatpush1.msra.mxu0 0.0
    %9095 = vmatprep.subr.mxu0 0.0
    %9096 = vmatpush1.msra.mxu0 0.0
    %9097 = vmatprep.subr.mxu0 0.0
    %9098 = vmatpush1.msra.mxu0 0.0
    %9099 = vmatprep.subr.mxu0 0.0
    %9100 = vmatpush1.msra.mxu0 0.0
    %9101 = vmatprep.subr.mxu0 0.0
    %9102 = vmatpush1.msra.mxu0 0.0
    %9103 = vmatprep.subr.mxu0 0.0
    %9104 = vmatpush1.msra.mxu0 0.0
    %9105 = vmatprep.subr.mxu0 0.0
    %9106 = vmatpush1.msra.mxu0 0.0
    %9107 = vmatprep.subr.mxu0 0.0
    %9108 = vmatpush1.msra.mxu0 0.0
    %9109 = vmatprep.subr.mxu0 0.0
    %v9110 = vand.u32 %v7993, 4294901760
    %9111 = vmatpush1.msra.mxu0 %v9110
    %9112 = vmatprep.subr.mxu0 0.0
    %v9113 = vand.u32 %v7992, 4294901760
    %9114 = vmatpush1.msra.mxu0 %v9113
    %9115 = vmatprep.subr.mxu0 0.0
    %v9116 = vand.u32 %v7991, 4294901760
    %9117 = vmatpush1.msra.mxu0 %v9116
    %9118 = vmatprep.subr.mxu0 0.0
    %v9119 = vand.u32 %v7990, 4294901760
    %9120 = vmatpush1.msra.mxu0 %v9119
    %9121 = vmatprep.subr.mxu0 0.0
    %v9122 = vand.u32 %v7989, 4294901760
    %9123 = vmatpush1.msra.mxu0 %v9122
    %9124 = vmatprep.subr.mxu0 0.0
    %v9125 = vand.u32 %v7988, 4294901760
    %9126 = vmatpush1.msra.mxu0 %v9125
    %9127 = vmatprep.subr.mxu0 0.0
    %v9128 = vand.u32 %v7987, 4294901760
    %9129 = vmatpush1.msra.mxu0 %v9128
    %9130 = vmatprep.subr.mxu0 0.0
    %v9131 = vand.u32 %v7986, 4294901760
    %9132 = vmatpush1.msra.mxu0 %v9131
    %9133 = vmatprep.subr.mxu0 0.0
    %9134 = vmatpush2.msra.mxu0 0.0
    %9135 = vmatprep.subr.mxu0 0.0
    %9136 = vmatpush2.msra.mxu0 0.0
    %9137 = vmatprep.subr.mxu0 0.0
    %9138 = vmatpush2.msra.mxu0 0.0
    %9139 = vmatprep.subr.mxu0 0.0
    %9140 = vmatpush2.msra.mxu0 0.0
    %9141 = vmatprep.subr.mxu0 0.0
    %9142 = vmatpush2.msra.mxu0 0.0
    %9143 = vmatprep.subr.mxu0 0.0
    %9144 = vmatpush2.msra.mxu0 0.0
    %9145 = vmatprep.subr.mxu0 0.0
    %9146 = vmatpush2.msra.mxu0 0.0
    %9147 = vmatprep.subr.mxu0 0.0
    %9148 = vmatpush2.msra.mxu0 0.0
    %9149 = vmatprep.subr.mxu0 0.0
    %9150 = vmatpush2.msra.mxu0 0.0
    %9151 = vmatprep.subr.mxu0 0.0
    %9152 = vmatpush2.msra.mxu0 0.0
    %9153 = vmatprep.subr.mxu0 0.0
    %9154 = vmatpush2.msra.mxu0 0.0
    %9155 = vmatprep.subr.mxu0 0.0
    %9156 = vmatpush2.msra.mxu0 0.0
    %9157 = vmatprep.subr.mxu0 0.0
    %9158 = vmatpush2.msra.mxu0 0.0
    %9159 = vmatprep.subr.mxu0 0.0
    %9160 = vmatpush2.msra.mxu0 0.0
    %9161 = vmatprep.subr.mxu0 0.0
    %9162 = vmatpush2.msra.mxu0 0.0
    %9163 = vmatprep.subr.mxu0 0.0
    %9164 = vmatpush2.msra.mxu0 0.0
    %9165 = vmatprep.mubr.f32.mxu0 0.0
    %v9166 = vand.u32 %v9091, 4294901760
    %v9167 = vsub.f32 %v9091, %v9166
    %v9168 = vand.u32 %v9167, 4294901760
    %v9169 = vsub.f32 %v9167, %v9168
    %v9170 = vand.u32 %v9169, 4294901760
    %9171 = vmatmul.mubr.f32.gmra.mxu0 %v9170
    %v9172 = vpop.f32.mrf.mxu0
    %v9173 = vadd.f32 %v8540, %v9172
    %v9174 = vpop.f32.mrf.mxu0
    %9175 = vdwg.mxu0
    %9176 = vmatprep.subr.mxu0 0.0
    %9177 = vmatpush1.msra.mxu0 0.0
    %9178 = vmatprep.subr.mxu0 0.0
    %9179 = vmatpush1.msra.mxu0 0.0
    %9180 = vmatprep.subr.mxu0 0.0
    %9181 = vmatpush1.msra.mxu0 0.0
    %9182 = vmatprep.subr.mxu0 0.0
    %9183 = vmatpush1.msra.mxu0 0.0
    %9184 = vmatprep.subr.mxu0 0.0
    %9185 = vmatpush1.msra.mxu0 0.0
    %9186 = vmatprep.subr.mxu0 0.0
    %9187 = vmatpush1.msra.mxu0 0.0
    %9188 = vmatprep.subr.mxu0 0.0
    %9189 = vmatpush1.msra.mxu0 0.0
    %9190 = vmatprep.subr.mxu0 0.0
    %9191 = vmatpush1.msra.mxu0 0.0
    %9192 = vmatprep.subr.mxu0 0.0
    %v9193 = vand.u32 %v7993, 4294901760
    %v9194 = vsub.f32 %v7993, %v9193
    %v9195 = vand.u32 %v9194, 4294901760
    %v9196 = vsub.f32 %v9194, %v9195
    %v9197 = vand.u32 %v9196, 4294901760
    %9198 = vmatpush1.msra.mxu0 %v9197
    %9199 = vmatprep.subr.mxu0 0.0
    %v9200 = vand.u32 %v7992, 4294901760
    %v9201 = vsub.f32 %v7992, %v9200
    %v9202 = vand.u32 %v9201, 4294901760
    %v9203 = vsub.f32 %v9201, %v9202
    %v9204 = vand.u32 %v9203, 4294901760
    %9205 = vmatpush1.msra.mxu0 %v9204
    %9206 = vmatprep.subr.mxu0 0.0
    %v9207 = vand.u32 %v7991, 4294901760
    %v9208 = vsub.f32 %v7991, %v9207
    %v9209 = vand.u32 %v9208, 4294901760
    %v9210 = vsub.f32 %v9208, %v9209
    %v9211 = vand.u32 %v9210, 4294901760
    %9212 = vmatpush1.msra.mxu0 %v9211
    %9213 = vmatprep.subr.mxu0 0.0
    %v9214 = vand.u32 %v7990, 4294901760
    %v9215 = vsub.f32 %v7990, %v9214
    %v9216 = vand.u32 %v9215, 4294901760
    %v9217 = vsub.f32 %v9215, %v9216
    %v9218 = vand.u32 %v9217, 4294901760
    %9219 = vmatpush1.msra.mxu0 %v9218
    %9220 = vmatprep.subr.mxu0 0.0
    %v9221 = vand.u32 %v7989, 4294901760
    %v9222 = vsub.f32 %v7989, %v9221
    %v9223 = vand.u32 %v9222, 4294901760
    %v9224 = vsub.f32 %v9222, %v9223
    %v9225 = vand.u32 %v9224, 4294901760
    %9226 = vmatpush1.msra.mxu0 %v9225
    %9227 = vmatprep.subr.mxu0 0.0
    %v9228 = vand.u32 %v7988, 4294901760
    %v9229 = vsub.f32 %v7988, %v9228
    %v9230 = vand.u32 %v9229, 4294901760
    %v9231 = vsub.f32 %v9229, %v9230
    %v9232 = vand.u32 %v9231, 4294901760
    %9233 = vmatpush1.msra.mxu0 %v9232
    %9234 = vmatprep.subr.mxu0 0.0
    %v9235 = vand.u32 %v7987, 4294901760
    %v9236 = vsub.f32 %v7987, %v9235
    %v9237 = vand.u32 %v9236, 4294901760
    %v9238 = vsub.f32 %v9236, %v9237
    %v9239 = vand.u32 %v9238, 4294901760
    %9240 = vmatpush1.msra.mxu0 %v9239
    %9241 = vmatprep.subr.mxu0 0.0
    %v9242 = vand.u32 %v7986, 4294901760
    %v9243 = vsub.f32 %v7986, %v9242
    %v9244 = vand.u32 %v9243, 4294901760
    %v9245 = vsub.f32 %v9243, %v9244
    %v9246 = vand.u32 %v9245, 4294901760
    %9247 = vmatpush1.msra.mxu0 %v9246
    %9248 = vmatprep.subr.mxu0 0.0
    %9249 = vmatpush2.msra.mxu0 0.0
    %9250 = vmatprep.subr.mxu0 0.0
    %9251 = vmatpush2.msra.mxu0 0.0
    %9252 = vmatprep.subr.mxu0 0.0
    %9253 = vmatpush2.msra.mxu0 0.0
    %9254 = vmatprep.subr.mxu0 0.0
    %9255 = vmatpush2.msra.mxu0 0.0
    %9256 = vmatprep.subr.mxu0 0.0
    %9257 = vmatpush2.msra.mxu0 0.0
    %9258 = vmatprep.subr.mxu0 0.0
    %9259 = vmatpush2.msra.mxu0 0.0
    %9260 = vmatprep.subr.mxu0 0.0
    %9261 = vmatpush2.msra.mxu0 0.0
    %9262 = vmatprep.subr.mxu0 0.0
    %9263 = vmatpush2.msra.mxu0 0.0
    %9264 = vmatprep.subr.mxu0 0.0
    %9265 = vmatpush2.msra.mxu0 0.0
    %9266 = vmatprep.subr.mxu0 0.0
    %9267 = vmatpush2.msra.mxu0 0.0
    %9268 = vmatprep.subr.mxu0 0.0
    %9269 = vmatpush2.msra.mxu0 0.0
    %9270 = vmatprep.subr.mxu0 0.0
    %9271 = vmatpush2.msra.mxu0 0.0
    %9272 = vmatprep.subr.mxu0 0.0
    %9273 = vmatpush2.msra.mxu0 0.0
    %9274 = vmatprep.subr.mxu0 0.0
    %9275 = vmatpush2.msra.mxu0 0.0
    %9276 = vmatprep.subr.mxu0 0.0
    %9277 = vmatpush2.msra.mxu0 0.0
    %9278 = vmatprep.subr.mxu0 0.0
    %9279 = vmatpush2.msra.mxu0 0.0
    %9280 = vmatprep.mubr.f32.mxu0 0.0
    %v9281 = vand.u32 %v9091, 4294901760
    %9282 = vmatmul.mubr.f32.gmra.mxu0 %v9281
    %v9283 = vpop.f32.mrf.mxu0
    %v9284 = vadd.f32 %v9173, %v9283
    %v9285 = vpop.f32.mrf.mxu0
    %9286 = vdwg.mxu0
    %9287 = vmatprep.subr.mxu0 0.0
    %9288 = vmatpush1.msra.mxu0 0.0
    %9289 = vmatprep.subr.mxu0 0.0
    %9290 = vmatpush1.msra.mxu0 0.0
    %9291 = vmatprep.subr.mxu0 0.0
    %9292 = vmatpush1.msra.mxu0 0.0
    %9293 = vmatprep.subr.mxu0 0.0
    %9294 = vmatpush1.msra.mxu0 0.0
    %9295 = vmatprep.subr.mxu0 0.0
    %9296 = vmatpush1.msra.mxu0 0.0
    %9297 = vmatprep.subr.mxu0 0.0
    %9298 = vmatpush1.msra.mxu0 0.0
    %9299 = vmatprep.subr.mxu0 0.0
    %9300 = vmatpush1.msra.mxu0 0.0
    %9301 = vmatprep.subr.mxu0 0.0
    %9302 = vmatpush1.msra.mxu0 0.0
    %9303 = vmatprep.subr.mxu0 0.0
    %v9304 = vand.u32 %v7993, 4294901760
    %v9305 = vsub.f32 %v7993, %v9304
    %9306 = vmatpush1.msra.mxu0 %v9305
    %9307 = vmatprep.subr.mxu0 0.0
    %v9308 = vand.u32 %v7992, 4294901760
    %v9309 = vsub.f32 %v7992, %v9308
    %9310 = vmatpush1.msra.mxu0 %v9309
    %9311 = vmatprep.subr.mxu0 0.0
    %v9312 = vand.u32 %v7991, 4294901760
    %v9313 = vsub.f32 %v7991, %v9312
    %9314 = vmatpush1.msra.mxu0 %v9313
    %9315 = vmatprep.subr.mxu0 0.0
    %v9316 = vand.u32 %v7990, 4294901760
    %v9317 = vsub.f32 %v7990, %v9316
    %9318 = vmatpush1.msra.mxu0 %v9317
    %9319 = vmatprep.subr.mxu0 0.0
    %v9320 = vand.u32 %v7989, 4294901760
    %v9321 = vsub.f32 %v7989, %v9320
    %9322 = vmatpush1.msra.mxu0 %v9321
    %9323 = vmatprep.subr.mxu0 0.0
    %v9324 = vand.u32 %v7988, 4294901760
    %v9325 = vsub.f32 %v7988, %v9324
    %9326 = vmatpush1.msra.mxu0 %v9325
    %9327 = vmatprep.subr.mxu0 0.0
    %v9328 = vand.u32 %v7987, 4294901760
    %v9329 = vsub.f32 %v7987, %v9328
    %9330 = vmatpush1.msra.mxu0 %v9329
    %9331 = vmatprep.subr.mxu0 0.0
    %v9332 = vand.u32 %v7986, 4294901760
    %v9333 = vsub.f32 %v7986, %v9332
    %9334 = vmatpush1.msra.mxu0 %v9333
    %9335 = vmatprep.subr.mxu0 0.0
    %9336 = vmatpush2.msra.mxu0 0.0
    %9337 = vmatprep.subr.mxu0 0.0
    %9338 = vmatpush2.msra.mxu0 0.0
    %9339 = vmatprep.subr.mxu0 0.0
    %9340 = vmatpush2.msra.mxu0 0.0
    %9341 = vmatprep.subr.mxu0 0.0
    %9342 = vmatpush2.msra.mxu0 0.0
    %9343 = vmatprep.subr.mxu0 0.0
    %9344 = vmatpush2.msra.mxu0 0.0
    %9345 = vmatprep.subr.mxu0 0.0
    %9346 = vmatpush2.msra.mxu0 0.0
    %9347 = vmatprep.subr.mxu0 0.0
    %9348 = vmatpush2.msra.mxu0 0.0
    %9349 = vmatprep.subr.mxu0 0.0
    %9350 = vmatpush2.msra.mxu0 0.0
    %9351 = vmatprep.subr.mxu0 0.0
    %9352 = vmatpush2.msra.mxu0 0.0
    %9353 = vmatprep.subr.mxu0 0.0
    %9354 = vmatpush2.msra.mxu0 0.0
    %9355 = vmatprep.subr.mxu0 0.0
    %9356 = vmatpush2.msra.mxu0 0.0
    %9357 = vmatprep.subr.mxu0 0.0
    %9358 = vmatpush2.msra.mxu0 0.0
    %9359 = vmatprep.subr.mxu0 0.0
    %9360 = vmatpush2.msra.mxu0 0.0
    %9361 = vmatprep.subr.mxu0 0.0
    %9362 = vmatpush2.msra.mxu0 0.0
    %9363 = vmatprep.subr.mxu0 0.0
    %9364 = vmatpush2.msra.mxu0 0.0
    %9365 = vmatprep.subr.mxu0 0.0
    %9366 = vmatpush2.msra.mxu0 0.0
    %9367 = vmatprep.mubr.f32.mxu0 0.0
    %v9368 = vand.u32 %v9091, 4294901760
    %v9369 = vsub.f32 %v9091, %v9368
    %9370 = vmatmul.mubr.f32.gmra.mxu0 %v9369
    %v9371 = vpop.f32.mrf.mxu0
    %v9372 = vadd.f32 %v9284, %v9371
    %v9373 = vpop.f32.mrf.mxu0
    %9374 = vdwg.mxu0
    %9375 = vmatprep.subr.mxu0 0.0
    %9376 = vmatpush1.msra.mxu0 0.0
    %9377 = vmatprep.subr.mxu0 0.0
    %9378 = vmatpush1.msra.mxu0 0.0
    %9379 = vmatprep.subr.mxu0 0.0
    %9380 = vmatpush1.msra.mxu0 0.0
    %9381 = vmatprep.subr.mxu0 0.0
    %9382 = vmatpush1.msra.mxu0 0.0
    %9383 = vmatprep.subr.mxu0 0.0
    %9384 = vmatpush1.msra.mxu0 0.0
    %9385 = vmatprep.subr.mxu0 0.0
    %9386 = vmatpush1.msra.mxu0 0.0
    %9387 = vmatprep.subr.mxu0 0.0
    %9388 = vmatpush1.msra.mxu0 0.0
    %9389 = vmatprep.subr.mxu0 0.0
    %9390 = vmatpush1.msra.mxu0 0.0
    %9391 = vmatprep.subr.mxu0 0.0
    %v9392 = vand.u32 %v7993, 4294901760
    %9393 = vmatpush1.msra.mxu0 %v9392
    %9394 = vmatprep.subr.mxu0 0.0
    %v9395 = vand.u32 %v7992, 4294901760
    %9396 = vmatpush1.msra.mxu0 %v9395
    %9397 = vmatprep.subr.mxu0 0.0
    %v9398 = vand.u32 %v7991, 4294901760
    %9399 = vmatpush1.msra.mxu0 %v9398
    %9400 = vmatprep.subr.mxu0 0.0
    %v9401 = vand.u32 %v7990, 4294901760
    %9402 = vmatpush1.msra.mxu0 %v9401
    %9403 = vmatprep.subr.mxu0 0.0
    %v9404 = vand.u32 %v7989, 4294901760
    %9405 = vmatpush1.msra.mxu0 %v9404
    %9406 = vmatprep.subr.mxu0 0.0
    %v9407 = vand.u32 %v7988, 4294901760
    %9408 = vmatpush1.msra.mxu0 %v9407
    %9409 = vmatprep.subr.mxu0 0.0
    %v9410 = vand.u32 %v7987, 4294901760
    %9411 = vmatpush1.msra.mxu0 %v9410
    %9412 = vmatprep.subr.mxu0 0.0
    %v9413 = vand.u32 %v7986, 4294901760
    %9414 = vmatpush1.msra.mxu0 %v9413
    %9415 = vmatprep.subr.mxu0 0.0
    %9416 = vmatpush2.msra.mxu0 0.0
    %9417 = vmatprep.subr.mxu0 0.0
    %9418 = vmatpush2.msra.mxu0 0.0
    %9419 = vmatprep.subr.mxu0 0.0
    %9420 = vmatpush2.msra.mxu0 0.0
    %9421 = vmatprep.subr.mxu0 0.0
    %9422 = vmatpush2.msra.mxu0 0.0
    %9423 = vmatprep.subr.mxu0 0.0
    %9424 = vmatpush2.msra.mxu0 0.0
    %9425 = vmatprep.subr.mxu0 0.0
    %9426 = vmatpush2.msra.mxu0 0.0
    %9427 = vmatprep.subr.mxu0 0.0
    %9428 = vmatpush2.msra.mxu0 0.0
    %9429 = vmatprep.subr.mxu0 0.0
    %9430 = vmatpush2.msra.mxu0 0.0
    %9431 = vmatprep.subr.mxu0 0.0
    %9432 = vmatpush2.msra.mxu0 0.0
    %9433 = vmatprep.subr.mxu0 0.0
    %9434 = vmatpush2.msra.mxu0 0.0
    %9435 = vmatprep.subr.mxu0 0.0
    %9436 = vmatpush2.msra.mxu0 0.0
    %9437 = vmatprep.subr.mxu0 0.0
    %9438 = vmatpush2.msra.mxu0 0.0
    %9439 = vmatprep.subr.mxu0 0.0
    %9440 = vmatpush2.msra.mxu0 0.0
    %9441 = vmatprep.subr.mxu0 0.0
    %9442 = vmatpush2.msra.mxu0 0.0
    %9443 = vmatprep.subr.mxu0 0.0
    %9444 = vmatpush2.msra.mxu0 0.0
    %9445 = vmatprep.subr.mxu0 0.0
    %9446 = vmatpush2.msra.mxu0 0.0
    %9447 = vmatprep.mubr.f32.mxu0 0.0
    %v9448 = vand.u32 %v9091, 4294901760
    %v9449 = vsub.f32 %v9091, %v9448
    %v9450 = vand.u32 %v9449, 4294901760
    %9451 = vmatmul.mubr.f32.gmra.mxu0 %v9450
    %v9452 = vpop.f32.mrf.mxu0
    %v9453 = vadd.f32 %v9372, %v9452
    %v9454 = vpop.f32.mrf.mxu0
    %9455 = vdwg.mxu0
    %9456 = vmatprep.subr.mxu0 0.0
    %9457 = vmatpush1.msra.mxu0 0.0
    %9458 = vmatprep.subr.mxu0 0.0
    %9459 = vmatpush1.msra.mxu0 0.0
    %9460 = vmatprep.subr.mxu0 0.0
    %9461 = vmatpush1.msra.mxu0 0.0
    %9462 = vmatprep.subr.mxu0 0.0
    %9463 = vmatpush1.msra.mxu0 0.0
    %9464 = vmatprep.subr.mxu0 0.0
    %9465 = vmatpush1.msra.mxu0 0.0
    %9466 = vmatprep.subr.mxu0 0.0
    %9467 = vmatpush1.msra.mxu0 0.0
    %9468 = vmatprep.subr.mxu0 0.0
    %9469 = vmatpush1.msra.mxu0 0.0
    %9470 = vmatprep.subr.mxu0 0.0
    %9471 = vmatpush1.msra.mxu0 0.0
    %9472 = vmatprep.subr.mxu0 0.0
    %v9473 = vand.u32 %v7993, 4294901760
    %v9474 = vsub.f32 %v7993, %v9473
    %v9475 = vand.u32 %v9474, 4294901760
    %9476 = vmatpush1.msra.mxu0 %v9475
    %9477 = vmatprep.subr.mxu0 0.0
    %v9478 = vand.u32 %v7992, 4294901760
    %v9479 = vsub.f32 %v7992, %v9478
    %v9480 = vand.u32 %v9479, 4294901760
    %9481 = vmatpush1.msra.mxu0 %v9480
    %9482 = vmatprep.subr.mxu0 0.0
    %v9483 = vand.u32 %v7991, 4294901760
    %v9484 = vsub.f32 %v7991, %v9483
    %v9485 = vand.u32 %v9484, 4294901760
    %9486 = vmatpush1.msra.mxu0 %v9485
    %9487 = vmatprep.subr.mxu0 0.0
    %v9488 = vand.u32 %v7990, 4294901760
    %v9489 = vsub.f32 %v7990, %v9488
    %v9490 = vand.u32 %v9489, 4294901760
    %9491 = vmatpush1.msra.mxu0 %v9490
    %9492 = vmatprep.subr.mxu0 0.0
    %v9493 = vand.u32 %v7989, 4294901760
    %v9494 = vsub.f32 %v7989, %v9493
    %v9495 = vand.u32 %v9494, 4294901760
    %9496 = vmatpush1.msra.mxu0 %v9495
    %9497 = vmatprep.subr.mxu0 0.0
    %v9498 = vand.u32 %v7988, 4294901760
    %v9499 = vsub.f32 %v7988, %v9498
    %v9500 = vand.u32 %v9499, 4294901760
    %9501 = vmatpush1.msra.mxu0 %v9500
    %9502 = vmatprep.subr.mxu0 0.0
    %v9503 = vand.u32 %v7987, 4294901760
    %v9504 = vsub.f32 %v7987, %v9503
    %v9505 = vand.u32 %v9504, 4294901760
    %9506 = vmatpush1.msra.mxu0 %v9505
    %9507 = vmatprep.subr.mxu0 0.0
    %v9508 = vand.u32 %v7986, 4294901760
    %v9509 = vsub.f32 %v7986, %v9508
    %v9510 = vand.u32 %v9509, 4294901760
    %9511 = vmatpush1.msra.mxu0 %v9510
    %9512 = vmatprep.subr.mxu0 0.0
    %9513 = vmatpush2.msra.mxu0 0.0
    %9514 = vmatprep.subr.mxu0 0.0
    %9515 = vmatpush2.msra.mxu0 0.0
    %9516 = vmatprep.subr.mxu0 0.0
    %9517 = vmatpush2.msra.mxu0 0.0
    %9518 = vmatprep.subr.mxu0 0.0
    %9519 = vmatpush2.msra.mxu0 0.0
    %9520 = vmatprep.subr.mxu0 0.0
    %9521 = vmatpush2.msra.mxu0 0.0
    %9522 = vmatprep.subr.mxu0 0.0
    %9523 = vmatpush2.msra.mxu0 0.0
    %9524 = vmatprep.subr.mxu0 0.0
    %9525 = vmatpush2.msra.mxu0 0.0
    %9526 = vmatprep.subr.mxu0 0.0
    %9527 = vmatpush2.msra.mxu0 0.0
    %9528 = vmatprep.subr.mxu0 0.0
    %9529 = vmatpush2.msra.mxu0 0.0
    %9530 = vmatprep.subr.mxu0 0.0
    %9531 = vmatpush2.msra.mxu0 0.0
    %9532 = vmatprep.subr.mxu0 0.0
    %9533 = vmatpush2.msra.mxu0 0.0
    %9534 = vmatprep.subr.mxu0 0.0
    %9535 = vmatpush2.msra.mxu0 0.0
    %9536 = vmatprep.subr.mxu0 0.0
    %9537 = vmatpush2.msra.mxu0 0.0
    %9538 = vmatprep.subr.mxu0 0.0
    %9539 = vmatpush2.msra.mxu0 0.0
    %9540 = vmatprep.subr.mxu0 0.0
    %9541 = vmatpush2.msra.mxu0 0.0
    %9542 = vmatprep.subr.mxu0 0.0
    %9543 = vmatpush2.msra.mxu0 0.0
    %9544 = vmatprep.mubr.f32.mxu0 0.0
    %v9545 = vand.u32 %v9091, 4294901760
    %9546 = vmatmul.mubr.f32.gmra.mxu0 %v9545
    %v9547 = vpop.f32.mrf.mxu0
    %v9548 = vadd.f32 %v9453, %v9547
    %v9549 = vpop.f32.mrf.mxu0
    %9550 = vdwg.mxu0
    %9551 = vmatprep.subr.mxu0 0.0
    %9552 = vmatpush1.msra.mxu0 0.0
    %9553 = vmatprep.subr.mxu0 0.0
    %9554 = vmatpush1.msra.mxu0 0.0
    %9555 = vmatprep.subr.mxu0 0.0
    %9556 = vmatpush1.msra.mxu0 0.0
    %9557 = vmatprep.subr.mxu0 0.0
    %9558 = vmatpush1.msra.mxu0 0.0
    %9559 = vmatprep.subr.mxu0 0.0
    %9560 = vmatpush1.msra.mxu0 0.0
    %9561 = vmatprep.subr.mxu0 0.0
    %9562 = vmatpush1.msra.mxu0 0.0
    %9563 = vmatprep.subr.mxu0 0.0
    %9564 = vmatpush1.msra.mxu0 0.0
    %9565 = vmatprep.subr.mxu0 0.0
    %9566 = vmatpush1.msra.mxu0 0.0
    %9567 = vmatprep.subr.mxu0 0.0
    %v9568 = vand.u32 %v7993, 4294901760
    %9569 = vmatpush1.msra.mxu0 %v9568
    %9570 = vmatprep.subr.mxu0 0.0
    %v9571 = vand.u32 %v7992, 4294901760
    %9572 = vmatpush1.msra.mxu0 %v9571
    %9573 = vmatprep.subr.mxu0 0.0
    %v9574 = vand.u32 %v7991, 4294901760
    %9575 = vmatpush1.msra.mxu0 %v9574
    %9576 = vmatprep.subr.mxu0 0.0
    %v9577 = vand.u32 %v7990, 4294901760
    %9578 = vmatpush1.msra.mxu0 %v9577
    %9579 = vmatprep.subr.mxu0 0.0
    %v9580 = vand.u32 %v7989, 4294901760
    %9581 = vmatpush1.msra.mxu0 %v9580
    %9582 = vmatprep.subr.mxu0 0.0
    %v9583 = vand.u32 %v7988, 4294901760
    %9584 = vmatpush1.msra.mxu0 %v9583
    %9585 = vmatprep.subr.mxu0 0.0
    %v9586 = vand.u32 %v7987, 4294901760
    %9587 = vmatpush1.msra.mxu0 %v9586
    %9588 = vmatprep.subr.mxu0 0.0
    %v9589 = vand.u32 %v7986, 4294901760
    %9590 = vmatpush1.msra.mxu0 %v9589
    %9591 = vmatprep.subr.mxu0 0.0
    %9592 = vmatpush2.msra.mxu0 0.0
    %9593 = vmatprep.subr.mxu0 0.0
    %9594 = vmatpush2.msra.mxu0 0.0
    %9595 = vmatprep.subr.mxu0 0.0
    %9596 = vmatpush2.msra.mxu0 0.0
    %9597 = vmatprep.subr.mxu0 0.0
    %9598 = vmatpush2.msra.mxu0 0.0
    %9599 = vmatprep.subr.mxu0 0.0
    %9600 = vmatpush2.msra.mxu0 0.0
    %9601 = vmatprep.subr.mxu0 0.0
    %9602 = vmatpush2.msra.mxu0 0.0
    %9603 = vmatprep.subr.mxu0 0.0
    %9604 = vmatpush2.msra.mxu0 0.0
    %9605 = vmatprep.subr.mxu0 0.0
    %9606 = vmatpush2.msra.mxu0 0.0
    %9607 = vmatprep.subr.mxu0 0.0
    %9608 = vmatpush2.msra.mxu0 0.0
    %9609 = vmatprep.subr.mxu0 0.0
    %9610 = vmatpush2.msra.mxu0 0.0
    %9611 = vmatprep.subr.mxu0 0.0
    %9612 = vmatpush2.msra.mxu0 0.0
    %9613 = vmatprep.subr.mxu0 0.0
    %9614 = vmatpush2.msra.mxu0 0.0
    %9615 = vmatprep.subr.mxu0 0.0
    %9616 = vmatpush2.msra.mxu0 0.0
    %9617 = vmatprep.subr.mxu0 0.0
    %9618 = vmatpush2.msra.mxu0 0.0
    %9619 = vmatprep.subr.mxu0 0.0
    %9620 = vmatpush2.msra.mxu0 0.0
    %9621 = vmatprep.subr.mxu0 0.0
    %9622 = vmatpush2.msra.mxu0 0.0
    %9623 = vmatprep.mubr.f32.mxu0 0.0
    %v9624 = vand.u32 %v9091, 4294901760
    %9625 = vmatmul.mubr.f32.gmra.mxu0 %v9624
    %v9626 = vpop.f32.mrf.mxu0
    %v9627 = vadd.f32 %v9548, %v9626
    %v9628 = vpop.f32.mrf.mxu0
    %9629 = vdwg.mxu0
    %v9630 = vadd.f32 %v9087, %v9627
    %v9631 = vadd.f32 %v8548, %v9630
    %vm9632 = vcmp.gt.f32.partialorder %v9631, 0.0
    %v9633 = vmin.f32 %v9631, 0.0
    %v9634 = vmul.f32 %v9633, 1.442695
    %v9635 = vpow.pop %v9634
    %v9636 = vsub.f32 %v9635, 1.0
    %v9637 = vsel %vm9632, %v9631, %v9636
    %v9638 = vld [vmem:[#allocation7] sm:$0xff]
    %v9639 = vld [vmem:[#allocation7 + $0x8] sm:$0xff]
    %v9640 = vld [vmem:[#allocation7 + $0x10] sm:$0xff]
    %v9641 = vld [vmem:[#allocation7 + $0x18] sm:$0xff]
    %v9642 = vld [vmem:[#allocation7 + $0x20] sm:$0xff]
    %v9643 = vld [vmem:[#allocation7 + $0x28] sm:$0xff]
    %s9644 = scalar_lea.vmem [#allocation7], 48
    %v9645 = vld [vmem:[%s9644] sm:$0xff]
    %v9646 = vld [vmem:[%s9644 + $0x8] sm:$0xff]
    %v9647 = vld [vmem:[%s9644 + $0x10] sm:$0xff]
    %v9648 = vld [vmem:[%s9644 + $0x18] sm:$0xff]
    %v9649 = vld [vmem:[%s9644 + $0x20] sm:$0xff]
    %v9650 = vld [vmem:[%s9644 + $0x28] sm:$0xff]
    %v9652 = vrot.slane %v9637, 2
    %vm9653 = vcmask 392192
    %v9654 = vsel %vm9653, %v9652, 0
    %9656 = vmatprep.subr.mxu0 0.0
    %9657 = vmatpush1.msra.mxu0 0.0
    %9658 = vmatprep.subr.mxu0 0.0
    %9659 = vmatpush1.msra.mxu0 0.0
    %9660 = vmatprep.subr.mxu0 0.0
    %9661 = vmatpush1.msra.mxu0 0.0
    %9662 = vmatprep.subr.mxu0 0.0
    %9663 = vmatpush1.msra.mxu0 0.0
    %9664 = vmatprep.subr.mxu0 0.0
    %9665 = vmatpush1.msra.mxu0 0.0
    %9666 = vmatprep.subr.mxu0 0.0
    %9667 = vmatpush1.msra.mxu0 0.0
    %9668 = vmatprep.subr.mxu0 0.0
    %9669 = vmatpush1.msra.mxu0 0.0
    %9670 = vmatprep.subr.mxu0 0.0
    %9671 = vmatpush1.msra.mxu0 0.0
    %9672 = vmatprep.subr.mxu0 0.0
    %9673 = vmatpush1.msra.mxu0 0.0
    %9674 = vmatprep.subr.mxu0 0.0
    %9675 = vmatpush1.msra.mxu0 0.0
    %9676 = vmatprep.subr.mxu0 0.0
    %v9677 = vand.u32 %v9650, 4294901760
    %9678 = vmatpush1.msra.mxu0 %v9677
    %9679 = vmatprep.subr.mxu0 0.0
    %v9680 = vand.u32 %v9649, 4294901760
    %9681 = vmatpush1.msra.mxu0 %v9680
    %9682 = vmatprep.subr.mxu0 0.0
    %v9683 = vand.u32 %v9648, 4294901760
    %9684 = vmatpush1.msra.mxu0 %v9683
    %9685 = vmatprep.subr.mxu0 0.0
    %v9686 = vand.u32 %v9647, 4294901760
    %9687 = vmatpush1.msra.mxu0 %v9686
    %9688 = vmatprep.subr.mxu0 0.0
    %v9689 = vand.u32 %v9646, 4294901760
    %9690 = vmatpush1.msra.mxu0 %v9689
    %9691 = vmatprep.subr.mxu0 0.0
    %v9692 = vand.u32 %v9645, 4294901760
    %9693 = vmatpush1.msra.mxu0 %v9692
    %9694 = vmatprep.subr.mxu0 0.0
    %9695 = vmatpush2.msra.mxu0 0.0
    %9696 = vmatprep.subr.mxu0 0.0
    %9697 = vmatpush2.msra.mxu0 0.0
    %9698 = vmatprep.subr.mxu0 0.0
    %9699 = vmatpush2.msra.mxu0 0.0
    %9700 = vmatprep.subr.mxu0 0.0
    %9701 = vmatpush2.msra.mxu0 0.0
    %9702 = vmatprep.subr.mxu0 0.0
    %9703 = vmatpush2.msra.mxu0 0.0
    %9704 = vmatprep.subr.mxu0 0.0
    %9705 = vmatpush2.msra.mxu0 0.0
    %9706 = vmatprep.subr.mxu0 0.0
    %9707 = vmatpush2.msra.mxu0 0.0
    %9708 = vmatprep.subr.mxu0 0.0
    %9709 = vmatpush2.msra.mxu0 0.0
    %9710 = vmatprep.subr.mxu0 0.0
    %9711 = vmatpush2.msra.mxu0 0.0
    %9712 = vmatprep.subr.mxu0 0.0
    %9713 = vmatpush2.msra.mxu0 0.0
    %9714 = vmatprep.subr.mxu0 0.0
    %9715 = vmatpush2.msra.mxu0 0.0
    %9716 = vmatprep.subr.mxu0 0.0
    %9717 = vmatpush2.msra.mxu0 0.0
    %9718 = vmatprep.subr.mxu0 0.0
    %9719 = vmatpush2.msra.mxu0 0.0
    %9720 = vmatprep.subr.mxu0 0.0
    %9721 = vmatpush2.msra.mxu0 0.0
    %9722 = vmatprep.subr.mxu0 0.0
    %9723 = vmatpush2.msra.mxu0 0.0
    %9724 = vmatprep.subr.mxu0 0.0
    %9725 = vmatpush2.msra.mxu0 0.0
    %9726 = vmatprep.mubr.f32.mxu0 0.0
    %v9727 = vand.u32 %v9654, 4294901760
    %v9728 = vsub.f32 %v9654, %v9727
    %v9729 = vand.u32 %v9728, 4294901760
    %v9730 = vsub.f32 %v9728, %v9729
    %v9731 = vand.u32 %v9730, 4294901760
    %9732 = vmatmul.mubr.f32.gmra.mxu0 %v9731
    %v9733 = vpop.f32.mrf.mxu0
    %v9734 = vadd.f32 0.0, %v9733
    %v9735 = vpop.f32.mrf.mxu0
    %9736 = vdwg.mxu0
    %9737 = vmatprep.subr.mxu0 0.0
    %9738 = vmatpush1.msra.mxu0 0.0
    %9739 = vmatprep.subr.mxu0 0.0
    %9740 = vmatpush1.msra.mxu0 0.0
    %9741 = vmatprep.subr.mxu0 0.0
    %9742 = vmatpush1.msra.mxu0 0.0
    %9743 = vmatprep.subr.mxu0 0.0
    %9744 = vmatpush1.msra.mxu0 0.0
    %9745 = vmatprep.subr.mxu0 0.0
    %9746 = vmatpush1.msra.mxu0 0.0
    %9747 = vmatprep.subr.mxu0 0.0
    %9748 = vmatpush1.msra.mxu0 0.0
    %9749 = vmatprep.subr.mxu0 0.0
    %9750 = vmatpush1.msra.mxu0 0.0
    %9751 = vmatprep.subr.mxu0 0.0
    %9752 = vmatpush1.msra.mxu0 0.0
    %9753 = vmatprep.subr.mxu0 0.0
    %9754 = vmatpush1.msra.mxu0 0.0
    %9755 = vmatprep.subr.mxu0 0.0
    %9756 = vmatpush1.msra.mxu0 0.0
    %9757 = vmatprep.subr.mxu0 0.0
    %v9758 = vand.u32 %v9650, 4294901760
    %v9759 = vsub.f32 %v9650, %v9758
    %v9760 = vand.u32 %v9759, 4294901760
    %v9761 = vsub.f32 %v9759, %v9760
    %v9762 = vand.u32 %v9761, 4294901760
    %9763 = vmatpush1.msra.mxu0 %v9762
    %9764 = vmatprep.subr.mxu0 0.0
    %v9765 = vand.u32 %v9649, 4294901760
    %v9766 = vsub.f32 %v9649, %v9765
    %v9767 = vand.u32 %v9766, 4294901760
    %v9768 = vsub.f32 %v9766, %v9767
    %v9769 = vand.u32 %v9768, 4294901760
    %9770 = vmatpush1.msra.mxu0 %v9769
    %9771 = vmatprep.subr.mxu0 0.0
    %v9772 = vand.u32 %v9648, 4294901760
    %v9773 = vsub.f32 %v9648, %v9772
    %v9774 = vand.u32 %v9773, 4294901760
    %v9775 = vsub.f32 %v9773, %v9774
    %v9776 = vand.u32 %v9775, 4294901760
    %9777 = vmatpush1.msra.mxu0 %v9776
    %9778 = vmatprep.subr.mxu0 0.0
    %v9779 = vand.u32 %v9647, 4294901760
    %v9780 = vsub.f32 %v9647, %v9779
    %v9781 = vand.u32 %v9780, 4294901760
    %v9782 = vsub.f32 %v9780, %v9781
    %v9783 = vand.u32 %v9782, 4294901760
    %9784 = vmatpush1.msra.mxu0 %v9783
    %9785 = vmatprep.subr.mxu0 0.0
    %v9786 = vand.u32 %v9646, 4294901760
    %v9787 = vsub.f32 %v9646, %v9786
    %v9788 = vand.u32 %v9787, 4294901760
    %v9789 = vsub.f32 %v9787, %v9788
    %v9790 = vand.u32 %v9789, 4294901760
    %9791 = vmatpush1.msra.mxu0 %v9790
    %9792 = vmatprep.subr.mxu0 0.0
    %v9793 = vand.u32 %v9645, 4294901760
    %v9794 = vsub.f32 %v9645, %v9793
    %v9795 = vand.u32 %v9794, 4294901760
    %v9796 = vsub.f32 %v9794, %v9795
    %v9797 = vand.u32 %v9796, 4294901760
    %9798 = vmatpush1.msra.mxu0 %v9797
    %9799 = vmatprep.subr.mxu0 0.0
    %9800 = vmatpush2.msra.mxu0 0.0
    %9801 = vmatprep.subr.mxu0 0.0
    %9802 = vmatpush2.msra.mxu0 0.0
    %9803 = vmatprep.subr.mxu0 0.0
    %9804 = vmatpush2.msra.mxu0 0.0
    %9805 = vmatprep.subr.mxu0 0.0
    %9806 = vmatpush2.msra.mxu0 0.0
    %9807 = vmatprep.subr.mxu0 0.0
    %9808 = vmatpush2.msra.mxu0 0.0
    %9809 = vmatprep.subr.mxu0 0.0
    %9810 = vmatpush2.msra.mxu0 0.0
    %9811 = vmatprep.subr.mxu0 0.0
    %9812 = vmatpush2.msra.mxu0 0.0
    %9813 = vmatprep.subr.mxu0 0.0
    %9814 = vmatpush2.msra.mxu0 0.0
    %9815 = vmatprep.subr.mxu0 0.0
    %9816 = vmatpush2.msra.mxu0 0.0
    %9817 = vmatprep.subr.mxu0 0.0
    %9818 = vmatpush2.msra.mxu0 0.0
    %9819 = vmatprep.subr.mxu0 0.0
    %9820 = vmatpush2.msra.mxu0 0.0
    %9821 = vmatprep.subr.mxu0 0.0
    %9822 = vmatpush2.msra.mxu0 0.0
    %9823 = vmatprep.subr.mxu0 0.0
    %9824 = vmatpush2.msra.mxu0 0.0
    %9825 = vmatprep.subr.mxu0 0.0
    %9826 = vmatpush2.msra.mxu0 0.0
    %9827 = vmatprep.subr.mxu0 0.0
    %9828 = vmatpush2.msra.mxu0 0.0
    %9829 = vmatprep.subr.mxu0 0.0
    %9830 = vmatpush2.msra.mxu0 0.0
    %9831 = vmatprep.mubr.f32.mxu0 0.0
    %v9832 = vand.u32 %v9654, 4294901760
    %9833 = vmatmul.mubr.f32.gmra.mxu0 %v9832
    %v9834 = vpop.f32.mrf.mxu0
    %v9835 = vadd.f32 %v9734, %v9834
    %v9836 = vpop.f32.mrf.mxu0
    %9837 = vdwg.mxu0
    %9838 = vmatprep.subr.mxu0 0.0
    %9839 = vmatpush1.msra.mxu0 0.0
    %9840 = vmatprep.subr.mxu0 0.0
    %9841 = vmatpush1.msra.mxu0 0.0
    %9842 = vmatprep.subr.mxu0 0.0
    %9843 = vmatpush1.msra.mxu0 0.0
    %9844 = vmatprep.subr.mxu0 0.0
    %9845 = vmatpush1.msra.mxu0 0.0
    %9846 = vmatprep.subr.mxu0 0.0
    %9847 = vmatpush1.msra.mxu0 0.0
    %9848 = vmatprep.subr.mxu0 0.0
    %9849 = vmatpush1.msra.mxu0 0.0
    %9850 = vmatprep.subr.mxu0 0.0
    %9851 = vmatpush1.msra.mxu0 0.0
    %9852 = vmatprep.subr.mxu0 0.0
    %9853 = vmatpush1.msra.mxu0 0.0
    %9854 = vmatprep.subr.mxu0 0.0
    %9855 = vmatpush1.msra.mxu0 0.0
    %9856 = vmatprep.subr.mxu0 0.0
    %9857 = vmatpush1.msra.mxu0 0.0
    %9858 = vmatprep.subr.mxu0 0.0
    %v9859 = vand.u32 %v9650, 4294901760
    %v9860 = vsub.f32 %v9650, %v9859
    %9861 = vmatpush1.msra.mxu0 %v9860
    %9862 = vmatprep.subr.mxu0 0.0
    %v9863 = vand.u32 %v9649, 4294901760
    %v9864 = vsub.f32 %v9649, %v9863
    %9865 = vmatpush1.msra.mxu0 %v9864
    %9866 = vmatprep.subr.mxu0 0.0
    %v9867 = vand.u32 %v9648, 4294901760
    %v9868 = vsub.f32 %v9648, %v9867
    %9869 = vmatpush1.msra.mxu0 %v9868
    %9870 = vmatprep.subr.mxu0 0.0
    %v9871 = vand.u32 %v9647, 4294901760
    %v9872 = vsub.f32 %v9647, %v9871
    %9873 = vmatpush1.msra.mxu0 %v9872
    %9874 = vmatprep.subr.mxu0 0.0
    %v9875 = vand.u32 %v9646, 4294901760
    %v9876 = vsub.f32 %v9646, %v9875
    %9877 = vmatpush1.msra.mxu0 %v9876
    %9878 = vmatprep.subr.mxu0 0.0
    %v9879 = vand.u32 %v9645, 4294901760
    %v9880 = vsub.f32 %v9645, %v9879
    %9881 = vmatpush1.msra.mxu0 %v9880
    %9882 = vmatprep.subr.mxu0 0.0
    %9883 = vmatpush2.msra.mxu0 0.0
    %9884 = vmatprep.subr.mxu0 0.0
    %9885 = vmatpush2.msra.mxu0 0.0
    %9886 = vmatprep.subr.mxu0 0.0
    %9887 = vmatpush2.msra.mxu0 0.0
    %9888 = vmatprep.subr.mxu0 0.0
    %9889 = vmatpush2.msra.mxu0 0.0
    %9890 = vmatprep.subr.mxu0 0.0
    %9891 = vmatpush2.msra.mxu0 0.0
    %9892 = vmatprep.subr.mxu0 0.0
    %9893 = vmatpush2.msra.mxu0 0.0
    %9894 = vmatprep.subr.mxu0 0.0
    %9895 = vmatpush2.msra.mxu0 0.0
    %9896 = vmatprep.subr.mxu0 0.0
    %9897 = vmatpush2.msra.mxu0 0.0
    %9898 = vmatprep.subr.mxu0 0.0
    %9899 = vmatpush2.msra.mxu0 0.0
    %9900 = vmatprep.subr.mxu0 0.0
    %9901 = vmatpush2.msra.mxu0 0.0
    %9902 = vmatprep.subr.mxu0 0.0
    %9903 = vmatpush2.msra.mxu0 0.0
    %9904 = vmatprep.subr.mxu0 0.0
    %9905 = vmatpush2.msra.mxu0 0.0
    %9906 = vmatprep.subr.mxu0 0.0
    %9907 = vmatpush2.msra.mxu0 0.0
    %9908 = vmatprep.subr.mxu0 0.0
    %9909 = vmatpush2.msra.mxu0 0.0
    %9910 = vmatprep.subr.mxu0 0.0
    %9911 = vmatpush2.msra.mxu0 0.0
    %9912 = vmatprep.subr.mxu0 0.0
    %9913 = vmatpush2.msra.mxu0 0.0
    %9914 = vmatprep.mubr.f32.mxu0 0.0
    %v9915 = vand.u32 %v9654, 4294901760
    %v9916 = vsub.f32 %v9654, %v9915
    %9917 = vmatmul.mubr.f32.gmra.mxu0 %v9916
    %v9918 = vpop.f32.mrf.mxu0
    %v9919 = vadd.f32 %v9835, %v9918
    %v9920 = vpop.f32.mrf.mxu0
    %9921 = vdwg.mxu0
    %9922 = vmatprep.subr.mxu0 0.0
    %9923 = vmatpush1.msra.mxu0 0.0
    %9924 = vmatprep.subr.mxu0 0.0
    %9925 = vmatpush1.msra.mxu0 0.0
    %9926 = vmatprep.subr.mxu0 0.0
    %9927 = vmatpush1.msra.mxu0 0.0
    %9928 = vmatprep.subr.mxu0 0.0
    %9929 = vmatpush1.msra.mxu0 0.0
    %9930 = vmatprep.subr.mxu0 0.0
    %9931 = vmatpush1.msra.mxu0 0.0
    %9932 = vmatprep.subr.mxu0 0.0
    %9933 = vmatpush1.msra.mxu0 0.0
    %9934 = vmatprep.subr.mxu0 0.0
    %9935 = vmatpush1.msra.mxu0 0.0
    %9936 = vmatprep.subr.mxu0 0.0
    %9937 = vmatpush1.msra.mxu0 0.0
    %9938 = vmatprep.subr.mxu0 0.0
    %9939 = vmatpush1.msra.mxu0 0.0
    %9940 = vmatprep.subr.mxu0 0.0
    %9941 = vmatpush1.msra.mxu0 0.0
    %9942 = vmatprep.subr.mxu0 0.0
    %v9943 = vand.u32 %v9650, 4294901760
    %9944 = vmatpush1.msra.mxu0 %v9943
    %9945 = vmatprep.subr.mxu0 0.0
    %v9946 = vand.u32 %v9649, 4294901760
    %9947 = vmatpush1.msra.mxu0 %v9946
    %9948 = vmatprep.subr.mxu0 0.0
    %v9949 = vand.u32 %v9648, 4294901760
    %9950 = vmatpush1.msra.mxu0 %v9949
    %9951 = vmatprep.subr.mxu0 0.0
    %v9952 = vand.u32 %v9647, 4294901760
    %9953 = vmatpush1.msra.mxu0 %v9952
    %9954 = vmatprep.subr.mxu0 0.0
    %v9955 = vand.u32 %v9646, 4294901760
    %9956 = vmatpush1.msra.mxu0 %v9955
    %9957 = vmatprep.subr.mxu0 0.0
    %v9958 = vand.u32 %v9645, 4294901760
    %9959 = vmatpush1.msra.mxu0 %v9958
    %9960 = vmatprep.subr.mxu0 0.0
    %9961 = vmatpush2.msra.mxu0 0.0
    %9962 = vmatprep.subr.mxu0 0.0
    %9963 = vmatpush2.msra.mxu0 0.0
    %9964 = vmatprep.subr.mxu0 0.0
    %9965 = vmatpush2.msra.mxu0 0.0
    %9966 = vmatprep.subr.mxu0 0.0
    %9967 = vmatpush2.msra.mxu0 0.0
    %9968 = vmatprep.subr.mxu0 0.0
    %9969 = vmatpush2.msra.mxu0 0.0
    %9970 = vmatprep.subr.mxu0 0.0
    %9971 = vmatpush2.msra.mxu0 0.0
    %9972 = vmatprep.subr.mxu0 0.0
    %9973 = vmatpush2.msra.mxu0 0.0
    %9974 = vmatprep.subr.mxu0 0.0
    %9975 = vmatpush2.msra.mxu0 0.0
    %9976 = vmatprep.subr.mxu0 0.0
    %9977 = vmatpush2.msra.mxu0 0.0
    %9978 = vmatprep.subr.mxu0 0.0
    %9979 = vmatpush2.msra.mxu0 0.0
    %9980 = vmatprep.subr.mxu0 0.0
    %9981 = vmatpush2.msra.mxu0 0.0
    %9982 = vmatprep.subr.mxu0 0.0
    %9983 = vmatpush2.msra.mxu0 0.0
    %9984 = vmatprep.subr.mxu0 0.0
    %9985 = vmatpush2.msra.mxu0 0.0
    %9986 = vmatprep.subr.mxu0 0.0
    %9987 = vmatpush2.msra.mxu0 0.0
    %9988 = vmatprep.subr.mxu0 0.0
    %9989 = vmatpush2.msra.mxu0 0.0
    %9990 = vmatprep.subr.mxu0 0.0
    %9991 = vmatpush2.msra.mxu0 0.0
    %9992 = vmatprep.mubr.f32.mxu0 0.0
    %v9993 = vand.u32 %v9654, 4294901760
    %v9994 = vsub.f32 %v9654, %v9993
    %v9995 = vand.u32 %v9994, 4294901760
    %9996 = vmatmul.mubr.f32.gmra.mxu0 %v9995
    %v9997 = vpop.f32.mrf.mxu0
    %v9998 = vadd.f32 %v9919, %v9997
    %v9999 = vpop.f32.mrf.mxu0
    %10000 = vdwg.mxu0
    %10001 = vmatprep.subr.mxu0 0.0
    %10002 = vmatpush1.msra.mxu0 0.0
    %10003 = vmatprep.subr.mxu0 0.0
    %10004 = vmatpush1.msra.mxu0 0.0
    %10005 = vmatprep.subr.mxu0 0.0
    %10006 = vmatpush1.msra.mxu0 0.0
    %10007 = vmatprep.subr.mxu0 0.0
    %10008 = vmatpush1.msra.mxu0 0.0
    %10009 = vmatprep.subr.mxu0 0.0
    %10010 = vmatpush1.msra.mxu0 0.0
    %10011 = vmatprep.subr.mxu0 0.0
    %10012 = vmatpush1.msra.mxu0 0.0
    %10013 = vmatprep.subr.mxu0 0.0
    %10014 = vmatpush1.msra.mxu0 0.0
    %10015 = vmatprep.subr.mxu0 0.0
    %10016 = vmatpush1.msra.mxu0 0.0
    %10017 = vmatprep.subr.mxu0 0.0
    %10018 = vmatpush1.msra.mxu0 0.0
    %10019 = vmatprep.subr.mxu0 0.0
    %10020 = vmatpush1.msra.mxu0 0.0
    %10021 = vmatprep.subr.mxu0 0.0
    %v10022 = vand.u32 %v9650, 4294901760
    %v10023 = vsub.f32 %v9650, %v10022
    %v10024 = vand.u32 %v10023, 4294901760
    %10025 = vmatpush1.msra.mxu0 %v10024
    %10026 = vmatprep.subr.mxu0 0.0
    %v10027 = vand.u32 %v9649, 4294901760
    %v10028 = vsub.f32 %v9649, %v10027
    %v10029 = vand.u32 %v10028, 4294901760
    %10030 = vmatpush1.msra.mxu0 %v10029
    %10031 = vmatprep.subr.mxu0 0.0
    %v10032 = vand.u32 %v9648, 4294901760
    %v10033 = vsub.f32 %v9648, %v10032
    %v10034 = vand.u32 %v10033, 4294901760
    %10035 = vmatpush1.msra.mxu0 %v10034
    %10036 = vmatprep.subr.mxu0 0.0
    %v10037 = vand.u32 %v9647, 4294901760
    %v10038 = vsub.f32 %v9647, %v10037
    %v10039 = vand.u32 %v10038, 4294901760
    %10040 = vmatpush1.msra.mxu0 %v10039
    %10041 = vmatprep.subr.mxu0 0.0
    %v10042 = vand.u32 %v9646, 4294901760
    %v10043 = vsub.f32 %v9646, %v10042
    %v10044 = vand.u32 %v10043, 4294901760
    %10045 = vmatpush1.msra.mxu0 %v10044
    %10046 = vmatprep.subr.mxu0 0.0
    %v10047 = vand.u32 %v9645, 4294901760
    %v10048 = vsub.f32 %v9645, %v10047
    %v10049 = vand.u32 %v10048, 4294901760
    %10050 = vmatpush1.msra.mxu0 %v10049
    %10051 = vmatprep.subr.mxu0 0.0
    %10052 = vmatpush2.msra.mxu0 0.0
    %10053 = vmatprep.subr.mxu0 0.0
    %10054 = vmatpush2.msra.mxu0 0.0
    %10055 = vmatprep.subr.mxu0 0.0
    %10056 = vmatpush2.msra.mxu0 0.0
    %10057 = vmatprep.subr.mxu0 0.0
    %10058 = vmatpush2.msra.mxu0 0.0
    %10059 = vmatprep.subr.mxu0 0.0
    %10060 = vmatpush2.msra.mxu0 0.0
    %10061 = vmatprep.subr.mxu0 0.0
    %10062 = vmatpush2.msra.mxu0 0.0
    %10063 = vmatprep.subr.mxu0 0.0
    %10064 = vmatpush2.msra.mxu0 0.0
    %10065 = vmatprep.subr.mxu0 0.0
    %10066 = vmatpush2.msra.mxu0 0.0
    %10067 = vmatprep.subr.mxu0 0.0
    %10068 = vmatpush2.msra.mxu0 0.0
    %10069 = vmatprep.subr.mxu0 0.0
    %10070 = vmatpush2.msra.mxu0 0.0
    %10071 = vmatprep.subr.mxu0 0.0
    %10072 = vmatpush2.msra.mxu0 0.0
    %10073 = vmatprep.subr.mxu0 0.0
    %10074 = vmatpush2.msra.mxu0 0.0
    %10075 = vmatprep.subr.mxu0 0.0
    %10076 = vmatpush2.msra.mxu0 0.0
    %10077 = vmatprep.subr.mxu0 0.0
    %10078 = vmatpush2.msra.mxu0 0.0
    %10079 = vmatprep.subr.mxu0 0.0
    %10080 = vmatpush2.msra.mxu0 0.0
    %10081 = vmatprep.subr.mxu0 0.0
    %10082 = vmatpush2.msra.mxu0 0.0
    %10083 = vmatprep.mubr.f32.mxu0 0.0
    %v10084 = vand.u32 %v9654, 4294901760
    %10085 = vmatmul.mubr.f32.gmra.mxu0 %v10084
    %v10086 = vpop.f32.mrf.mxu0
    %v10087 = vadd.f32 %v9998, %v10086
    %v10088 = vpop.f32.mrf.mxu0
    %10089 = vdwg.mxu0
    %10090 = vmatprep.subr.mxu0 0.0
    %10091 = vmatpush1.msra.mxu0 0.0
    %10092 = vmatprep.subr.mxu0 0.0
    %10093 = vmatpush1.msra.mxu0 0.0
    %10094 = vmatprep.subr.mxu0 0.0
    %10095 = vmatpush1.msra.mxu0 0.0
    %10096 = vmatprep.subr.mxu0 0.0
    %10097 = vmatpush1.msra.mxu0 0.0
    %10098 = vmatprep.subr.mxu0 0.0
    %10099 = vmatpush1.msra.mxu0 0.0
    %10100 = vmatprep.subr.mxu0 0.0
    %10101 = vmatpush1.msra.mxu0 0.0
    %10102 = vmatprep.subr.mxu0 0.0
    %10103 = vmatpush1.msra.mxu0 0.0
    %10104 = vmatprep.subr.mxu0 0.0
    %10105 = vmatpush1.msra.mxu0 0.0
    %10106 = vmatprep.subr.mxu0 0.0
    %10107 = vmatpush1.msra.mxu0 0.0
    %10108 = vmatprep.subr.mxu0 0.0
    %10109 = vmatpush1.msra.mxu0 0.0
    %10110 = vmatprep.subr.mxu0 0.0
    %v10111 = vand.u32 %v9650, 4294901760
    %10112 = vmatpush1.msra.mxu0 %v10111
    %10113 = vmatprep.subr.mxu0 0.0
    %v10114 = vand.u32 %v9649, 4294901760
    %10115 = vmatpush1.msra.mxu0 %v10114
    %10116 = vmatprep.subr.mxu0 0.0
    %v10117 = vand.u32 %v9648, 4294901760
    %10118 = vmatpush1.msra.mxu0 %v10117
    %10119 = vmatprep.subr.mxu0 0.0
    %v10120 = vand.u32 %v9647, 4294901760
    %10121 = vmatpush1.msra.mxu0 %v10120
    %10122 = vmatprep.subr.mxu0 0.0
    %v10123 = vand.u32 %v9646, 4294901760
    %10124 = vmatpush1.msra.mxu0 %v10123
    %10125 = vmatprep.subr.mxu0 0.0
    %v10126 = vand.u32 %v9645, 4294901760
    %10127 = vmatpush1.msra.mxu0 %v10126
    %10128 = vmatprep.subr.mxu0 0.0
    %10129 = vmatpush2.msra.mxu0 0.0
    %10130 = vmatprep.subr.mxu0 0.0
    %10131 = vmatpush2.msra.mxu0 0.0
    %10132 = vmatprep.subr.mxu0 0.0
    %10133 = vmatpush2.msra.mxu0 0.0
    %10134 = vmatprep.subr.mxu0 0.0
    %10135 = vmatpush2.msra.mxu0 0.0
    %10136 = vmatprep.subr.mxu0 0.0
    %10137 = vmatpush2.msra.mxu0 0.0
    %10138 = vmatprep.subr.mxu0 0.0
    %10139 = vmatpush2.msra.mxu0 0.0
    %10140 = vmatprep.subr.mxu0 0.0
    %10141 = vmatpush2.msra.mxu0 0.0
    %10142 = vmatprep.subr.mxu0 0.0
    %10143 = vmatpush2.msra.mxu0 0.0
    %10144 = vmatprep.subr.mxu0 0.0
    %10145 = vmatpush2.msra.mxu0 0.0
    %10146 = vmatprep.subr.mxu0 0.0
    %10147 = vmatpush2.msra.mxu0 0.0
    %10148 = vmatprep.subr.mxu0 0.0
    %10149 = vmatpush2.msra.mxu0 0.0
    %10150 = vmatprep.subr.mxu0 0.0
    %10151 = vmatpush2.msra.mxu0 0.0
    %10152 = vmatprep.subr.mxu0 0.0
    %10153 = vmatpush2.msra.mxu0 0.0
    %10154 = vmatprep.subr.mxu0 0.0
    %10155 = vmatpush2.msra.mxu0 0.0
    %10156 = vmatprep.subr.mxu0 0.0
    %10157 = vmatpush2.msra.mxu0 0.0
    %10158 = vmatprep.subr.mxu0 0.0
    %10159 = vmatpush2.msra.mxu0 0.0
    %10160 = vmatprep.mubr.f32.mxu0 0.0
    %v10161 = vand.u32 %v9654, 4294901760
    %10162 = vmatmul.mubr.f32.gmra.mxu0 %v10161
    %v10163 = vpop.f32.mrf.mxu0
    %v10164 = vadd.f32 %v10087, %v10163
    %v10165 = vpop.f32.mrf.mxu0
    %10166 = vdwg.mxu0
    %s10167 = scalar_lea.vmem [#allocation7], 96
    %v10168 = vld [vmem:[%s10167] sm:$0xff]
    %v10169 = vld [vmem:[%s10167 + $0x8] sm:$0xff]
    %v10170 = vld [vmem:[%s10167 + $0x10] sm:$0xff]
    %v10171 = vld [vmem:[%s10167 + $0x18] sm:$0xff]
    %v10172 = vld [vmem:[%s10167 + $0x20] sm:$0xff]
    %v10173 = vld [vmem:[%s10167 + $0x28] sm:$0xff]
    %v10174 = vrot.slane %v9637, 4
    %v10175 = vsel %vm9653, %v10174, 0
    %10177 = vmatprep.subr.mxu0 0.0
    %10178 = vmatpush1.msra.mxu0 0.0
    %10179 = vmatprep.subr.mxu0 0.0
    %10180 = vmatpush1.msra.mxu0 0.0
    %10181 = vmatprep.subr.mxu0 0.0
    %10182 = vmatpush1.msra.mxu0 0.0
    %10183 = vmatprep.subr.mxu0 0.0
    %10184 = vmatpush1.msra.mxu0 0.0
    %10185 = vmatprep.subr.mxu0 0.0
    %10186 = vmatpush1.msra.mxu0 0.0
    %10187 = vmatprep.subr.mxu0 0.0
    %10188 = vmatpush1.msra.mxu0 0.0
    %10189 = vmatprep.subr.mxu0 0.0
    %10190 = vmatpush1.msra.mxu0 0.0
    %10191 = vmatprep.subr.mxu0 0.0
    %10192 = vmatpush1.msra.mxu0 0.0
    %10193 = vmatprep.subr.mxu0 0.0
    %10194 = vmatpush1.msra.mxu0 0.0
    %10195 = vmatprep.subr.mxu0 0.0
    %10196 = vmatpush1.msra.mxu0 0.0
    %10197 = vmatprep.subr.mxu0 0.0
    %v10198 = vand.u32 %v10173, 4294901760
    %10199 = vmatpush1.msra.mxu0 %v10198
    %10200 = vmatprep.subr.mxu0 0.0
    %v10201 = vand.u32 %v10172, 4294901760
    %10202 = vmatpush1.msra.mxu0 %v10201
    %10203 = vmatprep.subr.mxu0 0.0
    %v10204 = vand.u32 %v10171, 4294901760
    %10205 = vmatpush1.msra.mxu0 %v10204
    %10206 = vmatprep.subr.mxu0 0.0
    %v10207 = vand.u32 %v10170, 4294901760
    %10208 = vmatpush1.msra.mxu0 %v10207
    %10209 = vmatprep.subr.mxu0 0.0
    %v10210 = vand.u32 %v10169, 4294901760
    %10211 = vmatpush1.msra.mxu0 %v10210
    %10212 = vmatprep.subr.mxu0 0.0
    %v10213 = vand.u32 %v10168, 4294901760
    %10214 = vmatpush1.msra.mxu0 %v10213
    %10215 = vmatprep.subr.mxu0 0.0
    %10216 = vmatpush2.msra.mxu0 0.0
    %10217 = vmatprep.subr.mxu0 0.0
    %10218 = vmatpush2.msra.mxu0 0.0
    %10219 = vmatprep.subr.mxu0 0.0
    %10220 = vmatpush2.msra.mxu0 0.0
    %10221 = vmatprep.subr.mxu0 0.0
    %10222 = vmatpush2.msra.mxu0 0.0
    %10223 = vmatprep.subr.mxu0 0.0
    %10224 = vmatpush2.msra.mxu0 0.0
    %10225 = vmatprep.subr.mxu0 0.0
    %10226 = vmatpush2.msra.mxu0 0.0
    %10227 = vmatprep.subr.mxu0 0.0
    %10228 = vmatpush2.msra.mxu0 0.0
    %10229 = vmatprep.subr.mxu0 0.0
    %10230 = vmatpush2.msra.mxu0 0.0
    %10231 = vmatprep.subr.mxu0 0.0
    %10232 = vmatpush2.msra.mxu0 0.0
    %10233 = vmatprep.subr.mxu0 0.0
    %10234 = vmatpush2.msra.mxu0 0.0
    %10235 = vmatprep.subr.mxu0 0.0
    %10236 = vmatpush2.msra.mxu0 0.0
    %10237 = vmatprep.subr.mxu0 0.0
    %10238 = vmatpush2.msra.mxu0 0.0
    %10239 = vmatprep.subr.mxu0 0.0
    %10240 = vmatpush2.msra.mxu0 0.0
    %10241 = vmatprep.subr.mxu0 0.0
    %10242 = vmatpush2.msra.mxu0 0.0
    %10243 = vmatprep.subr.mxu0 0.0
    %10244 = vmatpush2.msra.mxu0 0.0
    %10245 = vmatprep.subr.mxu0 0.0
    %10246 = vmatpush2.msra.mxu0 0.0
    %10247 = vmatprep.mubr.f32.mxu0 0.0
    %v10248 = vand.u32 %v10175, 4294901760
    %v10249 = vsub.f32 %v10175, %v10248
    %v10250 = vand.u32 %v10249, 4294901760
    %v10251 = vsub.f32 %v10249, %v10250
    %v10252 = vand.u32 %v10251, 4294901760
    %10253 = vmatmul.mubr.f32.gmra.mxu0 %v10252
    %v10254 = vpop.f32.mrf.mxu0
    %v10255 = vadd.f32 0.0, %v10254
    %v10256 = vpop.f32.mrf.mxu0
    %10257 = vdwg.mxu0
    %10258 = vmatprep.subr.mxu0 0.0
    %10259 = vmatpush1.msra.mxu0 0.0
    %10260 = vmatprep.subr.mxu0 0.0
    %10261 = vmatpush1.msra.mxu0 0.0
    %10262 = vmatprep.subr.mxu0 0.0
    %10263 = vmatpush1.msra.mxu0 0.0
    %10264 = vmatprep.subr.mxu0 0.0
    %10265 = vmatpush1.msra.mxu0 0.0
    %10266 = vmatprep.subr.mxu0 0.0
    %10267 = vmatpush1.msra.mxu0 0.0
    %10268 = vmatprep.subr.mxu0 0.0
    %10269 = vmatpush1.msra.mxu0 0.0
    %10270 = vmatprep.subr.mxu0 0.0
    %10271 = vmatpush1.msra.mxu0 0.0
    %10272 = vmatprep.subr.mxu0 0.0
    %10273 = vmatpush1.msra.mxu0 0.0
    %10274 = vmatprep.subr.mxu0 0.0
    %10275 = vmatpush1.msra.mxu0 0.0
    %10276 = vmatprep.subr.mxu0 0.0
    %10277 = vmatpush1.msra.mxu0 0.0
    %10278 = vmatprep.subr.mxu0 0.0
    %v10279 = vand.u32 %v10173, 4294901760
    %v10280 = vsub.f32 %v10173, %v10279
    %v10281 = vand.u32 %v10280, 4294901760
    %v10282 = vsub.f32 %v10280, %v10281
    %v10283 = vand.u32 %v10282, 4294901760
    %10284 = vmatpush1.msra.mxu0 %v10283
    %10285 = vmatprep.subr.mxu0 0.0
    %v10286 = vand.u32 %v10172, 4294901760
    %v10287 = vsub.f32 %v10172, %v10286
    %v10288 = vand.u32 %v10287, 4294901760
    %v10289 = vsub.f32 %v10287, %v10288
    %v10290 = vand.u32 %v10289, 4294901760
    %10291 = vmatpush1.msra.mxu0 %v10290
    %10292 = vmatprep.subr.mxu0 0.0
    %v10293 = vand.u32 %v10171, 4294901760
    %v10294 = vsub.f32 %v10171, %v10293
    %v10295 = vand.u32 %v10294, 4294901760
    %v10296 = vsub.f32 %v10294, %v10295
    %v10297 = vand.u32 %v10296, 4294901760
    %10298 = vmatpush1.msra.mxu0 %v10297
    %10299 = vmatprep.subr.mxu0 0.0
    %v10300 = vand.u32 %v10170, 4294901760
    %v10301 = vsub.f32 %v10170, %v10300
    %v10302 = vand.u32 %v10301, 4294901760
    %v10303 = vsub.f32 %v10301, %v10302
    %v10304 = vand.u32 %v10303, 4294901760
    %10305 = vmatpush1.msra.mxu0 %v10304
    %10306 = vmatprep.subr.mxu0 0.0
    %v10307 = vand.u32 %v10169, 4294901760
    %v10308 = vsub.f32 %v10169, %v10307
    %v10309 = vand.u32 %v10308, 4294901760
    %v10310 = vsub.f32 %v10308, %v10309
    %v10311 = vand.u32 %v10310, 4294901760
    %10312 = vmatpush1.msra.mxu0 %v10311
    %10313 = vmatprep.subr.mxu0 0.0
    %v10314 = vand.u32 %v10168, 4294901760
    %v10315 = vsub.f32 %v10168, %v10314
    %v10316 = vand.u32 %v10315, 4294901760
    %v10317 = vsub.f32 %v10315, %v10316
    %v10318 = vand.u32 %v10317, 4294901760
    %10319 = vmatpush1.msra.mxu0 %v10318
    %10320 = vmatprep.subr.mxu0 0.0
    %10321 = vmatpush2.msra.mxu0 0.0
    %10322 = vmatprep.subr.mxu0 0.0
    %10323 = vmatpush2.msra.mxu0 0.0
    %10324 = vmatprep.subr.mxu0 0.0
    %10325 = vmatpush2.msra.mxu0 0.0
    %10326 = vmatprep.subr.mxu0 0.0
    %10327 = vmatpush2.msra.mxu0 0.0
    %10328 = vmatprep.subr.mxu0 0.0
    %10329 = vmatpush2.msra.mxu0 0.0
    %10330 = vmatprep.subr.mxu0 0.0
    %10331 = vmatpush2.msra.mxu0 0.0
    %10332 = vmatprep.subr.mxu0 0.0
    %10333 = vmatpush2.msra.mxu0 0.0
    %10334 = vmatprep.subr.mxu0 0.0
    %10335 = vmatpush2.msra.mxu0 0.0
    %10336 = vmatprep.subr.mxu0 0.0
    %10337 = vmatpush2.msra.mxu0 0.0
    %10338 = vmatprep.subr.mxu0 0.0
    %10339 = vmatpush2.msra.mxu0 0.0
    %10340 = vmatprep.subr.mxu0 0.0
    %10341 = vmatpush2.msra.mxu0 0.0
    %10342 = vmatprep.subr.mxu0 0.0
    %10343 = vmatpush2.msra.mxu0 0.0
    %10344 = vmatprep.subr.mxu0 0.0
    %10345 = vmatpush2.msra.mxu0 0.0
    %10346 = vmatprep.subr.mxu0 0.0
    %10347 = vmatpush2.msra.mxu0 0.0
    %10348 = vmatprep.subr.mxu0 0.0
    %10349 = vmatpush2.msra.mxu0 0.0
    %10350 = vmatprep.subr.mxu0 0.0
    %10351 = vmatpush2.msra.mxu0 0.0
    %10352 = vmatprep.mubr.f32.mxu0 0.0
    %v10353 = vand.u32 %v10175, 4294901760
    %10354 = vmatmul.mubr.f32.gmra.mxu0 %v10353
    %v10355 = vpop.f32.mrf.mxu0
    %v10356 = vadd.f32 %v10255, %v10355
    %v10357 = vpop.f32.mrf.mxu0
    %10358 = vdwg.mxu0
    %10359 = vmatprep.subr.mxu0 0.0
    %10360 = vmatpush1.msra.mxu0 0.0
    %10361 = vmatprep.subr.mxu0 0.0
    %10362 = vmatpush1.msra.mxu0 0.0
    %10363 = vmatprep.subr.mxu0 0.0
    %10364 = vmatpush1.msra.mxu0 0.0
    %10365 = vmatprep.subr.mxu0 0.0
    %10366 = vmatpush1.msra.mxu0 0.0
    %10367 = vmatprep.subr.mxu0 0.0
    %10368 = vmatpush1.msra.mxu0 0.0
    %10369 = vmatprep.subr.mxu0 0.0
    %10370 = vmatpush1.msra.mxu0 0.0
    %10371 = vmatprep.subr.mxu0 0.0
    %10372 = vmatpush1.msra.mxu0 0.0
    %10373 = vmatprep.subr.mxu0 0.0
    %10374 = vmatpush1.msra.mxu0 0.0
    %10375 = vmatprep.subr.mxu0 0.0
    %10376 = vmatpush1.msra.mxu0 0.0
    %10377 = vmatprep.subr.mxu0 0.0
    %10378 = vmatpush1.msra.mxu0 0.0
    %10379 = vmatprep.subr.mxu0 0.0
    %v10380 = vand.u32 %v10173, 4294901760
    %v10381 = vsub.f32 %v10173, %v10380
    %10382 = vmatpush1.msra.mxu0 %v10381
    %10383 = vmatprep.subr.mxu0 0.0
    %v10384 = vand.u32 %v10172, 4294901760
    %v10385 = vsub.f32 %v10172, %v10384
    %10386 = vmatpush1.msra.mxu0 %v10385
    %10387 = vmatprep.subr.mxu0 0.0
    %v10388 = vand.u32 %v10171, 4294901760
    %v10389 = vsub.f32 %v10171, %v10388
    %10390 = vmatpush1.msra.mxu0 %v10389
    %10391 = vmatprep.subr.mxu0 0.0
    %v10392 = vand.u32 %v10170, 4294901760
    %v10393 = vsub.f32 %v10170, %v10392
    %10394 = vmatpush1.msra.mxu0 %v10393
    %10395 = vmatprep.subr.mxu0 0.0
    %v10396 = vand.u32 %v10169, 4294901760
    %v10397 = vsub.f32 %v10169, %v10396
    %10398 = vmatpush1.msra.mxu0 %v10397
    %10399 = vmatprep.subr.mxu0 0.0
    %v10400 = vand.u32 %v10168, 4294901760
    %v10401 = vsub.f32 %v10168, %v10400
    %10402 = vmatpush1.msra.mxu0 %v10401
    %10403 = vmatprep.subr.mxu0 0.0
    %10404 = vmatpush2.msra.mxu0 0.0
    %10405 = vmatprep.subr.mxu0 0.0
    %10406 = vmatpush2.msra.mxu0 0.0
    %10407 = vmatprep.subr.mxu0 0.0
    %10408 = vmatpush2.msra.mxu0 0.0
    %10409 = vmatprep.subr.mxu0 0.0
    %10410 = vmatpush2.msra.mxu0 0.0
    %10411 = vmatprep.subr.mxu0 0.0
    %10412 = vmatpush2.msra.mxu0 0.0
    %10413 = vmatprep.subr.mxu0 0.0
    %10414 = vmatpush2.msra.mxu0 0.0
    %10415 = vmatprep.subr.mxu0 0.0
    %10416 = vmatpush2.msra.mxu0 0.0
    %10417 = vmatprep.subr.mxu0 0.0
    %10418 = vmatpush2.msra.mxu0 0.0
    %10419 = vmatprep.subr.mxu0 0.0
    %10420 = vmatpush2.msra.mxu0 0.0
    %10421 = vmatprep.subr.mxu0 0.0
    %10422 = vmatpush2.msra.mxu0 0.0
    %10423 = vmatprep.subr.mxu0 0.0
    %10424 = vmatpush2.msra.mxu0 0.0
    %10425 = vmatprep.subr.mxu0 0.0
    %10426 = vmatpush2.msra.mxu0 0.0
    %10427 = vmatprep.subr.mxu0 0.0
    %10428 = vmatpush2.msra.mxu0 0.0
    %10429 = vmatprep.subr.mxu0 0.0
    %10430 = vmatpush2.msra.mxu0 0.0
    %10431 = vmatprep.subr.mxu0 0.0
    %10432 = vmatpush2.msra.mxu0 0.0
    %10433 = vmatprep.subr.mxu0 0.0
    %10434 = vmatpush2.msra.mxu0 0.0
    %10435 = vmatprep.mubr.f32.mxu0 0.0
    %v10436 = vand.u32 %v10175, 4294901760
    %v10437 = vsub.f32 %v10175, %v10436
    %10438 = vmatmul.mubr.f32.gmra.mxu0 %v10437
    %v10439 = vpop.f32.mrf.mxu0
    %v10440 = vadd.f32 %v10356, %v10439
    %v10441 = vpop.f32.mrf.mxu0
    %10442 = vdwg.mxu0
    %10443 = vmatprep.subr.mxu0 0.0
    %10444 = vmatpush1.msra.mxu0 0.0
    %10445 = vmatprep.subr.mxu0 0.0
    %10446 = vmatpush1.msra.mxu0 0.0
    %10447 = vmatprep.subr.mxu0 0.0
    %10448 = vmatpush1.msra.mxu0 0.0
    %10449 = vmatprep.subr.mxu0 0.0
    %10450 = vmatpush1.msra.mxu0 0.0
    %10451 = vmatprep.subr.mxu0 0.0
    %10452 = vmatpush1.msra.mxu0 0.0
    %10453 = vmatprep.subr.mxu0 0.0
    %10454 = vmatpush1.msra.mxu0 0.0
    %10455 = vmatprep.subr.mxu0 0.0
    %10456 = vmatpush1.msra.mxu0 0.0
    %10457 = vmatprep.subr.mxu0 0.0
    %10458 = vmatpush1.msra.mxu0 0.0
    %10459 = vmatprep.subr.mxu0 0.0
    %10460 = vmatpush1.msra.mxu0 0.0
    %10461 = vmatprep.subr.mxu0 0.0
    %10462 = vmatpush1.msra.mxu0 0.0
    %10463 = vmatprep.subr.mxu0 0.0
    %v10464 = vand.u32 %v10173, 4294901760
    %10465 = vmatpush1.msra.mxu0 %v10464
    %10466 = vmatprep.subr.mxu0 0.0
    %v10467 = vand.u32 %v10172, 4294901760
    %10468 = vmatpush1.msra.mxu0 %v10467
    %10469 = vmatprep.subr.mxu0 0.0
    %v10470 = vand.u32 %v10171, 4294901760
    %10471 = vmatpush1.msra.mxu0 %v10470
    %10472 = vmatprep.subr.mxu0 0.0
    %v10473 = vand.u32 %v10170, 4294901760
    %10474 = vmatpush1.msra.mxu0 %v10473
    %10475 = vmatprep.subr.mxu0 0.0
    %v10476 = vand.u32 %v10169, 4294901760
    %10477 = vmatpush1.msra.mxu0 %v10476
    %10478 = vmatprep.subr.mxu0 0.0
    %v10479 = vand.u32 %v10168, 4294901760
    %10480 = vmatpush1.msra.mxu0 %v10479
    %10481 = vmatprep.subr.mxu0 0.0
    %10482 = vmatpush2.msra.mxu0 0.0
    %10483 = vmatprep.subr.mxu0 0.0
    %10484 = vmatpush2.msra.mxu0 0.0
    %10485 = vmatprep.subr.mxu0 0.0
    %10486 = vmatpush2.msra.mxu0 0.0
    %10487 = vmatprep.subr.mxu0 0.0
    %10488 = vmatpush2.msra.mxu0 0.0
    %10489 = vmatprep.subr.mxu0 0.0
    %10490 = vmatpush2.msra.mxu0 0.0
    %10491 = vmatprep.subr.mxu0 0.0
    %10492 = vmatpush2.msra.mxu0 0.0
    %10493 = vmatprep.subr.mxu0 0.0
    %10494 = vmatpush2.msra.mxu0 0.0
    %10495 = vmatprep.subr.mxu0 0.0
    %10496 = vmatpush2.msra.mxu0 0.0
    %10497 = vmatprep.subr.mxu0 0.0
    %10498 = vmatpush2.msra.mxu0 0.0
    %10499 = vmatprep.subr.mxu0 0.0
    %10500 = vmatpush2.msra.mxu0 0.0
    %10501 = vmatprep.subr.mxu0 0.0
    %10502 = vmatpush2.msra.mxu0 0.0
    %10503 = vmatprep.subr.mxu0 0.0
    %10504 = vmatpush2.msra.mxu0 0.0
    %10505 = vmatprep.subr.mxu0 0.0
    %10506 = vmatpush2.msra.mxu0 0.0
    %10507 = vmatprep.subr.mxu0 0.0
    %10508 = vmatpush2.msra.mxu0 0.0
    %10509 = vmatprep.subr.mxu0 0.0
    %10510 = vmatpush2.msra.mxu0 0.0
    %10511 = vmatprep.subr.mxu0 0.0
    %10512 = vmatpush2.msra.mxu0 0.0
    %10513 = vmatprep.mubr.f32.mxu0 0.0
    %v10514 = vand.u32 %v10175, 4294901760
    %v10515 = vsub.f32 %v10175, %v10514
    %v10516 = vand.u32 %v10515, 4294901760
    %10517 = vmatmul.mubr.f32.gmra.mxu0 %v10516
    %v10518 = vpop.f32.mrf.mxu0
    %v10519 = vadd.f32 %v10440, %v10518
    %v10520 = vpop.f32.mrf.mxu0
    %10521 = vdwg.mxu0
    %10522 = vmatprep.subr.mxu0 0.0
    %10523 = vmatpush1.msra.mxu0 0.0
    %10524 = vmatprep.subr.mxu0 0.0
    %10525 = vmatpush1.msra.mxu0 0.0
    %10526 = vmatprep.subr.mxu0 0.0
    %10527 = vmatpush1.msra.mxu0 0.0
    %10528 = vmatprep.subr.mxu0 0.0
    %10529 = vmatpush1.msra.mxu0 0.0
    %10530 = vmatprep.subr.mxu0 0.0
    %10531 = vmatpush1.msra.mxu0 0.0
    %10532 = vmatprep.subr.mxu0 0.0
    %10533 = vmatpush1.msra.mxu0 0.0
    %10534 = vmatprep.subr.mxu0 0.0
    %10535 = vmatpush1.msra.mxu0 0.0
    %10536 = vmatprep.subr.mxu0 0.0
    %10537 = vmatpush1.msra.mxu0 0.0
    %10538 = vmatprep.subr.mxu0 0.0
    %10539 = vmatpush1.msra.mxu0 0.0
    %10540 = vmatprep.subr.mxu0 0.0
    %10541 = vmatpush1.msra.mxu0 0.0
    %10542 = vmatprep.subr.mxu0 0.0
    %v10543 = vand.u32 %v10173, 4294901760
    %v10544 = vsub.f32 %v10173, %v10543
    %v10545 = vand.u32 %v10544, 4294901760
    %10546 = vmatpush1.msra.mxu0 %v10545
    %10547 = vmatprep.subr.mxu0 0.0
    %v10548 = vand.u32 %v10172, 4294901760
    %v10549 = vsub.f32 %v10172, %v10548
    %v10550 = vand.u32 %v10549, 4294901760
    %10551 = vmatpush1.msra.mxu0 %v10550
    %10552 = vmatprep.subr.mxu0 0.0
    %v10553 = vand.u32 %v10171, 4294901760
    %v10554 = vsub.f32 %v10171, %v10553
    %v10555 = vand.u32 %v10554, 4294901760
    %10556 = vmatpush1.msra.mxu0 %v10555
    %10557 = vmatprep.subr.mxu0 0.0
    %v10558 = vand.u32 %v10170, 4294901760
    %v10559 = vsub.f32 %v10170, %v10558
    %v10560 = vand.u32 %v10559, 4294901760
    %10561 = vmatpush1.msra.mxu0 %v10560
    %10562 = vmatprep.subr.mxu0 0.0
    %v10563 = vand.u32 %v10169, 4294901760
    %v10564 = vsub.f32 %v10169, %v10563
    %v10565 = vand.u32 %v10564, 4294901760
    %10566 = vmatpush1.msra.mxu0 %v10565
    %10567 = vmatprep.subr.mxu0 0.0
    %v10568 = vand.u32 %v10168, 4294901760
    %v10569 = vsub.f32 %v10168, %v10568
    %v10570 = vand.u32 %v10569, 4294901760
    %10571 = vmatpush1.msra.mxu0 %v10570
    %10572 = vmatprep.subr.mxu0 0.0
    %10573 = vmatpush2.msra.mxu0 0.0
    %10574 = vmatprep.subr.mxu0 0.0
    %10575 = vmatpush2.msra.mxu0 0.0
    %10576 = vmatprep.subr.mxu0 0.0
    %10577 = vmatpush2.msra.mxu0 0.0
    %10578 = vmatprep.subr.mxu0 0.0
    %10579 = vmatpush2.msra.mxu0 0.0
    %10580 = vmatprep.subr.mxu0 0.0
    %10581 = vmatpush2.msra.mxu0 0.0
    %10582 = vmatprep.subr.mxu0 0.0
    %10583 = vmatpush2.msra.mxu0 0.0
    %10584 = vmatprep.subr.mxu0 0.0
    %10585 = vmatpush2.msra.mxu0 0.0
    %10586 = vmatprep.subr.mxu0 0.0
    %10587 = vmatpush2.msra.mxu0 0.0
    %10588 = vmatprep.subr.mxu0 0.0
    %10589 = vmatpush2.msra.mxu0 0.0
    %10590 = vmatprep.subr.mxu0 0.0
    %10591 = vmatpush2.msra.mxu0 0.0
    %10592 = vmatprep.subr.mxu0 0.0
    %10593 = vmatpush2.msra.mxu0 0.0
    %10594 = vmatprep.subr.mxu0 0.0
    %10595 = vmatpush2.msra.mxu0 0.0
    %10596 = vmatprep.subr.mxu0 0.0
    %10597 = vmatpush2.msra.mxu0 0.0
    %10598 = vmatprep.subr.mxu0 0.0
    %10599 = vmatpush2.msra.mxu0 0.0
    %10600 = vmatprep.subr.mxu0 0.0
    %10601 = vmatpush2.msra.mxu0 0.0
    %10602 = vmatprep.subr.mxu0 0.0
    %10603 = vmatpush2.msra.mxu0 0.0
    %10604 = vmatprep.mubr.f32.mxu0 0.0
    %v10605 = vand.u32 %v10175, 4294901760
    %10606 = vmatmul.mubr.f32.gmra.mxu0 %v10605
    %v10607 = vpop.f32.mrf.mxu0
    %v10608 = vadd.f32 %v10519, %v10607
    %v10609 = vpop.f32.mrf.mxu0
    %10610 = vdwg.mxu0
    %10611 = vmatprep.subr.mxu0 0.0
    %10612 = vmatpush1.msra.mxu0 0.0
    %10613 = vmatprep.subr.mxu0 0.0
    %10614 = vmatpush1.msra.mxu0 0.0
    %10615 = vmatprep.subr.mxu0 0.0
    %10616 = vmatpush1.msra.mxu0 0.0
    %10617 = vmatprep.subr.mxu0 0.0
    %10618 = vmatpush1.msra.mxu0 0.0
    %10619 = vmatprep.subr.mxu0 0.0
    %10620 = vmatpush1.msra.mxu0 0.0
    %10621 = vmatprep.subr.mxu0 0.0
    %10622 = vmatpush1.msra.mxu0 0.0
    %10623 = vmatprep.subr.mxu0 0.0
    %10624 = vmatpush1.msra.mxu0 0.0
    %10625 = vmatprep.subr.mxu0 0.0
    %10626 = vmatpush1.msra.mxu0 0.0
    %10627 = vmatprep.subr.mxu0 0.0
    %10628 = vmatpush1.msra.mxu0 0.0
    %10629 = vmatprep.subr.mxu0 0.0
    %10630 = vmatpush1.msra.mxu0 0.0
    %10631 = vmatprep.subr.mxu0 0.0
    %v10632 = vand.u32 %v10173, 4294901760
    %10633 = vmatpush1.msra.mxu0 %v10632
    %10634 = vmatprep.subr.mxu0 0.0
    %v10635 = vand.u32 %v10172, 4294901760
    %10636 = vmatpush1.msra.mxu0 %v10635
    %10637 = vmatprep.subr.mxu0 0.0
    %v10638 = vand.u32 %v10171, 4294901760
    %10639 = vmatpush1.msra.mxu0 %v10638
    %10640 = vmatprep.subr.mxu0 0.0
    %v10641 = vand.u32 %v10170, 4294901760
    %10642 = vmatpush1.msra.mxu0 %v10641
    %10643 = vmatprep.subr.mxu0 0.0
    %v10644 = vand.u32 %v10169, 4294901760
    %10645 = vmatpush1.msra.mxu0 %v10644
    %10646 = vmatprep.subr.mxu0 0.0
    %v10647 = vand.u32 %v10168, 4294901760
    %10648 = vmatpush1.msra.mxu0 %v10647
    %10649 = vmatprep.subr.mxu0 0.0
    %10650 = vmatpush2.msra.mxu0 0.0
    %10651 = vmatprep.subr.mxu0 0.0
    %10652 = vmatpush2.msra.mxu0 0.0
    %10653 = vmatprep.subr.mxu0 0.0
    %10654 = vmatpush2.msra.mxu0 0.0
    %10655 = vmatprep.subr.mxu0 0.0
    %10656 = vmatpush2.msra.mxu0 0.0
    %10657 = vmatprep.subr.mxu0 0.0
    %10658 = vmatpush2.msra.mxu0 0.0
    %10659 = vmatprep.subr.mxu0 0.0
    %10660 = vmatpush2.msra.mxu0 0.0
    %10661 = vmatprep.subr.mxu0 0.0
    %10662 = vmatpush2.msra.mxu0 0.0
    %10663 = vmatprep.subr.mxu0 0.0
    %10664 = vmatpush2.msra.mxu0 0.0
    %10665 = vmatprep.subr.mxu0 0.0
    %10666 = vmatpush2.msra.mxu0 0.0
    %10667 = vmatprep.subr.mxu0 0.0
    %10668 = vmatpush2.msra.mxu0 0.0
    %10669 = vmatprep.subr.mxu0 0.0
    %10670 = vmatpush2.msra.mxu0 0.0
    %10671 = vmatprep.subr.mxu0 0.0
    %10672 = vmatpush2.msra.mxu0 0.0
    %10673 = vmatprep.subr.mxu0 0.0
    %10674 = vmatpush2.msra.mxu0 0.0
    %10675 = vmatprep.subr.mxu0 0.0
    %10676 = vmatpush2.msra.mxu0 0.0
    %10677 = vmatprep.subr.mxu0 0.0
    %10678 = vmatpush2.msra.mxu0 0.0
    %10679 = vmatprep.subr.mxu0 0.0
    %10680 = vmatpush2.msra.mxu0 0.0
    %10681 = vmatprep.mubr.f32.mxu0 0.0
    %v10682 = vand.u32 %v10175, 4294901760
    %10683 = vmatmul.mubr.f32.gmra.mxu0 %v10682
    %v10684 = vpop.f32.mrf.mxu0
    %v10685 = vadd.f32 %v10608, %v10684
    %v10686 = vpop.f32.mrf.mxu0
    %10687 = vdwg.mxu0
    %v10688 = vld [vmem:[%s8] sm:$0x1]
    %v10690 = vlaneseq
    %v10691 = vshrl.u32 %v10690, 7
    %v10692 = vsub.s32 0, %v10691
    %v10693 = vrot.slane %v10688, %v10692
    %v10695 = vsel %vm9653, %v9637, 0
    %10697 = vmatprep.subr.mxu0 0.0
    %10698 = vmatpush1.msra.mxu0 0.0
    %10699 = vmatprep.subr.mxu0 0.0
    %10700 = vmatpush1.msra.mxu0 0.0
    %10701 = vmatprep.subr.mxu0 0.0
    %10702 = vmatpush1.msra.mxu0 0.0
    %10703 = vmatprep.subr.mxu0 0.0
    %10704 = vmatpush1.msra.mxu0 0.0
    %10705 = vmatprep.subr.mxu0 0.0
    %10706 = vmatpush1.msra.mxu0 0.0
    %10707 = vmatprep.subr.mxu0 0.0
    %10708 = vmatpush1.msra.mxu0 0.0
    %10709 = vmatprep.subr.mxu0 0.0
    %10710 = vmatpush1.msra.mxu0 0.0
    %10711 = vmatprep.subr.mxu0 0.0
    %10712 = vmatpush1.msra.mxu0 0.0
    %10713 = vmatprep.subr.mxu0 0.0
    %10714 = vmatpush1.msra.mxu0 0.0
    %10715 = vmatprep.subr.mxu0 0.0
    %10716 = vmatpush1.msra.mxu0 0.0
    %10717 = vmatprep.subr.mxu0 0.0
    %v10718 = vand.u32 %v9643, 4294901760
    %10719 = vmatpush1.msra.mxu0 %v10718
    %10720 = vmatprep.subr.mxu0 0.0
    %v10721 = vand.u32 %v9642, 4294901760
    %10722 = vmatpush1.msra.mxu0 %v10721
    %10723 = vmatprep.subr.mxu0 0.0
    %v10724 = vand.u32 %v9641, 4294901760
    %10725 = vmatpush1.msra.mxu0 %v10724
    %10726 = vmatprep.subr.mxu0 0.0
    %v10727 = vand.u32 %v9640, 4294901760
    %10728 = vmatpush1.msra.mxu0 %v10727
    %10729 = vmatprep.subr.mxu0 0.0
    %v10730 = vand.u32 %v9639, 4294901760
    %10731 = vmatpush1.msra.mxu0 %v10730
    %10732 = vmatprep.subr.mxu0 0.0
    %v10733 = vand.u32 %v9638, 4294901760
    %10734 = vmatpush1.msra.mxu0 %v10733
    %10735 = vmatprep.subr.mxu0 0.0
    %10736 = vmatpush2.msra.mxu0 0.0
    %10737 = vmatprep.subr.mxu0 0.0
    %10738 = vmatpush2.msra.mxu0 0.0
    %10739 = vmatprep.subr.mxu0 0.0
    %10740 = vmatpush2.msra.mxu0 0.0
    %10741 = vmatprep.subr.mxu0 0.0
    %10742 = vmatpush2.msra.mxu0 0.0
    %10743 = vmatprep.subr.mxu0 0.0
    %10744 = vmatpush2.msra.mxu0 0.0
    %10745 = vmatprep.subr.mxu0 0.0
    %10746 = vmatpush2.msra.mxu0 0.0
    %10747 = vmatprep.subr.mxu0 0.0
    %10748 = vmatpush2.msra.mxu0 0.0
    %10749 = vmatprep.subr.mxu0 0.0
    %10750 = vmatpush2.msra.mxu0 0.0
    %10751 = vmatprep.subr.mxu0 0.0
    %10752 = vmatpush2.msra.mxu0 0.0
    %10753 = vmatprep.subr.mxu0 0.0
    %10754 = vmatpush2.msra.mxu0 0.0
    %10755 = vmatprep.subr.mxu0 0.0
    %10756 = vmatpush2.msra.mxu0 0.0
    %10757 = vmatprep.subr.mxu0 0.0
    %10758 = vmatpush2.msra.mxu0 0.0
    %10759 = vmatprep.subr.mxu0 0.0
    %10760 = vmatpush2.msra.mxu0 0.0
    %10761 = vmatprep.subr.mxu0 0.0
    %10762 = vmatpush2.msra.mxu0 0.0
    %10763 = vmatprep.subr.mxu0 0.0
    %10764 = vmatpush2.msra.mxu0 0.0
    %10765 = vmatprep.subr.mxu0 0.0
    %10766 = vmatpush2.msra.mxu0 0.0
    %10767 = vmatprep.mubr.f32.mxu0 0.0
    %v10768 = vand.u32 %v10695, 4294901760
    %v10769 = vsub.f32 %v10695, %v10768
    %v10770 = vand.u32 %v10769, 4294901760
    %v10771 = vsub.f32 %v10769, %v10770
    %v10772 = vand.u32 %v10771, 4294901760
    %10773 = vmatmul.mubr.f32.gmra.mxu0 %v10772
    %v10774 = vpop.f32.mrf.mxu0
    %v10775 = vadd.f32 %v10164, %v10774
    %v10776 = vpop.f32.mrf.mxu0
    %10777 = vdwg.mxu0
    %10778 = vmatprep.subr.mxu0 0.0
    %10779 = vmatpush1.msra.mxu0 0.0
    %10780 = vmatprep.subr.mxu0 0.0
    %10781 = vmatpush1.msra.mxu0 0.0
    %10782 = vmatprep.subr.mxu0 0.0
    %10783 = vmatpush1.msra.mxu0 0.0
    %10784 = vmatprep.subr.mxu0 0.0
    %10785 = vmatpush1.msra.mxu0 0.0
    %10786 = vmatprep.subr.mxu0 0.0
    %10787 = vmatpush1.msra.mxu0 0.0
    %10788 = vmatprep.subr.mxu0 0.0
    %10789 = vmatpush1.msra.mxu0 0.0
    %10790 = vmatprep.subr.mxu0 0.0
    %10791 = vmatpush1.msra.mxu0 0.0
    %10792 = vmatprep.subr.mxu0 0.0
    %10793 = vmatpush1.msra.mxu0 0.0
    %10794 = vmatprep.subr.mxu0 0.0
    %10795 = vmatpush1.msra.mxu0 0.0
    %10796 = vmatprep.subr.mxu0 0.0
    %10797 = vmatpush1.msra.mxu0 0.0
    %10798 = vmatprep.subr.mxu0 0.0
    %v10799 = vand.u32 %v9643, 4294901760
    %v10800 = vsub.f32 %v9643, %v10799
    %v10801 = vand.u32 %v10800, 4294901760
    %v10802 = vsub.f32 %v10800, %v10801
    %v10803 = vand.u32 %v10802, 4294901760
    %10804 = vmatpush1.msra.mxu0 %v10803
    %10805 = vmatprep.subr.mxu0 0.0
    %v10806 = vand.u32 %v9642, 4294901760
    %v10807 = vsub.f32 %v9642, %v10806
    %v10808 = vand.u32 %v10807, 4294901760
    %v10809 = vsub.f32 %v10807, %v10808
    %v10810 = vand.u32 %v10809, 4294901760
    %10811 = vmatpush1.msra.mxu0 %v10810
    %10812 = vmatprep.subr.mxu0 0.0
    %v10813 = vand.u32 %v9641, 4294901760
    %v10814 = vsub.f32 %v9641, %v10813
    %v10815 = vand.u32 %v10814, 4294901760
    %v10816 = vsub.f32 %v10814, %v10815
    %v10817 = vand.u32 %v10816, 4294901760
    %10818 = vmatpush1.msra.mxu0 %v10817
    %10819 = vmatprep.subr.mxu0 0.0
    %v10820 = vand.u32 %v9640, 4294901760
    %v10821 = vsub.f32 %v9640, %v10820
    %v10822 = vand.u32 %v10821, 4294901760
    %v10823 = vsub.f32 %v10821, %v10822
    %v10824 = vand.u32 %v10823, 4294901760
    %10825 = vmatpush1.msra.mxu0 %v10824
    %10826 = vmatprep.subr.mxu0 0.0
    %v10827 = vand.u32 %v9639, 4294901760
    %v10828 = vsub.f32 %v9639, %v10827
    %v10829 = vand.u32 %v10828, 4294901760
    %v10830 = vsub.f32 %v10828, %v10829
    %v10831 = vand.u32 %v10830, 4294901760
    %10832 = vmatpush1.msra.mxu0 %v10831
    %10833 = vmatprep.subr.mxu0 0.0
    %v10834 = vand.u32 %v9638, 4294901760
    %v10835 = vsub.f32 %v9638, %v10834
    %v10836 = vand.u32 %v10835, 4294901760
    %v10837 = vsub.f32 %v10835, %v10836
    %v10838 = vand.u32 %v10837, 4294901760
    %10839 = vmatpush1.msra.mxu0 %v10838
    %10840 = vmatprep.subr.mxu0 0.0
    %10841 = vmatpush2.msra.mxu0 0.0
    %10842 = vmatprep.subr.mxu0 0.0
    %10843 = vmatpush2.msra.mxu0 0.0
    %10844 = vmatprep.subr.mxu0 0.0
    %10845 = vmatpush2.msra.mxu0 0.0
    %10846 = vmatprep.subr.mxu0 0.0
    %10847 = vmatpush2.msra.mxu0 0.0
    %10848 = vmatprep.subr.mxu0 0.0
    %10849 = vmatpush2.msra.mxu0 0.0
    %10850 = vmatprep.subr.mxu0 0.0
    %10851 = vmatpush2.msra.mxu0 0.0
    %10852 = vmatprep.subr.mxu0 0.0
    %10853 = vmatpush2.msra.mxu0 0.0
    %10854 = vmatprep.subr.mxu0 0.0
    %10855 = vmatpush2.msra.mxu0 0.0
    %10856 = vmatprep.subr.mxu0 0.0
    %10857 = vmatpush2.msra.mxu0 0.0
    %10858 = vmatprep.subr.mxu0 0.0
    %10859 = vmatpush2.msra.mxu0 0.0
    %10860 = vmatprep.subr.mxu0 0.0
    %10861 = vmatpush2.msra.mxu0 0.0
    %10862 = vmatprep.subr.mxu0 0.0
    %10863 = vmatpush2.msra.mxu0 0.0
    %10864 = vmatprep.subr.mxu0 0.0
    %10865 = vmatpush2.msra.mxu0 0.0
    %10866 = vmatprep.subr.mxu0 0.0
    %10867 = vmatpush2.msra.mxu0 0.0
    %10868 = vmatprep.subr.mxu0 0.0
    %10869 = vmatpush2.msra.mxu0 0.0
    %10870 = vmatprep.subr.mxu0 0.0
    %10871 = vmatpush2.msra.mxu0 0.0
    %10872 = vmatprep.mubr.f32.mxu0 0.0
    %v10873 = vand.u32 %v10695, 4294901760
    %10874 = vmatmul.mubr.f32.gmra.mxu0 %v10873
    %v10875 = vpop.f32.mrf.mxu0
    %v10876 = vadd.f32 %v10775, %v10875
    %v10877 = vpop.f32.mrf.mxu0
    %10878 = vdwg.mxu0
    %10879 = vmatprep.subr.mxu0 0.0
    %10880 = vmatpush1.msra.mxu0 0.0
    %10881 = vmatprep.subr.mxu0 0.0
    %10882 = vmatpush1.msra.mxu0 0.0
    %10883 = vmatprep.subr.mxu0 0.0
    %10884 = vmatpush1.msra.mxu0 0.0
    %10885 = vmatprep.subr.mxu0 0.0
    %10886 = vmatpush1.msra.mxu0 0.0
    %10887 = vmatprep.subr.mxu0 0.0
    %10888 = vmatpush1.msra.mxu0 0.0
    %10889 = vmatprep.subr.mxu0 0.0
    %10890 = vmatpush1.msra.mxu0 0.0
    %10891 = vmatprep.subr.mxu0 0.0
    %10892 = vmatpush1.msra.mxu0 0.0
    %10893 = vmatprep.subr.mxu0 0.0
    %10894 = vmatpush1.msra.mxu0 0.0
    %10895 = vmatprep.subr.mxu0 0.0
    %10896 = vmatpush1.msra.mxu0 0.0
    %10897 = vmatprep.subr.mxu0 0.0
    %10898 = vmatpush1.msra.mxu0 0.0
    %10899 = vmatprep.subr.mxu0 0.0
    %v10900 = vand.u32 %v9643, 4294901760
    %v10901 = vsub.f32 %v9643, %v10900
    %10902 = vmatpush1.msra.mxu0 %v10901
    %10903 = vmatprep.subr.mxu0 0.0
    %v10904 = vand.u32 %v9642, 4294901760
    %v10905 = vsub.f32 %v9642, %v10904
    %10906 = vmatpush1.msra.mxu0 %v10905
    %10907 = vmatprep.subr.mxu0 0.0
    %v10908 = vand.u32 %v9641, 4294901760
    %v10909 = vsub.f32 %v9641, %v10908
    %10910 = vmatpush1.msra.mxu0 %v10909
    %10911 = vmatprep.subr.mxu0 0.0
    %v10912 = vand.u32 %v9640, 4294901760
    %v10913 = vsub.f32 %v9640, %v10912
    %10914 = vmatpush1.msra.mxu0 %v10913
    %10915 = vmatprep.subr.mxu0 0.0
    %v10916 = vand.u32 %v9639, 4294901760
    %v10917 = vsub.f32 %v9639, %v10916
    %10918 = vmatpush1.msra.mxu0 %v10917
    %10919 = vmatprep.subr.mxu0 0.0
    %v10920 = vand.u32 %v9638, 4294901760
    %v10921 = vsub.f32 %v9638, %v10920
    %10922 = vmatpush1.msra.mxu0 %v10921
    %10923 = vmatprep.subr.mxu0 0.0
    %10924 = vmatpush2.msra.mxu0 0.0
    %10925 = vmatprep.subr.mxu0 0.0
    %10926 = vmatpush2.msra.mxu0 0.0
    %10927 = vmatprep.subr.mxu0 0.0
    %10928 = vmatpush2.msra.mxu0 0.0
    %10929 = vmatprep.subr.mxu0 0.0
    %10930 = vmatpush2.msra.mxu0 0.0
    %10931 = vmatprep.subr.mxu0 0.0
    %10932 = vmatpush2.msra.mxu0 0.0
    %10933 = vmatprep.subr.mxu0 0.0
    %10934 = vmatpush2.msra.mxu0 0.0
    %10935 = vmatprep.subr.mxu0 0.0
    %10936 = vmatpush2.msra.mxu0 0.0
    %10937 = vmatprep.subr.mxu0 0.0
    %10938 = vmatpush2.msra.mxu0 0.0
    %10939 = vmatprep.subr.mxu0 0.0
    %10940 = vmatpush2.msra.mxu0 0.0
    %10941 = vmatprep.subr.mxu0 0.0
    %10942 = vmatpush2.msra.mxu0 0.0
    %10943 = vmatprep.subr.mxu0 0.0
    %10944 = vmatpush2.msra.mxu0 0.0
    %10945 = vmatprep.subr.mxu0 0.0
    %10946 = vmatpush2.msra.mxu0 0.0
    %10947 = vmatprep.subr.mxu0 0.0
    %10948 = vmatpush2.msra.mxu0 0.0
    %10949 = vmatprep.subr.mxu0 0.0
    %10950 = vmatpush2.msra.mxu0 0.0
    %10951 = vmatprep.subr.mxu0 0.0
    %10952 = vmatpush2.msra.mxu0 0.0
    %10953 = vmatprep.subr.mxu0 0.0
    %10954 = vmatpush2.msra.mxu0 0.0
    %10955 = vmatprep.mubr.f32.mxu0 0.0
    %v10956 = vand.u32 %v10695, 4294901760
    %v10957 = vsub.f32 %v10695, %v10956
    %10958 = vmatmul.mubr.f32.gmra.mxu0 %v10957
    %v10959 = vpop.f32.mrf.mxu0
    %v10960 = vadd.f32 %v10876, %v10959
    %v10961 = vpop.f32.mrf.mxu0
    %10962 = vdwg.mxu0
    %10963 = vmatprep.subr.mxu0 0.0
    %10964 = vmatpush1.msra.mxu0 0.0
    %10965 = vmatprep.subr.mxu0 0.0
    %10966 = vmatpush1.msra.mxu0 0.0
    %10967 = vmatprep.subr.mxu0 0.0
    %10968 = vmatpush1.msra.mxu0 0.0
    %10969 = vmatprep.subr.mxu0 0.0
    %10970 = vmatpush1.msra.mxu0 0.0
    %10971 = vmatprep.subr.mxu0 0.0
    %10972 = vmatpush1.msra.mxu0 0.0
    %10973 = vmatprep.subr.mxu0 0.0
    %10974 = vmatpush1.msra.mxu0 0.0
    %10975 = vmatprep.subr.mxu0 0.0
    %10976 = vmatpush1.msra.mxu0 0.0
    %10977 = vmatprep.subr.mxu0 0.0
    %10978 = vmatpush1.msra.mxu0 0.0
    %10979 = vmatprep.subr.mxu0 0.0
    %10980 = vmatpush1.msra.mxu0 0.0
    %10981 = vmatprep.subr.mxu0 0.0
    %10982 = vmatpush1.msra.mxu0 0.0
    %10983 = vmatprep.subr.mxu0 0.0
    %v10984 = vand.u32 %v9643, 4294901760
    %10985 = vmatpush1.msra.mxu0 %v10984
    %10986 = vmatprep.subr.mxu0 0.0
    %v10987 = vand.u32 %v9642, 4294901760
    %10988 = vmatpush1.msra.mxu0 %v10987
    %10989 = vmatprep.subr.mxu0 0.0
    %v10990 = vand.u32 %v9641, 4294901760
    %10991 = vmatpush1.msra.mxu0 %v10990
    %10992 = vmatprep.subr.mxu0 0.0
    %v10993 = vand.u32 %v9640, 4294901760
    %10994 = vmatpush1.msra.mxu0 %v10993
    %10995 = vmatprep.subr.mxu0 0.0
    %v10996 = vand.u32 %v9639, 4294901760
    %10997 = vmatpush1.msra.mxu0 %v10996
    %10998 = vmatprep.subr.mxu0 0.0
    %v10999 = vand.u32 %v9638, 4294901760
    %11000 = vmatpush1.msra.mxu0 %v10999
    %11001 = vmatprep.subr.mxu0 0.0
    %11002 = vmatpush2.msra.mxu0 0.0
    %11003 = vmatprep.subr.mxu0 0.0
    %11004 = vmatpush2.msra.mxu0 0.0
    %11005 = vmatprep.subr.mxu0 0.0
    %11006 = vmatpush2.msra.mxu0 0.0
    %11007 = vmatprep.subr.mxu0 0.0
    %11008 = vmatpush2.msra.mxu0 0.0
    %11009 = vmatprep.subr.mxu0 0.0
    %11010 = vmatpush2.msra.mxu0 0.0
    %11011 = vmatprep.subr.mxu0 0.0
    %11012 = vmatpush2.msra.mxu0 0.0
    %11013 = vmatprep.subr.mxu0 0.0
    %11014 = vmatpush2.msra.mxu0 0.0
    %11015 = vmatprep.subr.mxu0 0.0
    %11016 = vmatpush2.msra.mxu0 0.0
    %11017 = vmatprep.subr.mxu0 0.0
    %11018 = vmatpush2.msra.mxu0 0.0
    %11019 = vmatprep.subr.mxu0 0.0
    %11020 = vmatpush2.msra.mxu0 0.0
    %11021 = vmatprep.subr.mxu0 0.0
    %11022 = vmatpush2.msra.mxu0 0.0
    %11023 = vmatprep.subr.mxu0 0.0
    %11024 = vmatpush2.msra.mxu0 0.0
    %11025 = vmatprep.subr.mxu0 0.0
    %11026 = vmatpush2.msra.mxu0 0.0
    %11027 = vmatprep.subr.mxu0 0.0
    %11028 = vmatpush2.msra.mxu0 0.0
    %11029 = vmatprep.subr.mxu0 0.0
    %11030 = vmatpush2.msra.mxu0 0.0
    %11031 = vmatprep.subr.mxu0 0.0
    %11032 = vmatpush2.msra.mxu0 0.0
    %11033 = vmatprep.mubr.f32.mxu0 0.0
    %v11034 = vand.u32 %v10695, 4294901760
    %v11035 = vsub.f32 %v10695, %v11034
    %v11036 = vand.u32 %v11035, 4294901760
    %11037 = vmatmul.mubr.f32.gmra.mxu0 %v11036
    %v11038 = vpop.f32.mrf.mxu0
    %v11039 = vadd.f32 %v10960, %v11038
    %v11040 = vpop.f32.mrf.mxu0
    %11041 = vdwg.mxu0
    %11042 = vmatprep.subr.mxu0 0.0
    %11043 = vmatpush1.msra.mxu0 0.0
    %11044 = vmatprep.subr.mxu0 0.0
    %11045 = vmatpush1.msra.mxu0 0.0
    %11046 = vmatprep.subr.mxu0 0.0
    %11047 = vmatpush1.msra.mxu0 0.0
    %11048 = vmatprep.subr.mxu0 0.0
    %11049 = vmatpush1.msra.mxu0 0.0
    %11050 = vmatprep.subr.mxu0 0.0
    %11051 = vmatpush1.msra.mxu0 0.0
    %11052 = vmatprep.subr.mxu0 0.0
    %11053 = vmatpush1.msra.mxu0 0.0
    %11054 = vmatprep.subr.mxu0 0.0
    %11055 = vmatpush1.msra.mxu0 0.0
    %11056 = vmatprep.subr.mxu0 0.0
    %11057 = vmatpush1.msra.mxu0 0.0
    %11058 = vmatprep.subr.mxu0 0.0
    %11059 = vmatpush1.msra.mxu0 0.0
    %11060 = vmatprep.subr.mxu0 0.0
    %11061 = vmatpush1.msra.mxu0 0.0
    %11062 = vmatprep.subr.mxu0 0.0
    %v11063 = vand.u32 %v9643, 4294901760
    %v11064 = vsub.f32 %v9643, %v11063
    %v11065 = vand.u32 %v11064, 4294901760
    %11066 = vmatpush1.msra.mxu0 %v11065
    %11067 = vmatprep.subr.mxu0 0.0
    %v11068 = vand.u32 %v9642, 4294901760
    %v11069 = vsub.f32 %v9642, %v11068
    %v11070 = vand.u32 %v11069, 4294901760
    %11071 = vmatpush1.msra.mxu0 %v11070
    %11072 = vmatprep.subr.mxu0 0.0
    %v11073 = vand.u32 %v9641, 4294901760
    %v11074 = vsub.f32 %v9641, %v11073
    %v11075 = vand.u32 %v11074, 4294901760
    %11076 = vmatpush1.msra.mxu0 %v11075
    %11077 = vmatprep.subr.mxu0 0.0
    %v11078 = vand.u32 %v9640, 4294901760
    %v11079 = vsub.f32 %v9640, %v11078
    %v11080 = vand.u32 %v11079, 4294901760
    %11081 = vmatpush1.msra.mxu0 %v11080
    %11082 = vmatprep.subr.mxu0 0.0
    %v11083 = vand.u32 %v9639, 4294901760
    %v11084 = vsub.f32 %v9639, %v11083
    %v11085 = vand.u32 %v11084, 4294901760
    %11086 = vmatpush1.msra.mxu0 %v11085
    %11087 = vmatprep.subr.mxu0 0.0
    %v11088 = vand.u32 %v9638, 4294901760
    %v11089 = vsub.f32 %v9638, %v11088
    %v11090 = vand.u32 %v11089, 4294901760
    %11091 = vmatpush1.msra.mxu0 %v11090
    %11092 = vmatprep.subr.mxu0 0.0
    %11093 = vmatpush2.msra.mxu0 0.0
    %11094 = vmatprep.subr.mxu0 0.0
    %11095 = vmatpush2.msra.mxu0 0.0
    %11096 = vmatprep.subr.mxu0 0.0
    %11097 = vmatpush2.msra.mxu0 0.0
    %11098 = vmatprep.subr.mxu0 0.0
    %11099 = vmatpush2.msra.mxu0 0.0
    %11100 = vmatprep.subr.mxu0 0.0
    %11101 = vmatpush2.msra.mxu0 0.0
    %11102 = vmatprep.subr.mxu0 0.0
    %11103 = vmatpush2.msra.mxu0 0.0
    %11104 = vmatprep.subr.mxu0 0.0
    %11105 = vmatpush2.msra.mxu0 0.0
    %11106 = vmatprep.subr.mxu0 0.0
    %11107 = vmatpush2.msra.mxu0 0.0
    %11108 = vmatprep.subr.mxu0 0.0
    %11109 = vmatpush2.msra.mxu0 0.0
    %11110 = vmatprep.subr.mxu0 0.0
    %11111 = vmatpush2.msra.mxu0 0.0
    %11112 = vmatprep.subr.mxu0 0.0
    %11113 = vmatpush2.msra.mxu0 0.0
    %11114 = vmatprep.subr.mxu0 0.0
    %11115 = vmatpush2.msra.mxu0 0.0
    %11116 = vmatprep.subr.mxu0 0.0
    %11117 = vmatpush2.msra.mxu0 0.0
    %11118 = vmatprep.subr.mxu0 0.0
    %11119 = vmatpush2.msra.mxu0 0.0
    %11120 = vmatprep.subr.mxu0 0.0
    %11121 = vmatpush2.msra.mxu0 0.0
    %11122 = vmatprep.subr.mxu0 0.0
    %11123 = vmatpush2.msra.mxu0 0.0
    %11124 = vmatprep.mubr.f32.mxu0 0.0
    %v11125 = vand.u32 %v10695, 4294901760
    %11126 = vmatmul.mubr.f32.gmra.mxu0 %v11125
    %v11127 = vpop.f32.mrf.mxu0
    %v11128 = vadd.f32 %v11039, %v11127
    %v11129 = vpop.f32.mrf.mxu0
    %11130 = vdwg.mxu0
    %11131 = vmatprep.subr.mxu0 0.0
    %11132 = vmatpush1.msra.mxu0 0.0
    %11133 = vmatprep.subr.mxu0 0.0
    %11134 = vmatpush1.msra.mxu0 0.0
    %11135 = vmatprep.subr.mxu0 0.0
    %11136 = vmatpush1.msra.mxu0 0.0
    %11137 = vmatprep.subr.mxu0 0.0
    %11138 = vmatpush1.msra.mxu0 0.0
    %11139 = vmatprep.subr.mxu0 0.0
    %11140 = vmatpush1.msra.mxu0 0.0
    %11141 = vmatprep.subr.mxu0 0.0
    %11142 = vmatpush1.msra.mxu0 0.0
    %11143 = vmatprep.subr.mxu0 0.0
    %11144 = vmatpush1.msra.mxu0 0.0
    %11145 = vmatprep.subr.mxu0 0.0
    %11146 = vmatpush1.msra.mxu0 0.0
    %11147 = vmatprep.subr.mxu0 0.0
    %11148 = vmatpush1.msra.mxu0 0.0
    %11149 = vmatprep.subr.mxu0 0.0
    %11150 = vmatpush1.msra.mxu0 0.0
    %11151 = vmatprep.subr.mxu0 0.0
    %v11152 = vand.u32 %v9643, 4294901760
    %11153 = vmatpush1.msra.mxu0 %v11152
    %11154 = vmatprep.subr.mxu0 0.0
    %v11155 = vand.u32 %v9642, 4294901760
    %11156 = vmatpush1.msra.mxu0 %v11155
    %11157 = vmatprep.subr.mxu0 0.0
    %v11158 = vand.u32 %v9641, 4294901760
    %11159 = vmatpush1.msra.mxu0 %v11158
    %11160 = vmatprep.subr.mxu0 0.0
    %v11161 = vand.u32 %v9640, 4294901760
    %11162 = vmatpush1.msra.mxu0 %v11161
    %11163 = vmatprep.subr.mxu0 0.0
    %v11164 = vand.u32 %v9639, 4294901760
    %11165 = vmatpush1.msra.mxu0 %v11164
    %11166 = vmatprep.subr.mxu0 0.0
    %v11167 = vand.u32 %v9638, 4294901760
    %11168 = vmatpush1.msra.mxu0 %v11167
    %11169 = vmatprep.subr.mxu0 0.0
    %11170 = vmatpush2.msra.mxu0 0.0
    %11171 = vmatprep.subr.mxu0 0.0
    %11172 = vmatpush2.msra.mxu0 0.0
    %11173 = vmatprep.subr.mxu0 0.0
    %11174 = vmatpush2.msra.mxu0 0.0
    %11175 = vmatprep.subr.mxu0 0.0
    %11176 = vmatpush2.msra.mxu0 0.0
    %11177 = vmatprep.subr.mxu0 0.0
    %11178 = vmatpush2.msra.mxu0 0.0
    %11179 = vmatprep.subr.mxu0 0.0
    %11180 = vmatpush2.msra.mxu0 0.0
    %11181 = vmatprep.subr.mxu0 0.0
    %11182 = vmatpush2.msra.mxu0 0.0
    %11183 = vmatprep.subr.mxu0 0.0
    %11184 = vmatpush2.msra.mxu0 0.0
    %11185 = vmatprep.subr.mxu0 0.0
    %11186 = vmatpush2.msra.mxu0 0.0
    %11187 = vmatprep.subr.mxu0 0.0
    %11188 = vmatpush2.msra.mxu0 0.0
    %11189 = vmatprep.subr.mxu0 0.0
    %11190 = vmatpush2.msra.mxu0 0.0
    %11191 = vmatprep.subr.mxu0 0.0
    %11192 = vmatpush2.msra.mxu0 0.0
    %11193 = vmatprep.subr.mxu0 0.0
    %11194 = vmatpush2.msra.mxu0 0.0
    %11195 = vmatprep.subr.mxu0 0.0
    %11196 = vmatpush2.msra.mxu0 0.0
    %11197 = vmatprep.subr.mxu0 0.0
    %11198 = vmatpush2.msra.mxu0 0.0
    %11199 = vmatprep.subr.mxu0 0.0
    %11200 = vmatpush2.msra.mxu0 0.0
    %11201 = vmatprep.mubr.f32.mxu0 0.0
    %v11202 = vand.u32 %v10695, 4294901760
    %11203 = vmatmul.mubr.f32.gmra.mxu0 %v11202
    %v11204 = vpop.f32.mrf.mxu0
    %v11205 = vadd.f32 %v11128, %v11204
    %v11206 = vpop.f32.mrf.mxu0
    %11207 = vdwg.mxu0
    %v11208 = vadd.f32 %v11205, %v10685
    %v11209 = vadd.f32 %v10693, %v11208
    %vm11210 = vcmp.gt.f32.partialorder %v11209, 0.0
    %v11211 = vmin.f32 %v11209, 0.0
    %v11212 = vmul.f32 %v11211, 1.442695
    %v11213 = vpow.pop %v11212
    %v11214 = vsub.f32 %v11213, 1.0
    %v11215 = vsel %vm11210, %v11209, %v11214
    %11216 = vst [vmem:[#allocation8] sm:$0x3] %v11215
    // Predicated region
    $region50: #{fwd.1} parent=1 // pred_check
      _
    $region51: #{fwd.1} parent=1 // pred_check_branch
      %11218 = sbr.rel (0) target = $region53
    $region52: #{fwd.1} parent=1 // pred_region
      %s11220 = ssub.s32 32, 32
      %11221 = vsyncadd [#allocation4], %s11220
      %s11223 = sshll.u32 [#allocation8], 4
      %s11224 = int_to_ptr.vmem [resolvable:$true] %s11223
      %11226 = dma.vmem_to_hbm [thread:$0]  %s11224, 32, %s9, [#allocation4]
    $region53: #{fwd.1} parent=1 // pred_fallthru
      _
    // Predicated region
    $region54: #{fwd.1} parent=1 // pred_check
      _
    $region55: #{fwd.1} parent=1 // pred_check_branch
      %11228 = sbr.rel (0) target = $region57
    $region56: #{fwd.1} parent=1 // pred_region
      %11229 = dma.done [#allocation4], 32
    $region57: #{fwd.1} parent=1 // pred_fallthru
      _
    %11230 = vsyncpa [#allocation3], 1
    %11231 = vsyncpa [#allocation6], 1
    %11232 = vsyncpa [#allocation4], 1

</llo_original>
